<compile_context>
chip_gen: v6e
topology: v6e:2x2x1
jax: 0.10.0
libtpu: 0.0.40
codegen_flags: <defaults>
</compile_context>

<pallas_src>
import functools

import jax
import jax.numpy as jnp
import numpy as np
from jax.experimental import pallas as pl
from jax.experimental.pallas import tpu as pltpu


# ----------------------------------------------------------------------------
# Kernel 1: encoder (cross-attention + joint attention + tanh interaction).
# One grid step == TB batch elements.  Weights are shared blocks (index map
# returns (0, 0) every step, so they stay resident in VMEM).
# ----------------------------------------------------------------------------
def _encoder_kernel(
    pe_ref, pf_ref, cf_ref,
    w_eq_ref, b_eq_ref,
    w_kv_ref, b_kv_ref, w_fc_ref, b_fc_ref,
    w_jp_ref, b_jp_ref, w_jc_ref, b_jc_ref,
    cp_ref,
    *, interaction_bf16):
  f32 = jnp.float32
  bf16 = jnp.bfloat16
  dot = functools.partial(jnp.dot, preferred_element_type=f32)

  tb, lp, e_dim = pe_ref.shape
  _, n_p, d = pf_ref.shape
  _, n_c, _ = cf_ref.shape

  pe = pe_ref[...]                                   # [TB, Lp, E]  bf16
  pf = pf_ref[...]                                   # [TB, Np, D]  bf16
  cf = cf_ref[...]                                   # [TB, Nc, D]  bf16

  # Fused (embedding_fc -> w_q -> 1/sqrt(D)) projection; folded in the wrapper.
  # Batch tile flattened into the matmul M dimension; bf16 operands, f32 acc.
  pe2 = pe.reshape(tb * lp, e_dim)
  q = dot(pe2, w_eq_ref[...]) + b_eq_ref[...]                          # [TB*Lp, D] (pre-scaled)

  pf2 = pf.reshape(tb * n_p, d)
  kv = dot(pf2, w_kv_ref[...]) + b_kv_ref[...]                         # [TB*Np, 2D]
  k3 = kv[:, :d].reshape(tb, n_p, d)
  v3 = kv[:, d:].reshape(tb, n_p, d)
  q3 = q.reshape(tb, lp, d)

  # Cross-attention, n_heads == 1.  Contract last dims directly — no k.T.
  # TODO(synk): flash-style streaming over Np if real sequence lengths are
  # large; at small Lp/Np the lever is TB, not the attention math.
  energy = jnp.einsum("bqd,bkd->bqk", q3.astype(bf16), k3.astype(bf16),
                      preferred_element_type=f32)                      # [TB,Lp,Np]
  m = jnp.max(energy, axis=-1, keepdims=True)
  e = jnp.exp(energy - m)
  attn = e * pl.reciprocal(jnp.sum(e, axis=-1, keepdims=True), approx=True)
  ctx = jnp.einsum("bqk,bkd->bqd", attn.astype(bf16), v3.astype(bf16),
                   preferred_element_type=f32)                         # [TB,Lp,D]
  prot_feats = dot(ctx.reshape(tb * lp, d).astype(bf16),
                   w_fc_ref[...]) + b_fc_ref[...]                      # [TB*Lp, D]

  # Joint attention: sigmoid(jp @ jc^T), normalized by its per-batch sum.
  jp = dot(jnp.maximum(prot_feats, 0.0).astype(bf16),
           w_jp_ref[...]) + b_jp_ref[...]                              # [TB*Lp, D]
  jc = dot(jnp.maximum(cf.reshape(tb * n_c, d), 0.0),
           w_jc_ref[...]) + b_jc_ref[...]                              # [TB*Nc, D]
  logits = jnp.einsum("bij,bkj->bik",
                      jp.reshape(tb, lp, d).astype(bf16),
                      jc.reshape(tb, n_c, d).astype(bf16),
                      preferred_element_type=f32)                      # [TB,Lp,Nc]
  if interaction_bf16:
    inter = jax.nn.sigmoid(logits.astype(bf16)).astype(f32)
  else:
    inter = jax.nn.sigmoid(logits)
  s = jnp.sum(jnp.sum(inter, axis=2, keepdims=True), axis=1, keepdims=True)
  inter = inter * pl.reciprocal(s)      # exact reciprocal (one scalar per batch)

  # cp[b,d] = sum_{i,j} tanh(prot_feats[b,i,d] * cf[b,j,d]) * inter[b,i,j]
  # EUP/VPU reduction: accumulate into a [TB,Lp,D] f32 buffer, single
  # cross-sublane reduce at the end.  tanh in bf16 on v6e/v7x (bf16 EUP),
  # f32 on v5e.  Nc is small/static; switch to lax.fori_loop(unroll=True)
  # if Nc ever grows large.
  pf3 = prot_feats.reshape(tb, lp, d)
  pf3_t = pf3.astype(bf16) if interaction_bf16 else pf3
  acc = jnp.zeros((tb, lp, d), f32)
  for j in range(n_c):
    x_j = pf3_t * cf[:, j:j + 1, :]               # bf16 (v6e/v7x) or f32 (v5e)
    t_j = jnp.tanh(x_j)
    acc = acc + t_j.astype(f32) * inter[:, :, j:j + 1]
  cp_ref[...] = jnp.sum(acc, axis=1).astype(cp_ref.dtype)


# ----------------------------------------------------------------------------
# Kernel 2: classifier MLP, tiled over batch; weights resident across steps.
# ----------------------------------------------------------------------------
def _classifier_kernel(cp_ref, w1_ref, b1_ref, w2_ref, b2_ref,
                       w3_ref, b3_ref, w4_ref, b4_ref, out_ref, *, vpu_out):
  f32 = jnp.float32
  bf16 = jnp.bfloat16
  dot = functools.partial(jnp.dot, preferred_element_type=f32)
  h = jnp.maximum(dot(cp_ref[...].astype(bf16), w1_ref[...]) + b1_ref[...], 0.0)
  h = jnp.maximum(dot(h.astype(bf16), w2_ref[...]) + b2_ref[...], 0.0)
  h = jnp.maximum(dot(h.astype(bf16), w3_ref[...]) + b3_ref[...], 0.0)
  if vpu_out:
    # out_dim == 1: row reduction on the VPU/XLU instead of an N=1 MXU pass.
    out = jnp.sum(h * w4_ref[...], axis=-1, keepdims=True) + b4_ref[...]
  else:
    out = dot(h.astype(bf16), w4_ref[...]) + b4_ref[...]
  out_ref[...] = out.astype(out_ref.dtype)


# ----------------------------------------------------------------------------
# Wrapper
# ----------------------------------------------------------------------------
def _round_up(x, m):
  return ((x + m - 1) // m) * m


def _tpu_kind():
  try:
    return jax.devices()[0].device_kind.lower()
  except Exception:  # pragma: no cover
    return ""


def mdgt_forward(params, protein_embedding, protein_feat_x, compound_feats):
  """Runs the fused Pallas kernels. Returns [B, out_dim]."""
  B, Lp, E = protein_embedding.shape
  _, Np_, D = protein_feat_x.shape
  _, Nc, _ = compound_feats.shape
  out_dim = params["w_c4"].shape[1]
  f32 = jnp.float32
  bf16 = jnp.bfloat16

  # Generation-aware knobs.
  kind = _tpu_kind()
  is_v7 = "v7" in kind
  interaction_bf16 = ("v6" in kind) or is_v7   # bf16 EUP only on v6e/v7x
  vmem_limit = (48 if is_v7 else 64) * 1024 * 1024

  # --- Fold embedding_fc -> w_q -> 1/sqrt(D) into a single projection (f32
  # math in the wrapper, bf16 storage for the kernel).  Fuse K/V weights so a
  # single matmul fills the 256-wide MXU on v6e/v7x.
  inv_scale = 1.0 / float(np.sqrt(D))   # hid_dim // n_heads, n_heads == 1
  w_eq = (params["w_embfc"] @ params["w_q"]) * inv_scale
  b_eq = (params["b_embfc"] @ params["w_q"] + params["b_q"]) * inv_scale
  w_kv = jnp.concatenate([params["w_k"], params["w_v"]], axis=1)
  b_kv = jnp.concatenate([params["b_k"], params["b_v"]], axis=1)

  enc_weights = [
      w_eq.astype(bf16), b_eq,
      w_kv.astype(bf16), b_kv,
      params["w_fc"].astype(bf16), params["b_fc"],
      params["w_jp"].astype(bf16), params["b_jp"],
      params["w_jc"].astype(bf16), params["b_jc"],
  ]

  # --- Batch tile selection: power-of-two TB with TB*Lp >= 256 when possible,
  # capped by the (rounded-up) batch; prefer >= 2 grid steps (v7x megacore).
  tb_cap = min(64, _round_up(B, 8))
  tb = 8
  while tb * 2 <= tb_cap and tb * Lp < 256:
    tb *= 2
  if _round_up(B, tb) == tb and tb >= 16:   # single grid step -> split it
    tb //= 2
  b_pad = _round_up(B, tb)

  # --- bf16 activations (halves HBM->VMEM bytes) + batch padding.
  pe = protein_embedding.astype(bf16)
  pf = protein_feat_x.astype(bf16)
  cf = compound_feats.astype(bf16)
  if b_pad != B:
    pad = ((0, b_pad - B), (0, 0), (0, 0))
    pe = jnp.pad(pe, pad)
    pf = jnp.pad(pf, pad)
    cf = jnp.pad(cf, pad)

  data_specs = [
      pl.BlockSpec((tb, Lp, E), lambda b: (b, 0, 0)),
      pl.BlockSpec((tb, Np_, D), lambda b: (b, 0, 0)),
      pl.BlockSpec((tb, Nc, D), lambda b: (b, 0, 0)),
  ]
  weight_specs = [pl.BlockSpec(tuple(w.shape), lambda b: (0, 0))
                  for w in enc_weights]

  cp = pl.pallas_call(
      functools.partial(_encoder_kernel, interaction_bf16=interaction_bf16),
      out_shape=jax.ShapeDtypeStruct((b_pad, D), f32),
      grid_spec=pltpu.PrefetchScalarGridSpec(
          num_scalar_prefetch=0,
          grid=(b_pad // tb,),
          in_specs=data_specs + weight_specs,
          out_specs=pl.BlockSpec((tb, D), lambda b: (b, 0)),
      ),
      compiler_params=pltpu.CompilerParams(
          dimension_semantics=("parallel",),   # batch elements are independent
          vmem_limit_bytes=vmem_limit),
  )(pe, pf, cf, *enc_weights)

  # --- Classifier: batch-tiled (weights resident), VPU final layer for
  # out_dim == 1.
  vpu_out = (out_dim == 1)
  if vpu_out:
    w4 = params["w_c4"].reshape(1, -1)          # [1, 256] f32 row
  else:
    w4 = params["w_c4"].astype(bf16)
  cls_weights = [
      params["w_c1"].astype(bf16), params["b_c1"],
      params["w_c2"].astype(bf16), params["b_c2"],
      params["w_c3"].astype(bf16), params["b_c3"],
      w4, params["b_c4"],
  ]

  tbc = min(256, b_pad)
  b_pad2 = _round_up(b_pad, tbc)
  cp_in = cp if b_pad2 == b_pad else jnp.pad(cp, ((0, b_pad2 - b_pad), (0, 0)))

  out = pl.pallas_call(
      functools.partial(_classifier_kernel, vpu_out=vpu_out),
      out_shape=jax.ShapeDtypeStruct((b_pad2, out_dim), f32),
      grid_spec=pltpu.PrefetchScalarGridSpec(
          num_scalar_prefetch=0,
          grid=(b_pad2 // tbc,),
          in_specs=[pl.BlockSpec((tbc, D), lambda i: (i, 0))] +
                   [pl.BlockSpec(tuple(w.shape), lambda i: (0, 0))
                    for w in cls_weights],
          out_specs=pl.BlockSpec((tbc, out_dim), lambda i: (i, 0)),
      ),
      compiler_params=pltpu.CompilerParams(
          dimension_semantics=("parallel",),
          vmem_limit_bytes=vmem_limit),
  )(cp_in, *cls_weights)
  return out[:B]


# ----------------------------------------------------------------------------
# Parameter construction (deterministic, PyTorch Linear shapes; weights are
# stored pre-transposed as [in, out] so the kernels do x @ W + b).
# ----------------------------------------------------------------------------
def init_params(key, *, emb_dim=320, hid_dim=128, out_dim=1):
  def linear(k, fan_in, fan_out):
    kw, kb = jax.random.split(k)
    bound = 1.0 / np.sqrt(fan_in)
    w = jax.random.uniform(kw, (fan_in, fan_out), jnp.float32, -bound, bound)
    b = jax.random.uniform(kb, (1, fan_out), jnp.float32, -bound, bound)
    return w, b

  keys = jax.random.split(key, 11)
  p = {}
  p["w_embfc"], p["b_embfc"] = linear(keys[0], emb_dim, hid_dim)
  p["w_q"], p["b_q"] = linear(keys[1], hid_dim, hid_dim)
  p["w_k"], p["b_k"] = linear(keys[2], hid_dim, hid_dim)
  p["w_v"], p["b_v"] = linear(keys[3], hid_dim, hid_dim)
  p["w_fc"], p["b_fc"] = linear(keys[4], hid_dim, hid_dim)
  p["w_jp"], p["b_jp"] = linear(keys[5], hid_dim, hid_dim)
  p["w_jc"], p["b_jc"] = linear(keys[6], hid_dim, hid_dim)
  p["w_c1"], p["b_c1"] = linear(keys[7], hid_dim, 1024)
  p["w_c2"], p["b_c2"] = linear(keys[8], 1024, 1024)
  p["w_c3"], p["b_c3"] = linear(keys[9], 1024, 256)
  p["w_c4"], p["b_c4"] = linear(keys[10], 256, out_dim)
  return p


# Pure-JAX (f32) reference for a sanity check.
def reference_forward(params, protein_embedding, protein_feat_x, compound_feats):
  D = protein_feat_x.shape[-1]
  scale = np.sqrt(D)
  lin = lambda x, w, b: x @ w + b
  q_in = lin(protein_embedding, params["w_embfc"], params["b_embfc"])
  q = lin(q_in, params["w_q"], params["b_q"])
  k = lin(protein_feat_x, params["w_k"], params["b_k"])
  v = lin(protein_feat_x, params["w_v"], params["b_v"])
  energy = jnp.einsum("bqd,bkd->bqk", q, k) / scale
  attn = jax.nn.softmax(energy, axis=-1)
  prot_feats = lin(jnp.einsum("bqk,bkd->bqd", attn, v),
                   params["w_fc"], params["b_fc"])
  jp = lin(jax.nn.relu(prot_feats), params["w_jp"], params["b_jp"])
  jc = lin(jax.nn.relu(compound_feats), params["w_jc"], params["b_jc"])
  inter = jax.nn.sigmoid(jnp.einsum("bij,bkj->bik", jp, jc))
  inter = inter / jnp.sum(inter, axis=(1, 2), keepdims=True)
  t = jnp.tanh(jnp.einsum("bpd,bcd->bpcd", prot_feats, compound_feats))
  cp = jnp.einsum("bpcd,bpc->bd", t, inter)
  h = jax.nn.relu(lin(cp, params["w_c1"], params["b_c1"]))
  h = jax.nn.relu(lin(h, params["w_c2"], params["b_c2"]))
  h = jax.nn.relu(lin(h, params["w_c3"], params["b_c3"]))
  return lin(h, params["w_c4"], params["b_c4"])


if __name__ == "__main__":
  B, Lp, Np, Nc = 2, 8, 16, 8      # batch, protein seq, protein nodes, compound nodes
  EMB, D, OUT = 320, 128, 1        # ESM dim (fixed by module), hidden_dim, out_dim

  root = jax.random.PRNGKey(0)
  k_params, k_pe, k_pf, k_cf = jax.random.split(root, 4)
  params = init_params(k_params, emb_dim=EMB, hid_dim=D, out_dim=OUT)

  protein_embedding = jax.random.normal(k_pe, (B, Lp, EMB), jnp.float32)
  protein_feat_x = jax.random.normal(k_pf, (B, Np, D), jnp.float32)   # protein_gt + dgl_split output
  compound_feats = jax.random.normal(k_cf, (B, Nc, D), jnp.float32)   # compound_gt + dgl_split output

  fwd = jax.jit(mdgt_forward)
  out = jax.block_until_ready(
      fwd(params, protein_embedding, protein_feat_x, compound_feats))

  ref = jax.block_until_ready(
      reference_forward(params, protein_embedding, protein_feat_x, compound_feats))

  assert out.shape == (B, OUT), out.shape
  assert bool(jnp.all(jnp.isfinite(out)))
  np.testing.assert_allclose(np.asarray(out), np.asarray(ref), rtol=5e-2, atol=5e-2)
  print("KERNEL_OK")
</pallas_src>

<mosaic_0001>
module attributes {stable_mosaic.version = 11 : i64} {
  func.func @_encoder_kernel(%arg0: i32, %arg1: memref<8x8x320xbf16, #tpu.memory_space<vmem>>, %arg2: memref<8x16x128xbf16, #tpu.memory_space<vmem>>, %arg3: memref<8x8x128xbf16, #tpu.memory_space<vmem>>, %arg4: memref<320x128xbf16, #tpu.memory_space<vmem>>, %arg5: memref<1x128xf32, #tpu.memory_space<vmem>>, %arg6: memref<128x256xbf16, #tpu.memory_space<vmem>>, %arg7: memref<1x256xf32, #tpu.memory_space<vmem>>, %arg8: memref<128x128xbf16, #tpu.memory_space<vmem>>, %arg9: memref<1x128xf32, #tpu.memory_space<vmem>>, %arg10: memref<128x128xbf16, #tpu.memory_space<vmem>>, %arg11: memref<1x128xf32, #tpu.memory_space<vmem>>, %arg12: memref<128x128xbf16, #tpu.memory_space<vmem>>, %arg13: memref<1x128xf32, #tpu.memory_space<vmem>>, %arg14: memref<8x128xf32, #tpu.memory_space<vmem>>) attributes {dimension_semantics = [#tpu.dimension_semantics<parallel>], iteration_bounds = array<i64: 1>, scalar_prefetch = 0 : i64, scratch_operands = 0 : i64, tpu.core_type = #tpu.core_type<tc>, window_params = [{transform_indices = @transform_0, window_bounds = array<i64: 8, 8, 320>}, {transform_indices = @transform_1, window_bounds = array<i64: 8, 16, 128>}, {transform_indices = @transform_2, window_bounds = array<i64: 8, 8, 128>}, {pipeline_mode = #tpu.pipeline_mode<synchronous>, transform_indices = @transform_3, window_bounds = array<i64: 320, 128>}, {pipeline_mode = #tpu.pipeline_mode<synchronous>, transform_indices = @transform_4, window_bounds = array<i64: 1, 128>}, {pipeline_mode = #tpu.pipeline_mode<synchronous>, transform_indices = @transform_5, window_bounds = array<i64: 128, 256>}, {pipeline_mode = #tpu.pipeline_mode<synchronous>, transform_indices = @transform_6, window_bounds = array<i64: 1, 256>}, {pipeline_mode = #tpu.pipeline_mode<synchronous>, transform_indices = @transform_7, window_bounds = array<i64: 128, 128>}, {pipeline_mode = #tpu.pipeline_mode<synchronous>, transform_indices = @transform_8, window_bounds = array<i64: 1, 128>}, {pipeline_mode = #tpu.pipeline_mode<synchronous>, transform_indices = @transform_9, window_bounds = array<i64: 128, 128>}, {pipeline_mode = #tpu.pipeline_mode<synchronous>, transform_indices = @transform_10, window_bounds = array<i64: 1, 128>}, {pipeline_mode = #tpu.pipeline_mode<synchronous>, transform_indices = @transform_11, window_bounds = array<i64: 128, 128>}, {pipeline_mode = #tpu.pipeline_mode<synchronous>, transform_indices = @transform_12, window_bounds = array<i64: 1, 128>}, {transform_indices = @transform_13, window_bounds = array<i64: 8, 128>}]} {
    %c0 = arith.constant 0 : index
    %c0_0 = arith.constant 0 : index
    %c0_1 = arith.constant 0 : index
    %0 = vector.load %arg1[%c0, %c0_0, %c0_1] : memref<8x8x320xbf16, #tpu.memory_space<vmem>>, vector<8x8x320xbf16>
    %c0_2 = arith.constant 0 : index
    %c0_3 = arith.constant 0 : index
    %c0_4 = arith.constant 0 : index
    %1 = vector.load %arg2[%c0_2, %c0_3, %c0_4] : memref<8x16x128xbf16, #tpu.memory_space<vmem>>, vector<8x16x128xbf16>
    %c0_5 = arith.constant 0 : index
    %c0_6 = arith.constant 0 : index
    %c0_7 = arith.constant 0 : index
    %2 = vector.load %arg3[%c0_5, %c0_6, %c0_7] : memref<8x8x128xbf16, #tpu.memory_space<vmem>>, vector<8x8x128xbf16>
    %3 = vector.shape_cast %0 : vector<8x8x320xbf16> to vector<64x320xbf16>
    %c0_8 = arith.constant 0 : index
    %c0_9 = arith.constant 0 : index
    %4 = vector.load %arg4[%c0_8, %c0_9] : memref<320x128xbf16, #tpu.memory_space<vmem>>, vector<320x128xbf16>
    %cst = arith.constant dense<0.000000e+00> : vector<64x128xf32>
    %5 = tpu.matmul %3, %4, %cst {dimension_numbers = #tpu.dot_dimension_numbers<[1], [0], [0], [1], [0, 0, 1, 1], [], []>} : vector<64x320xbf16>, vector<320x128xbf16>, vector<64x128xf32> -> vector<64x128xf32>
    %c0_10 = arith.constant 0 : index
    %c0_11 = arith.constant 0 : index
    %6 = vector.load %arg5[%c0_10, %c0_11] : memref<1x128xf32, #tpu.memory_space<vmem>>, vector<1x128xf32>
    %7 = vector.broadcast %6 : vector<1x128xf32> to vector<64x128xf32>
    %8 = arith.addf %5, %7 : vector<64x128xf32>
    %9 = vector.shape_cast %1 : vector<8x16x128xbf16> to vector<128x128xbf16>
    %c0_12 = arith.constant 0 : index
    %c0_13 = arith.constant 0 : index
    %10 = vector.load %arg6[%c0_12, %c0_13] : memref<128x256xbf16, #tpu.memory_space<vmem>>, vector<128x256xbf16>
    %cst_14 = arith.constant dense<0.000000e+00> : vector<128x256xf32>
    %11 = tpu.matmul %9, %10, %cst_14 {dimension_numbers = #tpu.dot_dimension_numbers<[1], [0], [0], [1], [0, 0, 1, 1], [], []>} : vector<128x128xbf16>, vector<128x256xbf16>, vector<128x256xf32> -> vector<128x256xf32>
    %c0_15 = arith.constant 0 : index
    %c0_16 = arith.constant 0 : index
    %12 = vector.load %arg7[%c0_15, %c0_16] : memref<1x256xf32, #tpu.memory_space<vmem>>, vector<1x256xf32>
    %13 = vector.broadcast %12 : vector<1x256xf32> to vector<128x256xf32>
    %14 = arith.addf %11, %13 : vector<128x256xf32>
    %15 = vector.extract_strided_slice %14 {offsets = [0, 0], sizes = [128, 128], strides = [1, 1]} : vector<128x256xf32> to vector<128x128xf32>
    %16 = vector.shape_cast %15 : vector<128x128xf32> to vector<8x16x128xf32>
    %17 = vector.extract_strided_slice %14 {offsets = [0, 128], sizes = [128, 128], strides = [1, 1]} : vector<128x256xf32> to vector<128x128xf32>
    %18 = vector.shape_cast %17 : vector<128x128xf32> to vector<8x16x128xf32>
    %19 = vector.shape_cast %8 : vector<64x128xf32> to vector<8x8x128xf32>
    %20 = arith.truncf %19 : vector<8x8x128xf32> to vector<8x8x128xbf16>
    %21 = arith.truncf %16 : vector<8x16x128xf32> to vector<8x16x128xbf16>
    "tpu.trace_start"() <{level = 10 : i32, message = "bqd,bkd->bqk"}> : () -> ()
    %cst_17 = arith.constant dense<0.000000e+00> : vector<8x8x16xf32>
    %22 = tpu.matmul %20, %21, %cst_17 {dimension_numbers = #tpu.dot_dimension_numbers<[2], [2], [1], [1], [0, 0, 0, 1, 1, 1], [0], [0]>} : vector<8x8x128xbf16>, vector<8x16x128xbf16>, vector<8x8x16xf32> -> vector<8x8x16xf32>
    "tpu.trace_stop"() : () -> ()
    %cst_18 = arith.constant dense<0xFF800000> : vector<8x8xf32>
    %23 = vector.multi_reduction <maximumf>, %22, %cst_18 [2] : vector<8x8x16xf32> to vector<8x8xf32>
    %24 = vector.shape_cast %23 : vector<8x8xf32> to vector<8x8x1xf32>
    %25 = vector.broadcast %24 : vector<8x8x1xf32> to vector<8x8x16xf32>
    %26 = arith.subf %22, %25 : vector<8x8x16xf32>
    %27 = math.exp %26 : vector<8x8x16xf32>
    %cst_19 = arith.constant dense<0.000000e+00> : vector<8x8xf32>
    %28 = vector.multi_reduction <add>, %27, %cst_19 [2] : vector<8x8x16xf32> to vector<8x8xf32>
    %29 = vector.shape_cast %28 : vector<8x8xf32> to vector<8x8x1xf32>
    %30 = tpu.reciprocal %29 {approx = true} : vector<8x8x1xf32> -> vector<8x8x1xf32>
    %31 = vector.broadcast %30 : vector<8x8x1xf32> to vector<8x8x16xf32>
    %32 = arith.mulf %27, %31 : vector<8x8x16xf32>
    %33 = arith.truncf %32 : vector<8x8x16xf32> to vector<8x8x16xbf16>
    %34 = arith.truncf %18 : vector<8x16x128xf32> to vector<8x16x128xbf16>
    "tpu.trace_start"() <{level = 10 : i32, message = "bqk,bkd->bqd"}> : () -> ()
    %cst_20 = arith.constant dense<0.000000e+00> : vector<8x8x128xf32>
    %35 = tpu.matmul %33, %34, %cst_20 {dimension_numbers = #tpu.dot_dimension_numbers<[2], [1], [1], [2], [0, 0, 0, 1, 1, 2], [0], [0]>} : vector<8x8x16xbf16>, vector<8x16x128xbf16>, vector<8x8x128xf32> -> vector<8x8x128xf32>
    "tpu.trace_stop"() : () -> ()
    %36 = vector.shape_cast %35 : vector<8x8x128xf32> to vector<64x128xf32>
    %37 = arith.truncf %36 : vector<64x128xf32> to vector<64x128xbf16>
    %c0_21 = arith.constant 0 : index
    %c0_22 = arith.constant 0 : index
    %38 = vector.load %arg8[%c0_21, %c0_22] : memref<128x128xbf16, #tpu.memory_space<vmem>>, vector<128x128xbf16>
    %cst_23 = arith.constant dense<0.000000e+00> : vector<64x128xf32>
    %39 = tpu.matmul %37, %38, %cst_23 {dimension_numbers = #tpu.dot_dimension_numbers<[1], [0], [0], [1], [0, 0, 1, 1], [], []>} : vector<64x128xbf16>, vector<128x128xbf16>, vector<64x128xf32> -> vector<64x128xf32>
    %c0_24 = arith.constant 0 : index
    %c0_25 = arith.constant 0 : index
    %40 = vector.load %arg9[%c0_24, %c0_25] : memref<1x128xf32, #tpu.memory_space<vmem>>, vector<1x128xf32>
    %41 = vector.broadcast %40 : vector<1x128xf32> to vector<64x128xf32>
    %42 = arith.addf %39, %41 : vector<64x128xf32>
    %cst_26 = arith.constant 0.000000e+00 : f32
    %43 = vector.broadcast %cst_26 : f32 to vector<64x128xf32>
    %44 = arith.maximumf %42, %43 : vector<64x128xf32>
    %45 = arith.truncf %44 : vector<64x128xf32> to vector<64x128xbf16>
    %c0_27 = arith.constant 0 : index
    %c0_28 = arith.constant 0 : index
    %46 = vector.load %arg10[%c0_27, %c0_28] : memref<128x128xbf16, #tpu.memory_space<vmem>>, vector<128x128xbf16>
    %cst_29 = arith.constant dense<0.000000e+00> : vector<64x128xf32>
    %47 = tpu.matmul %45, %46, %cst_29 {dimension_numbers = #tpu.dot_dimension_numbers<[1], [0], [0], [1], [0, 0, 1, 1], [], []>} : vector<64x128xbf16>, vector<128x128xbf16>, vector<64x128xf32> -> vector<64x128xf32>
    %c0_30 = arith.constant 0 : index
    %c0_31 = arith.constant 0 : index
    %48 = vector.load %arg11[%c0_30, %c0_31] : memref<1x128xf32, #tpu.memory_space<vmem>>, vector<1x128xf32>
    %49 = vector.broadcast %48 : vector<1x128xf32> to vector<64x128xf32>
    %50 = arith.addf %47, %49 : vector<64x128xf32>
    %51 = vector.shape_cast %2 : vector<8x8x128xbf16> to vector<64x128xbf16>
    %cst_32 = arith.constant 0.000000e+00 : bf16
    %52 = vector.broadcast %cst_32 : bf16 to vector<64x128xbf16>
    %53 = arith.maximumf %51, %52 : vector<64x128xbf16>
    %c0_33 = arith.constant 0 : index
    %c0_34 = arith.constant 0 : index
    %54 = vector.load %arg12[%c0_33, %c0_34] : memref<128x128xbf16, #tpu.memory_space<vmem>>, vector<128x128xbf16>
    %cst_35 = arith.constant dense<0.000000e+00> : vector<64x128xf32>
    %55 = tpu.matmul %53, %54, %cst_35 {dimension_numbers = #tpu.dot_dimension_numbers<[1], [0], [0], [1], [0, 0, 1, 1], [], []>} : vector<64x128xbf16>, vector<128x128xbf16>, vector<64x128xf32> -> vector<64x128xf32>
    %c0_36 = arith.constant 0 : index
    %c0_37 = arith.constant 0 : index
    %56 = vector.load %arg13[%c0_36, %c0_37] : memref<1x128xf32, #tpu.memory_space<vmem>>, vector<1x128xf32>
    %57 = vector.broadcast %56 : vector<1x128xf32> to vector<64x128xf32>
    %58 = arith.addf %55, %57 : vector<64x128xf32>
    %59 = vector.shape_cast %50 : vector<64x128xf32> to vector<8x8x128xf32>
    %60 = arith.truncf %59 : vector<8x8x128xf32> to vector<8x8x128xbf16>
    %61 = vector.shape_cast %58 : vector<64x128xf32> to vector<8x8x128xf32>
    %62 = arith.truncf %61 : vector<8x8x128xf32> to vector<8x8x128xbf16>
    "tpu.trace_start"() <{level = 10 : i32, message = "bij,bkj->bik"}> : () -> ()
    %cst_38 = arith.constant dense<0.000000e+00> : vector<8x8x8xf32>
    %63 = tpu.matmul %60, %62, %cst_38 {dimension_numbers = #tpu.dot_dimension_numbers<[2], [2], [1], [1], [0, 0, 0, 1, 1, 1], [0], [0]>} : vector<8x8x128xbf16>, vector<8x8x128xbf16>, vector<8x8x8xf32> -> vector<8x8x8xf32>
    "tpu.trace_stop"() : () -> ()
    %64 = arith.negf %63 : vector<8x8x8xf32>
    %65 = math.exp %64 : vector<8x8x8xf32>
    %cst_39 = arith.constant 1.000000e+00 : f32
    %66 = vector.broadcast %cst_39 : f32 to vector<8x8x8xf32>
    %67 = arith.addf %66, %65 : vector<8x8x8xf32>
    %68 = arith.divf %66, %67 : vector<8x8x8xf32>
    %cst_40 = arith.constant dense<0.000000e+00> : vector<8x8xf32>
    %69 = vector.multi_reduction <add>, %68, %cst_40 [2] : vector<8x8x8xf32> to vector<8x8xf32>
    %70 = vector.shape_cast %69 : vector<8x8xf32> to vector<8x8x1xf32>
    %cst_41 = arith.constant dense<0.000000e+00> : vector<8x1xf32>
    %71 = vector.multi_reduction <add>, %70, %cst_41 [1] : vector<8x8x1xf32> to vector<8x1xf32>
    %72 = vector.shape_cast %71 : vector<8x1xf32> to vector<8x1x1xf32>
    %73 = tpu.reciprocal %72 : vector<8x1x1xf32> -> vector<8x1x1xf32>
    %74 = vector.broadcast %73 : vector<8x1x1xf32> to vector<8x8x8xf32>
    %75 = arith.mulf %68, %74 : vector<8x8x8xf32>
    %76 = vector.shape_cast %42 : vector<64x128xf32> to vector<8x8x128xf32>
    %cst_42 = arith.constant 0.000000e+00 : f32
    %77 = vector.broadcast %cst_42 : f32 to vector<8x8x128xf32>
    %78 = vector.extract_strided_slice %2 {offsets = [0, 0, 0], sizes = [8, 1, 128], strides = [1, 1, 1]} : vector<8x8x128xbf16> to vector<8x1x128xbf16>
    %79 = arith.extf %78 : vector<8x1x128xbf16> to vector<8x1x128xf32>
    %80 = vector.broadcast %79 : vector<8x1x128xf32> to vector<8x8x128xf32>
    %81 = arith.mulf %76, %80 : vector<8x8x128xf32>
    %82 = math.tanh %81 : vector<8x8x128xf32>
    %83 = vector.extract_strided_slice %75 {offsets = [0, 0, 0], sizes = [8, 8, 1], strides = [1, 1, 1]} : vector<8x8x8xf32> to vector<8x8x1xf32>
    %84 = vector.broadcast %83 : vector<8x8x1xf32> to vector<8x8x128xf32>
    %85 = arith.mulf %82, %84 : vector<8x8x128xf32>
    %86 = arith.addf %77, %85 : vector<8x8x128xf32>
    %87 = vector.extract_strided_slice %2 {offsets = [0, 1, 0], sizes = [8, 1, 128], strides = [1, 1, 1]} : vector<8x8x128xbf16> to vector<8x1x128xbf16>
    %88 = arith.extf %87 : vector<8x1x128xbf16> to vector<8x1x128xf32>
    %89 = vector.broadcast %88 : vector<8x1x128xf32> to vector<8x8x128xf32>
    %90 = arith.mulf %76, %89 : vector<8x8x128xf32>
    %91 = math.tanh %90 : vector<8x8x128xf32>
    %92 = vector.extract_strided_slice %75 {offsets = [0, 0, 1], sizes = [8, 8, 1], strides = [1, 1, 1]} : vector<8x8x8xf32> to vector<8x8x1xf32>
    %93 = vector.broadcast %92 : vector<8x8x1xf32> to vector<8x8x128xf32>
    %94 = arith.mulf %91, %93 : vector<8x8x128xf32>
    %95 = arith.addf %86, %94 : vector<8x8x128xf32>
    %96 = vector.extract_strided_slice %2 {offsets = [0, 2, 0], sizes = [8, 1, 128], strides = [1, 1, 1]} : vector<8x8x128xbf16> to vector<8x1x128xbf16>
    %97 = arith.extf %96 : vector<8x1x128xbf16> to vector<8x1x128xf32>
    %98 = vector.broadcast %97 : vector<8x1x128xf32> to vector<8x8x128xf32>
    %99 = arith.mulf %76, %98 : vector<8x8x128xf32>
    %100 = math.tanh %99 : vector<8x8x128xf32>
    %101 = vector.extract_strided_slice %75 {offsets = [0, 0, 2], sizes = [8, 8, 1], strides = [1, 1, 1]} : vector<8x8x8xf32> to vector<8x8x1xf32>
    %102 = vector.broadcast %101 : vector<8x8x1xf32> to vector<8x8x128xf32>
    %103 = arith.mulf %100, %102 : vector<8x8x128xf32>
    %104 = arith.addf %95, %103 : vector<8x8x128xf32>
    %105 = vector.extract_strided_slice %2 {offsets = [0, 3, 0], sizes = [8, 1, 128], strides = [1, 1, 1]} : vector<8x8x128xbf16> to vector<8x1x128xbf16>
    %106 = arith.extf %105 : vector<8x1x128xbf16> to vector<8x1x128xf32>
    %107 = vector.broadcast %106 : vector<8x1x128xf32> to vector<8x8x128xf32>
    %108 = arith.mulf %76, %107 : vector<8x8x128xf32>
    %109 = math.tanh %108 : vector<8x8x128xf32>
    %110 = vector.extract_strided_slice %75 {offsets = [0, 0, 3], sizes = [8, 8, 1], strides = [1, 1, 1]} : vector<8x8x8xf32> to vector<8x8x1xf32>
    %111 = vector.broadcast %110 : vector<8x8x1xf32> to vector<8x8x128xf32>
    %112 = arith.mulf %109, %111 : vector<8x8x128xf32>
    %113 = arith.addf %104, %112 : vector<8x8x128xf32>
    %114 = vector.extract_strided_slice %2 {offsets = [0, 4, 0], sizes = [8, 1, 128], strides = [1, 1, 1]} : vector<8x8x128xbf16> to vector<8x1x128xbf16>
    %115 = arith.extf %114 : vector<8x1x128xbf16> to vector<8x1x128xf32>
    %116 = vector.broadcast %115 : vector<8x1x128xf32> to vector<8x8x128xf32>
    %117 = arith.mulf %76, %116 : vector<8x8x128xf32>
    %118 = math.tanh %117 : vector<8x8x128xf32>
    %119 = vector.extract_strided_slice %75 {offsets = [0, 0, 4], sizes = [8, 8, 1], strides = [1, 1, 1]} : vector<8x8x8xf32> to vector<8x8x1xf32>
    %120 = vector.broadcast %119 : vector<8x8x1xf32> to vector<8x8x128xf32>
    %121 = arith.mulf %118, %120 : vector<8x8x128xf32>
    %122 = arith.addf %113, %121 : vector<8x8x128xf32>
    %123 = vector.extract_strided_slice %2 {offsets = [0, 5, 0], sizes = [8, 1, 128], strides = [1, 1, 1]} : vector<8x8x128xbf16> to vector<8x1x128xbf16>
    %124 = arith.extf %123 : vector<8x1x128xbf16> to vector<8x1x128xf32>
    %125 = vector.broadcast %124 : vector<8x1x128xf32> to vector<8x8x128xf32>
    %126 = arith.mulf %76, %125 : vector<8x8x128xf32>
    %127 = math.tanh %126 : vector<8x8x128xf32>
    %128 = vector.extract_strided_slice %75 {offsets = [0, 0, 5], sizes = [8, 8, 1], strides = [1, 1, 1]} : vector<8x8x8xf32> to vector<8x8x1xf32>
    %129 = vector.broadcast %128 : vector<8x8x1xf32> to vector<8x8x128xf32>
    %130 = arith.mulf %127, %129 : vector<8x8x128xf32>
    %131 = arith.addf %122, %130 : vector<8x8x128xf32>
    %132 = vector.extract_strided_slice %2 {offsets = [0, 6, 0], sizes = [8, 1, 128], strides = [1, 1, 1]} : vector<8x8x128xbf16> to vector<8x1x128xbf16>
    %133 = arith.extf %132 : vector<8x1x128xbf16> to vector<8x1x128xf32>
    %134 = vector.broadcast %133 : vector<8x1x128xf32> to vector<8x8x128xf32>
    %135 = arith.mulf %76, %134 : vector<8x8x128xf32>
    %136 = math.tanh %135 : vector<8x8x128xf32>
    %137 = vector.extract_strided_slice %75 {offsets = [0, 0, 6], sizes = [8, 8, 1], strides = [1, 1, 1]} : vector<8x8x8xf32> to vector<8x8x1xf32>
    %138 = vector.broadcast %137 : vector<8x8x1xf32> to vector<8x8x128xf32>
    %139 = arith.mulf %136, %138 : vector<8x8x128xf32>
    %140 = arith.addf %131, %139 : vector<8x8x128xf32>
    %141 = vector.extract_strided_slice %2 {offsets = [0, 7, 0], sizes = [8, 1, 128], strides = [1, 1, 1]} : vector<8x8x128xbf16> to vector<8x1x128xbf16>
    %142 = arith.extf %141 : vector<8x1x128xbf16> to vector<8x1x128xf32>
    %143 = vector.broadcast %142 : vector<8x1x128xf32> to vector<8x8x128xf32>
    %144 = arith.mulf %76, %143 : vector<8x8x128xf32>
    %145 = math.tanh %144 : vector<8x8x128xf32>
    %146 = vector.extract_strided_slice %75 {offsets = [0, 0, 7], sizes = [8, 8, 1], strides = [1, 1, 1]} : vector<8x8x8xf32> to vector<8x8x1xf32>
    %147 = vector.broadcast %146 : vector<8x8x1xf32> to vector<8x8x128xf32>
    %148 = arith.mulf %145, %147 : vector<8x8x128xf32>
    %149 = arith.addf %140, %148 : vector<8x8x128xf32>
    %cst_43 = arith.constant dense<0.000000e+00> : vector<8x128xf32>
    %150 = vector.multi_reduction <add>, %149, %cst_43 [1] : vector<8x8x128xf32> to vector<8x128xf32>
    %c0_44 = arith.constant 0 : index
    %c0_45 = arith.constant 0 : index
    %151 = vector.load %arg14[%c0_44, %c0_45] : memref<8x128xf32, #tpu.memory_space<vmem>>, vector<8x128xf32>
    tpu.vector_store %arg14[%c0_44, %c0_45], %150 {strides = array<i32>} : memref<8x128xf32, #tpu.memory_space<vmem>>, vector<8x128xf32>,
    return
  }
  func.func @transform_0(%arg0: i32) -> (i32, i32, i32) {
    %c0_i32 = arith.constant 0 : i32
    %c0_i32_0 = arith.constant 0 : i32
    %c0_i32_1 = arith.constant 0 : i32
    return %arg0, %c0_i32, %c0_i32_0 : i32, i32, i32
  }
  func.func @transform_1(%arg0: i32) -> (i32, i32, i32) {
    %c0_i32 = arith.constant 0 : i32
    %c0_i32_0 = arith.constant 0 : i32
    %c0_i32_1 = arith.constant 0 : i32
    return %arg0, %c0_i32, %c0_i32_0 : i32, i32, i32
  }
  func.func @transform_2(%arg0: i32) -> (i32, i32, i32) {
    %c0_i32 = arith.constant 0 : i32
    %c0_i32_0 = arith.constant 0 : i32
    %c0_i32_1 = arith.constant 0 : i32
    return %arg0, %c0_i32, %c0_i32_0 : i32, i32, i32
  }
  func.func @transform_3(%arg0: i32) -> (i32, i32) {
    %c0_i32 = arith.constant 0 : i32
    %c0_i32_0 = arith.constant 0 : i32
    %c0_i32_1 = arith.constant 0 : i32
    return %c0_i32, %c0_i32_0 : i32, i32
  }
  func.func @transform_4(%arg0: i32) -> (i32, i32) {
    %c0_i32 = arith.constant 0 : i32
    %c0_i32_0 = arith.constant 0 : i32
    %c0_i32_1 = arith.constant 0 : i32
    return %c0_i32, %c0_i32_0 : i32, i32
  }
  func.func @transform_5(%arg0: i32) -> (i32, i32) {
    %c0_i32 = arith.constant 0 : i32
    %c0_i32_0 = arith.constant 0 : i32
    %c0_i32_1 = arith.constant 0 : i32
    return %c0_i32, %c0_i32_0 : i32, i32
  }
  func.func @transform_6(%arg0: i32) -> (i32, i32) {
    %c0_i32 = arith.constant 0 : i32
    %c0_i32_0 = arith.constant 0 : i32
    %c0_i32_1 = arith.constant 0 : i32
    return %c0_i32, %c0_i32_0 : i32, i32
  }
  func.func @transform_7(%arg0: i32) -> (i32, i32) {
    %c0_i32 = arith.constant 0 : i32
    %c0_i32_0 = arith.constant 0 : i32
    %c0_i32_1 = arith.constant 0 : i32
    return %c0_i32, %c0_i32_0 : i32, i32
  }
  func.func @transform_8(%arg0: i32) -> (i32, i32) {
    %c0_i32 = arith.constant 0 : i32
    %c0_i32_0 = arith.constant 0 : i32
    %c0_i32_1 = arith.constant 0 : i32
    return %c0_i32, %c0_i32_0 : i32, i32
  }
  func.func @transform_9(%arg0: i32) -> (i32, i32) {
    %c0_i32 = arith.constant 0 : i32
    %c0_i32_0 = arith.constant 0 : i32
    %c0_i32_1 = arith.constant 0 : i32
    return %c0_i32, %c0_i32_0 : i32, i32
  }
  func.func @transform_10(%arg0: i32) -> (i32, i32) {
    %c0_i32 = arith.constant 0 : i32
    %c0_i32_0 = arith.constant 0 : i32
    %c0_i32_1 = arith.constant 0 : i32
    return %c0_i32, %c0_i32_0 : i32, i32
  }
  func.func @transform_11(%arg0: i32) -> (i32, i32) {
    %c0_i32 = arith.constant 0 : i32
    %c0_i32_0 = arith.constant 0 : i32
    %c0_i32_1 = arith.constant 0 : i32
    return %c0_i32, %c0_i32_0 : i32, i32
  }
  func.func @transform_12(%arg0: i32) -> (i32, i32) {
    %c0_i32 = arith.constant 0 : i32
    %c0_i32_0 = arith.constant 0 : i32
    %c0_i32_1 = arith.constant 0 : i32
    return %c0_i32, %c0_i32_0 : i32, i32
  }
  func.func @transform_13(%arg0: i32) -> (i32, i32) {
    %c0_i32 = arith.constant 0 : i32
    %c0_i32_0 = arith.constant 0 : i32
    return %arg0, %c0_i32 : i32, i32
  }
}

module attributes {stable_mosaic.version = 11 : i64} {
  func.func @_classifier_kernel(%arg0: i32, %arg1: memref<8x128xf32, #tpu.memory_space<vmem>>, %arg2: memref<128x1024xbf16, #tpu.memory_space<vmem>>, %arg3: memref<1x1024xf32, #tpu.memory_space<vmem>>, %arg4: memref<1024x1024xbf16, #tpu.memory_space<vmem>>, %arg5: memref<1x1024xf32, #tpu.memory_space<vmem>>, %arg6: memref<1024x256xbf16, #tpu.memory_space<vmem>>, %arg7: memref<1x256xf32, #tpu.memory_space<vmem>>, %arg8: memref<1x256xf32, #tpu.memory_space<vmem>>, %arg9: memref<1x1xf32, #tpu.memory_space<vmem>>, %arg10: memref<8x1xf32, #tpu.memory_space<vmem>>) attributes {dimension_semantics = [#tpu.dimension_semantics<parallel>], iteration_bounds = array<i64: 1>, scalar_prefetch = 0 : i64, scratch_operands = 0 : i64, tpu.core_type = #tpu.core_type<tc>, window_params = [{transform_indices = @transform_0, window_bounds = array<i64: 8, 128>}, {pipeline_mode = #tpu.pipeline_mode<synchronous>, transform_indices = @transform_1, window_bounds = array<i64: 128, 1024>}, {pipeline_mode = #tpu.pipeline_mode<synchronous>, transform_indices = @transform_2, window_bounds = array<i64: 1, 1024>}, {pipeline_mode = #tpu.pipeline_mode<synchronous>, transform_indices = @transform_3, window_bounds = array<i64: 1024, 1024>}, {pipeline_mode = #tpu.pipeline_mode<synchronous>, transform_indices = @transform_4, window_bounds = array<i64: 1, 1024>}, {pipeline_mode = #tpu.pipeline_mode<synchronous>, transform_indices = @transform_5, window_bounds = array<i64: 1024, 256>}, {pipeline_mode = #tpu.pipeline_mode<synchronous>, transform_indices = @transform_6, window_bounds = array<i64: 1, 256>}, {pipeline_mode = #tpu.pipeline_mode<synchronous>, transform_indices = @transform_7, window_bounds = array<i64: 1, 256>}, {pipeline_mode = #tpu.pipeline_mode<synchronous>, transform_indices = @transform_8, window_bounds = array<i64: 1, 1>}, {transform_indices = @transform_9, window_bounds = array<i64: 8, 1>}]} {
    %c0 = arith.constant 0 : index
    %c0_0 = arith.constant 0 : index
    %0 = vector.load %arg1[%c0, %c0_0] : memref<8x128xf32, #tpu.memory_space<vmem>>, vector<8x128xf32>
    %1 = arith.truncf %0 : vector<8x128xf32> to vector<8x128xbf16>
    %c0_1 = arith.constant 0 : index
    %c0_2 = arith.constant 0 : index
    %2 = vector.load %arg2[%c0_1, %c0_2] : memref<128x1024xbf16, #tpu.memory_space<vmem>>, vector<128x1024xbf16>
    %cst = arith.constant dense<0.000000e+00> : vector<8x1024xf32>
    %3 = tpu.matmul %1, %2, %cst {dimension_numbers = #tpu.dot_dimension_numbers<[1], [0], [0], [1], [0, 0, 1, 1], [], []>} : vector<8x128xbf16>, vector<128x1024xbf16>, vector<8x1024xf32> -> vector<8x1024xf32>
    %c0_3 = arith.constant 0 : index
    %c0_4 = arith.constant 0 : index
    %4 = vector.load %arg3[%c0_3, %c0_4] : memref<1x1024xf32, #tpu.memory_space<vmem>>, vector<1x1024xf32>
    %5 = vector.broadcast %4 : vector<1x1024xf32> to vector<8x1024xf32>
    %6 = arith.addf %3, %5 : vector<8x1024xf32>
    %cst_5 = arith.constant 0.000000e+00 : f32
    %7 = vector.broadcast %cst_5 : f32 to vector<8x1024xf32>
    %8 = arith.maximumf %6, %7 : vector<8x1024xf32>
    %9 = arith.truncf %8 : vector<8x1024xf32> to vector<8x1024xbf16>
    %c0_6 = arith.constant 0 : index
    %c0_7 = arith.constant 0 : index
    %10 = vector.load %arg4[%c0_6, %c0_7] : memref<1024x1024xbf16, #tpu.memory_space<vmem>>, vector<1024x1024xbf16>
    %cst_8 = arith.constant dense<0.000000e+00> : vector<8x1024xf32>
    %11 = tpu.matmul %9, %10, %cst_8 {dimension_numbers = #tpu.dot_dimension_numbers<[1], [0], [0], [1], [0, 0, 1, 1], [], []>} : vector<8x1024xbf16>, vector<1024x1024xbf16>, vector<8x1024xf32> -> vector<8x1024xf32>
    %c0_9 = arith.constant 0 : index
    %c0_10 = arith.constant 0 : index
    %12 = vector.load %arg5[%c0_9, %c0_10] : memref<1x1024xf32, #tpu.memory_space<vmem>>, vector<1x1024xf32>
    %13 = vector.broadcast %12 : vector<1x1024xf32> to vector<8x1024xf32>
    %14 = arith.addf %11, %13 : vector<8x1024xf32>
    %cst_11 = arith.constant 0.000000e+00 : f32
    %15 = vector.broadcast %cst_11 : f32 to vector<8x1024xf32>
    %16 = arith.maximumf %14, %15 : vector<8x1024xf32>
    %17 = arith.truncf %16 : vector<8x1024xf32> to vector<8x1024xbf16>
    %c0_12 = arith.constant 0 : index
    %c0_13 = arith.constant 0 : index
    %18 = vector.load %arg6[%c0_12, %c0_13] : memref<1024x256xbf16, #tpu.memory_space<vmem>>, vector<1024x256xbf16>
    %cst_14 = arith.constant dense<0.000000e+00> : vector<8x256xf32>
    %19 = tpu.matmul %17, %18, %cst_14 {dimension_numbers = #tpu.dot_dimension_numbers<[1], [0], [0], [1], [0, 0, 1, 1], [], []>} : vector<8x1024xbf16>, vector<1024x256xbf16>, vector<8x256xf32> -> vector<8x256xf32>
    %c0_15 = arith.constant 0 : index
    %c0_16 = arith.constant 0 : index
    %20 = vector.load %arg7[%c0_15, %c0_16] : memref<1x256xf32, #tpu.memory_space<vmem>>, vector<1x256xf32>
    %21 = vector.broadcast %20 : vector<1x256xf32> to vector<8x256xf32>
    %22 = arith.addf %19, %21 : vector<8x256xf32>
    %cst_17 = arith.constant 0.000000e+00 : f32
    %23 = vector.broadcast %cst_17 : f32 to vector<8x256xf32>
    %24 = arith.maximumf %22, %23 : vector<8x256xf32>
    %c0_18 = arith.constant 0 : index
    %c0_19 = arith.constant 0 : index
    %25 = vector.load %arg8[%c0_18, %c0_19] : memref<1x256xf32, #tpu.memory_space<vmem>>, vector<1x256xf32>
    %26 = vector.broadcast %25 : vector<1x256xf32> to vector<8x256xf32>
    %27 = arith.mulf %24, %26 : vector<8x256xf32>
    %cst_20 = arith.constant dense<0.000000e+00> : vector<8xf32>
    %28 = vector.multi_reduction <add>, %27, %cst_20 [1] : vector<8x256xf32> to vector<8xf32>
    %29 = vector.shape_cast %28 : vector<8xf32> to vector<8x1xf32>
    %c0_21 = arith.constant 0 : index
    %c0_22 = arith.constant 0 : index
    %30 = vector.load %arg9[%c0_21, %c0_22] : memref<1x1xf32, #tpu.memory_space<vmem>>, vector<1x1xf32>
    %31 = vector.broadcast %30 : vector<1x1xf32> to vector<8x1xf32>
    %32 = arith.addf %29, %31 : vector<8x1xf32>
    %c0_23 = arith.constant 0 : index
    %c0_24 = arith.constant 0 : index
    %33 = vector.load %arg10[%c0_23, %c0_24] : memref<8x1xf32, #tpu.memory_space<vmem>>, vector<8x1xf32>
    tpu.vector_store %arg10[%c0_23, %c0_24], %32 {strides = array<i32>} : memref<8x1xf32, #tpu.memory_space<vmem>>, vector<8x1xf32>,
    return
  }
  func.func @transform_0(%arg0: i32) -> (i32, i32) {
    %c0_i32 = arith.constant 0 : i32
    %c0_i32_0 = arith.constant 0 : i32
    return %arg0, %c0_i32 : i32, i32
  }
  func.func @transform_1(%arg0: i32) -> (i32, i32) {
    %c0_i32 = arith.constant 0 : i32
    %c0_i32_0 = arith.constant 0 : i32
    %c0_i32_1 = arith.constant 0 : i32
    return %c0_i32, %c0_i32_0 : i32, i32
  }
  func.func @transform_2(%arg0: i32) -> (i32, i32) {
    %c0_i32 = arith.constant 0 : i32
    %c0_i32_0 = arith.constant 0 : i32
    %c0_i32_1 = arith.constant 0 : i32
    return %c0_i32, %c0_i32_0 : i32, i32
  }
  func.func @transform_3(%arg0: i32) -> (i32, i32) {
    %c0_i32 = arith.constant 0 : i32
    %c0_i32_0 = arith.constant 0 : i32
    %c0_i32_1 = arith.constant 0 : i32
    return %c0_i32, %c0_i32_0 : i32, i32
  }
  func.func @transform_4(%arg0: i32) -> (i32, i32) {
    %c0_i32 = arith.constant 0 : i32
    %c0_i32_0 = arith.constant 0 : i32
    %c0_i32_1 = arith.constant 0 : i32
    return %c0_i32, %c0_i32_0 : i32, i32
  }
  func.func @transform_5(%arg0: i32) -> (i32, i32) {
    %c0_i32 = arith.constant 0 : i32
    %c0_i32_0 = arith.constant 0 : i32
    %c0_i32_1 = arith.constant 0 : i32
    return %c0_i32, %c0_i32_0 : i32, i32
  }
  func.func @transform_6(%arg0: i32) -> (i32, i32) {
    %c0_i32 = arith.constant 0 : i32
    %c0_i32_0 = arith.constant 0 : i32
    %c0_i32_1 = arith.constant 0 : i32
    return %c0_i32, %c0_i32_0 : i32, i32
  }
  func.func @transform_7(%arg0: i32) -> (i32, i32) {
    %c0_i32 = arith.constant 0 : i32
    %c0_i32_0 = arith.constant 0 : i32
    %c0_i32_1 = arith.constant 0 : i32
    return %c0_i32, %c0_i32_0 : i32, i32
  }
  func.func @transform_8(%arg0: i32) -> (i32, i32) {
    %c0_i32 = arith.constant 0 : i32
    %c0_i32_0 = arith.constant 0 : i32
    %c0_i32_1 = arith.constant 0 : i32
    return %c0_i32, %c0_i32_0 : i32, i32
  }
  func.func @transform_9(%arg0: i32) -> (i32, i32) {
    %c0_i32 = arith.constant 0 : i32
    %c0_i32_0 = arith.constant 0 : i32
    return %arg0, %c0_i32 : i32, i32
  }
}

</mosaic_0001>

<llo_original>
// kernel: mdgt_forward.2
$region0: #{mdgt_forward.2}
  #allocation0 [shape = 'u32[]', space=smem, size = 0x4, offset = 0x4, fixed_abs, tag = 'smem constant byte address 0x4 - core index']
  #allocation1 [shape = 'u32[144,128]{1,0:T(1,128)}', space=vmem, size = 0x12000, scoped, tag = 'internal scratch']
  %s0 = inlined_call_operand.vmem [shape: bf16[8,8,320], index: 0, kind: input, shape index: {}]
  %s1 = inlined_call_operand.vmem [shape: bf16[8,16,128], index: 1, kind: input, shape index: {}]
  %s2 = inlined_call_operand.vmem [shape: bf16[8,8,128], index: 2, kind: input, shape index: {}]
  %s3 = inlined_call_operand.vmem [shape: bf16[320,128], index: 3, kind: input, shape index: {}]
  %s4 = inlined_call_operand.vmem [shape: f32[1,128], index: 4, kind: input, shape index: {}]
  %s5 = inlined_call_operand.vmem [shape: bf16[128,256], index: 5, kind: input, shape index: {}]
  %s6 = inlined_call_operand.vmem [shape: f32[1,256], index: 6, kind: input, shape index: {}]
  %s7 = inlined_call_operand.vmem [shape: bf16[128,128], index: 7, kind: input, shape index: {}]
  %s8 = inlined_call_operand.hbm [shape: f32[1,128], index: 8, kind: input, shape index: {}]
  %s9 = inlined_call_operand.vmem [shape: bf16[128,128], index: 9, kind: input, shape index: {}]
  %s10 = inlined_call_operand.hbm [shape: f32[1,128], index: 10, kind: input, shape index: {}]
  %s11 = inlined_call_operand.vmem [shape: bf16[128,128], index: 11, kind: input, shape index: {}]
  %s12 = inlined_call_operand.hbm [shape: f32[1,128], index: 12, kind: input, shape index: {}]
  %s13 = inlined_call_operand.vmem [shape: f32[8,128], index: 13, kind: output, shape index: {}]
  %s14 = sld [smem:[#allocation0]]
  $region74: #{mdgt_forward.2} parent=0
    _
  %s16 = ssub.s32 1, %s14
  %s17 = scalar_select 0, %s16, %s14
  $region1: #{mdgt_forward.2} parent=0
    #allocation2 [shape = 'u8[512]{0}', space=vmem, size = 0x400, scoped, tag = 'input window, operand 8, single buffered']
    #allocation3 [shape = 's32[1]{0}', space=sflag, size = 0x4, scoped, tag = 'scoped memory for mdgt_forward.2']
    #allocation4 [shape = 'u8[512]{0}', space=vmem, size = 0x400, scoped, tag = 'input window, operand 10, single buffered']
    #allocation5 [shape = 's32[1]{0}', space=sflag, size = 0x4, scoped, tag = 'scoped memory for mdgt_forward.2']
    #allocation6 [shape = 'u8[512]{0}', space=vmem, size = 0x400, scoped, tag = 'input window, operand 12, single buffered']
    %18 = vsyncpa [#allocation3], 0
    %19 = vsyncpa [#allocation5], 0
    // Predicated region
    $region2: #{mdgt_forward.2} parent=1 // pred_check
      _
    $region3: #{mdgt_forward.2} parent=1 // pred_check_branch
      %21 = sbr.rel (0) target = $region5
    $region4: #{mdgt_forward.2} parent=1 // pred_region
      _
    $region5: #{mdgt_forward.2} parent=1 // pred_fallthru
      _
    // Predicated region
    $region6: #{mdgt_forward.2} parent=1 // pred_check
      _
    $region7: #{mdgt_forward.2} parent=1 // pred_check_branch
      %23 = sbr.rel (0) target = $region9
    $region8: #{mdgt_forward.2} parent=1 // pred_region
      _
    $region9: #{mdgt_forward.2} parent=1 // pred_fallthru
      _
    // Predicated region
    $region10: #{mdgt_forward.2} parent=1 // pred_check
      _
    $region11: #{mdgt_forward.2} parent=1 // pred_check_branch
      %25 = sbr.rel (0) target = $region13
    $region12: #{mdgt_forward.2} parent=1 // pred_region
      _
    $region13: #{mdgt_forward.2} parent=1 // pred_fallthru
      _
    // Predicated region
    $region14: #{mdgt_forward.2} parent=1 // pred_check
      _
    $region15: #{mdgt_forward.2} parent=1 // pred_check_branch
      %27 = sbr.rel (0) target = $region17
    $region16: #{mdgt_forward.2} parent=1 // pred_region
      _
    $region17: #{mdgt_forward.2} parent=1 // pred_fallthru
      _
    // Predicated region
    $region18: #{mdgt_forward.2} parent=1 // pred_check
      _
    $region19: #{mdgt_forward.2} parent=1 // pred_check_branch
      %29 = sbr.rel (0) target = $region21
    $region20: #{mdgt_forward.2} parent=1 // pred_region
      _
    $region21: #{mdgt_forward.2} parent=1 // pred_fallthru
      _
    // Predicated region
    $region22: #{mdgt_forward.2} parent=1 // pred_check
      _
    $region23: #{mdgt_forward.2} parent=1 // pred_check_branch
      %31 = sbr.rel (0) target = $region25
    $region24: #{mdgt_forward.2} parent=1 // pred_region
      _
    $region25: #{mdgt_forward.2} parent=1 // pred_fallthru
      _
    // Predicated region
    $region26: #{mdgt_forward.2} parent=1 // pred_check
      _
    $region27: #{mdgt_forward.2} parent=1 // pred_check_branch
      %33 = sbr.rel (0) target = $region29
    $region28: #{mdgt_forward.2} parent=1 // pred_region
      _
    $region29: #{mdgt_forward.2} parent=1 // pred_fallthru
      _
    // Predicated region
    $region30: #{mdgt_forward.2} parent=1 // pred_check
      _
    $region31: #{mdgt_forward.2} parent=1 // pred_check_branch
      %35 = sbr.rel (0) target = $region33
    $region32: #{mdgt_forward.2} parent=1 // pred_region
      _
    $region33: #{mdgt_forward.2} parent=1 // pred_fallthru
      _
    // Predicated region
    $region34: #{mdgt_forward.2} parent=1 // pred_check
      _
    $region35: #{mdgt_forward.2} parent=1 // pred_check_branch
      %37 = sbr.rel (0) target = $region37
    $region36: #{mdgt_forward.2} parent=1 // pred_region
      %s39 = ssub.s32 16, 16
      %40 = vsyncadd [#allocation3], %s39
      %s42 = sshll.u32 [#allocation2], 4
      %s43 = int_to_ptr.vmem [resolvable:$true] %s42
      %45 = dma.hbm_to_vmem [thread:$0]  %s8, 16, %s43, [#allocation3]
    $region37: #{mdgt_forward.2} parent=1 // pred_fallthru
      _
    // Predicated region
    $region38: #{mdgt_forward.2} parent=1 // pred_check
      _
    $region39: #{mdgt_forward.2} parent=1 // pred_check_branch
      %47 = sbr.rel (0) target = $region41
    $region40: #{mdgt_forward.2} parent=1 // pred_region
      _
    $region41: #{mdgt_forward.2} parent=1 // pred_fallthru
      _
    // Predicated region
    $region42: #{mdgt_forward.2} parent=1 // pred_check
      _
    $region43: #{mdgt_forward.2} parent=1 // pred_check_branch
      %49 = sbr.rel (0) target = $region45
    $region44: #{mdgt_forward.2} parent=1 // pred_region
      %s51 = ssub.s32 16, 16
      %52 = vsyncadd [#allocation5], %s51
      %s54 = sshll.u32 [#allocation4], 4
      %s55 = int_to_ptr.vmem [resolvable:$true] %s54
      %57 = dma.hbm_to_vmem [thread:$0]  %s10, 16, %s55, [#allocation5]
    $region45: #{mdgt_forward.2} parent=1 // pred_fallthru
      _
    // Predicated region
    $region46: #{mdgt_forward.2} parent=1 // pred_check
      _
    $region47: #{mdgt_forward.2} parent=1 // pred_check_branch
      %59 = sbr.rel (0) target = $region49
    $region48: #{mdgt_forward.2} parent=1 // pred_region
      _
    $region49: #{mdgt_forward.2} parent=1 // pred_fallthru
      _
    // Predicated region
    $region50: #{mdgt_forward.2} parent=1 // pred_check
      _
    $region51: #{mdgt_forward.2} parent=1 // pred_check_branch
      %61 = sbr.rel (0) target = $region53
    $region52: #{mdgt_forward.2} parent=1 // pred_region
      %s63 = ssub.s32 16, 16
      %64 = vsyncadd [#allocation5], %s63
      %s66 = sshll.u32 [#allocation6], 4
      %s67 = int_to_ptr.vmem [resolvable:$true] %s66
      %69 = dma.hbm_to_vmem [thread:$0]  %s12, 16, %s67, [#allocation5]
    $region53: #{mdgt_forward.2} parent=1 // pred_fallthru
      _
    // Predicated region
    $region54: #{mdgt_forward.2} parent=1 // pred_check
      _
    $region55: #{mdgt_forward.2} parent=1 // pred_check_branch
      %71 = sbr.rel (0) target = $region57
    $region56: #{mdgt_forward.2} parent=1 // pred_region
      %72 = dma.done [#allocation3], 16
    $region57: #{mdgt_forward.2} parent=1 // pred_fallthru
      _
    // Predicated region
    $region58: #{mdgt_forward.2} parent=1 // pred_check
      _
    $region59: #{mdgt_forward.2} parent=1 // pred_check_branch
      %74 = sbr.rel (0) target = $region61
    $region60: #{mdgt_forward.2} parent=1 // pred_region
      %75 = dma.done [#allocation5], 16
    $region61: #{mdgt_forward.2} parent=1 // pred_fallthru
      _
    // Predicated region
    $region62: #{mdgt_forward.2} parent=1 // pred_check
      _
    $region63: #{mdgt_forward.2} parent=1 // pred_check_branch
      %77 = sbr.rel (0) target = $region65
    $region64: #{mdgt_forward.2} parent=1 // pred_region
      %78 = dma.done [#allocation5], 16
    $region65: #{mdgt_forward.2} parent=1 // pred_fallthru
      _
    %v80 = vld [vmem:[%s0] sm:$0xff]
    %v81 = vld [vmem:[%s0 + $0x8] sm:$0xf]
    %v82 = vld [vmem:[%s0 + $0xc] sm:$0xff]
    %v83 = vld [vmem:[%s0 + $0x14] sm:$0xf]
    %v84 = vld [vmem:[%s0 + $0x18] sm:$0xff]
    %v85 = vld [vmem:[%s0 + $0x20] sm:$0xf]
    %v86 = vld [vmem:[%s0 + $0x24] sm:$0xff]
    %v87 = vld [vmem:[%s0 + $0x2c] sm:$0xf]
    %v88 = vld [vmem:[%s0 + $0x30] sm:$0xff]
    %v89 = vld [vmem:[%s0 + $0x38] sm:$0xf]
    %v90 = vld [vmem:[%s0 + $0x3c] sm:$0xff]
    %v91 = vld [vmem:[%s0 + $0x44] sm:$0xf]
    %v92 = vld [vmem:[%s0 + $0x48] sm:$0xff]
    %v93 = vld [vmem:[%s0 + $0x50] sm:$0xf]
    %v94 = vld [vmem:[%s0 + $0x54] sm:$0xff]
    %v95 = vld [vmem:[%s0 + $0x5c] sm:$0xf]
    %v96 = vld [vmem:[%s1] sm:$0xf]
    %v97 = vld [vmem:[%s1 + $0x4] sm:$0xf]
    %v98 = vld [vmem:[%s1 + $0x8] sm:$0xf]
    %v99 = vld [vmem:[%s1 + $0xc] sm:$0xf]
    %v100 = vld [vmem:[%s1 + $0x10] sm:$0xf]
    %v101 = vld [vmem:[%s1 + $0x14] sm:$0xf]
    %v102 = vld [vmem:[%s1 + $0x18] sm:$0xf]
    %v103 = vld [vmem:[%s1 + $0x1c] sm:$0xf]
    %v104 = vld [vmem:[%s1 + $0x20] sm:$0xf]
    %v105 = vld [vmem:[%s1 + $0x24] sm:$0xf]
    %v106 = vld [vmem:[%s1 + $0x28] sm:$0xf]
    %v107 = vld [vmem:[%s1 + $0x2c] sm:$0xf]
    %v108 = vld [vmem:[%s1 + $0x30] sm:$0xf]
    %v109 = vld [vmem:[%s1 + $0x34] sm:$0xf]
    %v110 = vld [vmem:[%s1 + $0x38] sm:$0xf]
    %v111 = vld [vmem:[%s1 + $0x3c] sm:$0xf]
    %v112 = vld [vmem:[%s2] sm:$0xf]
    %v113 = vld [vmem:[%s2 + $0x4] sm:$0xf]
    %v114 = vld [vmem:[%s2 + $0x8] sm:$0xf]
    %v115 = vld [vmem:[%s2 + $0xc] sm:$0xf]
    %v116 = vld [vmem:[%s2 + $0x10] sm:$0xf]
    %v117 = vld [vmem:[%s2 + $0x14] sm:$0xf]
    %v118 = vld [vmem:[%s2 + $0x18] sm:$0xf]
    %v119 = vld [vmem:[%s2 + $0x1c] sm:$0xf]
    %v120 = vld [vmem:[%s3] sm:$0xf]
    %v121 = vld [vmem:[%s3 + $0x4] sm:$0xf]
    %v122 = vld [vmem:[%s3 + $0x8] sm:$0xf]
    %v123 = vld [vmem:[%s3 + $0xc] sm:$0xf]
    %v124 = vld [vmem:[%s3 + $0x10] sm:$0xf]
    %v125 = vld [vmem:[%s3 + $0x14] sm:$0xf]
    %v126 = vld [vmem:[%s3 + $0x18] sm:$0xf]
    %v127 = vld [vmem:[%s3 + $0x1c] sm:$0xf]
    %v128 = vld [vmem:[%s3 + $0x20] sm:$0xf]
    %v129 = vld [vmem:[%s3 + $0x24] sm:$0xf]
    %v130 = vld [vmem:[%s3 + $0x28] sm:$0xf]
    %v131 = vld [vmem:[%s3 + $0x2c] sm:$0xf]
    %v132 = vld [vmem:[%s3 + $0x30] sm:$0xf]
    %v133 = vld [vmem:[%s3 + $0x34] sm:$0xf]
    %v134 = vld [vmem:[%s3 + $0x38] sm:$0xf]
    %v135 = vld [vmem:[%s3 + $0x3c] sm:$0xf]
    %v136 = vld [vmem:[%s3 + $0x40] sm:$0xf]
    %v137 = vld [vmem:[%s3 + $0x44] sm:$0xf]
    %v138 = vld [vmem:[%s3 + $0x48] sm:$0xf]
    %v139 = vld [vmem:[%s3 + $0x4c] sm:$0xf]
    %v140 = vld [vmem:[%s3 + $0x50] sm:$0xf]
    %v141 = vld [vmem:[%s3 + $0x54] sm:$0xf]
    %v142 = vld [vmem:[%s3 + $0x58] sm:$0xf]
    %v143 = vld [vmem:[%s3 + $0x5c] sm:$0xf]
    %v144 = vld [vmem:[%s3 + $0x60] sm:$0xf]
    %v145 = vld [vmem:[%s3 + $0x64] sm:$0xf]
    %v146 = vld [vmem:[%s3 + $0x68] sm:$0xf]
    %v147 = vld [vmem:[%s3 + $0x6c] sm:$0xf]
    %v148 = vld [vmem:[%s3 + $0x70] sm:$0xf]
    %v149 = vld [vmem:[%s3 + $0x74] sm:$0xf]
    %v150 = vld [vmem:[%s3 + $0x78] sm:$0xf]
    %v151 = vld [vmem:[%s3 + $0x7c] sm:$0xf]
    %v152 = vld [vmem:[%s3 + $0x80] sm:$0xf]
    %v153 = vld [vmem:[%s3 + $0x84] sm:$0xf]
    %v154 = vld [vmem:[%s3 + $0x88] sm:$0xf]
    %v155 = vld [vmem:[%s3 + $0x8c] sm:$0xf]
    %v156 = vld [vmem:[%s3 + $0x90] sm:$0xf]
    %v157 = vld [vmem:[%s3 + $0x94] sm:$0xf]
    %v158 = vld [vmem:[%s3 + $0x98] sm:$0xf]
    %v159 = vld [vmem:[%s3 + $0x9c] sm:$0xf]
    %v160 = vld [vmem:[%s4] sm:$0x1]
    %v162 = vlaneseq
    %v163 = vshrl.u32 %v162, 7
    %v164 = vsub.s32 0, %v163
    %v165 = vrot.slane %v160, %v164
    %v183 = vunpack.c.l.b16 %v80
    %v184 = vunpack.c.h.b16 %v80
    %v185 = vunpack.c.l.b16 %v81
    %v186 = vunpack.c.l.b16 %v82
    %v187 = vunpack.c.h.b16 %v82
    %v188 = vunpack.c.l.b16 %v83
    %v189 = vunpack.c.l.b16 %v84
    %v190 = vunpack.c.h.b16 %v84
    %v191 = vunpack.c.l.b16 %v85
    %v192 = vunpack.c.l.b16 %v86
    %v193 = vunpack.c.h.b16 %v86
    %v194 = vunpack.c.l.b16 %v87
    %v195 = vunpack.c.l.b16 %v88
    %v196 = vunpack.c.h.b16 %v88
    %v197 = vunpack.c.l.b16 %v89
    %v198 = vunpack.c.l.b16 %v90
    %v199 = vunpack.c.h.b16 %v90
    %v200 = vunpack.c.l.b16 %v91
    %v201 = vunpack.c.l.b16 %v92
    %v202 = vunpack.c.h.b16 %v92
    %v203 = vunpack.c.l.b16 %v93
    %v204 = vunpack.c.l.b16 %v94
    %v205 = vunpack.c.h.b16 %v94
    %v206 = vunpack.c.l.b16 %v95
    %v207 = vpack.c.b16 %v186, %v183
    %v208 = vpack.c.b16 %v187, %v184
    %v209 = vpack.c.b16 %v188, %v185
    %v210 = vpack.c.b16 %v192, %v189
    %v211 = vpack.c.b16 %v193, %v190
    %v212 = vpack.c.b16 %v194, %v191
    %v213 = vpack.c.b16 %v198, %v195
    %v214 = vpack.c.b16 %v199, %v196
    %v215 = vpack.c.b16 %v200, %v197
    %v216 = vpack.c.b16 %v204, %v201
    %v217 = vpack.c.b16 %v205, %v202
    %v218 = vpack.c.b16 %v206, %v203
    %v267 = vunpack.c.l.b16 %v120
    %v268 = vunpack.c.l.b16 %v121
    %v269 = vunpack.c.l.b16 %v122
    %v270 = vunpack.c.l.b16 %v123
    %v271 = vunpack.c.l.b16 %v124
    %v272 = vunpack.c.l.b16 %v125
    %v273 = vunpack.c.l.b16 %v126
    %v274 = vunpack.c.l.b16 %v127
    %v275 = vunpack.c.l.b16 %v128
    %v276 = vunpack.c.l.b16 %v129
    %v277 = vunpack.c.l.b16 %v130
    %v278 = vunpack.c.l.b16 %v131
    %v279 = vunpack.c.l.b16 %v132
    %v280 = vunpack.c.l.b16 %v133
    %v281 = vunpack.c.l.b16 %v134
    %v282 = vunpack.c.l.b16 %v135
    %v283 = vunpack.c.l.b16 %v136
    %v284 = vunpack.c.l.b16 %v137
    %v285 = vunpack.c.l.b16 %v138
    %v286 = vunpack.c.l.b16 %v139
    %v287 = vunpack.c.l.b16 %v140
    %v288 = vunpack.c.l.b16 %v141
    %v289 = vunpack.c.l.b16 %v142
    %v290 = vunpack.c.l.b16 %v143
    %v291 = vunpack.c.l.b16 %v144
    %v292 = vunpack.c.l.b16 %v145
    %v293 = vunpack.c.l.b16 %v146
    %v294 = vunpack.c.l.b16 %v147
    %v295 = vunpack.c.l.b16 %v148
    %v296 = vunpack.c.l.b16 %v149
    %v297 = vunpack.c.l.b16 %v150
    %v298 = vunpack.c.l.b16 %v151
    %v299 = vunpack.c.l.b16 %v152
    %v300 = vunpack.c.l.b16 %v153
    %v301 = vunpack.c.l.b16 %v154
    %v302 = vunpack.c.l.b16 %v155
    %v303 = vunpack.c.l.b16 %v156
    %v304 = vunpack.c.l.b16 %v157
    %v305 = vunpack.c.l.b16 %v158
    %v306 = vunpack.c.l.b16 %v159
    %v307 = vpack.c.b16 %v268, %v267
    %v308 = vpack.c.b16 %v270, %v269
    %v309 = vpack.c.b16 %v272, %v271
    %v310 = vpack.c.b16 %v274, %v273
    %v311 = vpack.c.b16 %v276, %v275
    %v312 = vpack.c.b16 %v278, %v277
    %v313 = vpack.c.b16 %v280, %v279
    %v314 = vpack.c.b16 %v282, %v281
    %v315 = vpack.c.b16 %v284, %v283
    %v316 = vpack.c.b16 %v286, %v285
    %v317 = vpack.c.b16 %v288, %v287
    %v318 = vpack.c.b16 %v290, %v289
    %v319 = vpack.c.b16 %v292, %v291
    %v320 = vpack.c.b16 %v294, %v293
    %v321 = vpack.c.b16 %v296, %v295
    %v322 = vpack.c.b16 %v298, %v297
    %v323 = vpack.c.b16 %v300, %v299
    %v324 = vpack.c.b16 %v302, %v301
    %v325 = vpack.c.b16 %v304, %v303
    %v326 = vpack.c.b16 %v306, %v305
    %vm347 = vcmask 523264
    %v349 = vsel %vm347, %v209, 0
    %v352 = vsel %vm347, %v212, 0
    %v355 = vsel %vm347, %v215, 0
    %v358 = vsel %vm347, %v218, 0
    %360 = vmatprep.subr.bf16.mxu0 0
    %361 = vmatpush1.bf16.msra.mxu0 %v314
    %362 = vmatprep.subr.bf16.mxu0 0
    %363 = vmatpush1.bf16.msra.mxu0 %v313
    %364 = vmatprep.subr.bf16.mxu0 0
    %365 = vmatpush1.bf16.msra.mxu0 %v312
    %366 = vmatprep.subr.bf16.mxu0 0
    %367 = vmatpush1.bf16.msra.mxu0 %v311
    %368 = vmatprep.subr.bf16.mxu0 0
    %369 = vmatpush1.bf16.msra.mxu0 %v310
    %370 = vmatprep.subr.bf16.mxu0 0
    %371 = vmatpush1.bf16.msra.mxu0 %v309
    %372 = vmatprep.subr.bf16.mxu0 0
    %373 = vmatpush1.bf16.msra.mxu0 %v308
    %374 = vmatprep.subr.bf16.mxu0 0
    %375 = vmatpush1.bf16.msra.mxu0 %v307
    %376 = vmatprep.subr.bf16.mxu0 0
    %377 = vmatpush2.bf16.msra.mxu0 %v322
    %378 = vmatprep.subr.bf16.mxu0 0
    %379 = vmatpush2.bf16.msra.mxu0 %v321
    %380 = vmatprep.subr.bf16.mxu0 0
    %381 = vmatpush2.bf16.msra.mxu0 %v320
    %382 = vmatprep.subr.bf16.mxu0 0
    %383 = vmatpush2.bf16.msra.mxu0 %v319
    %384 = vmatprep.subr.bf16.mxu0 0
    %385 = vmatpush2.bf16.msra.mxu0 %v318
    %386 = vmatprep.subr.bf16.mxu0 0
    %387 = vmatpush2.bf16.msra.mxu0 %v317
    %388 = vmatprep.subr.bf16.mxu0 0
    %389 = vmatpush2.bf16.msra.mxu0 %v316
    %390 = vmatprep.subr.bf16.mxu0 0
    %391 = vmatpush2.bf16.msra.mxu0 %v315
    %392 = vmatprep.mubr.bf16.mxu0 %v208
    %393 = vmatmul.mubr.bf16.gmra.mxu0 %v207
    %v394 = vpop.f32.mrf.mxu0
    %v395 = vadd.f32 %v165, %v394
    %v396 = vpop.f32.mrf.mxu0
    %v397 = vpop.f32.mrf.mxu0
    %v398 = vadd.f32 %v165, %v397
    %v399 = vpop.f32.mrf.mxu0
    %400 = vmatprep.mubr.bf16.mxu0 %v211
    %401 = vmatmul.mubr.bf16.gmra.mxu0 %v210
    %v402 = vpop.f32.mrf.mxu0
    %v403 = vadd.f32 %v165, %v402
    %v404 = vpop.f32.mrf.mxu0
    %v405 = vpop.f32.mrf.mxu0
    %v406 = vadd.f32 %v165, %v405
    %v407 = vpop.f32.mrf.mxu0
    %408 = vmatprep.mubr.bf16.mxu0 %v214
    %409 = vmatmul.mubr.bf16.gmra.mxu0 %v213
    %v410 = vpop.f32.mrf.mxu0
    %v411 = vadd.f32 %v165, %v410
    %v412 = vpop.f32.mrf.mxu0
    %v413 = vpop.f32.mrf.mxu0
    %v414 = vadd.f32 %v165, %v413
    %v415 = vpop.f32.mrf.mxu0
    %416 = vmatprep.mubr.bf16.mxu0 %v217
    %417 = vmatmul.mubr.bf16.gmra.mxu0 %v216
    %v418 = vpop.f32.mrf.mxu0
    %v419 = vadd.f32 %v165, %v418
    %v420 = vpop.f32.mrf.mxu0
    %v421 = vpop.f32.mrf.mxu0
    %v422 = vadd.f32 %v165, %v421
    %v423 = vpop.f32.mrf.mxu0
    %424 = vdwg.mxu0
    %425 = vmatprep.subr.bf16.mxu0 0
    %426 = vmatpush1.bf16.msra.mxu0 0
    %427 = vmatprep.subr.bf16.mxu0 0
    %428 = vmatpush1.bf16.msra.mxu0 0
    %429 = vmatprep.subr.bf16.mxu0 0
    %430 = vmatpush1.bf16.msra.mxu0 0
    %431 = vmatprep.subr.bf16.mxu0 0
    %432 = vmatpush1.bf16.msra.mxu0 0
    %433 = vmatprep.subr.bf16.mxu0 0
    %434 = vmatpush1.bf16.msra.mxu0 %v326
    %435 = vmatprep.subr.bf16.mxu0 0
    %436 = vmatpush1.bf16.msra.mxu0 %v325
    %437 = vmatprep.subr.bf16.mxu0 0
    %438 = vmatpush1.bf16.msra.mxu0 %v324
    %439 = vmatprep.subr.bf16.mxu0 0
    %440 = vmatpush1.bf16.msra.mxu0 %v323
    %441 = vmatprep.subr.bf16.mxu0 0
    %442 = vmatpush2.bf16.msra.mxu0 0
    %443 = vmatprep.subr.bf16.mxu0 0
    %444 = vmatpush2.bf16.msra.mxu0 0
    %445 = vmatprep.subr.bf16.mxu0 0
    %446 = vmatpush2.bf16.msra.mxu0 0
    %447 = vmatprep.subr.bf16.mxu0 0
    %448 = vmatpush2.bf16.msra.mxu0 0
    %449 = vmatprep.subr.bf16.mxu0 0
    %450 = vmatpush2.bf16.msra.mxu0 0
    %451 = vmatprep.subr.bf16.mxu0 0
    %452 = vmatpush2.bf16.msra.mxu0 0
    %453 = vmatprep.subr.bf16.mxu0 0
    %454 = vmatpush2.bf16.msra.mxu0 0
    %455 = vmatprep.subr.bf16.mxu0 0
    %456 = vmatpush2.bf16.msra.mxu0 0
    %457 = vmatprep.mubr.bf16.mxu0 0
    %458 = vmatmul.mubr.bf16.gmra.mxu0 %v349
    %v459 = vpop.f32.mrf.mxu0
    %v460 = vadd.f32 %v395, %v459
    %v461 = vpop.f32.mrf.mxu0
    %v462 = vpop.f32.mrf.mxu0
    %v463 = vadd.f32 %v398, %v462
    %v464 = vpop.f32.mrf.mxu0
    %465 = vmatprep.mubr.bf16.mxu0 0
    %466 = vmatmul.mubr.bf16.gmra.mxu0 %v352
    %v467 = vpop.f32.mrf.mxu0
    %v468 = vadd.f32 %v403, %v467
    %v469 = vpop.f32.mrf.mxu0
    %v470 = vpop.f32.mrf.mxu0
    %v471 = vadd.f32 %v406, %v470
    %v472 = vpop.f32.mrf.mxu0
    %473 = vmatprep.mubr.bf16.mxu0 0
    %474 = vmatmul.mubr.bf16.gmra.mxu0 %v355
    %v475 = vpop.f32.mrf.mxu0
    %v476 = vadd.f32 %v411, %v475
    %v477 = vpop.f32.mrf.mxu0
    %v478 = vpop.f32.mrf.mxu0
    %v479 = vadd.f32 %v414, %v478
    %v480 = vpop.f32.mrf.mxu0
    %481 = vmatprep.mubr.bf16.mxu0 0
    %482 = vmatmul.mubr.bf16.gmra.mxu0 %v358
    %v483 = vpop.f32.mrf.mxu0
    %v484 = vadd.f32 %v419, %v483
    %v485 = vpop.f32.mrf.mxu0
    %v486 = vpop.f32.mrf.mxu0
    %v487 = vadd.f32 %v422, %v486
    %v488 = vpop.f32.mrf.mxu0
    %489 = vdwg.mxu0
    %v490 = vld [vmem:[%s5] sm:$0xff]
    %v491 = vld [vmem:[%s5 + $0x8] sm:$0xff]
    %v492 = vld [vmem:[%s5 + $0x10] sm:$0xff]
    %v493 = vld [vmem:[%s5 + $0x18] sm:$0xff]
    %v494 = vld [vmem:[%s5 + $0x20] sm:$0xff]
    %v495 = vld [vmem:[%s5 + $0x28] sm:$0xff]
    %v496 = vld [vmem:[%s5 + $0x30] sm:$0xff]
    %v497 = vld [vmem:[%s5 + $0x38] sm:$0xff]
    %v498 = vld [vmem:[%s5 + $0x40] sm:$0xff]
    %v499 = vld [vmem:[%s5 + $0x48] sm:$0xff]
    %v500 = vld [vmem:[%s5 + $0x50] sm:$0xff]
    %v501 = vld [vmem:[%s5 + $0x58] sm:$0xff]
    %v502 = vld [vmem:[%s5 + $0x60] sm:$0xff]
    %v503 = vld [vmem:[%s5 + $0x68] sm:$0xff]
    %v504 = vld [vmem:[%s5 + $0x70] sm:$0xff]
    %v505 = vld [vmem:[%s5 + $0x78] sm:$0xff]
    %v506 = vld [vmem:[%s6] sm:$0x3]
    %v508 = vlaneseq
    %v509 = vshrl.u32 %v508, 7
    %v510 = vsub.s32 0, %v509
    %v511 = vrot.slane %v506, %v510
    %v512 = vlaneseq
    %v513 = vshrl.u32 %v512, 7
    %v514 = vsub.s32 1, %v513
    %v515 = vrot.slane %v506, %v514
    %v534 = vunpack.c.l.b16 %v96
    %v535 = vunpack.c.l.b16 %v97
    %v536 = vunpack.c.l.b16 %v98
    %v537 = vunpack.c.l.b16 %v99
    %v538 = vunpack.c.l.b16 %v100
    %v539 = vunpack.c.l.b16 %v101
    %v540 = vunpack.c.l.b16 %v102
    %v541 = vunpack.c.l.b16 %v103
    %v542 = vunpack.c.l.b16 %v104
    %v543 = vunpack.c.l.b16 %v105
    %v544 = vunpack.c.l.b16 %v106
    %v545 = vunpack.c.l.b16 %v107
    %v546 = vunpack.c.l.b16 %v108
    %v547 = vunpack.c.l.b16 %v109
    %v548 = vunpack.c.l.b16 %v110
    %v549 = vunpack.c.l.b16 %v111
    %v550 = vpack.c.b16 %v535, %v534
    %v551 = vpack.c.b16 %v537, %v536
    %v552 = vpack.c.b16 %v539, %v538
    %v553 = vpack.c.b16 %v541, %v540
    %v554 = vpack.c.b16 %v543, %v542
    %v555 = vpack.c.b16 %v545, %v544
    %v556 = vpack.c.b16 %v547, %v546
    %v557 = vpack.c.b16 %v549, %v548
    %v582 = vunpack.c.l.b16 %v490
    %v583 = vunpack.c.h.b16 %v490
    %v584 = vunpack.c.l.b16 %v491
    %v585 = vunpack.c.h.b16 %v491
    %v586 = vunpack.c.l.b16 %v492
    %v587 = vunpack.c.h.b16 %v492
    %v588 = vunpack.c.l.b16 %v493
    %v589 = vunpack.c.h.b16 %v493
    %v590 = vunpack.c.l.b16 %v494
    %v591 = vunpack.c.h.b16 %v494
    %v592 = vunpack.c.l.b16 %v495
    %v593 = vunpack.c.h.b16 %v495
    %v594 = vunpack.c.l.b16 %v496
    %v595 = vunpack.c.h.b16 %v496
    %v596 = vunpack.c.l.b16 %v497
    %v597 = vunpack.c.h.b16 %v497
    %v598 = vunpack.c.l.b16 %v498
    %v599 = vunpack.c.h.b16 %v498
    %v600 = vunpack.c.l.b16 %v499
    %v601 = vunpack.c.h.b16 %v499
    %v602 = vunpack.c.l.b16 %v500
    %v603 = vunpack.c.h.b16 %v500
    %v604 = vunpack.c.l.b16 %v501
    %v605 = vunpack.c.h.b16 %v501
    %v606 = vunpack.c.l.b16 %v502
    %v607 = vunpack.c.h.b16 %v502
    %v608 = vunpack.c.l.b16 %v503
    %v609 = vunpack.c.h.b16 %v503
    %v610 = vunpack.c.l.b16 %v504
    %v611 = vunpack.c.h.b16 %v504
    %v612 = vunpack.c.l.b16 %v505
    %v613 = vunpack.c.h.b16 %v505
    %v614 = vpack.c.b16 %v584, %v582
    %v615 = vpack.c.b16 %v585, %v583
    %v616 = vpack.c.b16 %v588, %v586
    %v617 = vpack.c.b16 %v589, %v587
    %v618 = vpack.c.b16 %v592, %v590
    %v619 = vpack.c.b16 %v593, %v591
    %v620 = vpack.c.b16 %v596, %v594
    %v621 = vpack.c.b16 %v597, %v595
    %v622 = vpack.c.b16 %v600, %v598
    %v623 = vpack.c.b16 %v601, %v599
    %v624 = vpack.c.b16 %v604, %v602
    %v625 = vpack.c.b16 %v605, %v603
    %v626 = vpack.c.b16 %v608, %v606
    %v627 = vpack.c.b16 %v609, %v607
    %v628 = vpack.c.b16 %v612, %v610
    %v629 = vpack.c.b16 %v613, %v611
    %646 = vmatprep.subr.bf16.mxu0 %v629
    %647 = vmatpush1.bf16.msra.mxu0 %v628
    %648 = vmatprep.subr.bf16.mxu0 %v627
    %649 = vmatpush1.bf16.msra.mxu0 %v626
    %650 = vmatprep.subr.bf16.mxu0 %v625
    %651 = vmatpush1.bf16.msra.mxu0 %v624
    %652 = vmatprep.subr.bf16.mxu0 %v623
    %653 = vmatpush1.bf16.msra.mxu0 %v622
    %654 = vmatprep.subr.bf16.mxu0 %v621
    %655 = vmatpush1.bf16.msra.mxu0 %v620
    %656 = vmatprep.subr.bf16.mxu0 %v619
    %657 = vmatpush1.bf16.msra.mxu0 %v618
    %658 = vmatprep.subr.bf16.mxu0 %v617
    %659 = vmatpush1.bf16.msra.mxu0 %v616
    %660 = vmatprep.subr.bf16.mxu0 %v615
    %661 = vmatpush1.bf16.msra.mxu0 %v614
    %662 = vmatprep.subr.bf16.mxu0 0
    %663 = vmatpush2.bf16.msra.mxu0 0
    %664 = vmatprep.subr.bf16.mxu0 0
    %665 = vmatpush2.bf16.msra.mxu0 0
    %666 = vmatprep.subr.bf16.mxu0 0
    %667 = vmatpush2.bf16.msra.mxu0 0
    %668 = vmatprep.subr.bf16.mxu0 0
    %669 = vmatpush2.bf16.msra.mxu0 0
    %670 = vmatprep.subr.bf16.mxu0 0
    %671 = vmatpush2.bf16.msra.mxu0 0
    %672 = vmatprep.subr.bf16.mxu0 0
    %673 = vmatpush2.bf16.msra.mxu0 0
    %674 = vmatprep.subr.bf16.mxu0 0
    %675 = vmatpush2.bf16.msra.mxu0 0
    %676 = vmatprep.subr.bf16.mxu0 0
    %677 = vmatpush2.bf16.msra.mxu0 0
    %678 = vmatprep.mubr.bf16.mxu0 0
    %679 = vmatmul.mubr.bf16.gmra.mxu0 %v550
    %v680 = vpop.f32.mrf.mxu0
    %v681 = vadd.f32 %v511, %v680
    %v682 = vpop.f32.mrf.mxu0
    %v683 = vadd.f32 %v515, %v682
    %v684 = vpop.f32.mrf.mxu0
    %v685 = vadd.f32 %v511, %v684
    %v686 = vpop.f32.mrf.mxu0
    %v687 = vadd.f32 %v515, %v686
    %688 = vmatprep.mubr.bf16.mxu0 0
    %689 = vmatmul.mubr.bf16.gmra.mxu0 %v551
    %v690 = vpop.f32.mrf.mxu0
    %v691 = vadd.f32 %v511, %v690
    %v692 = vpop.f32.mrf.mxu0
    %v693 = vadd.f32 %v515, %v692
    %v694 = vpop.f32.mrf.mxu0
    %v695 = vadd.f32 %v511, %v694
    %v696 = vpop.f32.mrf.mxu0
    %v697 = vadd.f32 %v515, %v696
    %698 = vmatprep.mubr.bf16.mxu0 0
    %699 = vmatmul.mubr.bf16.gmra.mxu0 %v552
    %v700 = vpop.f32.mrf.mxu0
    %v701 = vadd.f32 %v511, %v700
    %v702 = vpop.f32.mrf.mxu0
    %v703 = vadd.f32 %v515, %v702
    %v704 = vpop.f32.mrf.mxu0
    %v705 = vadd.f32 %v511, %v704
    %v706 = vpop.f32.mrf.mxu0
    %v707 = vadd.f32 %v515, %v706
    %708 = vmatprep.mubr.bf16.mxu0 0
    %709 = vmatmul.mubr.bf16.gmra.mxu0 %v553
    %v710 = vpop.f32.mrf.mxu0
    %v711 = vadd.f32 %v511, %v710
    %v712 = vpop.f32.mrf.mxu0
    %v713 = vadd.f32 %v515, %v712
    %v714 = vpop.f32.mrf.mxu0
    %v715 = vadd.f32 %v511, %v714
    %v716 = vpop.f32.mrf.mxu0
    %v717 = vadd.f32 %v515, %v716
    %718 = vmatprep.mubr.bf16.mxu0 0
    %719 = vmatmul.mubr.bf16.gmra.mxu0 %v554
    %v720 = vpop.f32.mrf.mxu0
    %v721 = vadd.f32 %v511, %v720
    %v722 = vpop.f32.mrf.mxu0
    %v723 = vadd.f32 %v515, %v722
    %v724 = vpop.f32.mrf.mxu0
    %v725 = vadd.f32 %v511, %v724
    %v726 = vpop.f32.mrf.mxu0
    %v727 = vadd.f32 %v515, %v726
    %728 = vmatprep.mubr.bf16.mxu0 0
    %729 = vmatmul.mubr.bf16.gmra.mxu0 %v555
    %v730 = vpop.f32.mrf.mxu0
    %v731 = vadd.f32 %v511, %v730
    %v732 = vpop.f32.mrf.mxu0
    %v733 = vadd.f32 %v515, %v732
    %v734 = vpop.f32.mrf.mxu0
    %v735 = vadd.f32 %v511, %v734
    %v736 = vpop.f32.mrf.mxu0
    %v737 = vadd.f32 %v515, %v736
    %738 = vmatprep.mubr.bf16.mxu0 0
    %739 = vmatmul.mubr.bf16.gmra.mxu0 %v556
    %v740 = vpop.f32.mrf.mxu0
    %v741 = vadd.f32 %v511, %v740
    %v742 = vpop.f32.mrf.mxu0
    %v743 = vadd.f32 %v515, %v742
    %v744 = vpop.f32.mrf.mxu0
    %v745 = vadd.f32 %v511, %v744
    %v746 = vpop.f32.mrf.mxu0
    %v747 = vadd.f32 %v515, %v746
    %748 = vmatprep.mubr.bf16.mxu0 0
    %749 = vmatmul.mubr.bf16.gmra.mxu0 %v557
    %v750 = vpop.f32.mrf.mxu0
    %v751 = vadd.f32 %v511, %v750
    %v752 = vpop.f32.mrf.mxu0
    %v753 = vadd.f32 %v515, %v752
    %v754 = vpop.f32.mrf.mxu0
    %v755 = vadd.f32 %v511, %v754
    %v756 = vpop.f32.mrf.mxu0
    %v757 = vadd.f32 %v515, %v756
    %758 = vdwg.mxu0
    %v759 = vpack.c.bf16 %v460, %v460
    %v760 = vpack.c.bf16 %v463, %v463
    %v761 = vpack.c.bf16 %v468, %v468
    %v762 = vpack.c.bf16 %v471, %v471
    %v763 = vpack.c.bf16 %v476, %v476
    %v764 = vpack.c.bf16 %v479, %v479
    %v765 = vpack.c.bf16 %v484, %v484
    %v766 = vpack.c.bf16 %v487, %v487
    %v767 = vpack.c.bf16 %v685, %v681
    %v768 = vpack.c.bf16 %v695, %v691
    %v769 = vpack.c.bf16 %v705, %v701
    %v770 = vpack.c.bf16 %v715, %v711
    %v771 = vpack.c.bf16 %v725, %v721
    %v772 = vpack.c.bf16 %v735, %v731
    %v773 = vpack.c.bf16 %v745, %v741
    %v774 = vpack.c.bf16 %v755, %v751
    %775 = vmatprep.subr.bf16.mxu0 0
    %776 = vmatpush1.bf16.xpose.msra.mxu0 0
    %777 = vmatprep.subr.bf16.mxu0 0
    %778 = vmatpush1.bf16.xpose.msra.mxu0 0
    %779 = vmatprep.subr.bf16.mxu0 0
    %780 = vmatpush1.bf16.xpose.msra.mxu0 0
    %781 = vmatprep.subr.bf16.mxu0 0
    %782 = vmatpush1.bf16.xpose.msra.mxu0 0
    %783 = vmatprep.subr.bf16.mxu0 0
    %784 = vmatpush1.bf16.xpose.msra.mxu0 0
    %785 = vmatprep.subr.bf16.mxu0 0
    %786 = vmatpush1.bf16.xpose.msra.mxu0 0
    %787 = vmatprep.subr.bf16.mxu0 0
    %788 = vmatpush1.bf16.xpose.msra.mxu0 0
    %789 = vmatprep.subr.bf16.mxu0 0
    %790 = vmatpush1.bf16.xpose.msra.mxu0 %v767
    %791 = vmatprep.subr.bf16.mxu0 0
    %792 = vmatpush2.bf16.xpose.msra.mxu0 0
    %793 = vmatprep.subr.bf16.mxu0 0
    %794 = vmatpush2.bf16.xpose.msra.mxu0 0
    %795 = vmatprep.subr.bf16.mxu0 0
    %796 = vmatpush2.bf16.xpose.msra.mxu0 0
    %797 = vmatprep.subr.bf16.mxu0 0
    %798 = vmatpush2.bf16.xpose.msra.mxu0 0
    %799 = vmatprep.subr.bf16.mxu0 0
    %800 = vmatpush2.bf16.xpose.msra.mxu0 0
    %801 = vmatprep.subr.bf16.mxu0 0
    %802 = vmatpush2.bf16.xpose.msra.mxu0 0
    %803 = vmatprep.subr.bf16.mxu0 0
    %804 = vmatpush2.bf16.xpose.msra.mxu0 0
    %805 = vmatprep.subr.bf16.mxu0 0
    %806 = vmatpush2.bf16.xpose.msra.mxu0 0
    %807 = vmatprep.mubr.bf16.mxu0 0
    %808 = vmatmul.mubr.bf16.gmra.mxu0 %v759
    %v809 = vpop.f32.mrf.mxu0
    %v810 = vadd.f32 0.0, %v809
    %v811 = vpop.f32.mrf.mxu0
    %v812 = vpop.f32.mrf.mxu0
    %v813 = vpop.f32.mrf.mxu0
    %814 = vdwg.mxu0
    %815 = vmatprep.subr.bf16.mxu0 0
    %816 = vmatpush1.bf16.xpose.msra.mxu0 0
    %817 = vmatprep.subr.bf16.mxu0 0
    %818 = vmatpush1.bf16.xpose.msra.mxu0 0
    %819 = vmatprep.subr.bf16.mxu0 0
    %820 = vmatpush1.bf16.xpose.msra.mxu0 0
    %821 = vmatprep.subr.bf16.mxu0 0
    %822 = vmatpush1.bf16.xpose.msra.mxu0 0
    %823 = vmatprep.subr.bf16.mxu0 0
    %824 = vmatpush1.bf16.xpose.msra.mxu0 0
    %825 = vmatprep.subr.bf16.mxu0 0
    %826 = vmatpush1.bf16.xpose.msra.mxu0 0
    %827 = vmatprep.subr.bf16.mxu0 0
    %828 = vmatpush1.bf16.xpose.msra.mxu0 0
    %829 = vmatprep.subr.bf16.mxu0 0
    %830 = vmatpush1.bf16.xpose.msra.mxu0 %v768
    %831 = vmatprep.subr.bf16.mxu0 0
    %832 = vmatpush2.bf16.xpose.msra.mxu0 0
    %833 = vmatprep.subr.bf16.mxu0 0
    %834 = vmatpush2.bf16.xpose.msra.mxu0 0
    %835 = vmatprep.subr.bf16.mxu0 0
    %836 = vmatpush2.bf16.xpose.msra.mxu0 0
    %837 = vmatprep.subr.bf16.mxu0 0
    %838 = vmatpush2.bf16.xpose.msra.mxu0 0
    %839 = vmatprep.subr.bf16.mxu0 0
    %840 = vmatpush2.bf16.xpose.msra.mxu0 0
    %841 = vmatprep.subr.bf16.mxu0 0
    %842 = vmatpush2.bf16.xpose.msra.mxu0 0
    %843 = vmatprep.subr.bf16.mxu0 0
    %844 = vmatpush2.bf16.xpose.msra.mxu0 0
    %845 = vmatprep.subr.bf16.mxu0 0
    %846 = vmatpush2.bf16.xpose.msra.mxu0 0
    %847 = vmatprep.mubr.bf16.mxu0 0
    %848 = vmatmul.mubr.bf16.gmra.mxu0 %v760
    %v849 = vpop.f32.mrf.mxu0
    %v850 = vadd.f32 0.0, %v849
    %v851 = vpop.f32.mrf.mxu0
    %v852 = vpop.f32.mrf.mxu0
    %v853 = vpop.f32.mrf.mxu0
    %854 = vdwg.mxu0
    %855 = vmatprep.subr.bf16.mxu0 0
    %856 = vmatpush1.bf16.xpose.msra.mxu0 0
    %857 = vmatprep.subr.bf16.mxu0 0
    %858 = vmatpush1.bf16.xpose.msra.mxu0 0
    %859 = vmatprep.subr.bf16.mxu0 0
    %860 = vmatpush1.bf16.xpose.msra.mxu0 0
    %861 = vmatprep.subr.bf16.mxu0 0
    %862 = vmatpush1.bf16.xpose.msra.mxu0 0
    %863 = vmatprep.subr.bf16.mxu0 0
    %864 = vmatpush1.bf16.xpose.msra.mxu0 0
    %865 = vmatprep.subr.bf16.mxu0 0
    %866 = vmatpush1.bf16.xpose.msra.mxu0 0
    %867 = vmatprep.subr.bf16.mxu0 0
    %868 = vmatpush1.bf16.xpose.msra.mxu0 0
    %869 = vmatprep.subr.bf16.mxu0 0
    %870 = vmatpush1.bf16.xpose.msra.mxu0 %v769
    %871 = vmatprep.subr.bf16.mxu0 0
    %872 = vmatpush2.bf16.xpose.msra.mxu0 0
    %873 = vmatprep.subr.bf16.mxu0 0
    %874 = vmatpush2.bf16.xpose.msra.mxu0 0
    %875 = vmatprep.subr.bf16.mxu0 0
    %876 = vmatpush2.bf16.xpose.msra.mxu0 0
    %877 = vmatprep.subr.bf16.mxu0 0
    %878 = vmatpush2.bf16.xpose.msra.mxu0 0
    %879 = vmatprep.subr.bf16.mxu0 0
    %880 = vmatpush2.bf16.xpose.msra.mxu0 0
    %881 = vmatprep.subr.bf16.mxu0 0
    %882 = vmatpush2.bf16.xpose.msra.mxu0 0
    %883 = vmatprep.subr.bf16.mxu0 0
    %884 = vmatpush2.bf16.xpose.msra.mxu0 0
    %885 = vmatprep.subr.bf16.mxu0 0
    %886 = vmatpush2.bf16.xpose.msra.mxu0 0
    %887 = vmatprep.mubr.bf16.mxu0 0
    %888 = vmatmul.mubr.bf16.gmra.mxu0 %v761
    %v889 = vpop.f32.mrf.mxu0
    %v890 = vadd.f32 0.0, %v889
    %v891 = vpop.f32.mrf.mxu0
    %v892 = vpop.f32.mrf.mxu0
    %v893 = vpop.f32.mrf.mxu0
    %894 = vdwg.mxu0
    %895 = vmatprep.subr.bf16.mxu0 0
    %896 = vmatpush1.bf16.xpose.msra.mxu0 0
    %897 = vmatprep.subr.bf16.mxu0 0
    %898 = vmatpush1.bf16.xpose.msra.mxu0 0
    %899 = vmatprep.subr.bf16.mxu0 0
    %900 = vmatpush1.bf16.xpose.msra.mxu0 0
    %901 = vmatprep.subr.bf16.mxu0 0
    %902 = vmatpush1.bf16.xpose.msra.mxu0 0
    %903 = vmatprep.subr.bf16.mxu0 0
    %904 = vmatpush1.bf16.xpose.msra.mxu0 0
    %905 = vmatprep.subr.bf16.mxu0 0
    %906 = vmatpush1.bf16.xpose.msra.mxu0 0
    %907 = vmatprep.subr.bf16.mxu0 0
    %908 = vmatpush1.bf16.xpose.msra.mxu0 0
    %909 = vmatprep.subr.bf16.mxu0 0
    %910 = vmatpush1.bf16.xpose.msra.mxu0 %v770
    %911 = vmatprep.subr.bf16.mxu0 0
    %912 = vmatpush2.bf16.xpose.msra.mxu0 0
    %913 = vmatprep.subr.bf16.mxu0 0
    %914 = vmatpush2.bf16.xpose.msra.mxu0 0
    %915 = vmatprep.subr.bf16.mxu0 0
    %916 = vmatpush2.bf16.xpose.msra.mxu0 0
    %917 = vmatprep.subr.bf16.mxu0 0
    %918 = vmatpush2.bf16.xpose.msra.mxu0 0
    %919 = vmatprep.subr.bf16.mxu0 0
    %920 = vmatpush2.bf16.xpose.msra.mxu0 0
    %921 = vmatprep.subr.bf16.mxu0 0
    %922 = vmatpush2.bf16.xpose.msra.mxu0 0
    %923 = vmatprep.subr.bf16.mxu0 0
    %924 = vmatpush2.bf16.xpose.msra.mxu0 0
    %925 = vmatprep.subr.bf16.mxu0 0
    %926 = vmatpush2.bf16.xpose.msra.mxu0 0
    %927 = vmatprep.mubr.bf16.mxu0 0
    %928 = vmatmul.mubr.bf16.gmra.mxu0 %v762
    %v929 = vpop.f32.mrf.mxu0
    %v930 = vadd.f32 0.0, %v929
    %v931 = vpop.f32.mrf.mxu0
    %v932 = vpop.f32.mrf.mxu0
    %v933 = vpop.f32.mrf.mxu0
    %934 = vdwg.mxu0
    %935 = vmatprep.subr.bf16.mxu0 0
    %936 = vmatpush1.bf16.xpose.msra.mxu0 0
    %937 = vmatprep.subr.bf16.mxu0 0
    %938 = vmatpush1.bf16.xpose.msra.mxu0 0
    %939 = vmatprep.subr.bf16.mxu0 0
    %940 = vmatpush1.bf16.xpose.msra.mxu0 0
    %941 = vmatprep.subr.bf16.mxu0 0
    %942 = vmatpush1.bf16.xpose.msra.mxu0 0
    %943 = vmatprep.subr.bf16.mxu0 0
    %944 = vmatpush1.bf16.xpose.msra.mxu0 0
    %945 = vmatprep.subr.bf16.mxu0 0
    %946 = vmatpush1.bf16.xpose.msra.mxu0 0
    %947 = vmatprep.subr.bf16.mxu0 0
    %948 = vmatpush1.bf16.xpose.msra.mxu0 0
    %949 = vmatprep.subr.bf16.mxu0 0
    %950 = vmatpush1.bf16.xpose.msra.mxu0 %v771
    %951 = vmatprep.subr.bf16.mxu0 0
    %952 = vmatpush2.bf16.xpose.msra.mxu0 0
    %953 = vmatprep.subr.bf16.mxu0 0
    %954 = vmatpush2.bf16.xpose.msra.mxu0 0
    %955 = vmatprep.subr.bf16.mxu0 0
    %956 = vmatpush2.bf16.xpose.msra.mxu0 0
    %957 = vmatprep.subr.bf16.mxu0 0
    %958 = vmatpush2.bf16.xpose.msra.mxu0 0
    %959 = vmatprep.subr.bf16.mxu0 0
    %960 = vmatpush2.bf16.xpose.msra.mxu0 0
    %961 = vmatprep.subr.bf16.mxu0 0
    %962 = vmatpush2.bf16.xpose.msra.mxu0 0
    %963 = vmatprep.subr.bf16.mxu0 0
    %964 = vmatpush2.bf16.xpose.msra.mxu0 0
    %965 = vmatprep.subr.bf16.mxu0 0
    %966 = vmatpush2.bf16.xpose.msra.mxu0 0
    %967 = vmatprep.mubr.bf16.mxu0 0
    %968 = vmatmul.mubr.bf16.gmra.mxu0 %v763
    %v969 = vpop.f32.mrf.mxu0
    %v970 = vadd.f32 0.0, %v969
    %v971 = vpop.f32.mrf.mxu0
    %v972 = vpop.f32.mrf.mxu0
    %v973 = vpop.f32.mrf.mxu0
    %974 = vdwg.mxu0
    %975 = vmatprep.subr.bf16.mxu0 0
    %976 = vmatpush1.bf16.xpose.msra.mxu0 0
    %977 = vmatprep.subr.bf16.mxu0 0
    %978 = vmatpush1.bf16.xpose.msra.mxu0 0
    %979 = vmatprep.subr.bf16.mxu0 0
    %980 = vmatpush1.bf16.xpose.msra.mxu0 0
    %981 = vmatprep.subr.bf16.mxu0 0
    %982 = vmatpush1.bf16.xpose.msra.mxu0 0
    %983 = vmatprep.subr.bf16.mxu0 0
    %984 = vmatpush1.bf16.xpose.msra.mxu0 0
    %985 = vmatprep.subr.bf16.mxu0 0
    %986 = vmatpush1.bf16.xpose.msra.mxu0 0
    %987 = vmatprep.subr.bf16.mxu0 0
    %988 = vmatpush1.bf16.xpose.msra.mxu0 0
    %989 = vmatprep.subr.bf16.mxu0 0
    %990 = vmatpush1.bf16.xpose.msra.mxu0 %v772
    %991 = vmatprep.subr.bf16.mxu0 0
    %992 = vmatpush2.bf16.xpose.msra.mxu0 0
    %993 = vmatprep.subr.bf16.mxu0 0
    %994 = vmatpush2.bf16.xpose.msra.mxu0 0
    %995 = vmatprep.subr.bf16.mxu0 0
    %996 = vmatpush2.bf16.xpose.msra.mxu0 0
    %997 = vmatprep.subr.bf16.mxu0 0
    %998 = vmatpush2.bf16.xpose.msra.mxu0 0
    %999 = vmatprep.subr.bf16.mxu0 0
    %1000 = vmatpush2.bf16.xpose.msra.mxu0 0
    %1001 = vmatprep.subr.bf16.mxu0 0
    %1002 = vmatpush2.bf16.xpose.msra.mxu0 0
    %1003 = vmatprep.subr.bf16.mxu0 0
    %1004 = vmatpush2.bf16.xpose.msra.mxu0 0
    %1005 = vmatprep.subr.bf16.mxu0 0
    %1006 = vmatpush2.bf16.xpose.msra.mxu0 0
    %1007 = vmatprep.mubr.bf16.mxu0 0
    %1008 = vmatmul.mubr.bf16.gmra.mxu0 %v764
    %v1009 = vpop.f32.mrf.mxu0
    %v1010 = vadd.f32 0.0, %v1009
    %v1011 = vpop.f32.mrf.mxu0
    %v1012 = vpop.f32.mrf.mxu0
    %v1013 = vpop.f32.mrf.mxu0
    %1014 = vdwg.mxu0
    %1015 = vmatprep.subr.bf16.mxu0 0
    %1016 = vmatpush1.bf16.xpose.msra.mxu0 0
    %1017 = vmatprep.subr.bf16.mxu0 0
    %1018 = vmatpush1.bf16.xpose.msra.mxu0 0
    %1019 = vmatprep.subr.bf16.mxu0 0
    %1020 = vmatpush1.bf16.xpose.msra.mxu0 0
    %1021 = vmatprep.subr.bf16.mxu0 0
    %1022 = vmatpush1.bf16.xpose.msra.mxu0 0
    %1023 = vmatprep.subr.bf16.mxu0 0
    %1024 = vmatpush1.bf16.xpose.msra.mxu0 0
    %1025 = vmatprep.subr.bf16.mxu0 0
    %1026 = vmatpush1.bf16.xpose.msra.mxu0 0
    %1027 = vmatprep.subr.bf16.mxu0 0
    %1028 = vmatpush1.bf16.xpose.msra.mxu0 0
    %1029 = vmatprep.subr.bf16.mxu0 0
    %1030 = vmatpush1.bf16.xpose.msra.mxu0 %v773
    %1031 = vmatprep.subr.bf16.mxu0 0
    %1032 = vmatpush2.bf16.xpose.msra.mxu0 0
    %1033 = vmatprep.subr.bf16.mxu0 0
    %1034 = vmatpush2.bf16.xpose.msra.mxu0 0
    %1035 = vmatprep.subr.bf16.mxu0 0
    %1036 = vmatpush2.bf16.xpose.msra.mxu0 0
    %1037 = vmatprep.subr.bf16.mxu0 0
    %1038 = vmatpush2.bf16.xpose.msra.mxu0 0
    %1039 = vmatprep.subr.bf16.mxu0 0
    %1040 = vmatpush2.bf16.xpose.msra.mxu0 0
    %1041 = vmatprep.subr.bf16.mxu0 0
    %1042 = vmatpush2.bf16.xpose.msra.mxu0 0
    %1043 = vmatprep.subr.bf16.mxu0 0
    %1044 = vmatpush2.bf16.xpose.msra.mxu0 0
    %1045 = vmatprep.subr.bf16.mxu0 0
    %1046 = vmatpush2.bf16.xpose.msra.mxu0 0
    %1047 = vmatprep.mubr.bf16.mxu0 0
    %1048 = vmatmul.mubr.bf16.gmra.mxu0 %v765
    %v1049 = vpop.f32.mrf.mxu0
    %v1050 = vadd.f32 0.0, %v1049
    %v1051 = vpop.f32.mrf.mxu0
    %v1052 = vpop.f32.mrf.mxu0
    %v1053 = vpop.f32.mrf.mxu0
    %1054 = vdwg.mxu0
    %1055 = vmatprep.subr.bf16.mxu0 0
    %1056 = vmatpush1.bf16.xpose.msra.mxu0 0
    %1057 = vmatprep.subr.bf16.mxu0 0
    %1058 = vmatpush1.bf16.xpose.msra.mxu0 0
    %1059 = vmatprep.subr.bf16.mxu0 0
    %1060 = vmatpush1.bf16.xpose.msra.mxu0 0
    %1061 = vmatprep.subr.bf16.mxu0 0
    %1062 = vmatpush1.bf16.xpose.msra.mxu0 0
    %1063 = vmatprep.subr.bf16.mxu0 0
    %1064 = vmatpush1.bf16.xpose.msra.mxu0 0
    %1065 = vmatprep.subr.bf16.mxu0 0
    %1066 = vmatpush1.bf16.xpose.msra.mxu0 0
    %1067 = vmatprep.subr.bf16.mxu0 0
    %1068 = vmatpush1.bf16.xpose.msra.mxu0 0
    %1069 = vmatprep.subr.bf16.mxu0 0
    %1070 = vmatpush1.bf16.xpose.msra.mxu0 %v774
    %1071 = vmatprep.subr.bf16.mxu0 0
    %1072 = vmatpush2.bf16.xpose.msra.mxu0 0
    %1073 = vmatprep.subr.bf16.mxu0 0
    %1074 = vmatpush2.bf16.xpose.msra.mxu0 0
    %1075 = vmatprep.subr.bf16.mxu0 0
    %1076 = vmatpush2.bf16.xpose.msra.mxu0 0
    %1077 = vmatprep.subr.bf16.mxu0 0
    %1078 = vmatpush2.bf16.xpose.msra.mxu0 0
    %1079 = vmatprep.subr.bf16.mxu0 0
    %1080 = vmatpush2.bf16.xpose.msra.mxu0 0
    %1081 = vmatprep.subr.bf16.mxu0 0
    %1082 = vmatpush2.bf16.xpose.msra.mxu0 0
    %1083 = vmatprep.subr.bf16.mxu0 0
    %1084 = vmatpush2.bf16.xpose.msra.mxu0 0
    %1085 = vmatprep.subr.bf16.mxu0 0
    %1086 = vmatpush2.bf16.xpose.msra.mxu0 0
    %1087 = vmatprep.mubr.bf16.mxu0 0
    %1088 = vmatmul.mubr.bf16.gmra.mxu0 %v766
    %v1089 = vpop.f32.mrf.mxu0
    %v1090 = vadd.f32 0.0, %v1089
    %v1091 = vpop.f32.mrf.mxu0
    %v1092 = vpop.f32.mrf.mxu0
    %v1093 = vpop.f32.mrf.mxu0
    %1094 = vdwg.mxu0
    %vm1095 = vcmask 130048
    %v1096 = vsel %vm1095, %v810, -inf
    %1097 = vmax.xlane.f32.xlu0 %v1096
    %v1098 = vpop.xlane.xlu0 %1097
    %v1099 = vsel %vm1095, %v850, -inf
    %1100 = vmax.xlane.f32.xlu0 %v1099
    %v1101 = vpop.xlane.xlu0 %1100
    %v1102 = vsel %vm1095, %v890, -inf
    %1103 = vmax.xlane.f32.xlu0 %v1102
    %v1104 = vpop.xlane.xlu0 %1103
    %v1105 = vsel %vm1095, %v930, -inf
    %1106 = vmax.xlane.f32.xlu0 %v1105
    %v1107 = vpop.xlane.xlu0 %1106
    %v1108 = vsel %vm1095, %v970, -inf
    %1109 = vmax.xlane.f32.xlu0 %v1108
    %v1110 = vpop.xlane.xlu0 %1109
    %v1111 = vsel %vm1095, %v1010, -inf
    %1112 = vmax.xlane.f32.xlu0 %v1111
    %v1113 = vpop.xlane.xlu0 %1112
    %v1114 = vsel %vm1095, %v1050, -inf
    %1115 = vmax.xlane.f32.xlu0 %v1114
    %v1116 = vpop.xlane.xlu0 %1115
    %v1117 = vsel %vm1095, %v1090, -inf
    %1118 = vmax.xlane.f32.xlu0 %v1117
    %v1119 = vpop.xlane.xlu0 %1118
    %v1120 = vsub.f32 %v810, %v1098
    %v1121 = vsub.f32 %v850, %v1101
    %v1122 = vsub.f32 %v890, %v1104
    %v1123 = vsub.f32 %v930, %v1107
    %v1124 = vsub.f32 %v970, %v1110
    %v1125 = vsub.f32 %v1010, %v1113
    %v1126 = vsub.f32 %v1050, %v1116
    %v1127 = vsub.f32 %v1090, %v1119
    %v1128 = vmul.f32 %v1120, 1.442695
    %v1129 = vpow.pop %v1128
    %v1130 = vmul.f32 %v1121, 1.442695
    %v1131 = vpow.pop %v1130
    %v1132 = vmul.f32 %v1122, 1.442695
    %v1133 = vpow.pop %v1132
    %v1134 = vmul.f32 %v1123, 1.442695
    %v1135 = vpow.pop %v1134
    %v1136 = vmul.f32 %v1124, 1.442695
    %v1137 = vpow.pop %v1136
    %v1138 = vmul.f32 %v1125, 1.442695
    %v1139 = vpow.pop %v1138
    %v1140 = vmul.f32 %v1126, 1.442695
    %v1141 = vpow.pop %v1140
    %v1142 = vmul.f32 %v1127, 1.442695
    %v1143 = vpow.pop %v1142
    %v1144 = vsel %vm1095, %v1129, 0.0
    %1145 = vadd.xlane.f32.xlu0 %v1144
    %v1146 = vpop.xlane.xlu0 %1145
    %v1147 = vsel %vm1095, %v1131, 0.0
    %1148 = vadd.xlane.f32.xlu0 %v1147
    %v1149 = vpop.xlane.xlu0 %1148
    %v1150 = vsel %vm1095, %v1133, 0.0
    %1151 = vadd.xlane.f32.xlu0 %v1150
    %v1152 = vpop.xlane.xlu0 %1151
    %v1153 = vsel %vm1095, %v1135, 0.0
    %1154 = vadd.xlane.f32.xlu0 %v1153
    %v1155 = vpop.xlane.xlu0 %1154
    %v1156 = vsel %vm1095, %v1137, 0.0
    %1157 = vadd.xlane.f32.xlu0 %v1156
    %v1158 = vpop.xlane.xlu0 %1157
    %v1159 = vsel %vm1095, %v1139, 0.0
    %1160 = vadd.xlane.f32.xlu0 %v1159
    %v1161 = vpop.xlane.xlu0 %1160
    %v1162 = vsel %vm1095, %v1141, 0.0
    %1163 = vadd.xlane.f32.xlu0 %v1162
    %v1164 = vpop.xlane.xlu0 %1163
    %v1165 = vsel %vm1095, %v1143, 0.0
    %1166 = vadd.xlane.f32.xlu0 %v1165
    %v1167 = vpop.xlane.xlu0 %1166
    %v1168 = vrcp.pop %v1146
    %v1169 = vrcp.pop %v1149
    %v1170 = vrcp.pop %v1152
    %v1171 = vrcp.pop %v1155
    %v1172 = vrcp.pop %v1158
    %v1173 = vrcp.pop %v1161
    %v1174 = vrcp.pop %v1164
    %v1175 = vrcp.pop %v1167
    %v1176 = vmul.f32 %v1129, %v1168
    %v1177 = vmul.f32 %v1131, %v1169
    %v1178 = vmul.f32 %v1133, %v1170
    %v1179 = vmul.f32 %v1135, %v1171
    %v1180 = vmul.f32 %v1137, %v1172
    %v1181 = vmul.f32 %v1139, %v1173
    %v1182 = vmul.f32 %v1141, %v1174
    %v1183 = vmul.f32 %v1143, %v1175
    %v1184 = vpack.c.bf16 %v1176, %v1176
    %v1185 = vpack.c.bf16 %v1177, %v1177
    %v1186 = vpack.c.bf16 %v1178, %v1178
    %v1187 = vpack.c.bf16 %v1179, %v1179
    %v1188 = vpack.c.bf16 %v1180, %v1180
    %v1189 = vpack.c.bf16 %v1181, %v1181
    %v1190 = vpack.c.bf16 %v1182, %v1182
    %v1191 = vpack.c.bf16 %v1183, %v1183
    %v1192 = vpack.c.bf16 %v687, %v683
    %v1193 = vpack.c.bf16 %v697, %v693
    %v1194 = vpack.c.bf16 %v707, %v703
    %v1195 = vpack.c.bf16 %v717, %v713
    %v1196 = vpack.c.bf16 %v727, %v723
    %v1197 = vpack.c.bf16 %v737, %v733
    %v1198 = vpack.c.bf16 %v747, %v743
    %v1199 = vpack.c.bf16 %v757, %v753
    %v1201 = vsel %vm1095, %v1184, 0
    %1203 = vmatprep.subr.bf16.mxu0 0
    %1204 = vmatpush1.bf16.msra.mxu0 0
    %1205 = vmatprep.subr.bf16.mxu0 0
    %1206 = vmatpush1.bf16.msra.mxu0 0
    %1207 = vmatprep.subr.bf16.mxu0 0
    %1208 = vmatpush1.bf16.msra.mxu0 0
    %1209 = vmatprep.subr.bf16.mxu0 0
    %1210 = vmatpush1.bf16.msra.mxu0 0
    %1211 = vmatprep.subr.bf16.mxu0 0
    %1212 = vmatpush1.bf16.msra.mxu0 0
    %1213 = vmatprep.subr.bf16.mxu0 0
    %1214 = vmatpush1.bf16.msra.mxu0 0
    %1215 = vmatprep.subr.bf16.mxu0 0
    %1216 = vmatpush1.bf16.msra.mxu0 0
    %1217 = vmatprep.subr.bf16.mxu0 0
    %1218 = vmatpush1.bf16.msra.mxu0 %v1192
    %1219 = vmatprep.subr.bf16.mxu0 0
    %1220 = vmatpush2.bf16.msra.mxu0 0
    %1221 = vmatprep.subr.bf16.mxu0 0
    %1222 = vmatpush2.bf16.msra.mxu0 0
    %1223 = vmatprep.subr.bf16.mxu0 0
    %1224 = vmatpush2.bf16.msra.mxu0 0
    %1225 = vmatprep.subr.bf16.mxu0 0
    %1226 = vmatpush2.bf16.msra.mxu0 0
    %1227 = vmatprep.subr.bf16.mxu0 0
    %1228 = vmatpush2.bf16.msra.mxu0 0
    %1229 = vmatprep.subr.bf16.mxu0 0
    %1230 = vmatpush2.bf16.msra.mxu0 0
    %1231 = vmatprep.subr.bf16.mxu0 0
    %1232 = vmatpush2.bf16.msra.mxu0 0
    %1233 = vmatprep.subr.bf16.mxu0 0
    %1234 = vmatpush2.bf16.msra.mxu0 0
    %1235 = vmatprep.mubr.bf16.mxu0 0
    %1236 = vmatmul.mubr.bf16.gmra.mxu0 %v1201
    %v1237 = vpop.f32.mrf.mxu0
    %v1238 = vadd.f32 0.0, %v1237
    %v1239 = vpop.f32.mrf.mxu0
    %v1240 = vpop.f32.mrf.mxu0
    %v1241 = vpop.f32.mrf.mxu0
    %1242 = vdwg.mxu0
    %v1244 = vsel %vm1095, %v1185, 0
    %1246 = vmatprep.subr.bf16.mxu0 0
    %1247 = vmatpush1.bf16.msra.mxu0 0
    %1248 = vmatprep.subr.bf16.mxu0 0
    %1249 = vmatpush1.bf16.msra.mxu0 0
    %1250 = vmatprep.subr.bf16.mxu0 0
    %1251 = vmatpush1.bf16.msra.mxu0 0
    %1252 = vmatprep.subr.bf16.mxu0 0
    %1253 = vmatpush1.bf16.msra.mxu0 0
    %1254 = vmatprep.subr.bf16.mxu0 0
    %1255 = vmatpush1.bf16.msra.mxu0 0
    %1256 = vmatprep.subr.bf16.mxu0 0
    %1257 = vmatpush1.bf16.msra.mxu0 0
    %1258 = vmatprep.subr.bf16.mxu0 0
    %1259 = vmatpush1.bf16.msra.mxu0 0
    %1260 = vmatprep.subr.bf16.mxu0 0
    %1261 = vmatpush1.bf16.msra.mxu0 %v1193
    %1262 = vmatprep.subr.bf16.mxu0 0
    %1263 = vmatpush2.bf16.msra.mxu0 0
    %1264 = vmatprep.subr.bf16.mxu0 0
    %1265 = vmatpush2.bf16.msra.mxu0 0
    %1266 = vmatprep.subr.bf16.mxu0 0
    %1267 = vmatpush2.bf16.msra.mxu0 0
    %1268 = vmatprep.subr.bf16.mxu0 0
    %1269 = vmatpush2.bf16.msra.mxu0 0
    %1270 = vmatprep.subr.bf16.mxu0 0
    %1271 = vmatpush2.bf16.msra.mxu0 0
    %1272 = vmatprep.subr.bf16.mxu0 0
    %1273 = vmatpush2.bf16.msra.mxu0 0
    %1274 = vmatprep.subr.bf16.mxu0 0
    %1275 = vmatpush2.bf16.msra.mxu0 0
    %1276 = vmatprep.subr.bf16.mxu0 0
    %1277 = vmatpush2.bf16.msra.mxu0 0
    %1278 = vmatprep.mubr.bf16.mxu0 0
    %1279 = vmatmul.mubr.bf16.gmra.mxu0 %v1244
    %v1280 = vpop.f32.mrf.mxu0
    %v1281 = vadd.f32 0.0, %v1280
    %v1282 = vpop.f32.mrf.mxu0
    %v1283 = vpop.f32.mrf.mxu0
    %v1284 = vpop.f32.mrf.mxu0
    %1285 = vdwg.mxu0
    %v1287 = vsel %vm1095, %v1186, 0
    %1289 = vmatprep.subr.bf16.mxu0 0
    %1290 = vmatpush1.bf16.msra.mxu0 0
    %1291 = vmatprep.subr.bf16.mxu0 0
    %1292 = vmatpush1.bf16.msra.mxu0 0
    %1293 = vmatprep.subr.bf16.mxu0 0
    %1294 = vmatpush1.bf16.msra.mxu0 0
    %1295 = vmatprep.subr.bf16.mxu0 0
    %1296 = vmatpush1.bf16.msra.mxu0 0
    %1297 = vmatprep.subr.bf16.mxu0 0
    %1298 = vmatpush1.bf16.msra.mxu0 0
    %1299 = vmatprep.subr.bf16.mxu0 0
    %1300 = vmatpush1.bf16.msra.mxu0 0
    %1301 = vmatprep.subr.bf16.mxu0 0
    %1302 = vmatpush1.bf16.msra.mxu0 0
    %1303 = vmatprep.subr.bf16.mxu0 0
    %1304 = vmatpush1.bf16.msra.mxu0 %v1194
    %1305 = vmatprep.subr.bf16.mxu0 0
    %1306 = vmatpush2.bf16.msra.mxu0 0
    %1307 = vmatprep.subr.bf16.mxu0 0
    %1308 = vmatpush2.bf16.msra.mxu0 0
    %1309 = vmatprep.subr.bf16.mxu0 0
    %1310 = vmatpush2.bf16.msra.mxu0 0
    %1311 = vmatprep.subr.bf16.mxu0 0
    %1312 = vmatpush2.bf16.msra.mxu0 0
    %1313 = vmatprep.subr.bf16.mxu0 0
    %1314 = vmatpush2.bf16.msra.mxu0 0
    %1315 = vmatprep.subr.bf16.mxu0 0
    %1316 = vmatpush2.bf16.msra.mxu0 0
    %1317 = vmatprep.subr.bf16.mxu0 0
    %1318 = vmatpush2.bf16.msra.mxu0 0
    %1319 = vmatprep.subr.bf16.mxu0 0
    %1320 = vmatpush2.bf16.msra.mxu0 0
    %1321 = vmatprep.mubr.bf16.mxu0 0
    %1322 = vmatmul.mubr.bf16.gmra.mxu0 %v1287
    %v1323 = vpop.f32.mrf.mxu0
    %v1324 = vadd.f32 0.0, %v1323
    %v1325 = vpop.f32.mrf.mxu0
    %v1326 = vpop.f32.mrf.mxu0
    %v1327 = vpop.f32.mrf.mxu0
    %1328 = vdwg.mxu0
    %v1330 = vsel %vm1095, %v1187, 0
    %1332 = vmatprep.subr.bf16.mxu0 0
    %1333 = vmatpush1.bf16.msra.mxu0 0
    %1334 = vmatprep.subr.bf16.mxu0 0
    %1335 = vmatpush1.bf16.msra.mxu0 0
    %1336 = vmatprep.subr.bf16.mxu0 0
    %1337 = vmatpush1.bf16.msra.mxu0 0
    %1338 = vmatprep.subr.bf16.mxu0 0
    %1339 = vmatpush1.bf16.msra.mxu0 0
    %1340 = vmatprep.subr.bf16.mxu0 0
    %1341 = vmatpush1.bf16.msra.mxu0 0
    %1342 = vmatprep.subr.bf16.mxu0 0
    %1343 = vmatpush1.bf16.msra.mxu0 0
    %1344 = vmatprep.subr.bf16.mxu0 0
    %1345 = vmatpush1.bf16.msra.mxu0 0
    %1346 = vmatprep.subr.bf16.mxu0 0
    %1347 = vmatpush1.bf16.msra.mxu0 %v1195
    %1348 = vmatprep.subr.bf16.mxu0 0
    %1349 = vmatpush2.bf16.msra.mxu0 0
    %1350 = vmatprep.subr.bf16.mxu0 0
    %1351 = vmatpush2.bf16.msra.mxu0 0
    %1352 = vmatprep.subr.bf16.mxu0 0
    %1353 = vmatpush2.bf16.msra.mxu0 0
    %1354 = vmatprep.subr.bf16.mxu0 0
    %1355 = vmatpush2.bf16.msra.mxu0 0
    %1356 = vmatprep.subr.bf16.mxu0 0
    %1357 = vmatpush2.bf16.msra.mxu0 0
    %1358 = vmatprep.subr.bf16.mxu0 0
    %1359 = vmatpush2.bf16.msra.mxu0 0
    %1360 = vmatprep.subr.bf16.mxu0 0
    %1361 = vmatpush2.bf16.msra.mxu0 0
    %1362 = vmatprep.subr.bf16.mxu0 0
    %1363 = vmatpush2.bf16.msra.mxu0 0
    %1364 = vmatprep.mubr.bf16.mxu0 0
    %1365 = vmatmul.mubr.bf16.gmra.mxu0 %v1330
    %v1366 = vpop.f32.mrf.mxu0
    %v1367 = vadd.f32 0.0, %v1366
    %v1368 = vpop.f32.mrf.mxu0
    %v1369 = vpop.f32.mrf.mxu0
    %v1370 = vpop.f32.mrf.mxu0
    %1371 = vdwg.mxu0
    %v1373 = vsel %vm1095, %v1188, 0
    %1375 = vmatprep.subr.bf16.mxu0 0
    %1376 = vmatpush1.bf16.msra.mxu0 0
    %1377 = vmatprep.subr.bf16.mxu0 0
    %1378 = vmatpush1.bf16.msra.mxu0 0
    %1379 = vmatprep.subr.bf16.mxu0 0
    %1380 = vmatpush1.bf16.msra.mxu0 0
    %1381 = vmatprep.subr.bf16.mxu0 0
    %1382 = vmatpush1.bf16.msra.mxu0 0
    %1383 = vmatprep.subr.bf16.mxu0 0
    %1384 = vmatpush1.bf16.msra.mxu0 0
    %1385 = vmatprep.subr.bf16.mxu0 0
    %1386 = vmatpush1.bf16.msra.mxu0 0
    %1387 = vmatprep.subr.bf16.mxu0 0
    %1388 = vmatpush1.bf16.msra.mxu0 0
    %1389 = vmatprep.subr.bf16.mxu0 0
    %1390 = vmatpush1.bf16.msra.mxu0 %v1196
    %1391 = vmatprep.subr.bf16.mxu0 0
    %1392 = vmatpush2.bf16.msra.mxu0 0
    %1393 = vmatprep.subr.bf16.mxu0 0
    %1394 = vmatpush2.bf16.msra.mxu0 0
    %1395 = vmatprep.subr.bf16.mxu0 0
    %1396 = vmatpush2.bf16.msra.mxu0 0
    %1397 = vmatprep.subr.bf16.mxu0 0
    %1398 = vmatpush2.bf16.msra.mxu0 0
    %1399 = vmatprep.subr.bf16.mxu0 0
    %1400 = vmatpush2.bf16.msra.mxu0 0
    %1401 = vmatprep.subr.bf16.mxu0 0
    %1402 = vmatpush2.bf16.msra.mxu0 0
    %1403 = vmatprep.subr.bf16.mxu0 0
    %1404 = vmatpush2.bf16.msra.mxu0 0
    %1405 = vmatprep.subr.bf16.mxu0 0
    %1406 = vmatpush2.bf16.msra.mxu0 0
    %1407 = vmatprep.mubr.bf16.mxu0 0
    %1408 = vmatmul.mubr.bf16.gmra.mxu0 %v1373
    %v1409 = vpop.f32.mrf.mxu0
    %v1410 = vadd.f32 0.0, %v1409
    %v1411 = vpop.f32.mrf.mxu0
    %v1412 = vpop.f32.mrf.mxu0
    %v1413 = vpop.f32.mrf.mxu0
    %1414 = vdwg.mxu0
    %v1416 = vsel %vm1095, %v1189, 0
    %1418 = vmatprep.subr.bf16.mxu0 0
    %1419 = vmatpush1.bf16.msra.mxu0 0
    %1420 = vmatprep.subr.bf16.mxu0 0
    %1421 = vmatpush1.bf16.msra.mxu0 0
    %1422 = vmatprep.subr.bf16.mxu0 0
    %1423 = vmatpush1.bf16.msra.mxu0 0
    %1424 = vmatprep.subr.bf16.mxu0 0
    %1425 = vmatpush1.bf16.msra.mxu0 0
    %1426 = vmatprep.subr.bf16.mxu0 0
    %1427 = vmatpush1.bf16.msra.mxu0 0
    %1428 = vmatprep.subr.bf16.mxu0 0
    %1429 = vmatpush1.bf16.msra.mxu0 0
    %1430 = vmatprep.subr.bf16.mxu0 0
    %1431 = vmatpush1.bf16.msra.mxu0 0
    %1432 = vmatprep.subr.bf16.mxu0 0
    %1433 = vmatpush1.bf16.msra.mxu0 %v1197
    %1434 = vmatprep.subr.bf16.mxu0 0
    %1435 = vmatpush2.bf16.msra.mxu0 0
    %1436 = vmatprep.subr.bf16.mxu0 0
    %1437 = vmatpush2.bf16.msra.mxu0 0
    %1438 = vmatprep.subr.bf16.mxu0 0
    %1439 = vmatpush2.bf16.msra.mxu0 0
    %1440 = vmatprep.subr.bf16.mxu0 0
    %1441 = vmatpush2.bf16.msra.mxu0 0
    %1442 = vmatprep.subr.bf16.mxu0 0
    %1443 = vmatpush2.bf16.msra.mxu0 0
    %1444 = vmatprep.subr.bf16.mxu0 0
    %1445 = vmatpush2.bf16.msra.mxu0 0
    %1446 = vmatprep.subr.bf16.mxu0 0
    %1447 = vmatpush2.bf16.msra.mxu0 0
    %1448 = vmatprep.subr.bf16.mxu0 0
    %1449 = vmatpush2.bf16.msra.mxu0 0
    %1450 = vmatprep.mubr.bf16.mxu0 0
    %1451 = vmatmul.mubr.bf16.gmra.mxu0 %v1416
    %v1452 = vpop.f32.mrf.mxu0
    %v1453 = vadd.f32 0.0, %v1452
    %v1454 = vpop.f32.mrf.mxu0
    %v1455 = vpop.f32.mrf.mxu0
    %v1456 = vpop.f32.mrf.mxu0
    %1457 = vdwg.mxu0
    %v1459 = vsel %vm1095, %v1190, 0
    %1461 = vmatprep.subr.bf16.mxu0 0
    %1462 = vmatpush1.bf16.msra.mxu0 0
    %1463 = vmatprep.subr.bf16.mxu0 0
    %1464 = vmatpush1.bf16.msra.mxu0 0
    %1465 = vmatprep.subr.bf16.mxu0 0
    %1466 = vmatpush1.bf16.msra.mxu0 0
    %1467 = vmatprep.subr.bf16.mxu0 0
    %1468 = vmatpush1.bf16.msra.mxu0 0
    %1469 = vmatprep.subr.bf16.mxu0 0
    %1470 = vmatpush1.bf16.msra.mxu0 0
    %1471 = vmatprep.subr.bf16.mxu0 0
    %1472 = vmatpush1.bf16.msra.mxu0 0
    %1473 = vmatprep.subr.bf16.mxu0 0
    %1474 = vmatpush1.bf16.msra.mxu0 0
    %1475 = vmatprep.subr.bf16.mxu0 0
    %1476 = vmatpush1.bf16.msra.mxu0 %v1198
    %1477 = vmatprep.subr.bf16.mxu0 0
    %1478 = vmatpush2.bf16.msra.mxu0 0
    %1479 = vmatprep.subr.bf16.mxu0 0
    %1480 = vmatpush2.bf16.msra.mxu0 0
    %1481 = vmatprep.subr.bf16.mxu0 0
    %1482 = vmatpush2.bf16.msra.mxu0 0
    %1483 = vmatprep.subr.bf16.mxu0 0
    %1484 = vmatpush2.bf16.msra.mxu0 0
    %1485 = vmatprep.subr.bf16.mxu0 0
    %1486 = vmatpush2.bf16.msra.mxu0 0
    %1487 = vmatprep.subr.bf16.mxu0 0
    %1488 = vmatpush2.bf16.msra.mxu0 0
    %1489 = vmatprep.subr.bf16.mxu0 0
    %1490 = vmatpush2.bf16.msra.mxu0 0
    %1491 = vmatprep.subr.bf16.mxu0 0
    %1492 = vmatpush2.bf16.msra.mxu0 0
    %1493 = vmatprep.mubr.bf16.mxu0 0
    %1494 = vmatmul.mubr.bf16.gmra.mxu0 %v1459
    %v1495 = vpop.f32.mrf.mxu0
    %v1496 = vadd.f32 0.0, %v1495
    %v1497 = vpop.f32.mrf.mxu0
    %v1498 = vpop.f32.mrf.mxu0
    %v1499 = vpop.f32.mrf.mxu0
    %1500 = vdwg.mxu0
    %v1502 = vsel %vm1095, %v1191, 0
    %1504 = vmatprep.subr.bf16.mxu0 0
    %1505 = vmatpush1.bf16.msra.mxu0 0
    %1506 = vmatprep.subr.bf16.mxu0 0
    %1507 = vmatpush1.bf16.msra.mxu0 0
    %1508 = vmatprep.subr.bf16.mxu0 0
    %1509 = vmatpush1.bf16.msra.mxu0 0
    %1510 = vmatprep.subr.bf16.mxu0 0
    %1511 = vmatpush1.bf16.msra.mxu0 0
    %1512 = vmatprep.subr.bf16.mxu0 0
    %1513 = vmatpush1.bf16.msra.mxu0 0
    %1514 = vmatprep.subr.bf16.mxu0 0
    %1515 = vmatpush1.bf16.msra.mxu0 0
    %1516 = vmatprep.subr.bf16.mxu0 0
    %1517 = vmatpush1.bf16.msra.mxu0 0
    %1518 = vmatprep.subr.bf16.mxu0 0
    %1519 = vmatpush1.bf16.msra.mxu0 %v1199
    %1520 = vmatprep.subr.bf16.mxu0 0
    %1521 = vmatpush2.bf16.msra.mxu0 0
    %1522 = vmatprep.subr.bf16.mxu0 0
    %1523 = vmatpush2.bf16.msra.mxu0 0
    %1524 = vmatprep.subr.bf16.mxu0 0
    %1525 = vmatpush2.bf16.msra.mxu0 0
    %1526 = vmatprep.subr.bf16.mxu0 0
    %1527 = vmatpush2.bf16.msra.mxu0 0
    %1528 = vmatprep.subr.bf16.mxu0 0
    %1529 = vmatpush2.bf16.msra.mxu0 0
    %1530 = vmatprep.subr.bf16.mxu0 0
    %1531 = vmatpush2.bf16.msra.mxu0 0
    %1532 = vmatprep.subr.bf16.mxu0 0
    %1533 = vmatpush2.bf16.msra.mxu0 0
    %1534 = vmatprep.subr.bf16.mxu0 0
    %1535 = vmatpush2.bf16.msra.mxu0 0
    %1536 = vmatprep.mubr.bf16.mxu0 0
    %1537 = vmatmul.mubr.bf16.gmra.mxu0 %v1502
    %v1538 = vpop.f32.mrf.mxu0
    %v1539 = vadd.f32 0.0, %v1538
    %v1540 = vpop.f32.mrf.mxu0
    %v1541 = vpop.f32.mrf.mxu0
    %v1542 = vpop.f32.mrf.mxu0
    %1543 = vdwg.mxu0
    %v1544 = vpack.c.bf16 %v1281, %v1238
    %v1545 = vpack.c.bf16 %v1367, %v1324
    %v1546 = vpack.c.bf16 %v1453, %v1410
    %v1547 = vpack.c.bf16 %v1539, %v1496
    %v1548 = vld [vmem:[%s7] sm:$0xf]
    %v1549 = vld [vmem:[%s7 + $0x4] sm:$0xf]
    %v1550 = vld [vmem:[%s7 + $0x8] sm:$0xf]
    %v1551 = vld [vmem:[%s7 + $0xc] sm:$0xf]
    %v1552 = vld [vmem:[%s7 + $0x10] sm:$0xf]
    %v1553 = vld [vmem:[%s7 + $0x14] sm:$0xf]
    %v1554 = vld [vmem:[%s7 + $0x18] sm:$0xf]
    %v1555 = vld [vmem:[%s7 + $0x1c] sm:$0xf]
    %v1556 = vld [vmem:[%s7 + $0x20] sm:$0xf]
    %v1557 = vld [vmem:[%s7 + $0x24] sm:$0xf]
    %v1558 = vld [vmem:[%s7 + $0x28] sm:$0xf]
    %v1559 = vld [vmem:[%s7 + $0x2c] sm:$0xf]
    %v1560 = vld [vmem:[%s7 + $0x30] sm:$0xf]
    %v1561 = vld [vmem:[%s7 + $0x34] sm:$0xf]
    %v1562 = vld [vmem:[%s7 + $0x38] sm:$0xf]
    %v1563 = vld [vmem:[%s7 + $0x3c] sm:$0xf]
    %v1564 = vld [vmem:[#allocation2] sm:$0x1]
    %v1566 = vlaneseq
    %v1567 = vshrl.u32 %v1566, 7
    %v1568 = vsub.s32 0, %v1567
    %v1569 = vrot.slane %v1564, %v1568
    %v1587 = vunpack.c.l.b16 %v1548
    %v1588 = vunpack.c.l.b16 %v1549
    %v1589 = vunpack.c.l.b16 %v1550
    %v1590 = vunpack.c.l.b16 %v1551
    %v1591 = vunpack.c.l.b16 %v1552
    %v1592 = vunpack.c.l.b16 %v1553
    %v1593 = vunpack.c.l.b16 %v1554
    %v1594 = vunpack.c.l.b16 %v1555
    %v1595 = vunpack.c.l.b16 %v1556
    %v1596 = vunpack.c.l.b16 %v1557
    %v1597 = vunpack.c.l.b16 %v1558
    %v1598 = vunpack.c.l.b16 %v1559
    %v1599 = vunpack.c.l.b16 %v1560
    %v1600 = vunpack.c.l.b16 %v1561
    %v1601 = vunpack.c.l.b16 %v1562
    %v1602 = vunpack.c.l.b16 %v1563
    %v1603 = vpack.c.b16 %v1588, %v1587
    %v1604 = vpack.c.b16 %v1590, %v1589
    %v1605 = vpack.c.b16 %v1592, %v1591
    %v1606 = vpack.c.b16 %v1594, %v1593
    %v1607 = vpack.c.b16 %v1596, %v1595
    %v1608 = vpack.c.b16 %v1598, %v1597
    %v1609 = vpack.c.b16 %v1600, %v1599
    %v1610 = vpack.c.b16 %v1602, %v1601
    %1619 = vmatprep.subr.bf16.mxu0 0
    %1620 = vmatpush1.bf16.msra.mxu0 %v1610
    %1621 = vmatprep.subr.bf16.mxu0 0
    %1622 = vmatpush1.bf16.msra.mxu0 %v1609
    %1623 = vmatprep.subr.bf16.mxu0 0
    %1624 = vmatpush1.bf16.msra.mxu0 %v1608
    %1625 = vmatprep.subr.bf16.mxu0 0
    %1626 = vmatpush1.bf16.msra.mxu0 %v1607
    %1627 = vmatprep.subr.bf16.mxu0 0
    %1628 = vmatpush1.bf16.msra.mxu0 %v1606
    %1629 = vmatprep.subr.bf16.mxu0 0
    %1630 = vmatpush1.bf16.msra.mxu0 %v1605
    %1631 = vmatprep.subr.bf16.mxu0 0
    %1632 = vmatpush1.bf16.msra.mxu0 %v1604
    %1633 = vmatprep.subr.bf16.mxu0 0
    %1634 = vmatpush1.bf16.msra.mxu0 %v1603
    %1635 = vmatprep.subr.bf16.mxu0 0
    %1636 = vmatpush2.bf16.msra.mxu0 0
    %1637 = vmatprep.subr.bf16.mxu0 0
    %1638 = vmatpush2.bf16.msra.mxu0 0
    %1639 = vmatprep.subr.bf16.mxu0 0
    %1640 = vmatpush2.bf16.msra.mxu0 0
    %1641 = vmatprep.subr.bf16.mxu0 0
    %1642 = vmatpush2.bf16.msra.mxu0 0
    %1643 = vmatprep.subr.bf16.mxu0 0
    %1644 = vmatpush2.bf16.msra.mxu0 0
    %1645 = vmatprep.subr.bf16.mxu0 0
    %1646 = vmatpush2.bf16.msra.mxu0 0
    %1647 = vmatprep.subr.bf16.mxu0 0
    %1648 = vmatpush2.bf16.msra.mxu0 0
    %1649 = vmatprep.subr.bf16.mxu0 0
    %1650 = vmatpush2.bf16.msra.mxu0 0
    %1651 = vmatprep.mubr.bf16.mxu0 0
    %1652 = vmatmul.mubr.bf16.gmra.mxu0 %v1544
    %v1653 = vpop.f32.mrf.mxu0
    %v1654 = vadd.f32 %v1569, %v1653
    %v1655 = vpop.f32.mrf.mxu0
    %v1656 = vpop.f32.mrf.mxu0
    %v1657 = vadd.f32 %v1569, %v1656
    %v1658 = vpop.f32.mrf.mxu0
    %1659 = vmatprep.mubr.bf16.mxu0 0
    %1660 = vmatmul.mubr.bf16.gmra.mxu0 %v1545
    %v1661 = vpop.f32.mrf.mxu0
    %v1662 = vadd.f32 %v1569, %v1661
    %v1663 = vpop.f32.mrf.mxu0
    %v1664 = vpop.f32.mrf.mxu0
    %v1665 = vadd.f32 %v1569, %v1664
    %v1666 = vpop.f32.mrf.mxu0
    %1667 = vmatprep.mubr.bf16.mxu0 0
    %1668 = vmatmul.mubr.bf16.gmra.mxu0 %v1546
    %v1669 = vpop.f32.mrf.mxu0
    %v1670 = vadd.f32 %v1569, %v1669
    %v1671 = vpop.f32.mrf.mxu0
    %v1672 = vpop.f32.mrf.mxu0
    %v1673 = vadd.f32 %v1569, %v1672
    %v1674 = vpop.f32.mrf.mxu0
    %1675 = vmatprep.mubr.bf16.mxu0 0
    %1676 = vmatmul.mubr.bf16.gmra.mxu0 %v1547
    %v1677 = vpop.f32.mrf.mxu0
    %v1678 = vadd.f32 %v1569, %v1677
    %v1679 = vpop.f32.mrf.mxu0
    %v1680 = vpop.f32.mrf.mxu0
    %v1681 = vadd.f32 %v1569, %v1680
    %v1682 = vpop.f32.mrf.mxu0
    %1683 = vdwg.mxu0
    %v1684 = vmax.f32 %v1654, 0.0
    %v1685 = vmax.f32 %v1657, 0.0
    %v1686 = vmax.f32 %v1662, 0.0
    %v1687 = vmax.f32 %v1665, 0.0
    %v1688 = vmax.f32 %v1670, 0.0
    %v1689 = vmax.f32 %v1673, 0.0
    %v1690 = vmax.f32 %v1678, 0.0
    %v1691 = vmax.f32 %v1681, 0.0
    %v1692 = vpack.c.bf16 %v1685, %v1684
    %v1693 = vpack.c.bf16 %v1687, %v1686
    %v1694 = vpack.c.bf16 %v1689, %v1688
    %v1695 = vpack.c.bf16 %v1691, %v1690
    %v1696 = vld [vmem:[%s9] sm:$0xf]
    %v1697 = vld [vmem:[%s9 + $0x4] sm:$0xf]
    %v1698 = vld [vmem:[%s9 + $0x8] sm:$0xf]
    %v1699 = vld [vmem:[%s9 + $0xc] sm:$0xf]
    %v1700 = vld [vmem:[%s9 + $0x10] sm:$0xf]
    %v1701 = vld [vmem:[%s9 + $0x14] sm:$0xf]
    %v1702 = vld [vmem:[%s9 + $0x18] sm:$0xf]
    %v1703 = vld [vmem:[%s9 + $0x1c] sm:$0xf]
    %v1704 = vld [vmem:[%s9 + $0x20] sm:$0xf]
    %v1705 = vld [vmem:[%s9 + $0x24] sm:$0xf]
    %v1706 = vld [vmem:[%s9 + $0x28] sm:$0xf]
    %v1707 = vld [vmem:[%s9 + $0x2c] sm:$0xf]
    %v1708 = vld [vmem:[%s9 + $0x30] sm:$0xf]
    %v1709 = vld [vmem:[%s9 + $0x34] sm:$0xf]
    %v1710 = vld [vmem:[%s9 + $0x38] sm:$0xf]
    %v1711 = vld [vmem:[%s9 + $0x3c] sm:$0xf]
    %v1712 = vld [vmem:[#allocation4] sm:$0x1]
    %v1714 = vlaneseq
    %v1715 = vshrl.u32 %v1714, 7
    %v1716 = vsub.s32 0, %v1715
    %v1717 = vrot.slane %v1712, %v1716
    %v1735 = vunpack.c.l.b16 %v1696
    %v1736 = vunpack.c.l.b16 %v1697
    %v1737 = vunpack.c.l.b16 %v1698
    %v1738 = vunpack.c.l.b16 %v1699
    %v1739 = vunpack.c.l.b16 %v1700
    %v1740 = vunpack.c.l.b16 %v1701
    %v1741 = vunpack.c.l.b16 %v1702
    %v1742 = vunpack.c.l.b16 %v1703
    %v1743 = vunpack.c.l.b16 %v1704
    %v1744 = vunpack.c.l.b16 %v1705
    %v1745 = vunpack.c.l.b16 %v1706
    %v1746 = vunpack.c.l.b16 %v1707
    %v1747 = vunpack.c.l.b16 %v1708
    %v1748 = vunpack.c.l.b16 %v1709
    %v1749 = vunpack.c.l.b16 %v1710
    %v1750 = vunpack.c.l.b16 %v1711
    %v1751 = vpack.c.b16 %v1736, %v1735
    %v1752 = vpack.c.b16 %v1738, %v1737
    %v1753 = vpack.c.b16 %v1740, %v1739
    %v1754 = vpack.c.b16 %v1742, %v1741
    %v1755 = vpack.c.b16 %v1744, %v1743
    %v1756 = vpack.c.b16 %v1746, %v1745
    %v1757 = vpack.c.b16 %v1748, %v1747
    %v1758 = vpack.c.b16 %v1750, %v1749
    %1767 = vmatprep.subr.bf16.mxu0 0
    %1768 = vmatpush1.bf16.msra.mxu0 %v1758
    %1769 = vmatprep.subr.bf16.mxu0 0
    %1770 = vmatpush1.bf16.msra.mxu0 %v1757
    %1771 = vmatprep.subr.bf16.mxu0 0
    %1772 = vmatpush1.bf16.msra.mxu0 %v1756
    %1773 = vmatprep.subr.bf16.mxu0 0
    %1774 = vmatpush1.bf16.msra.mxu0 %v1755
    %1775 = vmatprep.subr.bf16.mxu0 0
    %1776 = vmatpush1.bf16.msra.mxu0 %v1754
    %1777 = vmatprep.subr.bf16.mxu0 0
    %1778 = vmatpush1.bf16.msra.mxu0 %v1753
    %1779 = vmatprep.subr.bf16.mxu0 0
    %1780 = vmatpush1.bf16.msra.mxu0 %v1752
    %1781 = vmatprep.subr.bf16.mxu0 0
    %1782 = vmatpush1.bf16.msra.mxu0 %v1751
    %1783 = vmatprep.subr.bf16.mxu0 0
    %1784 = vmatpush2.bf16.msra.mxu0 0
    %1785 = vmatprep.subr.bf16.mxu0 0
    %1786 = vmatpush2.bf16.msra.mxu0 0
    %1787 = vmatprep.subr.bf16.mxu0 0
    %1788 = vmatpush2.bf16.msra.mxu0 0
    %1789 = vmatprep.subr.bf16.mxu0 0
    %1790 = vmatpush2.bf16.msra.mxu0 0
    %1791 = vmatprep.subr.bf16.mxu0 0
    %1792 = vmatpush2.bf16.msra.mxu0 0
    %1793 = vmatprep.subr.bf16.mxu0 0
    %1794 = vmatpush2.bf16.msra.mxu0 0
    %1795 = vmatprep.subr.bf16.mxu0 0
    %1796 = vmatpush2.bf16.msra.mxu0 0
    %1797 = vmatprep.subr.bf16.mxu0 0
    %1798 = vmatpush2.bf16.msra.mxu0 0
    %1799 = vmatprep.mubr.bf16.mxu0 0
    %1800 = vmatmul.mubr.bf16.gmra.mxu0 %v1692
    %v1801 = vpop.f32.mrf.mxu0
    %v1802 = vadd.f32 %v1717, %v1801
    %v1803 = vpop.f32.mrf.mxu0
    %v1804 = vpop.f32.mrf.mxu0
    %v1805 = vadd.f32 %v1717, %v1804
    %v1806 = vpop.f32.mrf.mxu0
    %1807 = vmatprep.mubr.bf16.mxu0 0
    %1808 = vmatmul.mubr.bf16.gmra.mxu0 %v1693
    %v1809 = vpop.f32.mrf.mxu0
    %v1810 = vadd.f32 %v1717, %v1809
    %v1811 = vpop.f32.mrf.mxu0
    %v1812 = vpop.f32.mrf.mxu0
    %v1813 = vadd.f32 %v1717, %v1812
    %v1814 = vpop.f32.mrf.mxu0
    %1815 = vmatprep.mubr.bf16.mxu0 0
    %1816 = vmatmul.mubr.bf16.gmra.mxu0 %v1694
    %v1817 = vpop.f32.mrf.mxu0
    %v1818 = vadd.f32 %v1717, %v1817
    %v1819 = vpop.f32.mrf.mxu0
    %v1820 = vpop.f32.mrf.mxu0
    %v1821 = vadd.f32 %v1717, %v1820
    %v1822 = vpop.f32.mrf.mxu0
    %1823 = vmatprep.mubr.bf16.mxu0 0
    %1824 = vmatmul.mubr.bf16.gmra.mxu0 %v1695
    %v1825 = vpop.f32.mrf.mxu0
    %v1826 = vadd.f32 %v1717, %v1825
    %v1827 = vpop.f32.mrf.mxu0
    %v1828 = vpop.f32.mrf.mxu0
    %v1829 = vadd.f32 %v1717, %v1828
    %v1830 = vpop.f32.mrf.mxu0
    %1831 = vdwg.mxu0
    %v1832 = vmax.bf16 %v112, 0
    %v1833 = vmax.bf16 %v113, 0
    %v1834 = vmax.bf16 %v114, 0
    %v1835 = vmax.bf16 %v115, 0
    %v1836 = vmax.bf16 %v116, 0
    %v1837 = vmax.bf16 %v117, 0
    %v1838 = vmax.bf16 %v118, 0
    %v1839 = vmax.bf16 %v119, 0
    %v1840 = vld [vmem:[%s11] sm:$0xf]
    %v1841 = vld [vmem:[%s11 + $0x4] sm:$0xf]
    %v1842 = vld [vmem:[%s11 + $0x8] sm:$0xf]
    %v1843 = vld [vmem:[%s11 + $0xc] sm:$0xf]
    %v1844 = vld [vmem:[%s11 + $0x10] sm:$0xf]
    %v1845 = vld [vmem:[%s11 + $0x14] sm:$0xf]
    %v1846 = vld [vmem:[%s11 + $0x18] sm:$0xf]
    %v1847 = vld [vmem:[%s11 + $0x1c] sm:$0xf]
    %v1848 = vld [vmem:[%s11 + $0x20] sm:$0xf]
    %v1849 = vld [vmem:[%s11 + $0x24] sm:$0xf]
    %v1850 = vld [vmem:[%s11 + $0x28] sm:$0xf]
    %v1851 = vld [vmem:[%s11 + $0x2c] sm:$0xf]
    %v1852 = vld [vmem:[%s11 + $0x30] sm:$0xf]
    %v1853 = vld [vmem:[%s11 + $0x34] sm:$0xf]
    %v1854 = vld [vmem:[%s11 + $0x38] sm:$0xf]
    %v1855 = vld [vmem:[%s11 + $0x3c] sm:$0xf]
    %v1856 = vld [vmem:[#allocation6] sm:$0x1]
    %v1858 = vlaneseq
    %v1859 = vshrl.u32 %v1858, 7
    %v1860 = vsub.s32 0, %v1859
    %v1861 = vrot.slane %v1856, %v1860
    %v1871 = vunpack.c.l.b16 %v1832
    %v1872 = vunpack.c.l.b16 %v1833
    %v1873 = vunpack.c.l.b16 %v1834
    %v1874 = vunpack.c.l.b16 %v1835
    %v1875 = vunpack.c.l.b16 %v1836
    %v1876 = vunpack.c.l.b16 %v1837
    %v1877 = vunpack.c.l.b16 %v1838
    %v1878 = vunpack.c.l.b16 %v1839
    %v1879 = vpack.c.b16 %v1872, %v1871
    %v1880 = vpack.c.b16 %v1874, %v1873
    %v1881 = vpack.c.b16 %v1876, %v1875
    %v1882 = vpack.c.b16 %v1878, %v1877
    %v1903 = vunpack.c.l.b16 %v1840
    %v1904 = vunpack.c.l.b16 %v1841
    %v1905 = vunpack.c.l.b16 %v1842
    %v1906 = vunpack.c.l.b16 %v1843
    %v1907 = vunpack.c.l.b16 %v1844
    %v1908 = vunpack.c.l.b16 %v1845
    %v1909 = vunpack.c.l.b16 %v1846
    %v1910 = vunpack.c.l.b16 %v1847
    %v1911 = vunpack.c.l.b16 %v1848
    %v1912 = vunpack.c.l.b16 %v1849
    %v1913 = vunpack.c.l.b16 %v1850
    %v1914 = vunpack.c.l.b16 %v1851
    %v1915 = vunpack.c.l.b16 %v1852
    %v1916 = vunpack.c.l.b16 %v1853
    %v1917 = vunpack.c.l.b16 %v1854
    %v1918 = vunpack.c.l.b16 %v1855
    %v1919 = vpack.c.b16 %v1904, %v1903
    %v1920 = vpack.c.b16 %v1906, %v1905
    %v1921 = vpack.c.b16 %v1908, %v1907
    %v1922 = vpack.c.b16 %v1910, %v1909
    %v1923 = vpack.c.b16 %v1912, %v1911
    %v1924 = vpack.c.b16 %v1914, %v1913
    %v1925 = vpack.c.b16 %v1916, %v1915
    %v1926 = vpack.c.b16 %v1918, %v1917
    %1935 = vmatprep.subr.bf16.mxu0 0
    %1936 = vmatpush1.bf16.msra.mxu0 %v1926
    %1937 = vmatprep.subr.bf16.mxu0 0
    %1938 = vmatpush1.bf16.msra.mxu0 %v1925
    %1939 = vmatprep.subr.bf16.mxu0 0
    %1940 = vmatpush1.bf16.msra.mxu0 %v1924
    %1941 = vmatprep.subr.bf16.mxu0 0
    %1942 = vmatpush1.bf16.msra.mxu0 %v1923
    %1943 = vmatprep.subr.bf16.mxu0 0
    %1944 = vmatpush1.bf16.msra.mxu0 %v1922
    %1945 = vmatprep.subr.bf16.mxu0 0
    %1946 = vmatpush1.bf16.msra.mxu0 %v1921
    %1947 = vmatprep.subr.bf16.mxu0 0
    %1948 = vmatpush1.bf16.msra.mxu0 %v1920
    %1949 = vmatprep.subr.bf16.mxu0 0
    %1950 = vmatpush1.bf16.msra.mxu0 %v1919
    %1951 = vmatprep.subr.bf16.mxu0 0
    %1952 = vmatpush2.bf16.msra.mxu0 0
    %1953 = vmatprep.subr.bf16.mxu0 0
    %1954 = vmatpush2.bf16.msra.mxu0 0
    %1955 = vmatprep.subr.bf16.mxu0 0
    %1956 = vmatpush2.bf16.msra.mxu0 0
    %1957 = vmatprep.subr.bf16.mxu0 0
    %1958 = vmatpush2.bf16.msra.mxu0 0
    %1959 = vmatprep.subr.bf16.mxu0 0
    %1960 = vmatpush2.bf16.msra.mxu0 0
    %1961 = vmatprep.subr.bf16.mxu0 0
    %1962 = vmatpush2.bf16.msra.mxu0 0
    %1963 = vmatprep.subr.bf16.mxu0 0
    %1964 = vmatpush2.bf16.msra.mxu0 0
    %1965 = vmatprep.subr.bf16.mxu0 0
    %1966 = vmatpush2.bf16.msra.mxu0 0
    %1967 = vmatprep.mubr.bf16.mxu0 0
    %1968 = vmatmul.mubr.bf16.gmra.mxu0 %v1879
    %v1969 = vpop.f32.mrf.mxu0
    %v1970 = vadd.f32 %v1861, %v1969
    %v1971 = vpop.f32.mrf.mxu0
    %v1972 = vpop.f32.mrf.mxu0
    %v1973 = vadd.f32 %v1861, %v1972
    %v1974 = vpop.f32.mrf.mxu0
    %1975 = vmatprep.mubr.bf16.mxu0 0
    %1976 = vmatmul.mubr.bf16.gmra.mxu0 %v1880
    %v1977 = vpop.f32.mrf.mxu0
    %v1978 = vadd.f32 %v1861, %v1977
    %v1979 = vpop.f32.mrf.mxu0
    %v1980 = vpop.f32.mrf.mxu0
    %v1981 = vadd.f32 %v1861, %v1980
    %v1982 = vpop.f32.mrf.mxu0
    %1983 = vmatprep.mubr.bf16.mxu0 0
    %1984 = vmatmul.mubr.bf16.gmra.mxu0 %v1881
    %v1985 = vpop.f32.mrf.mxu0
    %v1986 = vadd.f32 %v1861, %v1985
    %v1987 = vpop.f32.mrf.mxu0
    %v1988 = vpop.f32.mrf.mxu0
    %v1989 = vadd.f32 %v1861, %v1988
    %v1990 = vpop.f32.mrf.mxu0
    %1991 = vmatprep.mubr.bf16.mxu0 0
    %1992 = vmatmul.mubr.bf16.gmra.mxu0 %v1882
    %v1993 = vpop.f32.mrf.mxu0
    %v1994 = vadd.f32 %v1861, %v1993
    %v1995 = vpop.f32.mrf.mxu0
    %v1996 = vpop.f32.mrf.mxu0
    %v1997 = vadd.f32 %v1861, %v1996
    %v1998 = vpop.f32.mrf.mxu0
    %1999 = vdwg.mxu0
    %v2000 = vpack.c.bf16 %v1802, %v1802
    %v2001 = vpack.c.bf16 %v1805, %v1805
    %v2002 = vpack.c.bf16 %v1810, %v1810
    %v2003 = vpack.c.bf16 %v1813, %v1813
    %v2004 = vpack.c.bf16 %v1818, %v1818
    %v2005 = vpack.c.bf16 %v1821, %v1821
    %v2006 = vpack.c.bf16 %v1826, %v1826
    %v2007 = vpack.c.bf16 %v1829, %v1829
    %v2008 = vpack.c.bf16 %v1970, %v1970
    %v2009 = vpack.c.bf16 %v1973, %v1973
    %v2010 = vpack.c.bf16 %v1978, %v1978
    %v2011 = vpack.c.bf16 %v1981, %v1981
    %v2012 = vpack.c.bf16 %v1986, %v1986
    %v2013 = vpack.c.bf16 %v1989, %v1989
    %v2014 = vpack.c.bf16 %v1994, %v1994
    %v2015 = vpack.c.bf16 %v1997, %v1997
    %2016 = vmatprep.subr.bf16.mxu0 0
    %2017 = vmatpush1.bf16.xpose.msra.mxu0 0
    %2018 = vmatprep.subr.bf16.mxu0 0
    %2019 = vmatpush1.bf16.xpose.msra.mxu0 0
    %2020 = vmatprep.subr.bf16.mxu0 0
    %2021 = vmatpush1.bf16.xpose.msra.mxu0 0
    %2022 = vmatprep.subr.bf16.mxu0 0
    %2023 = vmatpush1.bf16.xpose.msra.mxu0 0
    %2024 = vmatprep.subr.bf16.mxu0 0
    %2025 = vmatpush1.bf16.xpose.msra.mxu0 0
    %2026 = vmatprep.subr.bf16.mxu0 0
    %2027 = vmatpush1.bf16.xpose.msra.mxu0 0
    %2028 = vmatprep.subr.bf16.mxu0 0
    %2029 = vmatpush1.bf16.xpose.msra.mxu0 0
    %2030 = vmatprep.subr.bf16.mxu0 0
    %2031 = vmatpush1.bf16.xpose.msra.mxu0 %v2008
    %2032 = vmatprep.subr.bf16.mxu0 0
    %2033 = vmatpush2.bf16.xpose.msra.mxu0 0
    %2034 = vmatprep.subr.bf16.mxu0 0
    %2035 = vmatpush2.bf16.xpose.msra.mxu0 0
    %2036 = vmatprep.subr.bf16.mxu0 0
    %2037 = vmatpush2.bf16.xpose.msra.mxu0 0
    %2038 = vmatprep.subr.bf16.mxu0 0
    %2039 = vmatpush2.bf16.xpose.msra.mxu0 0
    %2040 = vmatprep.subr.bf16.mxu0 0
    %2041 = vmatpush2.bf16.xpose.msra.mxu0 0
    %2042 = vmatprep.subr.bf16.mxu0 0
    %2043 = vmatpush2.bf16.xpose.msra.mxu0 0
    %2044 = vmatprep.subr.bf16.mxu0 0
    %2045 = vmatpush2.bf16.xpose.msra.mxu0 0
    %2046 = vmatprep.subr.bf16.mxu0 0
    %2047 = vmatpush2.bf16.xpose.msra.mxu0 0
    %2048 = vmatprep.mubr.bf16.mxu0 0
    %2049 = vmatmul.mubr.bf16.gmra.mxu0 %v2000
    %v2050 = vpop.f32.mrf.mxu0
    %v2051 = vadd.f32 0.0, %v2050
    %v2052 = vpop.f32.mrf.mxu0
    %v2053 = vpop.f32.mrf.mxu0
    %v2054 = vpop.f32.mrf.mxu0
    %2055 = vdwg.mxu0
    %2056 = vmatprep.subr.bf16.mxu0 0
    %2057 = vmatpush1.bf16.xpose.msra.mxu0 0
    %2058 = vmatprep.subr.bf16.mxu0 0
    %2059 = vmatpush1.bf16.xpose.msra.mxu0 0
    %2060 = vmatprep.subr.bf16.mxu0 0
    %2061 = vmatpush1.bf16.xpose.msra.mxu0 0
    %2062 = vmatprep.subr.bf16.mxu0 0
    %2063 = vmatpush1.bf16.xpose.msra.mxu0 0
    %2064 = vmatprep.subr.bf16.mxu0 0
    %2065 = vmatpush1.bf16.xpose.msra.mxu0 0
    %2066 = vmatprep.subr.bf16.mxu0 0
    %2067 = vmatpush1.bf16.xpose.msra.mxu0 0
    %2068 = vmatprep.subr.bf16.mxu0 0
    %2069 = vmatpush1.bf16.xpose.msra.mxu0 0
    %2070 = vmatprep.subr.bf16.mxu0 0
    %2071 = vmatpush1.bf16.xpose.msra.mxu0 %v2009
    %2072 = vmatprep.subr.bf16.mxu0 0
    %2073 = vmatpush2.bf16.xpose.msra.mxu0 0
    %2074 = vmatprep.subr.bf16.mxu0 0
    %2075 = vmatpush2.bf16.xpose.msra.mxu0 0
    %2076 = vmatprep.subr.bf16.mxu0 0
    %2077 = vmatpush2.bf16.xpose.msra.mxu0 0
    %2078 = vmatprep.subr.bf16.mxu0 0
    %2079 = vmatpush2.bf16.xpose.msra.mxu0 0
    %2080 = vmatprep.subr.bf16.mxu0 0
    %2081 = vmatpush2.bf16.xpose.msra.mxu0 0
    %2082 = vmatprep.subr.bf16.mxu0 0
    %2083 = vmatpush2.bf16.xpose.msra.mxu0 0
    %2084 = vmatprep.subr.bf16.mxu0 0
    %2085 = vmatpush2.bf16.xpose.msra.mxu0 0
    %2086 = vmatprep.subr.bf16.mxu0 0
    %2087 = vmatpush2.bf16.xpose.msra.mxu0 0
    %2088 = vmatprep.mubr.bf16.mxu0 0
    %2089 = vmatmul.mubr.bf16.gmra.mxu0 %v2001
    %v2090 = vpop.f32.mrf.mxu0
    %v2091 = vadd.f32 0.0, %v2090
    %v2092 = vpop.f32.mrf.mxu0
    %v2093 = vpop.f32.mrf.mxu0
    %v2094 = vpop.f32.mrf.mxu0
    %2095 = vdwg.mxu0
    %2096 = vmatprep.subr.bf16.mxu0 0
    %2097 = vmatpush1.bf16.xpose.msra.mxu0 0
    %2098 = vmatprep.subr.bf16.mxu0 0
    %2099 = vmatpush1.bf16.xpose.msra.mxu0 0
    %2100 = vmatprep.subr.bf16.mxu0 0
    %2101 = vmatpush1.bf16.xpose.msra.mxu0 0
    %2102 = vmatprep.subr.bf16.mxu0 0
    %2103 = vmatpush1.bf16.xpose.msra.mxu0 0
    %2104 = vmatprep.subr.bf16.mxu0 0
    %2105 = vmatpush1.bf16.xpose.msra.mxu0 0
    %2106 = vmatprep.subr.bf16.mxu0 0
    %2107 = vmatpush1.bf16.xpose.msra.mxu0 0
    %2108 = vmatprep.subr.bf16.mxu0 0
    %2109 = vmatpush1.bf16.xpose.msra.mxu0 0
    %2110 = vmatprep.subr.bf16.mxu0 0
    %2111 = vmatpush1.bf16.xpose.msra.mxu0 %v2010
    %2112 = vmatprep.subr.bf16.mxu0 0
    %2113 = vmatpush2.bf16.xpose.msra.mxu0 0
    %2114 = vmatprep.subr.bf16.mxu0 0
    %2115 = vmatpush2.bf16.xpose.msra.mxu0 0
    %2116 = vmatprep.subr.bf16.mxu0 0
    %2117 = vmatpush2.bf16.xpose.msra.mxu0 0
    %2118 = vmatprep.subr.bf16.mxu0 0
    %2119 = vmatpush2.bf16.xpose.msra.mxu0 0
    %2120 = vmatprep.subr.bf16.mxu0 0
    %2121 = vmatpush2.bf16.xpose.msra.mxu0 0
    %2122 = vmatprep.subr.bf16.mxu0 0
    %2123 = vmatpush2.bf16.xpose.msra.mxu0 0
    %2124 = vmatprep.subr.bf16.mxu0 0
    %2125 = vmatpush2.bf16.xpose.msra.mxu0 0
    %2126 = vmatprep.subr.bf16.mxu0 0
    %2127 = vmatpush2.bf16.xpose.msra.mxu0 0
    %2128 = vmatprep.mubr.bf16.mxu0 0
    %2129 = vmatmul.mubr.bf16.gmra.mxu0 %v2002
    %v2130 = vpop.f32.mrf.mxu0
    %v2131 = vadd.f32 0.0, %v2130
    %v2132 = vpop.f32.mrf.mxu0
    %v2133 = vpop.f32.mrf.mxu0
    %v2134 = vpop.f32.mrf.mxu0
    %2135 = vdwg.mxu0
    %2136 = vmatprep.subr.bf16.mxu0 0
    %2137 = vmatpush1.bf16.xpose.msra.mxu0 0
    %2138 = vmatprep.subr.bf16.mxu0 0
    %2139 = vmatpush1.bf16.xpose.msra.mxu0 0
    %2140 = vmatprep.subr.bf16.mxu0 0
    %2141 = vmatpush1.bf16.xpose.msra.mxu0 0
    %2142 = vmatprep.subr.bf16.mxu0 0
    %2143 = vmatpush1.bf16.xpose.msra.mxu0 0
    %2144 = vmatprep.subr.bf16.mxu0 0
    %2145 = vmatpush1.bf16.xpose.msra.mxu0 0
    %2146 = vmatprep.subr.bf16.mxu0 0
    %2147 = vmatpush1.bf16.xpose.msra.mxu0 0
    %2148 = vmatprep.subr.bf16.mxu0 0
    %2149 = vmatpush1.bf16.xpose.msra.mxu0 0
    %2150 = vmatprep.subr.bf16.mxu0 0
    %2151 = vmatpush1.bf16.xpose.msra.mxu0 %v2011
    %2152 = vmatprep.subr.bf16.mxu0 0
    %2153 = vmatpush2.bf16.xpose.msra.mxu0 0
    %2154 = vmatprep.subr.bf16.mxu0 0
    %2155 = vmatpush2.bf16.xpose.msra.mxu0 0
    %2156 = vmatprep.subr.bf16.mxu0 0
    %2157 = vmatpush2.bf16.xpose.msra.mxu0 0
    %2158 = vmatprep.subr.bf16.mxu0 0
    %2159 = vmatpush2.bf16.xpose.msra.mxu0 0
    %2160 = vmatprep.subr.bf16.mxu0 0
    %2161 = vmatpush2.bf16.xpose.msra.mxu0 0
    %2162 = vmatprep.subr.bf16.mxu0 0
    %2163 = vmatpush2.bf16.xpose.msra.mxu0 0
    %2164 = vmatprep.subr.bf16.mxu0 0
    %2165 = vmatpush2.bf16.xpose.msra.mxu0 0
    %2166 = vmatprep.subr.bf16.mxu0 0
    %2167 = vmatpush2.bf16.xpose.msra.mxu0 0
    %2168 = vmatprep.mubr.bf16.mxu0 0
    %2169 = vmatmul.mubr.bf16.gmra.mxu0 %v2003
    %v2170 = vpop.f32.mrf.mxu0
    %v2171 = vadd.f32 0.0, %v2170
    %v2172 = vpop.f32.mrf.mxu0
    %v2173 = vpop.f32.mrf.mxu0
    %v2174 = vpop.f32.mrf.mxu0
    %2175 = vdwg.mxu0
    %2176 = vmatprep.subr.bf16.mxu0 0
    %2177 = vmatpush1.bf16.xpose.msra.mxu0 0
    %2178 = vmatprep.subr.bf16.mxu0 0
    %2179 = vmatpush1.bf16.xpose.msra.mxu0 0
    %2180 = vmatprep.subr.bf16.mxu0 0
    %2181 = vmatpush1.bf16.xpose.msra.mxu0 0
    %2182 = vmatprep.subr.bf16.mxu0 0
    %2183 = vmatpush1.bf16.xpose.msra.mxu0 0
    %2184 = vmatprep.subr.bf16.mxu0 0
    %2185 = vmatpush1.bf16.xpose.msra.mxu0 0
    %2186 = vmatprep.subr.bf16.mxu0 0
    %2187 = vmatpush1.bf16.xpose.msra.mxu0 0
    %2188 = vmatprep.subr.bf16.mxu0 0
    %2189 = vmatpush1.bf16.xpose.msra.mxu0 0
    %2190 = vmatprep.subr.bf16.mxu0 0
    %2191 = vmatpush1.bf16.xpose.msra.mxu0 %v2012
    %2192 = vmatprep.subr.bf16.mxu0 0
    %2193 = vmatpush2.bf16.xpose.msra.mxu0 0
    %2194 = vmatprep.subr.bf16.mxu0 0
    %2195 = vmatpush2.bf16.xpose.msra.mxu0 0
    %2196 = vmatprep.subr.bf16.mxu0 0
    %2197 = vmatpush2.bf16.xpose.msra.mxu0 0
    %2198 = vmatprep.subr.bf16.mxu0 0
    %2199 = vmatpush2.bf16.xpose.msra.mxu0 0
    %2200 = vmatprep.subr.bf16.mxu0 0
    %2201 = vmatpush2.bf16.xpose.msra.mxu0 0
    %2202 = vmatprep.subr.bf16.mxu0 0
    %2203 = vmatpush2.bf16.xpose.msra.mxu0 0
    %2204 = vmatprep.subr.bf16.mxu0 0
    %2205 = vmatpush2.bf16.xpose.msra.mxu0 0
    %2206 = vmatprep.subr.bf16.mxu0 0
    %2207 = vmatpush2.bf16.xpose.msra.mxu0 0
    %2208 = vmatprep.mubr.bf16.mxu0 0
    %2209 = vmatmul.mubr.bf16.gmra.mxu0 %v2004
    %v2210 = vpop.f32.mrf.mxu0
    %v2211 = vadd.f32 0.0, %v2210
    %v2212 = vpop.f32.mrf.mxu0
    %v2213 = vpop.f32.mrf.mxu0
    %v2214 = vpop.f32.mrf.mxu0
    %2215 = vdwg.mxu0
    %2216 = vmatprep.subr.bf16.mxu0 0
    %2217 = vmatpush1.bf16.xpose.msra.mxu0 0
    %2218 = vmatprep.subr.bf16.mxu0 0
    %2219 = vmatpush1.bf16.xpose.msra.mxu0 0
    %2220 = vmatprep.subr.bf16.mxu0 0
    %2221 = vmatpush1.bf16.xpose.msra.mxu0 0
    %2222 = vmatprep.subr.bf16.mxu0 0
    %2223 = vmatpush1.bf16.xpose.msra.mxu0 0
    %2224 = vmatprep.subr.bf16.mxu0 0
    %2225 = vmatpush1.bf16.xpose.msra.mxu0 0
    %2226 = vmatprep.subr.bf16.mxu0 0
    %2227 = vmatpush1.bf16.xpose.msra.mxu0 0
    %2228 = vmatprep.subr.bf16.mxu0 0
    %2229 = vmatpush1.bf16.xpose.msra.mxu0 0
    %2230 = vmatprep.subr.bf16.mxu0 0
    %2231 = vmatpush1.bf16.xpose.msra.mxu0 %v2013
    %2232 = vmatprep.subr.bf16.mxu0 0
    %2233 = vmatpush2.bf16.xpose.msra.mxu0 0
    %2234 = vmatprep.subr.bf16.mxu0 0
    %2235 = vmatpush2.bf16.xpose.msra.mxu0 0
    %2236 = vmatprep.subr.bf16.mxu0 0
    %2237 = vmatpush2.bf16.xpose.msra.mxu0 0
    %2238 = vmatprep.subr.bf16.mxu0 0
    %2239 = vmatpush2.bf16.xpose.msra.mxu0 0
    %2240 = vmatprep.subr.bf16.mxu0 0
    %2241 = vmatpush2.bf16.xpose.msra.mxu0 0
    %2242 = vmatprep.subr.bf16.mxu0 0
    %2243 = vmatpush2.bf16.xpose.msra.mxu0 0
    %2244 = vmatprep.subr.bf16.mxu0 0
    %2245 = vmatpush2.bf16.xpose.msra.mxu0 0
    %2246 = vmatprep.subr.bf16.mxu0 0
    %2247 = vmatpush2.bf16.xpose.msra.mxu0 0
    %2248 = vmatprep.mubr.bf16.mxu0 0
    %2249 = vmatmul.mubr.bf16.gmra.mxu0 %v2005
    %v2250 = vpop.f32.mrf.mxu0
    %v2251 = vadd.f32 0.0, %v2250
    %v2252 = vpop.f32.mrf.mxu0
    %v2253 = vpop.f32.mrf.mxu0
    %v2254 = vpop.f32.mrf.mxu0
    %2255 = vdwg.mxu0
    %2256 = vmatprep.subr.bf16.mxu0 0
    %2257 = vmatpush1.bf16.xpose.msra.mxu0 0
    %2258 = vmatprep.subr.bf16.mxu0 0
    %2259 = vmatpush1.bf16.xpose.msra.mxu0 0
    %2260 = vmatprep.subr.bf16.mxu0 0
    %2261 = vmatpush1.bf16.xpose.msra.mxu0 0
    %2262 = vmatprep.subr.bf16.mxu0 0
    %2263 = vmatpush1.bf16.xpose.msra.mxu0 0
    %2264 = vmatprep.subr.bf16.mxu0 0
    %2265 = vmatpush1.bf16.xpose.msra.mxu0 0
    %2266 = vmatprep.subr.bf16.mxu0 0
    %2267 = vmatpush1.bf16.xpose.msra.mxu0 0
    %2268 = vmatprep.subr.bf16.mxu0 0
    %2269 = vmatpush1.bf16.xpose.msra.mxu0 0
    %2270 = vmatprep.subr.bf16.mxu0 0
    %2271 = vmatpush1.bf16.xpose.msra.mxu0 %v2014
    %2272 = vmatprep.subr.bf16.mxu0 0
    %2273 = vmatpush2.bf16.xpose.msra.mxu0 0
    %2274 = vmatprep.subr.bf16.mxu0 0
    %2275 = vmatpush2.bf16.xpose.msra.mxu0 0
    %2276 = vmatprep.subr.bf16.mxu0 0
    %2277 = vmatpush2.bf16.xpose.msra.mxu0 0
    %2278 = vmatprep.subr.bf16.mxu0 0
    %2279 = vmatpush2.bf16.xpose.msra.mxu0 0
    %2280 = vmatprep.subr.bf16.mxu0 0
    %2281 = vmatpush2.bf16.xpose.msra.mxu0 0
    %2282 = vmatprep.subr.bf16.mxu0 0
    %2283 = vmatpush2.bf16.xpose.msra.mxu0 0
    %2284 = vmatprep.subr.bf16.mxu0 0
    %2285 = vmatpush2.bf16.xpose.msra.mxu0 0
    %2286 = vmatprep.subr.bf16.mxu0 0
    %2287 = vmatpush2.bf16.xpose.msra.mxu0 0
    %2288 = vmatprep.mubr.bf16.mxu0 0
    %2289 = vmatmul.mubr.bf16.gmra.mxu0 %v2006
    %v2290 = vpop.f32.mrf.mxu0
    %v2291 = vadd.f32 0.0, %v2290
    %v2292 = vpop.f32.mrf.mxu0
    %v2293 = vpop.f32.mrf.mxu0
    %v2294 = vpop.f32.mrf.mxu0
    %2295 = vdwg.mxu0
    %2296 = vmatprep.subr.bf16.mxu0 0
    %2297 = vmatpush1.bf16.xpose.msra.mxu0 0
    %2298 = vmatprep.subr.bf16.mxu0 0
    %2299 = vmatpush1.bf16.xpose.msra.mxu0 0
    %2300 = vmatprep.subr.bf16.mxu0 0
    %2301 = vmatpush1.bf16.xpose.msra.mxu0 0
    %2302 = vmatprep.subr.bf16.mxu0 0
    %2303 = vmatpush1.bf16.xpose.msra.mxu0 0
    %2304 = vmatprep.subr.bf16.mxu0 0
    %2305 = vmatpush1.bf16.xpose.msra.mxu0 0
    %2306 = vmatprep.subr.bf16.mxu0 0
    %2307 = vmatpush1.bf16.xpose.msra.mxu0 0
    %2308 = vmatprep.subr.bf16.mxu0 0
    %2309 = vmatpush1.bf16.xpose.msra.mxu0 0
    %2310 = vmatprep.subr.bf16.mxu0 0
    %2311 = vmatpush1.bf16.xpose.msra.mxu0 %v2015
    %2312 = vmatprep.subr.bf16.mxu0 0
    %2313 = vmatpush2.bf16.xpose.msra.mxu0 0
    %2314 = vmatprep.subr.bf16.mxu0 0
    %2315 = vmatpush2.bf16.xpose.msra.mxu0 0
    %2316 = vmatprep.subr.bf16.mxu0 0
    %2317 = vmatpush2.bf16.xpose.msra.mxu0 0
    %2318 = vmatprep.subr.bf16.mxu0 0
    %2319 = vmatpush2.bf16.xpose.msra.mxu0 0
    %2320 = vmatprep.subr.bf16.mxu0 0
    %2321 = vmatpush2.bf16.xpose.msra.mxu0 0
    %2322 = vmatprep.subr.bf16.mxu0 0
    %2323 = vmatpush2.bf16.xpose.msra.mxu0 0
    %2324 = vmatprep.subr.bf16.mxu0 0
    %2325 = vmatpush2.bf16.xpose.msra.mxu0 0
    %2326 = vmatprep.subr.bf16.mxu0 0
    %2327 = vmatpush2.bf16.xpose.msra.mxu0 0
    %2328 = vmatprep.mubr.bf16.mxu0 0
    %2329 = vmatmul.mubr.bf16.gmra.mxu0 %v2007
    %v2330 = vpop.f32.mrf.mxu0
    %v2331 = vadd.f32 0.0, %v2330
    %v2332 = vpop.f32.mrf.mxu0
    %v2333 = vpop.f32.mrf.mxu0
    %v2334 = vpop.f32.mrf.mxu0
    %2335 = vdwg.mxu0
    %v2336 = vxor.u32 %v2051, 2147483648
    %v2337 = vxor.u32 %v2091, 2147483648
    %v2338 = vxor.u32 %v2131, 2147483648
    %v2339 = vxor.u32 %v2171, 2147483648
    %v2340 = vxor.u32 %v2211, 2147483648
    %v2341 = vxor.u32 %v2251, 2147483648
    %v2342 = vxor.u32 %v2291, 2147483648
    %v2343 = vxor.u32 %v2331, 2147483648
    %v2344 = vmul.f32 %v2336, 1.442695
    %v2345 = vpow.pop %v2344
    %v2346 = vmul.f32 %v2337, 1.442695
    %v2347 = vpow.pop %v2346
    %v2348 = vmul.f32 %v2338, 1.442695
    %v2349 = vpow.pop %v2348
    %v2350 = vmul.f32 %v2339, 1.442695
    %v2351 = vpow.pop %v2350
    %v2352 = vmul.f32 %v2340, 1.442695
    %v2353 = vpow.pop %v2352
    %v2354 = vmul.f32 %v2341, 1.442695
    %v2355 = vpow.pop %v2354
    %v2356 = vmul.f32 %v2342, 1.442695
    %v2357 = vpow.pop %v2356
    %v2358 = vmul.f32 %v2343, 1.442695
    %v2359 = vpow.pop %v2358
    %v2360 = vadd.f32 %v2345, 1.0
    %v2361 = vadd.f32 %v2347, 1.0
    %v2362 = vadd.f32 %v2349, 1.0
    %v2363 = vadd.f32 %v2351, 1.0
    %v2364 = vadd.f32 %v2353, 1.0
    %v2365 = vadd.f32 %v2355, 1.0
    %v2366 = vadd.f32 %v2357, 1.0
    %v2367 = vadd.f32 %v2359, 1.0
    %v2368 = vrcp.pop %v2360
    %v2369 = vmul.f32 1.0, %v2368
    %v2370 = vrcp.pop %v2361
    %v2371 = vmul.f32 1.0, %v2370
    %v2372 = vrcp.pop %v2362
    %v2373 = vmul.f32 1.0, %v2372
    %v2374 = vrcp.pop %v2363
    %v2375 = vmul.f32 1.0, %v2374
    %v2376 = vrcp.pop %v2364
    %v2377 = vmul.f32 1.0, %v2376
    %v2378 = vrcp.pop %v2365
    %v2379 = vmul.f32 1.0, %v2378
    %v2380 = vrcp.pop %v2366
    %v2381 = vmul.f32 1.0, %v2380
    %v2382 = vrcp.pop %v2367
    %v2383 = vmul.f32 1.0, %v2382
    %vm2384 = vcmask 64512
    %v2385 = vsel %vm2384, %v2369, 0.0
    %2386 = vadd.xlane.f32.xlu0 %v2385
    %v2387 = vpop.xlane.xlu0 %2386
    %v2388 = vsel %vm2384, %v2371, 0.0
    %2389 = vadd.xlane.f32.xlu0 %v2388
    %v2390 = vpop.xlane.xlu0 %2389
    %v2391 = vsel %vm2384, %v2373, 0.0
    %2392 = vadd.xlane.f32.xlu0 %v2391
    %v2393 = vpop.xlane.xlu0 %2392
    %v2394 = vsel %vm2384, %v2375, 0.0
    %2395 = vadd.xlane.f32.xlu0 %v2394
    %v2396 = vpop.xlane.xlu0 %2395
    %v2397 = vsel %vm2384, %v2377, 0.0
    %2398 = vadd.xlane.f32.xlu0 %v2397
    %v2399 = vpop.xlane.xlu0 %2398
    %v2400 = vsel %vm2384, %v2379, 0.0
    %2401 = vadd.xlane.f32.xlu0 %v2400
    %v2402 = vpop.xlane.xlu0 %2401
    %v2403 = vsel %vm2384, %v2381, 0.0
    %2404 = vadd.xlane.f32.xlu0 %v2403
    %v2405 = vpop.xlane.xlu0 %2404
    %v2406 = vsel %vm2384, %v2383, 0.0
    %2407 = vadd.xlane.f32.xlu0 %v2406
    %v2408 = vpop.xlane.xlu0 %2407
    %v2409 = vrot.slane %v2387, 4
    %v2410 = vadd.f32 %v2387, %v2409
    %v2411 = vrot.slane %v2410, 2
    %v2412 = vadd.f32 %v2410, %v2411
    %v2413 = vrot.slane %v2412, 1
    %v2414 = vadd.f32 %v2412, %v2413
    %v2415 = vrot.slane %v2390, 4
    %v2416 = vadd.f32 %v2390, %v2415
    %v2417 = vrot.slane %v2416, 2
    %v2418 = vadd.f32 %v2416, %v2417
    %v2419 = vrot.slane %v2418, 1
    %v2420 = vadd.f32 %v2418, %v2419
    %v2421 = vrot.slane %v2393, 4
    %v2422 = vadd.f32 %v2393, %v2421
    %v2423 = vrot.slane %v2422, 2
    %v2424 = vadd.f32 %v2422, %v2423
    %v2425 = vrot.slane %v2424, 1
    %v2426 = vadd.f32 %v2424, %v2425
    %v2427 = vrot.slane %v2396, 4
    %v2428 = vadd.f32 %v2396, %v2427
    %v2429 = vrot.slane %v2428, 2
    %v2430 = vadd.f32 %v2428, %v2429
    %v2431 = vrot.slane %v2430, 1
    %v2432 = vadd.f32 %v2430, %v2431
    %v2433 = vrot.slane %v2399, 4
    %v2434 = vadd.f32 %v2399, %v2433
    %v2435 = vrot.slane %v2434, 2
    %v2436 = vadd.f32 %v2434, %v2435
    %v2437 = vrot.slane %v2436, 1
    %v2438 = vadd.f32 %v2436, %v2437
    %v2439 = vrot.slane %v2402, 4
    %v2440 = vadd.f32 %v2402, %v2439
    %v2441 = vrot.slane %v2440, 2
    %v2442 = vadd.f32 %v2440, %v2441
    %v2443 = vrot.slane %v2442, 1
    %v2444 = vadd.f32 %v2442, %v2443
    %v2445 = vrot.slane %v2405, 4
    %v2446 = vadd.f32 %v2405, %v2445
    %v2447 = vrot.slane %v2446, 2
    %v2448 = vadd.f32 %v2446, %v2447
    %v2449 = vrot.slane %v2448, 1
    %v2450 = vadd.f32 %v2448, %v2449
    %v2451 = vrot.slane %v2408, 4
    %v2452 = vadd.f32 %v2408, %v2451
    %v2453 = vrot.slane %v2452, 2
    %v2454 = vadd.f32 %v2452, %v2453
    %v2455 = vrot.slane %v2454, 1
    %v2456 = vadd.f32 %v2454, %v2455
    %v2457 = vrcp.pop %v2414
    %v2458 = vrcp.pop %v2420
    %v2459 = vrcp.pop %v2426
    %v2460 = vrcp.pop %v2432
    %v2461 = vrcp.pop %v2438
    %v2462 = vrcp.pop %v2444
    %v2463 = vrcp.pop %v2450
    %v2464 = vrcp.pop %v2456
    %v2465 = vmul.f32 %v2369, %v2457
    %v2466 = vmul.f32 %v2371, %v2458
    %v2467 = vmul.f32 %v2373, %v2459
    %v2468 = vmul.f32 %v2375, %v2460
    %v2469 = vmul.f32 %v2377, %v2461
    %v2470 = vmul.f32 %v2379, %v2462
    %v2471 = vmul.f32 %v2381, %v2463
    %v2472 = vmul.f32 %v2383, %v2464
    %v2473 = vunpack.c.l.bf16 %v112
    %v2474 = vunpack.c.l.bf16 %v113
    %v2475 = vunpack.c.l.bf16 %v114
    %v2476 = vunpack.c.l.bf16 %v115
    %v2477 = vunpack.c.l.bf16 %v116
    %v2478 = vunpack.c.l.bf16 %v117
    %v2479 = vunpack.c.l.bf16 %v118
    %v2480 = vunpack.c.l.bf16 %v119
    %v2481 = vlaneseq
    %v2482 = vshrl.u32 %v2481, 7
    %v2483 = vsub.s32 0, %v2482
    %v2484 = vrot.slane %v2473, %v2483
    %v2485 = vlaneseq
    %v2486 = vshrl.u32 %v2485, 7
    %v2487 = vsub.s32 0, %v2486
    %v2488 = vrot.slane %v2474, %v2487
    %v2489 = vlaneseq
    %v2490 = vshrl.u32 %v2489, 7
    %v2491 = vsub.s32 0, %v2490
    %v2492 = vrot.slane %v2475, %v2491
    %v2493 = vlaneseq
    %v2494 = vshrl.u32 %v2493, 7
    %v2495 = vsub.s32 0, %v2494
    %v2496 = vrot.slane %v2476, %v2495
    %v2497 = vlaneseq
    %v2498 = vshrl.u32 %v2497, 7
    %v2499 = vsub.s32 0, %v2498
    %v2500 = vrot.slane %v2477, %v2499
    %v2501 = vlaneseq
    %v2502 = vshrl.u32 %v2501, 7
    %v2503 = vsub.s32 0, %v2502
    %v2504 = vrot.slane %v2478, %v2503
    %v2505 = vlaneseq
    %v2506 = vshrl.u32 %v2505, 7
    %v2507 = vsub.s32 0, %v2506
    %v2508 = vrot.slane %v2479, %v2507
    %v2509 = vlaneseq
    %v2510 = vshrl.u32 %v2509, 7
    %v2511 = vsub.s32 0, %v2510
    %v2512 = vrot.slane %v2480, %v2511
    %v2513 = vmul.f32 %v1654, %v2484
    %v2514 = vmul.f32 %v1657, %v2488
    %v2515 = vmul.f32 %v1662, %v2492
    %v2516 = vmul.f32 %v1665, %v2496
    %v2517 = vmul.f32 %v1670, %v2500
    %v2518 = vmul.f32 %v1673, %v2504
    %v2519 = vmul.f32 %v1678, %v2508
    %v2520 = vmul.f32 %v1681, %v2512
    %v2521 = vtanh.pop %v2513
    %v2522 = vtanh.pop %v2514
    %v2523 = vtanh.pop %v2515
    %v2524 = vtanh.pop %v2516
    %v2525 = vtanh.pop %v2517
    %v2526 = vtanh.pop %v2518
    %v2527 = vtanh.pop %v2519
    %v2528 = vtanh.pop %v2520
    %2530 = vset.pattern.permute.xlu0 0
    %2531 = vperm.xlu0 %2530, %v2465
    %v2532 = vpop.permute.xlu0 %2531
    %2535 = vset.pattern.permute.xlu0 0
    %2536 = vperm.xlu0 %2535, %v2466
    %v2537 = vpop.permute.xlu0 %2536
    %2540 = vset.pattern.permute.xlu0 0
    %2541 = vperm.xlu0 %2540, %v2467
    %v2542 = vpop.permute.xlu0 %2541
    %2545 = vset.pattern.permute.xlu0 0
    %2546 = vperm.xlu0 %2545, %v2468
    %v2547 = vpop.permute.xlu0 %2546
    %2550 = vset.pattern.permute.xlu0 0
    %2551 = vperm.xlu0 %2550, %v2469
    %v2552 = vpop.permute.xlu0 %2551
    %2555 = vset.pattern.permute.xlu0 0
    %2556 = vperm.xlu0 %2555, %v2470
    %v2557 = vpop.permute.xlu0 %2556
    %2560 = vset.pattern.permute.xlu0 0
    %2561 = vperm.xlu0 %2560, %v2471
    %v2562 = vpop.permute.xlu0 %2561
    %2565 = vset.pattern.permute.xlu0 0
    %2566 = vperm.xlu0 %2565, %v2472
    %v2567 = vpop.permute.xlu0 %2566
    %v2569 = vmul.f32 %v2521, %v2532
    %v2570 = vmul.f32 %v2522, %v2537
    %v2571 = vmul.f32 %v2523, %v2542
    %v2572 = vmul.f32 %v2524, %v2547
    %v2573 = vmul.f32 %v2525, %v2552
    %v2574 = vmul.f32 %v2526, %v2557
    %v2575 = vmul.f32 %v2527, %v2562
    %v2576 = vmul.f32 %v2528, %v2567
    %v2577 = vadd.f32 %v2569, 0.0
    %v2578 = vadd.f32 %v2570, 0.0
    %v2579 = vadd.f32 %v2571, 0.0
    %v2580 = vadd.f32 %v2572, 0.0
    %v2581 = vadd.f32 %v2573, 0.0
    %v2582 = vadd.f32 %v2574, 0.0
    %v2583 = vadd.f32 %v2575, 0.0
    %v2584 = vadd.f32 %v2576, 0.0
    %v2585 = vlaneseq
    %v2586 = vshrl.u32 %v2585, 7
    %v2587 = vsub.s32 1, %v2586
    %v2588 = vrot.slane %v2473, %v2587
    %v2589 = vlaneseq
    %v2590 = vshrl.u32 %v2589, 7
    %v2591 = vsub.s32 1, %v2590
    %v2592 = vrot.slane %v2474, %v2591
    %v2593 = vlaneseq
    %v2594 = vshrl.u32 %v2593, 7
    %v2595 = vsub.s32 1, %v2594
    %v2596 = vrot.slane %v2475, %v2595
    %v2597 = vlaneseq
    %v2598 = vshrl.u32 %v2597, 7
    %v2599 = vsub.s32 1, %v2598
    %v2600 = vrot.slane %v2476, %v2599
    %v2601 = vlaneseq
    %v2602 = vshrl.u32 %v2601, 7
    %v2603 = vsub.s32 1, %v2602
    %v2604 = vrot.slane %v2477, %v2603
    %v2605 = vlaneseq
    %v2606 = vshrl.u32 %v2605, 7
    %v2607 = vsub.s32 1, %v2606
    %v2608 = vrot.slane %v2478, %v2607
    %v2609 = vlaneseq
    %v2610 = vshrl.u32 %v2609, 7
    %v2611 = vsub.s32 1, %v2610
    %v2612 = vrot.slane %v2479, %v2611
    %v2613 = vlaneseq
    %v2614 = vshrl.u32 %v2613, 7
    %v2615 = vsub.s32 1, %v2614
    %v2616 = vrot.slane %v2480, %v2615
    %v2617 = vmul.f32 %v1654, %v2588
    %v2618 = vmul.f32 %v1657, %v2592
    %v2619 = vmul.f32 %v1662, %v2596
    %v2620 = vmul.f32 %v1665, %v2600
    %v2621 = vmul.f32 %v1670, %v2604
    %v2622 = vmul.f32 %v1673, %v2608
    %v2623 = vmul.f32 %v1678, %v2612
    %v2624 = vmul.f32 %v1681, %v2616
    %v2625 = vtanh.pop %v2617
    %v2626 = vtanh.pop %v2618
    %v2627 = vtanh.pop %v2619
    %v2628 = vtanh.pop %v2620
    %v2629 = vtanh.pop %v2621
    %v2630 = vtanh.pop %v2622
    %v2631 = vtanh.pop %v2623
    %v2632 = vtanh.pop %v2624
    %2633 = vset.pattern.permute.xlu0 1
    %2634 = vperm.xlu0 %2633, %v2465
    %v2635 = vpop.permute.xlu0 %2634
    %2637 = vset.pattern.permute.xlu0 1
    %2638 = vperm.xlu0 %2637, %v2466
    %v2639 = vpop.permute.xlu0 %2638
    %2641 = vset.pattern.permute.xlu0 1
    %2642 = vperm.xlu0 %2641, %v2467
    %v2643 = vpop.permute.xlu0 %2642
    %2645 = vset.pattern.permute.xlu0 1
    %2646 = vperm.xlu0 %2645, %v2468
    %v2647 = vpop.permute.xlu0 %2646
    %2649 = vset.pattern.permute.xlu0 1
    %2650 = vperm.xlu0 %2649, %v2469
    %v2651 = vpop.permute.xlu0 %2650
    %2653 = vset.pattern.permute.xlu0 1
    %2654 = vperm.xlu0 %2653, %v2470
    %v2655 = vpop.permute.xlu0 %2654
    %2657 = vset.pattern.permute.xlu0 1
    %2658 = vperm.xlu0 %2657, %v2471
    %v2659 = vpop.permute.xlu0 %2658
    %2661 = vset.pattern.permute.xlu0 1
    %2662 = vperm.xlu0 %2661, %v2472
    %v2663 = vpop.permute.xlu0 %2662
    %v2665 = vmul.f32 %v2625, %v2635
    %v2666 = vmul.f32 %v2626, %v2639
    %v2667 = vmul.f32 %v2627, %v2643
    %v2668 = vmul.f32 %v2628, %v2647
    %v2669 = vmul.f32 %v2629, %v2651
    %v2670 = vmul.f32 %v2630, %v2655
    %v2671 = vmul.f32 %v2631, %v2659
    %v2672 = vmul.f32 %v2632, %v2663
    %v2673 = vadd.f32 %v2577, %v2665
    %v2674 = vadd.f32 %v2578, %v2666
    %v2675 = vadd.f32 %v2579, %v2667
    %v2676 = vadd.f32 %v2580, %v2668
    %v2677 = vadd.f32 %v2581, %v2669
    %v2678 = vadd.f32 %v2582, %v2670
    %v2679 = vadd.f32 %v2583, %v2671
    %v2680 = vadd.f32 %v2584, %v2672
    %v2681 = vlaneseq
    %v2682 = vshrl.u32 %v2681, 7
    %v2683 = vsub.s32 2, %v2682
    %v2684 = vrot.slane %v2473, %v2683
    %v2685 = vlaneseq
    %v2686 = vshrl.u32 %v2685, 7
    %v2687 = vsub.s32 2, %v2686
    %v2688 = vrot.slane %v2474, %v2687
    %v2689 = vlaneseq
    %v2690 = vshrl.u32 %v2689, 7
    %v2691 = vsub.s32 2, %v2690
    %v2692 = vrot.slane %v2475, %v2691
    %v2693 = vlaneseq
    %v2694 = vshrl.u32 %v2693, 7
    %v2695 = vsub.s32 2, %v2694
    %v2696 = vrot.slane %v2476, %v2695
    %v2697 = vlaneseq
    %v2698 = vshrl.u32 %v2697, 7
    %v2699 = vsub.s32 2, %v2698
    %v2700 = vrot.slane %v2477, %v2699
    %v2701 = vlaneseq
    %v2702 = vshrl.u32 %v2701, 7
    %v2703 = vsub.s32 2, %v2702
    %v2704 = vrot.slane %v2478, %v2703
    %v2705 = vlaneseq
    %v2706 = vshrl.u32 %v2705, 7
    %v2707 = vsub.s32 2, %v2706
    %v2708 = vrot.slane %v2479, %v2707
    %v2709 = vlaneseq
    %v2710 = vshrl.u32 %v2709, 7
    %v2711 = vsub.s32 2, %v2710
    %v2712 = vrot.slane %v2480, %v2711
    %v2713 = vmul.f32 %v1654, %v2684
    %v2714 = vmul.f32 %v1657, %v2688
    %v2715 = vmul.f32 %v1662, %v2692
    %v2716 = vmul.f32 %v1665, %v2696
    %v2717 = vmul.f32 %v1670, %v2700
    %v2718 = vmul.f32 %v1673, %v2704
    %v2719 = vmul.f32 %v1678, %v2708
    %v2720 = vmul.f32 %v1681, %v2712
    %v2721 = vtanh.pop %v2713
    %v2722 = vtanh.pop %v2714
    %v2723 = vtanh.pop %v2715
    %v2724 = vtanh.pop %v2716
    %v2725 = vtanh.pop %v2717
    %v2726 = vtanh.pop %v2718
    %v2727 = vtanh.pop %v2719
    %v2728 = vtanh.pop %v2720
    %2729 = vset.pattern.permute.xlu0 2
    %2730 = vperm.xlu0 %2729, %v2465
    %v2731 = vpop.permute.xlu0 %2730
    %2733 = vset.pattern.permute.xlu0 2
    %2734 = vperm.xlu0 %2733, %v2466
    %v2735 = vpop.permute.xlu0 %2734
    %2737 = vset.pattern.permute.xlu0 2
    %2738 = vperm.xlu0 %2737, %v2467
    %v2739 = vpop.permute.xlu0 %2738
    %2741 = vset.pattern.permute.xlu0 2
    %2742 = vperm.xlu0 %2741, %v2468
    %v2743 = vpop.permute.xlu0 %2742
    %2745 = vset.pattern.permute.xlu0 2
    %2746 = vperm.xlu0 %2745, %v2469
    %v2747 = vpop.permute.xlu0 %2746
    %2749 = vset.pattern.permute.xlu0 2
    %2750 = vperm.xlu0 %2749, %v2470
    %v2751 = vpop.permute.xlu0 %2750
    %2753 = vset.pattern.permute.xlu0 2
    %2754 = vperm.xlu0 %2753, %v2471
    %v2755 = vpop.permute.xlu0 %2754
    %2757 = vset.pattern.permute.xlu0 2
    %2758 = vperm.xlu0 %2757, %v2472
    %v2759 = vpop.permute.xlu0 %2758
    %v2761 = vmul.f32 %v2721, %v2731
    %v2762 = vmul.f32 %v2722, %v2735
    %v2763 = vmul.f32 %v2723, %v2739
    %v2764 = vmul.f32 %v2724, %v2743
    %v2765 = vmul.f32 %v2725, %v2747
    %v2766 = vmul.f32 %v2726, %v2751
    %v2767 = vmul.f32 %v2727, %v2755
    %v2768 = vmul.f32 %v2728, %v2759
    %v2769 = vadd.f32 %v2673, %v2761
    %v2770 = vadd.f32 %v2674, %v2762
    %v2771 = vadd.f32 %v2675, %v2763
    %v2772 = vadd.f32 %v2676, %v2764
    %v2773 = vadd.f32 %v2677, %v2765
    %v2774 = vadd.f32 %v2678, %v2766
    %v2775 = vadd.f32 %v2679, %v2767
    %v2776 = vadd.f32 %v2680, %v2768
    %v2777 = vlaneseq
    %v2778 = vshrl.u32 %v2777, 7
    %v2779 = vsub.s32 3, %v2778
    %v2780 = vrot.slane %v2473, %v2779
    %v2781 = vlaneseq
    %v2782 = vshrl.u32 %v2781, 7
    %v2783 = vsub.s32 3, %v2782
    %v2784 = vrot.slane %v2474, %v2783
    %v2785 = vlaneseq
    %v2786 = vshrl.u32 %v2785, 7
    %v2787 = vsub.s32 3, %v2786
    %v2788 = vrot.slane %v2475, %v2787
    %v2789 = vlaneseq
    %v2790 = vshrl.u32 %v2789, 7
    %v2791 = vsub.s32 3, %v2790
    %v2792 = vrot.slane %v2476, %v2791
    %v2793 = vlaneseq
    %v2794 = vshrl.u32 %v2793, 7
    %v2795 = vsub.s32 3, %v2794
    %v2796 = vrot.slane %v2477, %v2795
    %v2797 = vlaneseq
    %v2798 = vshrl.u32 %v2797, 7
    %v2799 = vsub.s32 3, %v2798
    %v2800 = vrot.slane %v2478, %v2799
    %v2801 = vlaneseq
    %v2802 = vshrl.u32 %v2801, 7
    %v2803 = vsub.s32 3, %v2802
    %v2804 = vrot.slane %v2479, %v2803
    %v2805 = vlaneseq
    %v2806 = vshrl.u32 %v2805, 7
    %v2807 = vsub.s32 3, %v2806
    %v2808 = vrot.slane %v2480, %v2807
    %v2809 = vmul.f32 %v1654, %v2780
    %v2810 = vmul.f32 %v1657, %v2784
    %v2811 = vmul.f32 %v1662, %v2788
    %v2812 = vmul.f32 %v1665, %v2792
    %v2813 = vmul.f32 %v1670, %v2796
    %v2814 = vmul.f32 %v1673, %v2800
    %v2815 = vmul.f32 %v1678, %v2804
    %v2816 = vmul.f32 %v1681, %v2808
    %v2817 = vtanh.pop %v2809
    %v2818 = vtanh.pop %v2810
    %v2819 = vtanh.pop %v2811
    %v2820 = vtanh.pop %v2812
    %v2821 = vtanh.pop %v2813
    %v2822 = vtanh.pop %v2814
    %v2823 = vtanh.pop %v2815
    %v2824 = vtanh.pop %v2816
    %2825 = vset.pattern.permute.xlu0 3
    %2826 = vperm.xlu0 %2825, %v2465
    %v2827 = vpop.permute.xlu0 %2826
    %2829 = vset.pattern.permute.xlu0 3
    %2830 = vperm.xlu0 %2829, %v2466
    %v2831 = vpop.permute.xlu0 %2830
    %2833 = vset.pattern.permute.xlu0 3
    %2834 = vperm.xlu0 %2833, %v2467
    %v2835 = vpop.permute.xlu0 %2834
    %2837 = vset.pattern.permute.xlu0 3
    %2838 = vperm.xlu0 %2837, %v2468
    %v2839 = vpop.permute.xlu0 %2838
    %2841 = vset.pattern.permute.xlu0 3
    %2842 = vperm.xlu0 %2841, %v2469
    %v2843 = vpop.permute.xlu0 %2842
    %2845 = vset.pattern.permute.xlu0 3
    %2846 = vperm.xlu0 %2845, %v2470
    %v2847 = vpop.permute.xlu0 %2846
    %2849 = vset.pattern.permute.xlu0 3
    %2850 = vperm.xlu0 %2849, %v2471
    %v2851 = vpop.permute.xlu0 %2850
    %2853 = vset.pattern.permute.xlu0 3
    %2854 = vperm.xlu0 %2853, %v2472
    %v2855 = vpop.permute.xlu0 %2854
    %v2857 = vmul.f32 %v2817, %v2827
    %v2858 = vmul.f32 %v2818, %v2831
    %v2859 = vmul.f32 %v2819, %v2835
    %v2860 = vmul.f32 %v2820, %v2839
    %v2861 = vmul.f32 %v2821, %v2843
    %v2862 = vmul.f32 %v2822, %v2847
    %v2863 = vmul.f32 %v2823, %v2851
    %v2864 = vmul.f32 %v2824, %v2855
    %v2865 = vadd.f32 %v2769, %v2857
    %v2866 = vadd.f32 %v2770, %v2858
    %v2867 = vadd.f32 %v2771, %v2859
    %v2868 = vadd.f32 %v2772, %v2860
    %v2869 = vadd.f32 %v2773, %v2861
    %v2870 = vadd.f32 %v2774, %v2862
    %v2871 = vadd.f32 %v2775, %v2863
    %v2872 = vadd.f32 %v2776, %v2864
    %v2873 = vlaneseq
    %v2874 = vshrl.u32 %v2873, 7
    %v2875 = vsub.s32 4, %v2874
    %v2876 = vrot.slane %v2473, %v2875
    %v2877 = vlaneseq
    %v2878 = vshrl.u32 %v2877, 7
    %v2879 = vsub.s32 4, %v2878
    %v2880 = vrot.slane %v2474, %v2879
    %v2881 = vlaneseq
    %v2882 = vshrl.u32 %v2881, 7
    %v2883 = vsub.s32 4, %v2882
    %v2884 = vrot.slane %v2475, %v2883
    %v2885 = vlaneseq
    %v2886 = vshrl.u32 %v2885, 7
    %v2887 = vsub.s32 4, %v2886
    %v2888 = vrot.slane %v2476, %v2887
    %v2889 = vlaneseq
    %v2890 = vshrl.u32 %v2889, 7
    %v2891 = vsub.s32 4, %v2890
    %v2892 = vrot.slane %v2477, %v2891
    %v2893 = vlaneseq
    %v2894 = vshrl.u32 %v2893, 7
    %v2895 = vsub.s32 4, %v2894
    %v2896 = vrot.slane %v2478, %v2895
    %v2897 = vlaneseq
    %v2898 = vshrl.u32 %v2897, 7
    %v2899 = vsub.s32 4, %v2898
    %v2900 = vrot.slane %v2479, %v2899
    %v2901 = vlaneseq
    %v2902 = vshrl.u32 %v2901, 7
    %v2903 = vsub.s32 4, %v2902
    %v2904 = vrot.slane %v2480, %v2903
    %v2905 = vmul.f32 %v1654, %v2876
    %v2906 = vmul.f32 %v1657, %v2880
    %v2907 = vmul.f32 %v1662, %v2884
    %v2908 = vmul.f32 %v1665, %v2888
    %v2909 = vmul.f32 %v1670, %v2892
    %v2910 = vmul.f32 %v1673, %v2896
    %v2911 = vmul.f32 %v1678, %v2900
    %v2912 = vmul.f32 %v1681, %v2904
    %v2913 = vtanh.pop %v2905
    %v2914 = vtanh.pop %v2906
    %v2915 = vtanh.pop %v2907
    %v2916 = vtanh.pop %v2908
    %v2917 = vtanh.pop %v2909
    %v2918 = vtanh.pop %v2910
    %v2919 = vtanh.pop %v2911
    %v2920 = vtanh.pop %v2912
    %2921 = vset.pattern.permute.xlu0 4
    %2922 = vperm.xlu0 %2921, %v2465
    %v2923 = vpop.permute.xlu0 %2922
    %2925 = vset.pattern.permute.xlu0 4
    %2926 = vperm.xlu0 %2925, %v2466
    %v2927 = vpop.permute.xlu0 %2926
    %2929 = vset.pattern.permute.xlu0 4
    %2930 = vperm.xlu0 %2929, %v2467
    %v2931 = vpop.permute.xlu0 %2930
    %2933 = vset.pattern.permute.xlu0 4
    %2934 = vperm.xlu0 %2933, %v2468
    %v2935 = vpop.permute.xlu0 %2934
    %2937 = vset.pattern.permute.xlu0 4
    %2938 = vperm.xlu0 %2937, %v2469
    %v2939 = vpop.permute.xlu0 %2938
    %2941 = vset.pattern.permute.xlu0 4
    %2942 = vperm.xlu0 %2941, %v2470
    %v2943 = vpop.permute.xlu0 %2942
    %2945 = vset.pattern.permute.xlu0 4
    %2946 = vperm.xlu0 %2945, %v2471
    %v2947 = vpop.permute.xlu0 %2946
    %2949 = vset.pattern.permute.xlu0 4
    %2950 = vperm.xlu0 %2949, %v2472
    %v2951 = vpop.permute.xlu0 %2950
    %v2953 = vmul.f32 %v2913, %v2923
    %v2954 = vmul.f32 %v2914, %v2927
    %v2955 = vmul.f32 %v2915, %v2931
    %v2956 = vmul.f32 %v2916, %v2935
    %v2957 = vmul.f32 %v2917, %v2939
    %v2958 = vmul.f32 %v2918, %v2943
    %v2959 = vmul.f32 %v2919, %v2947
    %v2960 = vmul.f32 %v2920, %v2951
    %v2961 = vadd.f32 %v2865, %v2953
    %v2962 = vadd.f32 %v2866, %v2954
    %v2963 = vadd.f32 %v2867, %v2955
    %v2964 = vadd.f32 %v2868, %v2956
    %v2965 = vadd.f32 %v2869, %v2957
    %v2966 = vadd.f32 %v2870, %v2958
    %v2967 = vadd.f32 %v2871, %v2959
    %v2968 = vadd.f32 %v2872, %v2960
    %v2969 = vlaneseq
    %v2970 = vshrl.u32 %v2969, 7
    %v2971 = vsub.s32 5, %v2970
    %v2972 = vrot.slane %v2473, %v2971
    %v2973 = vlaneseq
    %v2974 = vshrl.u32 %v2973, 7
    %v2975 = vsub.s32 5, %v2974
    %v2976 = vrot.slane %v2474, %v2975
    %v2977 = vlaneseq
    %v2978 = vshrl.u32 %v2977, 7
    %v2979 = vsub.s32 5, %v2978
    %v2980 = vrot.slane %v2475, %v2979
    %v2981 = vlaneseq
    %v2982 = vshrl.u32 %v2981, 7
    %v2983 = vsub.s32 5, %v2982
    %v2984 = vrot.slane %v2476, %v2983
    %v2985 = vlaneseq
    %v2986 = vshrl.u32 %v2985, 7
    %v2987 = vsub.s32 5, %v2986
    %v2988 = vrot.slane %v2477, %v2987
    %v2989 = vlaneseq
    %v2990 = vshrl.u32 %v2989, 7
    %v2991 = vsub.s32 5, %v2990
    %v2992 = vrot.slane %v2478, %v2991
    %v2993 = vlaneseq
    %v2994 = vshrl.u32 %v2993, 7
    %v2995 = vsub.s32 5, %v2994
    %v2996 = vrot.slane %v2479, %v2995
    %v2997 = vlaneseq
    %v2998 = vshrl.u32 %v2997, 7
    %v2999 = vsub.s32 5, %v2998
    %v3000 = vrot.slane %v2480, %v2999
    %v3001 = vmul.f32 %v1654, %v2972
    %v3002 = vmul.f32 %v1657, %v2976
    %v3003 = vmul.f32 %v1662, %v2980
    %v3004 = vmul.f32 %v1665, %v2984
    %v3005 = vmul.f32 %v1670, %v2988
    %v3006 = vmul.f32 %v1673, %v2992
    %v3007 = vmul.f32 %v1678, %v2996
    %v3008 = vmul.f32 %v1681, %v3000
    %v3009 = vtanh.pop %v3001
    %v3010 = vtanh.pop %v3002
    %v3011 = vtanh.pop %v3003
    %v3012 = vtanh.pop %v3004
    %v3013 = vtanh.pop %v3005
    %v3014 = vtanh.pop %v3006
    %v3015 = vtanh.pop %v3007
    %v3016 = vtanh.pop %v3008
    %3017 = vset.pattern.permute.xlu0 5
    %3018 = vperm.xlu0 %3017, %v2465
    %v3019 = vpop.permute.xlu0 %3018
    %3021 = vset.pattern.permute.xlu0 5
    %3022 = vperm.xlu0 %3021, %v2466
    %v3023 = vpop.permute.xlu0 %3022
    %3025 = vset.pattern.permute.xlu0 5
    %3026 = vperm.xlu0 %3025, %v2467
    %v3027 = vpop.permute.xlu0 %3026
    %3029 = vset.pattern.permute.xlu0 5
    %3030 = vperm.xlu0 %3029, %v2468
    %v3031 = vpop.permute.xlu0 %3030
    %3033 = vset.pattern.permute.xlu0 5
    %3034 = vperm.xlu0 %3033, %v2469
    %v3035 = vpop.permute.xlu0 %3034
    %3037 = vset.pattern.permute.xlu0 5
    %3038 = vperm.xlu0 %3037, %v2470
    %v3039 = vpop.permute.xlu0 %3038
    %3041 = vset.pattern.permute.xlu0 5
    %3042 = vperm.xlu0 %3041, %v2471
    %v3043 = vpop.permute.xlu0 %3042
    %3045 = vset.pattern.permute.xlu0 5
    %3046 = vperm.xlu0 %3045, %v2472
    %v3047 = vpop.permute.xlu0 %3046
    %v3049 = vmul.f32 %v3009, %v3019
    %v3050 = vmul.f32 %v3010, %v3023
    %v3051 = vmul.f32 %v3011, %v3027
    %v3052 = vmul.f32 %v3012, %v3031
    %v3053 = vmul.f32 %v3013, %v3035
    %v3054 = vmul.f32 %v3014, %v3039
    %v3055 = vmul.f32 %v3015, %v3043
    %v3056 = vmul.f32 %v3016, %v3047
    %v3057 = vadd.f32 %v2961, %v3049
    %v3058 = vadd.f32 %v2962, %v3050
    %v3059 = vadd.f32 %v2963, %v3051
    %v3060 = vadd.f32 %v2964, %v3052
    %v3061 = vadd.f32 %v2965, %v3053
    %v3062 = vadd.f32 %v2966, %v3054
    %v3063 = vadd.f32 %v2967, %v3055
    %v3064 = vadd.f32 %v2968, %v3056
    %v3065 = vlaneseq
    %v3066 = vshrl.u32 %v3065, 7
    %v3067 = vsub.s32 6, %v3066
    %v3068 = vrot.slane %v2473, %v3067
    %v3069 = vlaneseq
    %v3070 = vshrl.u32 %v3069, 7
    %v3071 = vsub.s32 6, %v3070
    %v3072 = vrot.slane %v2474, %v3071
    %v3073 = vlaneseq
    %v3074 = vshrl.u32 %v3073, 7
    %v3075 = vsub.s32 6, %v3074
    %v3076 = vrot.slane %v2475, %v3075
    %v3077 = vlaneseq
    %v3078 = vshrl.u32 %v3077, 7
    %v3079 = vsub.s32 6, %v3078
    %v3080 = vrot.slane %v2476, %v3079
    %v3081 = vlaneseq
    %v3082 = vshrl.u32 %v3081, 7
    %v3083 = vsub.s32 6, %v3082
    %v3084 = vrot.slane %v2477, %v3083
    %v3085 = vlaneseq
    %v3086 = vshrl.u32 %v3085, 7
    %v3087 = vsub.s32 6, %v3086
    %v3088 = vrot.slane %v2478, %v3087
    %v3089 = vlaneseq
    %v3090 = vshrl.u32 %v3089, 7
    %v3091 = vsub.s32 6, %v3090
    %v3092 = vrot.slane %v2479, %v3091
    %v3093 = vlaneseq
    %v3094 = vshrl.u32 %v3093, 7
    %v3095 = vsub.s32 6, %v3094
    %v3096 = vrot.slane %v2480, %v3095
    %v3097 = vmul.f32 %v1654, %v3068
    %v3098 = vmul.f32 %v1657, %v3072
    %v3099 = vmul.f32 %v1662, %v3076
    %v3100 = vmul.f32 %v1665, %v3080
    %v3101 = vmul.f32 %v1670, %v3084
    %v3102 = vmul.f32 %v1673, %v3088
    %v3103 = vmul.f32 %v1678, %v3092
    %v3104 = vmul.f32 %v1681, %v3096
    %v3105 = vtanh.pop %v3097
    %v3106 = vtanh.pop %v3098
    %v3107 = vtanh.pop %v3099
    %v3108 = vtanh.pop %v3100
    %v3109 = vtanh.pop %v3101
    %v3110 = vtanh.pop %v3102
    %v3111 = vtanh.pop %v3103
    %v3112 = vtanh.pop %v3104
    %3113 = vset.pattern.permute.xlu0 6
    %3114 = vperm.xlu0 %3113, %v2465
    %v3115 = vpop.permute.xlu0 %3114
    %3117 = vset.pattern.permute.xlu0 6
    %3118 = vperm.xlu0 %3117, %v2466
    %v3119 = vpop.permute.xlu0 %3118
    %3121 = vset.pattern.permute.xlu0 6
    %3122 = vperm.xlu0 %3121, %v2467
    %v3123 = vpop.permute.xlu0 %3122
    %3125 = vset.pattern.permute.xlu0 6
    %3126 = vperm.xlu0 %3125, %v2468
    %v3127 = vpop.permute.xlu0 %3126
    %3129 = vset.pattern.permute.xlu0 6
    %3130 = vperm.xlu0 %3129, %v2469
    %v3131 = vpop.permute.xlu0 %3130
    %3133 = vset.pattern.permute.xlu0 6
    %3134 = vperm.xlu0 %3133, %v2470
    %v3135 = vpop.permute.xlu0 %3134
    %3137 = vset.pattern.permute.xlu0 6
    %3138 = vperm.xlu0 %3137, %v2471
    %v3139 = vpop.permute.xlu0 %3138
    %3141 = vset.pattern.permute.xlu0 6
    %3142 = vperm.xlu0 %3141, %v2472
    %v3143 = vpop.permute.xlu0 %3142
    %v3145 = vmul.f32 %v3105, %v3115
    %v3146 = vmul.f32 %v3106, %v3119
    %v3147 = vmul.f32 %v3107, %v3123
    %v3148 = vmul.f32 %v3108, %v3127
    %v3149 = vmul.f32 %v3109, %v3131
    %v3150 = vmul.f32 %v3110, %v3135
    %v3151 = vmul.f32 %v3111, %v3139
    %v3152 = vmul.f32 %v3112, %v3143
    %v3153 = vadd.f32 %v3057, %v3145
    %v3154 = vadd.f32 %v3058, %v3146
    %v3155 = vadd.f32 %v3059, %v3147
    %v3156 = vadd.f32 %v3060, %v3148
    %v3157 = vadd.f32 %v3061, %v3149
    %v3158 = vadd.f32 %v3062, %v3150
    %v3159 = vadd.f32 %v3063, %v3151
    %v3160 = vadd.f32 %v3064, %v3152
    %v3161 = vlaneseq
    %v3162 = vshrl.u32 %v3161, 7
    %v3163 = vsub.s32 7, %v3162
    %v3164 = vrot.slane %v2473, %v3163
    %v3165 = vlaneseq
    %v3166 = vshrl.u32 %v3165, 7
    %v3167 = vsub.s32 7, %v3166
    %v3168 = vrot.slane %v2474, %v3167
    %v3169 = vlaneseq
    %v3170 = vshrl.u32 %v3169, 7
    %v3171 = vsub.s32 7, %v3170
    %v3172 = vrot.slane %v2475, %v3171
    %v3173 = vlaneseq
    %v3174 = vshrl.u32 %v3173, 7
    %v3175 = vsub.s32 7, %v3174
    %v3176 = vrot.slane %v2476, %v3175
    %v3177 = vlaneseq
    %v3178 = vshrl.u32 %v3177, 7
    %v3179 = vsub.s32 7, %v3178
    %v3180 = vrot.slane %v2477, %v3179
    %v3181 = vlaneseq
    %v3182 = vshrl.u32 %v3181, 7
    %v3183 = vsub.s32 7, %v3182
    %v3184 = vrot.slane %v2478, %v3183
    %v3185 = vlaneseq
    %v3186 = vshrl.u32 %v3185, 7
    %v3187 = vsub.s32 7, %v3186
    %v3188 = vrot.slane %v2479, %v3187
    %v3189 = vlaneseq
    %v3190 = vshrl.u32 %v3189, 7
    %v3191 = vsub.s32 7, %v3190
    %v3192 = vrot.slane %v2480, %v3191
    %v3193 = vmul.f32 %v1654, %v3164
    %v3194 = vmul.f32 %v1657, %v3168
    %v3195 = vmul.f32 %v1662, %v3172
    %v3196 = vmul.f32 %v1665, %v3176
    %v3197 = vmul.f32 %v1670, %v3180
    %v3198 = vmul.f32 %v1673, %v3184
    %v3199 = vmul.f32 %v1678, %v3188
    %v3200 = vmul.f32 %v1681, %v3192
    %v3201 = vtanh.pop %v3193
    %v3202 = vtanh.pop %v3194
    %v3203 = vtanh.pop %v3195
    %v3204 = vtanh.pop %v3196
    %v3205 = vtanh.pop %v3197
    %v3206 = vtanh.pop %v3198
    %v3207 = vtanh.pop %v3199
    %v3208 = vtanh.pop %v3200
    %3209 = vset.pattern.permute.xlu0 7
    %3210 = vperm.xlu0 %3209, %v2465
    %v3211 = vpop.permute.xlu0 %3210
    %3213 = vset.pattern.permute.xlu0 7
    %3214 = vperm.xlu0 %3213, %v2466
    %v3215 = vpop.permute.xlu0 %3214
    %3217 = vset.pattern.permute.xlu0 7
    %3218 = vperm.xlu0 %3217, %v2467
    %v3219 = vpop.permute.xlu0 %3218
    %3221 = vset.pattern.permute.xlu0 7
    %3222 = vperm.xlu0 %3221, %v2468
    %v3223 = vpop.permute.xlu0 %3222
    %3225 = vset.pattern.permute.xlu0 7
    %3226 = vperm.xlu0 %3225, %v2469
    %v3227 = vpop.permute.xlu0 %3226
    %3229 = vset.pattern.permute.xlu0 7
    %3230 = vperm.xlu0 %3229, %v2470
    %v3231 = vpop.permute.xlu0 %3230
    %3233 = vset.pattern.permute.xlu0 7
    %3234 = vperm.xlu0 %3233, %v2471
    %v3235 = vpop.permute.xlu0 %3234
    %3237 = vset.pattern.permute.xlu0 7
    %3238 = vperm.xlu0 %3237, %v2472
    %v3239 = vpop.permute.xlu0 %3238
    %v3241 = vmul.f32 %v3201, %v3211
    %v3242 = vmul.f32 %v3202, %v3215
    %v3243 = vmul.f32 %v3203, %v3219
    %v3244 = vmul.f32 %v3204, %v3223
    %v3245 = vmul.f32 %v3205, %v3227
    %v3246 = vmul.f32 %v3206, %v3231
    %v3247 = vmul.f32 %v3207, %v3235
    %v3248 = vmul.f32 %v3208, %v3239
    %v3249 = vadd.f32 %v3153, %v3241
    %v3250 = vadd.f32 %v3154, %v3242
    %v3251 = vadd.f32 %v3155, %v3243
    %v3252 = vadd.f32 %v3156, %v3244
    %v3253 = vadd.f32 %v3157, %v3245
    %v3254 = vadd.f32 %v3158, %v3246
    %v3255 = vadd.f32 %v3159, %v3247
    %v3256 = vadd.f32 %v3160, %v3248
    %v3257 = vrot.slane %v3249, 4
    %v3258 = vadd.f32 %v3249, %v3257
    %v3259 = vrot.slane %v3258, 2
    %v3260 = vadd.f32 %v3258, %v3259
    %v3261 = vrot.slane %v3260, 1
    %v3262 = vadd.f32 %v3260, %v3261
    %v3263 = vrot.slane %v3250, 4
    %v3264 = vadd.f32 %v3250, %v3263
    %v3265 = vrot.slane %v3264, 2
    %v3266 = vadd.f32 %v3264, %v3265
    %v3267 = vrot.slane %v3266, 1
    %v3268 = vadd.f32 %v3266, %v3267
    %v3269 = vrot.slane %v3251, 4
    %v3270 = vadd.f32 %v3251, %v3269
    %v3271 = vrot.slane %v3270, 2
    %v3272 = vadd.f32 %v3270, %v3271
    %v3273 = vrot.slane %v3272, 1
    %v3274 = vadd.f32 %v3272, %v3273
    %v3275 = vrot.slane %v3252, 4
    %v3276 = vadd.f32 %v3252, %v3275
    %v3277 = vrot.slane %v3276, 2
    %v3278 = vadd.f32 %v3276, %v3277
    %v3279 = vrot.slane %v3278, 1
    %v3280 = vadd.f32 %v3278, %v3279
    %v3281 = vrot.slane %v3253, 4
    %v3282 = vadd.f32 %v3253, %v3281
    %v3283 = vrot.slane %v3282, 2
    %v3284 = vadd.f32 %v3282, %v3283
    %v3285 = vrot.slane %v3284, 1
    %v3286 = vadd.f32 %v3284, %v3285
    %v3287 = vrot.slane %v3254, 4
    %v3288 = vadd.f32 %v3254, %v3287
    %v3289 = vrot.slane %v3288, 2
    %v3290 = vadd.f32 %v3288, %v3289
    %v3291 = vrot.slane %v3290, 1
    %v3292 = vadd.f32 %v3290, %v3291
    %v3293 = vrot.slane %v3255, 4
    %v3294 = vadd.f32 %v3255, %v3293
    %v3295 = vrot.slane %v3294, 2
    %v3296 = vadd.f32 %v3294, %v3295
    %v3297 = vrot.slane %v3296, 1
    %v3298 = vadd.f32 %v3296, %v3297
    %v3299 = vrot.slane %v3256, 4
    %v3300 = vadd.f32 %v3256, %v3299
    %v3301 = vrot.slane %v3300, 2
    %v3302 = vadd.f32 %v3300, %v3301
    %v3303 = vrot.slane %v3302, 1
    %v3304 = vadd.f32 %v3302, %v3303
    %vm3313 = vcmask 1041409
    %v3314 = vsel %vm3313, %v3268, %v3262
    %vm3315 = vcmask 1042434
    %v3316 = vsel %vm3315, %v3274, %v3314
    %vm3317 = vcmask 1043459
    %v3318 = vsel %vm3317, %v3280, %v3316
    %vm3319 = vcmask 1044484
    %v3320 = vsel %vm3319, %v3286, %v3318
    %vm3321 = vcmask 1045509
    %v3322 = vsel %vm3321, %v3292, %v3320
    %vm3323 = vcmask 1046534
    %v3324 = vsel %vm3323, %v3298, %v3322
    %vm3325 = vcmask 1047559
    %v3326 = vsel %vm3325, %v3304, %v3324
    %3328 = vst [vmem:[%s13] sm:$0xff] %v3326
    // Predicated region
    $region66: #{mdgt_forward.2} parent=1 // pred_check
      _
    $region67: #{mdgt_forward.2} parent=1 // pred_check_branch
      %3330 = sbr.rel (0) target = $region69
    $region68: #{mdgt_forward.2} parent=1 // pred_region
      _
    $region69: #{mdgt_forward.2} parent=1 // pred_fallthru
      _
    // Predicated region
    $region70: #{mdgt_forward.2} parent=1 // pred_check
      _
    $region71: #{mdgt_forward.2} parent=1 // pred_check_branch
      %3332 = sbr.rel (0) target = $region73
    $region72: #{mdgt_forward.2} parent=1 // pred_region
      _
    $region73: #{mdgt_forward.2} parent=1 // pred_fallthru
      _
    %3333 = vsyncpa [#allocation3], 1
    %3334 = vsyncpa [#allocation5], 1

// kernel: mdgt_forward.3
$region0: #{mdgt_forward.3}
  #allocation0 [shape = 'u32[]', space=smem, size = 0x4, offset = 0x4, fixed_abs, tag = 'smem constant byte address 0x4 - core index']
  #allocation1 [shape = 'u32[144,128]{1,0:T(1,128)}', space=vmem, size = 0x12000, scoped, tag = 'internal scratch']
  #allocation2 [shape = 'f32[1,1]{1,0:T(1,128)S(1)}', space=vmem, size = 0x200, scoped, tag = 'scoped memory for mdgt_forward.3']
  %s0 = inlined_call_operand.vmem [shape: f32[8,128], index: 0, kind: input, shape index: {}]
  %s1 = inlined_call_operand.vmem [shape: bf16[128,1024], index: 1, kind: input, shape index: {}]
  %s2 = inlined_call_operand.vmem [shape: f32[1,1024], index: 2, kind: input, shape index: {}]
  %s3 = inlined_call_operand.vmem [shape: bf16[1024,1024], index: 3, kind: input, shape index: {}]
  %s4 = inlined_call_operand.vmem [shape: f32[1,1024], index: 4, kind: input, shape index: {}]
  %s5 = inlined_call_operand.vmem [shape: bf16[1024,256], index: 5, kind: input, shape index: {}]
  %s6 = inlined_call_operand.vmem [shape: f32[1,256], index: 6, kind: input, shape index: {}]
  %s7 = inlined_call_operand.vmem [shape: f32[1,256], index: 7, kind: input, shape index: {}]
  %s8 = inlined_call_operand.<no memory space> [shape: f32[1,1], index: 8, kind: input, shape index: {}]
  %s9 = inlined_call_operand.vmem [shape: f32[8,1], index: 9, kind: output, shape index: {}]
  %s10 = sld [smem:[#allocation0]]
  $region46: #{mdgt_forward.3} parent=0
    _
  %s12 = ssub.s32 1, %s10
  %s13 = scalar_select 0, %s12, %s10
  %v14 = vstv %s8
  %15 = vst [vmem:[#allocation2] sm:$0x1] %v14
  // Predicated region
  $region2: #{mdgt_forward.3} parent=0 // pred_check
    _
  $region3: #{mdgt_forward.3} parent=0 // pred_check_branch
    %17 = sbr.rel (0) target = $region5
  $region4: #{mdgt_forward.3} parent=0 // pred_region
    _
  $region5: #{mdgt_forward.3} parent=0 // pred_fallthru
    _
  // Predicated region
  $region6: #{mdgt_forward.3} parent=0 // pred_check
    _
  $region7: #{mdgt_forward.3} parent=0 // pred_check_branch
    %19 = sbr.rel (0) target = $region9
  $region8: #{mdgt_forward.3} parent=0 // pred_region
    _
  $region9: #{mdgt_forward.3} parent=0 // pred_fallthru
    _
  // Predicated region
  $region10: #{mdgt_forward.3} parent=0 // pred_check
    _
  $region11: #{mdgt_forward.3} parent=0 // pred_check_branch
    %21 = sbr.rel (0) target = $region13
  $region12: #{mdgt_forward.3} parent=0 // pred_region
    _
  $region13: #{mdgt_forward.3} parent=0 // pred_fallthru
    _
  // Predicated region
  $region14: #{mdgt_forward.3} parent=0 // pred_check
    _
  $region15: #{mdgt_forward.3} parent=0 // pred_check_branch
    %23 = sbr.rel (0) target = $region17
  $region16: #{mdgt_forward.3} parent=0 // pred_region
    _
  $region17: #{mdgt_forward.3} parent=0 // pred_fallthru
    _
  // Predicated region
  $region18: #{mdgt_forward.3} parent=0 // pred_check
    _
  $region19: #{mdgt_forward.3} parent=0 // pred_check_branch
    %25 = sbr.rel (0) target = $region21
  $region20: #{mdgt_forward.3} parent=0 // pred_region
    _
  $region21: #{mdgt_forward.3} parent=0 // pred_fallthru
    _
  // Predicated region
  $region22: #{mdgt_forward.3} parent=0 // pred_check
    _
  $region23: #{mdgt_forward.3} parent=0 // pred_check_branch
    %27 = sbr.rel (0) target = $region25
  $region24: #{mdgt_forward.3} parent=0 // pred_region
    _
  $region25: #{mdgt_forward.3} parent=0 // pred_fallthru
    _
  // Predicated region
  $region26: #{mdgt_forward.3} parent=0 // pred_check
    _
  $region27: #{mdgt_forward.3} parent=0 // pred_check_branch
    %29 = sbr.rel (0) target = $region29
  $region28: #{mdgt_forward.3} parent=0 // pred_region
    _
  $region29: #{mdgt_forward.3} parent=0 // pred_fallthru
    _
  // Predicated region
  $region30: #{mdgt_forward.3} parent=0 // pred_check
    _
  $region31: #{mdgt_forward.3} parent=0 // pred_check_branch
    %31 = sbr.rel (0) target = $region33
  $region32: #{mdgt_forward.3} parent=0 // pred_region
    _
  $region33: #{mdgt_forward.3} parent=0 // pred_fallthru
    _
  // Predicated region
  $region34: #{mdgt_forward.3} parent=0 // pred_check
    _
  $region35: #{mdgt_forward.3} parent=0 // pred_check_branch
    %33 = sbr.rel (0) target = $region37
  $region36: #{mdgt_forward.3} parent=0 // pred_region
    _
  $region37: #{mdgt_forward.3} parent=0 // pred_fallthru
    _
  %v35 = vld [vmem:[%s0] sm:$0xff]
  %v36 = vpack.c.bf16 %v35, %v35
  %v37 = vld [vmem:[%s1] sm:$0xff]
  %v38 = vld [vmem:[%s1 + $0x8] sm:$0xff]
  %v39 = vld [vmem:[%s1 + $0x10] sm:$0xff]
  %v40 = vld [vmem:[%s1 + $0x18] sm:$0xff]
  %v41 = vld [vmem:[%s1 + $0x20] sm:$0xff]
  %v42 = vld [vmem:[%s1 + $0x28] sm:$0xff]
  %v43 = vld [vmem:[%s1 + $0x30] sm:$0xff]
  %v44 = vld [vmem:[%s1 + $0x38] sm:$0xff]
  %v45 = vld [vmem:[%s1 + $0x40] sm:$0xff]
  %v46 = vld [vmem:[%s1 + $0x48] sm:$0xff]
  %v47 = vld [vmem:[%s1 + $0x50] sm:$0xff]
  %v48 = vld [vmem:[%s1 + $0x58] sm:$0xff]
  %v49 = vld [vmem:[%s1 + $0x60] sm:$0xff]
  %v50 = vld [vmem:[%s1 + $0x68] sm:$0xff]
  %v51 = vld [vmem:[%s1 + $0x70] sm:$0xff]
  %v52 = vld [vmem:[%s1 + $0x78] sm:$0xff]
  %v53 = vld [vmem:[%s1 + $0x80] sm:$0xff]
  %v54 = vld [vmem:[%s1 + $0x88] sm:$0xff]
  %v55 = vld [vmem:[%s1 + $0x90] sm:$0xff]
  %v56 = vld [vmem:[%s1 + $0x98] sm:$0xff]
  %v57 = vld [vmem:[%s1 + $0xa0] sm:$0xff]
  %v58 = vld [vmem:[%s1 + $0xa8] sm:$0xff]
  %v59 = vld [vmem:[%s1 + $0xb0] sm:$0xff]
  %v60 = vld [vmem:[%s1 + $0xb8] sm:$0xff]
  %v61 = vld [vmem:[%s1 + $0xc0] sm:$0xff]
  %v62 = vld [vmem:[%s1 + $0xc8] sm:$0xff]
  %v63 = vld [vmem:[%s1 + $0xd0] sm:$0xff]
  %v64 = vld [vmem:[%s1 + $0xd8] sm:$0xff]
  %v65 = vld [vmem:[%s1 + $0xe0] sm:$0xff]
  %v66 = vld [vmem:[%s1 + $0xe8] sm:$0xff]
  %v67 = vld [vmem:[%s1 + $0xf0] sm:$0xff]
  %v68 = vld [vmem:[%s1 + $0xf8] sm:$0xff]
  %v69 = vld [vmem:[%s1 + $0x100] sm:$0xff]
  %v70 = vld [vmem:[%s1 + $0x108] sm:$0xff]
  %v71 = vld [vmem:[%s1 + $0x110] sm:$0xff]
  %v72 = vld [vmem:[%s1 + $0x118] sm:$0xff]
  %v73 = vld [vmem:[%s1 + $0x120] sm:$0xff]
  %v74 = vld [vmem:[%s1 + $0x128] sm:$0xff]
  %v75 = vld [vmem:[%s1 + $0x130] sm:$0xff]
  %v76 = vld [vmem:[%s1 + $0x138] sm:$0xff]
  %v77 = vld [vmem:[%s1 + $0x140] sm:$0xff]
  %v78 = vld [vmem:[%s1 + $0x148] sm:$0xff]
  %v79 = vld [vmem:[%s1 + $0x150] sm:$0xff]
  %v80 = vld [vmem:[%s1 + $0x158] sm:$0xff]
  %v81 = vld [vmem:[%s1 + $0x160] sm:$0xff]
  %v82 = vld [vmem:[%s1 + $0x168] sm:$0xff]
  %v83 = vld [vmem:[%s1 + $0x170] sm:$0xff]
  %v84 = vld [vmem:[%s1 + $0x178] sm:$0xff]
  %v85 = vld [vmem:[%s1 + $0x180] sm:$0xff]
  %v86 = vld [vmem:[%s1 + $0x188] sm:$0xff]
  %v87 = vld [vmem:[%s1 + $0x190] sm:$0xff]
  %v88 = vld [vmem:[%s1 + $0x198] sm:$0xff]
  %v89 = vld [vmem:[%s1 + $0x1a0] sm:$0xff]
  %v90 = vld [vmem:[%s1 + $0x1a8] sm:$0xff]
  %v91 = vld [vmem:[%s1 + $0x1b0] sm:$0xff]
  %v92 = vld [vmem:[%s1 + $0x1b8] sm:$0xff]
  %v93 = vld [vmem:[%s1 + $0x1c0] sm:$0xff]
  %v94 = vld [vmem:[%s1 + $0x1c8] sm:$0xff]
  %v95 = vld [vmem:[%s1 + $0x1d0] sm:$0xff]
  %v96 = vld [vmem:[%s1 + $0x1d8] sm:$0xff]
  %v97 = vld [vmem:[%s1 + $0x1e0] sm:$0xff]
  %v98 = vld [vmem:[%s1 + $0x1e8] sm:$0xff]
  %v99 = vld [vmem:[%s1 + $0x1f0] sm:$0xff]
  %v100 = vld [vmem:[%s1 + $0x1f8] sm:$0xff]
  %v101 = vld [vmem:[%s2] sm:$0xff]
  %v103 = vlaneseq
  %v104 = vshrl.u32 %v103, 7
  %v105 = vsub.s32 0, %v104
  %v106 = vrot.slane %v101, %v105
  %v107 = vlaneseq
  %v108 = vshrl.u32 %v107, 7
  %v109 = vsub.s32 1, %v108
  %v110 = vrot.slane %v101, %v109
  %v111 = vlaneseq
  %v112 = vshrl.u32 %v111, 7
  %v113 = vsub.s32 2, %v112
  %v114 = vrot.slane %v101, %v113
  %v115 = vlaneseq
  %v116 = vshrl.u32 %v115, 7
  %v117 = vsub.s32 3, %v116
  %v118 = vrot.slane %v101, %v117
  %v119 = vlaneseq
  %v120 = vshrl.u32 %v119, 7
  %v121 = vsub.s32 4, %v120
  %v122 = vrot.slane %v101, %v121
  %v123 = vlaneseq
  %v124 = vshrl.u32 %v123, 7
  %v125 = vsub.s32 5, %v124
  %v126 = vrot.slane %v101, %v125
  %v127 = vlaneseq
  %v128 = vshrl.u32 %v127, 7
  %v129 = vsub.s32 6, %v128
  %v130 = vrot.slane %v101, %v129
  %v131 = vlaneseq
  %v132 = vshrl.u32 %v131, 7
  %v133 = vsub.s32 7, %v132
  %v134 = vrot.slane %v101, %v133
  %v207 = vunpack.c.l.b16 %v37
  %v208 = vunpack.c.h.b16 %v37
  %v209 = vunpack.c.l.b16 %v38
  %v210 = vunpack.c.h.b16 %v38
  %v211 = vunpack.c.l.b16 %v39
  %v212 = vunpack.c.h.b16 %v39
  %v213 = vunpack.c.l.b16 %v40
  %v214 = vunpack.c.h.b16 %v40
  %v215 = vunpack.c.l.b16 %v41
  %v216 = vunpack.c.h.b16 %v41
  %v217 = vunpack.c.l.b16 %v42
  %v218 = vunpack.c.h.b16 %v42
  %v219 = vunpack.c.l.b16 %v43
  %v220 = vunpack.c.h.b16 %v43
  %v221 = vunpack.c.l.b16 %v44
  %v222 = vunpack.c.h.b16 %v44
  %v223 = vunpack.c.l.b16 %v45
  %v224 = vunpack.c.h.b16 %v45
  %v225 = vunpack.c.l.b16 %v46
  %v226 = vunpack.c.h.b16 %v46
  %v227 = vunpack.c.l.b16 %v47
  %v228 = vunpack.c.h.b16 %v47
  %v229 = vunpack.c.l.b16 %v48
  %v230 = vunpack.c.h.b16 %v48
  %v231 = vunpack.c.l.b16 %v49
  %v232 = vunpack.c.h.b16 %v49
  %v233 = vunpack.c.l.b16 %v50
  %v234 = vunpack.c.h.b16 %v50
  %v235 = vunpack.c.l.b16 %v51
  %v236 = vunpack.c.h.b16 %v51
  %v237 = vunpack.c.l.b16 %v52
  %v238 = vunpack.c.h.b16 %v52
  %v239 = vunpack.c.l.b16 %v53
  %v240 = vunpack.c.h.b16 %v53
  %v241 = vunpack.c.l.b16 %v54
  %v242 = vunpack.c.h.b16 %v54
  %v243 = vunpack.c.l.b16 %v55
  %v244 = vunpack.c.h.b16 %v55
  %v245 = vunpack.c.l.b16 %v56
  %v246 = vunpack.c.h.b16 %v56
  %v247 = vunpack.c.l.b16 %v57
  %v248 = vunpack.c.h.b16 %v57
  %v249 = vunpack.c.l.b16 %v58
  %v250 = vunpack.c.h.b16 %v58
  %v251 = vunpack.c.l.b16 %v59
  %v252 = vunpack.c.h.b16 %v59
  %v253 = vunpack.c.l.b16 %v60
  %v254 = vunpack.c.h.b16 %v60
  %v255 = vunpack.c.l.b16 %v61
  %v256 = vunpack.c.h.b16 %v61
  %v257 = vunpack.c.l.b16 %v62
  %v258 = vunpack.c.h.b16 %v62
  %v259 = vunpack.c.l.b16 %v63
  %v260 = vunpack.c.h.b16 %v63
  %v261 = vunpack.c.l.b16 %v64
  %v262 = vunpack.c.h.b16 %v64
  %v263 = vunpack.c.l.b16 %v65
  %v264 = vunpack.c.h.b16 %v65
  %v265 = vunpack.c.l.b16 %v66
  %v266 = vunpack.c.h.b16 %v66
  %v267 = vunpack.c.l.b16 %v67
  %v268 = vunpack.c.h.b16 %v67
  %v269 = vunpack.c.l.b16 %v68
  %v270 = vunpack.c.h.b16 %v68
  %v271 = vunpack.c.l.b16 %v69
  %v272 = vunpack.c.h.b16 %v69
  %v273 = vunpack.c.l.b16 %v70
  %v274 = vunpack.c.h.b16 %v70
  %v275 = vunpack.c.l.b16 %v71
  %v276 = vunpack.c.h.b16 %v71
  %v277 = vunpack.c.l.b16 %v72
  %v278 = vunpack.c.h.b16 %v72
  %v279 = vunpack.c.l.b16 %v73
  %v280 = vunpack.c.h.b16 %v73
  %v281 = vunpack.c.l.b16 %v74
  %v282 = vunpack.c.h.b16 %v74
  %v283 = vunpack.c.l.b16 %v75
  %v284 = vunpack.c.h.b16 %v75
  %v285 = vunpack.c.l.b16 %v76
  %v286 = vunpack.c.h.b16 %v76
  %v287 = vunpack.c.l.b16 %v77
  %v288 = vunpack.c.h.b16 %v77
  %v289 = vunpack.c.l.b16 %v78
  %v290 = vunpack.c.h.b16 %v78
  %v291 = vunpack.c.l.b16 %v79
  %v292 = vunpack.c.h.b16 %v79
  %v293 = vunpack.c.l.b16 %v80
  %v294 = vunpack.c.h.b16 %v80
  %v295 = vunpack.c.l.b16 %v81
  %v296 = vunpack.c.h.b16 %v81
  %v297 = vunpack.c.l.b16 %v82
  %v298 = vunpack.c.h.b16 %v82
  %v299 = vunpack.c.l.b16 %v83
  %v300 = vunpack.c.h.b16 %v83
  %v301 = vunpack.c.l.b16 %v84
  %v302 = vunpack.c.h.b16 %v84
  %v303 = vunpack.c.l.b16 %v85
  %v304 = vunpack.c.h.b16 %v85
  %v305 = vunpack.c.l.b16 %v86
  %v306 = vunpack.c.h.b16 %v86
  %v307 = vunpack.c.l.b16 %v87
  %v308 = vunpack.c.h.b16 %v87
  %v309 = vunpack.c.l.b16 %v88
  %v310 = vunpack.c.h.b16 %v88
  %v311 = vunpack.c.l.b16 %v89
  %v312 = vunpack.c.h.b16 %v89
  %v313 = vunpack.c.l.b16 %v90
  %v314 = vunpack.c.h.b16 %v90
  %v315 = vunpack.c.l.b16 %v91
  %v316 = vunpack.c.h.b16 %v91
  %v317 = vunpack.c.l.b16 %v92
  %v318 = vunpack.c.h.b16 %v92
  %v319 = vunpack.c.l.b16 %v93
  %v320 = vunpack.c.h.b16 %v93
  %v321 = vunpack.c.l.b16 %v94
  %v322 = vunpack.c.h.b16 %v94
  %v323 = vunpack.c.l.b16 %v95
  %v324 = vunpack.c.h.b16 %v95
  %v325 = vunpack.c.l.b16 %v96
  %v326 = vunpack.c.h.b16 %v96
  %v327 = vunpack.c.l.b16 %v97
  %v328 = vunpack.c.h.b16 %v97
  %v329 = vunpack.c.l.b16 %v98
  %v330 = vunpack.c.h.b16 %v98
  %v331 = vunpack.c.l.b16 %v99
  %v332 = vunpack.c.h.b16 %v99
  %v333 = vunpack.c.l.b16 %v100
  %v334 = vunpack.c.h.b16 %v100
  %v335 = vpack.c.b16 %v215, %v207
  %v336 = vpack.c.b16 %v216, %v208
  %v337 = vpack.c.b16 %v217, %v209
  %v338 = vpack.c.b16 %v218, %v210
  %v339 = vpack.c.b16 %v219, %v211
  %v340 = vpack.c.b16 %v220, %v212
  %v341 = vpack.c.b16 %v221, %v213
  %v342 = vpack.c.b16 %v222, %v214
  %v343 = vpack.c.b16 %v231, %v223
  %v344 = vpack.c.b16 %v232, %v224
  %v345 = vpack.c.b16 %v233, %v225
  %v346 = vpack.c.b16 %v234, %v226
  %v347 = vpack.c.b16 %v235, %v227
  %v348 = vpack.c.b16 %v236, %v228
  %v349 = vpack.c.b16 %v237, %v229
  %v350 = vpack.c.b16 %v238, %v230
  %v351 = vpack.c.b16 %v247, %v239
  %v352 = vpack.c.b16 %v248, %v240
  %v353 = vpack.c.b16 %v249, %v241
  %v354 = vpack.c.b16 %v250, %v242
  %v355 = vpack.c.b16 %v251, %v243
  %v356 = vpack.c.b16 %v252, %v244
  %v357 = vpack.c.b16 %v253, %v245
  %v358 = vpack.c.b16 %v254, %v246
  %v359 = vpack.c.b16 %v263, %v255
  %v360 = vpack.c.b16 %v264, %v256
  %v361 = vpack.c.b16 %v265, %v257
  %v362 = vpack.c.b16 %v266, %v258
  %v363 = vpack.c.b16 %v267, %v259
  %v364 = vpack.c.b16 %v268, %v260
  %v365 = vpack.c.b16 %v269, %v261
  %v366 = vpack.c.b16 %v270, %v262
  %v367 = vpack.c.b16 %v279, %v271
  %v368 = vpack.c.b16 %v280, %v272
  %v369 = vpack.c.b16 %v281, %v273
  %v370 = vpack.c.b16 %v282, %v274
  %v371 = vpack.c.b16 %v283, %v275
  %v372 = vpack.c.b16 %v284, %v276
  %v373 = vpack.c.b16 %v285, %v277
  %v374 = vpack.c.b16 %v286, %v278
  %v375 = vpack.c.b16 %v295, %v287
  %v376 = vpack.c.b16 %v296, %v288
  %v377 = vpack.c.b16 %v297, %v289
  %v378 = vpack.c.b16 %v298, %v290
  %v379 = vpack.c.b16 %v299, %v291
  %v380 = vpack.c.b16 %v300, %v292
  %v381 = vpack.c.b16 %v301, %v293
  %v382 = vpack.c.b16 %v302, %v294
  %v383 = vpack.c.b16 %v311, %v303
  %v384 = vpack.c.b16 %v312, %v304
  %v385 = vpack.c.b16 %v313, %v305
  %v386 = vpack.c.b16 %v314, %v306
  %v387 = vpack.c.b16 %v315, %v307
  %v388 = vpack.c.b16 %v316, %v308
  %v389 = vpack.c.b16 %v317, %v309
  %v390 = vpack.c.b16 %v318, %v310
  %v391 = vpack.c.b16 %v327, %v319
  %v392 = vpack.c.b16 %v328, %v320
  %v393 = vpack.c.b16 %v329, %v321
  %v394 = vpack.c.b16 %v330, %v322
  %v395 = vpack.c.b16 %v331, %v323
  %v396 = vpack.c.b16 %v332, %v324
  %v397 = vpack.c.b16 %v333, %v325
  %v398 = vpack.c.b16 %v334, %v326
  %463 = vmatprep.subr.bf16.mxu0 %v392
  %464 = vmatpush1.bf16.msra.mxu0 %v391
  %465 = vmatprep.subr.bf16.mxu0 %v384
  %466 = vmatpush1.bf16.msra.mxu0 %v383
  %467 = vmatprep.subr.bf16.mxu0 %v376
  %468 = vmatpush1.bf16.msra.mxu0 %v375
  %469 = vmatprep.subr.bf16.mxu0 %v368
  %470 = vmatpush1.bf16.msra.mxu0 %v367
  %471 = vmatprep.subr.bf16.mxu0 %v360
  %472 = vmatpush1.bf16.msra.mxu0 %v359
  %473 = vmatprep.subr.bf16.mxu0 %v352
  %474 = vmatpush1.bf16.msra.mxu0 %v351
  %475 = vmatprep.subr.bf16.mxu0 %v344
  %476 = vmatpush1.bf16.msra.mxu0 %v343
  %477 = vmatprep.subr.bf16.mxu0 %v336
  %478 = vmatpush1.bf16.msra.mxu0 %v335
  %479 = vmatprep.subr.bf16.mxu0 0
  %480 = vmatpush2.bf16.msra.mxu0 0
  %481 = vmatprep.subr.bf16.mxu0 0
  %482 = vmatpush2.bf16.msra.mxu0 0
  %483 = vmatprep.subr.bf16.mxu0 0
  %484 = vmatpush2.bf16.msra.mxu0 0
  %485 = vmatprep.subr.bf16.mxu0 0
  %486 = vmatpush2.bf16.msra.mxu0 0
  %487 = vmatprep.subr.bf16.mxu0 0
  %488 = vmatpush2.bf16.msra.mxu0 0
  %489 = vmatprep.subr.bf16.mxu0 0
  %490 = vmatpush2.bf16.msra.mxu0 0
  %491 = vmatprep.subr.bf16.mxu0 0
  %492 = vmatpush2.bf16.msra.mxu0 0
  %493 = vmatprep.subr.bf16.mxu0 0
  %494 = vmatpush2.bf16.msra.mxu0 0
  %495 = vmatprep.mubr.bf16.mxu0 0
  %496 = vmatmul.mubr.bf16.gmra.mxu0 %v36
  %v497 = vpop.f32.mrf.mxu0
  %v498 = vadd.f32 %v106, %v497
  %v499 = vpop.f32.mrf.mxu0
  %v500 = vadd.f32 %v110, %v499
  %v501 = vpop.f32.mrf.mxu0
  %v502 = vpop.f32.mrf.mxu0
  %503 = vdwg.mxu0
  %504 = vmatprep.subr.bf16.mxu0 %v394
  %505 = vmatpush1.bf16.msra.mxu0 %v393
  %506 = vmatprep.subr.bf16.mxu0 %v386
  %507 = vmatpush1.bf16.msra.mxu0 %v385
  %508 = vmatprep.subr.bf16.mxu0 %v378
  %509 = vmatpush1.bf16.msra.mxu0 %v377
  %510 = vmatprep.subr.bf16.mxu0 %v370
  %511 = vmatpush1.bf16.msra.mxu0 %v369
  %512 = vmatprep.subr.bf16.mxu0 %v362
  %513 = vmatpush1.bf16.msra.mxu0 %v361
  %514 = vmatprep.subr.bf16.mxu0 %v354
  %515 = vmatpush1.bf16.msra.mxu0 %v353
  %516 = vmatprep.subr.bf16.mxu0 %v346
  %517 = vmatpush1.bf16.msra.mxu0 %v345
  %518 = vmatprep.subr.bf16.mxu0 %v338
  %519 = vmatpush1.bf16.msra.mxu0 %v337
  %520 = vmatprep.subr.bf16.mxu0 0
  %521 = vmatpush2.bf16.msra.mxu0 0
  %522 = vmatprep.subr.bf16.mxu0 0
  %523 = vmatpush2.bf16.msra.mxu0 0
  %524 = vmatprep.subr.bf16.mxu0 0
  %525 = vmatpush2.bf16.msra.mxu0 0
  %526 = vmatprep.subr.bf16.mxu0 0
  %527 = vmatpush2.bf16.msra.mxu0 0
  %528 = vmatprep.subr.bf16.mxu0 0
  %529 = vmatpush2.bf16.msra.mxu0 0
  %530 = vmatprep.subr.bf16.mxu0 0
  %531 = vmatpush2.bf16.msra.mxu0 0
  %532 = vmatprep.subr.bf16.mxu0 0
  %533 = vmatpush2.bf16.msra.mxu0 0
  %534 = vmatprep.subr.bf16.mxu0 0
  %535 = vmatpush2.bf16.msra.mxu0 0
  %536 = vmatprep.mubr.bf16.mxu0 0
  %537 = vmatmul.mubr.bf16.gmra.mxu0 %v36
  %v538 = vpop.f32.mrf.mxu0
  %v539 = vadd.f32 %v114, %v538
  %v540 = vpop.f32.mrf.mxu0
  %v541 = vadd.f32 %v118, %v540
  %v542 = vpop.f32.mrf.mxu0
  %v543 = vpop.f32.mrf.mxu0
  %544 = vdwg.mxu0
  %545 = vmatprep.subr.bf16.mxu0 %v396
  %546 = vmatpush1.bf16.msra.mxu0 %v395
  %547 = vmatprep.subr.bf16.mxu0 %v388
  %548 = vmatpush1.bf16.msra.mxu0 %v387
  %549 = vmatprep.subr.bf16.mxu0 %v380
  %550 = vmatpush1.bf16.msra.mxu0 %v379
  %551 = vmatprep.subr.bf16.mxu0 %v372
  %552 = vmatpush1.bf16.msra.mxu0 %v371
  %553 = vmatprep.subr.bf16.mxu0 %v364
  %554 = vmatpush1.bf16.msra.mxu0 %v363
  %555 = vmatprep.subr.bf16.mxu0 %v356
  %556 = vmatpush1.bf16.msra.mxu0 %v355
  %557 = vmatprep.subr.bf16.mxu0 %v348
  %558 = vmatpush1.bf16.msra.mxu0 %v347
  %559 = vmatprep.subr.bf16.mxu0 %v340
  %560 = vmatpush1.bf16.msra.mxu0 %v339
  %561 = vmatprep.subr.bf16.mxu0 0
  %562 = vmatpush2.bf16.msra.mxu0 0
  %563 = vmatprep.subr.bf16.mxu0 0
  %564 = vmatpush2.bf16.msra.mxu0 0
  %565 = vmatprep.subr.bf16.mxu0 0
  %566 = vmatpush2.bf16.msra.mxu0 0
  %567 = vmatprep.subr.bf16.mxu0 0
  %568 = vmatpush2.bf16.msra.mxu0 0
  %569 = vmatprep.subr.bf16.mxu0 0
  %570 = vmatpush2.bf16.msra.mxu0 0
  %571 = vmatprep.subr.bf16.mxu0 0
  %572 = vmatpush2.bf16.msra.mxu0 0
  %573 = vmatprep.subr.bf16.mxu0 0
  %574 = vmatpush2.bf16.msra.mxu0 0
  %575 = vmatprep.subr.bf16.mxu0 0
  %576 = vmatpush2.bf16.msra.mxu0 0
  %577 = vmatprep.mubr.bf16.mxu0 0
  %578 = vmatmul.mubr.bf16.gmra.mxu0 %v36
  %v579 = vpop.f32.mrf.mxu0
  %v580 = vadd.f32 %v122, %v579
  %v581 = vpop.f32.mrf.mxu0
  %v582 = vadd.f32 %v126, %v581
  %v583 = vpop.f32.mrf.mxu0
  %v584 = vpop.f32.mrf.mxu0
  %585 = vdwg.mxu0
  %586 = vmatprep.subr.bf16.mxu0 %v398
  %587 = vmatpush1.bf16.msra.mxu0 %v397
  %588 = vmatprep.subr.bf16.mxu0 %v390
  %589 = vmatpush1.bf16.msra.mxu0 %v389
  %590 = vmatprep.subr.bf16.mxu0 %v382
  %591 = vmatpush1.bf16.msra.mxu0 %v381
  %592 = vmatprep.subr.bf16.mxu0 %v374
  %593 = vmatpush1.bf16.msra.mxu0 %v373
  %594 = vmatprep.subr.bf16.mxu0 %v366
  %595 = vmatpush1.bf16.msra.mxu0 %v365
  %596 = vmatprep.subr.bf16.mxu0 %v358
  %597 = vmatpush1.bf16.msra.mxu0 %v357
  %598 = vmatprep.subr.bf16.mxu0 %v350
  %599 = vmatpush1.bf16.msra.mxu0 %v349
  %600 = vmatprep.subr.bf16.mxu0 %v342
  %601 = vmatpush1.bf16.msra.mxu0 %v341
  %602 = vmatprep.subr.bf16.mxu0 0
  %603 = vmatpush2.bf16.msra.mxu0 0
  %604 = vmatprep.subr.bf16.mxu0 0
  %605 = vmatpush2.bf16.msra.mxu0 0
  %606 = vmatprep.subr.bf16.mxu0 0
  %607 = vmatpush2.bf16.msra.mxu0 0
  %608 = vmatprep.subr.bf16.mxu0 0
  %609 = vmatpush2.bf16.msra.mxu0 0
  %610 = vmatprep.subr.bf16.mxu0 0
  %611 = vmatpush2.bf16.msra.mxu0 0
  %612 = vmatprep.subr.bf16.mxu0 0
  %613 = vmatpush2.bf16.msra.mxu0 0
  %614 = vmatprep.subr.bf16.mxu0 0
  %615 = vmatpush2.bf16.msra.mxu0 0
  %616 = vmatprep.subr.bf16.mxu0 0
  %617 = vmatpush2.bf16.msra.mxu0 0
  %618 = vmatprep.mubr.bf16.mxu0 0
  %619 = vmatmul.mubr.bf16.gmra.mxu0 %v36
  %v620 = vpop.f32.mrf.mxu0
  %v621 = vadd.f32 %v130, %v620
  %v622 = vpop.f32.mrf.mxu0
  %v623 = vadd.f32 %v134, %v622
  %v624 = vpop.f32.mrf.mxu0
  %v625 = vpop.f32.mrf.mxu0
  %626 = vdwg.mxu0
  %v627 = vmax.f32 %v498, 0.0
  %v628 = vmax.f32 %v500, 0.0
  %v629 = vmax.f32 %v539, 0.0
  %v630 = vmax.f32 %v541, 0.0
  %v631 = vmax.f32 %v580, 0.0
  %v632 = vmax.f32 %v582, 0.0
  %v633 = vmax.f32 %v621, 0.0
  %v634 = vmax.f32 %v623, 0.0
  %v635 = vpack.c.bf16 %v627, %v627
  %v636 = vpack.c.bf16 %v628, %v628
  %v637 = vpack.c.bf16 %v629, %v629
  %v638 = vpack.c.bf16 %v630, %v630
  %v639 = vpack.c.bf16 %v631, %v631
  %v640 = vpack.c.bf16 %v632, %v632
  %v641 = vpack.c.bf16 %v633, %v633
  %v642 = vpack.c.bf16 %v634, %v634
  %v643 = vld [vmem:[%s3] sm:$0xff]
  %v644 = vld [vmem:[%s3 + $0x8] sm:$0xff]
  %v645 = vld [vmem:[%s3 + $0x10] sm:$0xff]
  %v646 = vld [vmem:[%s3 + $0x18] sm:$0xff]
  %v647 = vld [vmem:[%s3 + $0x20] sm:$0xff]
  %v648 = vld [vmem:[%s3 + $0x28] sm:$0xff]
  %v649 = vld [vmem:[%s3 + $0x30] sm:$0xff]
  %v650 = vld [vmem:[%s3 + $0x38] sm:$0xff]
  %v651 = vld [vmem:[%s3 + $0x40] sm:$0xff]
  %v652 = vld [vmem:[%s3 + $0x48] sm:$0xff]
  %v653 = vld [vmem:[%s3 + $0x50] sm:$0xff]
  %v654 = vld [vmem:[%s3 + $0x58] sm:$0xff]
  %v655 = vld [vmem:[%s3 + $0x60] sm:$0xff]
  %v656 = vld [vmem:[%s3 + $0x68] sm:$0xff]
  %v657 = vld [vmem:[%s3 + $0x70] sm:$0xff]
  %v658 = vld [vmem:[%s3 + $0x78] sm:$0xff]
  %v659 = vld [vmem:[%s3 + $0x80] sm:$0xff]
  %v660 = vld [vmem:[%s3 + $0x88] sm:$0xff]
  %v661 = vld [vmem:[%s3 + $0x90] sm:$0xff]
  %v662 = vld [vmem:[%s3 + $0x98] sm:$0xff]
  %v663 = vld [vmem:[%s3 + $0xa0] sm:$0xff]
  %v664 = vld [vmem:[%s3 + $0xa8] sm:$0xff]
  %v665 = vld [vmem:[%s3 + $0xb0] sm:$0xff]
  %v666 = vld [vmem:[%s3 + $0xb8] sm:$0xff]
  %v667 = vld [vmem:[%s3 + $0xc0] sm:$0xff]
  %v668 = vld [vmem:[%s3 + $0xc8] sm:$0xff]
  %v669 = vld [vmem:[%s3 + $0xd0] sm:$0xff]
  %v670 = vld [vmem:[%s3 + $0xd8] sm:$0xff]
  %v671 = vld [vmem:[%s3 + $0xe0] sm:$0xff]
  %v672 = vld [vmem:[%s3 + $0xe8] sm:$0xff]
  %v673 = vld [vmem:[%s3 + $0xf0] sm:$0xff]
  %v674 = vld [vmem:[%s3 + $0xf8] sm:$0xff]
  %v675 = vld [vmem:[%s3 + $0x100] sm:$0xff]
  %v676 = vld [vmem:[%s3 + $0x108] sm:$0xff]
  %v677 = vld [vmem:[%s3 + $0x110] sm:$0xff]
  %v678 = vld [vmem:[%s3 + $0x118] sm:$0xff]
  %v679 = vld [vmem:[%s3 + $0x120] sm:$0xff]
  %v680 = vld [vmem:[%s3 + $0x128] sm:$0xff]
  %v681 = vld [vmem:[%s3 + $0x130] sm:$0xff]
  %v682 = vld [vmem:[%s3 + $0x138] sm:$0xff]
  %v683 = vld [vmem:[%s3 + $0x140] sm:$0xff]
  %v684 = vld [vmem:[%s3 + $0x148] sm:$0xff]
  %v685 = vld [vmem:[%s3 + $0x150] sm:$0xff]
  %v686 = vld [vmem:[%s3 + $0x158] sm:$0xff]
  %v687 = vld [vmem:[%s3 + $0x160] sm:$0xff]
  %v688 = vld [vmem:[%s3 + $0x168] sm:$0xff]
  %v689 = vld [vmem:[%s3 + $0x170] sm:$0xff]
  %v690 = vld [vmem:[%s3 + $0x178] sm:$0xff]
  %v691 = vld [vmem:[%s3 + $0x180] sm:$0xff]
  %v692 = vld [vmem:[%s3 + $0x188] sm:$0xff]
  %v693 = vld [vmem:[%s3 + $0x190] sm:$0xff]
  %v694 = vld [vmem:[%s3 + $0x198] sm:$0xff]
  %v695 = vld [vmem:[%s3 + $0x1a0] sm:$0xff]
  %v696 = vld [vmem:[%s3 + $0x1a8] sm:$0xff]
  %v697 = vld [vmem:[%s3 + $0x1b0] sm:$0xff]
  %v698 = vld [vmem:[%s3 + $0x1b8] sm:$0xff]
  %v699 = vld [vmem:[%s3 + $0x1c0] sm:$0xff]
  %v700 = vld [vmem:[%s3 + $0x1c8] sm:$0xff]
  %v701 = vld [vmem:[%s3 + $0x1d0] sm:$0xff]
  %v702 = vld [vmem:[%s3 + $0x1d8] sm:$0xff]
  %v703 = vld [vmem:[%s3 + $0x1e0] sm:$0xff]
  %v704 = vld [vmem:[%s3 + $0x1e8] sm:$0xff]
  %v705 = vld [vmem:[%s3 + $0x1f0] sm:$0xff]
  %v706 = vld [vmem:[%s3 + $0x1f8] sm:$0xff]
  %v707 = vld [vmem:[%s3 + $0x200] sm:$0xff]
  %v708 = vld [vmem:[%s3 + $0x208] sm:$0xff]
  %v709 = vld [vmem:[%s3 + $0x210] sm:$0xff]
  %v710 = vld [vmem:[%s3 + $0x218] sm:$0xff]
  %v711 = vld [vmem:[%s3 + $0x220] sm:$0xff]
  %v712 = vld [vmem:[%s3 + $0x228] sm:$0xff]
  %v713 = vld [vmem:[%s3 + $0x230] sm:$0xff]
  %v714 = vld [vmem:[%s3 + $0x238] sm:$0xff]
  %v715 = vld [vmem:[%s3 + $0x240] sm:$0xff]
  %v716 = vld [vmem:[%s3 + $0x248] sm:$0xff]
  %v717 = vld [vmem:[%s3 + $0x250] sm:$0xff]
  %v718 = vld [vmem:[%s3 + $0x258] sm:$0xff]
  %v719 = vld [vmem:[%s3 + $0x260] sm:$0xff]
  %v720 = vld [vmem:[%s3 + $0x268] sm:$0xff]
  %v721 = vld [vmem:[%s3 + $0x270] sm:$0xff]
  %v722 = vld [vmem:[%s3 + $0x278] sm:$0xff]
  %v723 = vld [vmem:[%s3 + $0x280] sm:$0xff]
  %v724 = vld [vmem:[%s3 + $0x288] sm:$0xff]
  %v725 = vld [vmem:[%s3 + $0x290] sm:$0xff]
  %v726 = vld [vmem:[%s3 + $0x298] sm:$0xff]
  %v727 = vld [vmem:[%s3 + $0x2a0] sm:$0xff]
  %v728 = vld [vmem:[%s3 + $0x2a8] sm:$0xff]
  %v729 = vld [vmem:[%s3 + $0x2b0] sm:$0xff]
  %v730 = vld [vmem:[%s3 + $0x2b8] sm:$0xff]
  %v731 = vld [vmem:[%s3 + $0x2c0] sm:$0xff]
  %v732 = vld [vmem:[%s3 + $0x2c8] sm:$0xff]
  %v733 = vld [vmem:[%s3 + $0x2d0] sm:$0xff]
  %v734 = vld [vmem:[%s3 + $0x2d8] sm:$0xff]
  %v735 = vld [vmem:[%s3 + $0x2e0] sm:$0xff]
  %v736 = vld [vmem:[%s3 + $0x2e8] sm:$0xff]
  %v737 = vld [vmem:[%s3 + $0x2f0] sm:$0xff]
  %v738 = vld [vmem:[%s3 + $0x2f8] sm:$0xff]
  %v739 = vld [vmem:[%s3 + $0x300] sm:$0xff]
  %v740 = vld [vmem:[%s3 + $0x308] sm:$0xff]
  %v741 = vld [vmem:[%s3 + $0x310] sm:$0xff]
  %v742 = vld [vmem:[%s3 + $0x318] sm:$0xff]
  %v743 = vld [vmem:[%s3 + $0x320] sm:$0xff]
  %v744 = vld [vmem:[%s3 + $0x328] sm:$0xff]
  %v745 = vld [vmem:[%s3 + $0x330] sm:$0xff]
  %v746 = vld [vmem:[%s3 + $0x338] sm:$0xff]
  %v747 = vld [vmem:[%s3 + $0x340] sm:$0xff]
  %v748 = vld [vmem:[%s3 + $0x348] sm:$0xff]
  %v749 = vld [vmem:[%s3 + $0x350] sm:$0xff]
  %v750 = vld [vmem:[%s3 + $0x358] sm:$0xff]
  %v751 = vld [vmem:[%s3 + $0x360] sm:$0xff]
  %v752 = vld [vmem:[%s3 + $0x368] sm:$0xff]
  %v753 = vld [vmem:[%s3 + $0x370] sm:$0xff]
  %v754 = vld [vmem:[%s3 + $0x378] sm:$0xff]
  %v755 = vld [vmem:[%s3 + $0x380] sm:$0xff]
  %v756 = vld [vmem:[%s3 + $0x388] sm:$0xff]
  %v757 = vld [vmem:[%s3 + $0x390] sm:$0xff]
  %v758 = vld [vmem:[%s3 + $0x398] sm:$0xff]
  %v759 = vld [vmem:[%s3 + $0x3a0] sm:$0xff]
  %v760 = vld [vmem:[%s3 + $0x3a8] sm:$0xff]
  %v761 = vld [vmem:[%s3 + $0x3b0] sm:$0xff]
  %v762 = vld [vmem:[%s3 + $0x3b8] sm:$0xff]
  %v763 = vld [vmem:[%s3 + $0x3c0] sm:$0xff]
  %v764 = vld [vmem:[%s3 + $0x3c8] sm:$0xff]
  %v765 = vld [vmem:[%s3 + $0x3d0] sm:$0xff]
  %v766 = vld [vmem:[%s3 + $0x3d8] sm:$0xff]
  %v767 = vld [vmem:[%s3 + $0x3e0] sm:$0xff]
  %v768 = vld [vmem:[%s3 + $0x3e8] sm:$0xff]
  %v769 = vld [vmem:[%s3 + $0x3f0] sm:$0xff]
  %v770 = vld [vmem:[%s3 + $0x3f8] sm:$0xff]
  %v771 = vld [vmem:[%s3 + $0x400] sm:$0xff]
  %v772 = vld [vmem:[%s3 + $0x408] sm:$0xff]
  %v773 = vld [vmem:[%s3 + $0x410] sm:$0xff]
  %v774 = vld [vmem:[%s3 + $0x418] sm:$0xff]
  %v775 = vld [vmem:[%s3 + $0x420] sm:$0xff]
  %v776 = vld [vmem:[%s3 + $0x428] sm:$0xff]
  %v777 = vld [vmem:[%s3 + $0x430] sm:$0xff]
  %v778 = vld [vmem:[%s3 + $0x438] sm:$0xff]
  %v779 = vld [vmem:[%s3 + $0x440] sm:$0xff]
  %v780 = vld [vmem:[%s3 + $0x448] sm:$0xff]
  %v781 = vld [vmem:[%s3 + $0x450] sm:$0xff]
  %v782 = vld [vmem:[%s3 + $0x458] sm:$0xff]
  %v783 = vld [vmem:[%s3 + $0x460] sm:$0xff]
  %v784 = vld [vmem:[%s3 + $0x468] sm:$0xff]
  %v785 = vld [vmem:[%s3 + $0x470] sm:$0xff]
  %v786 = vld [vmem:[%s3 + $0x478] sm:$0xff]
  %v787 = vld [vmem:[%s3 + $0x480] sm:$0xff]
  %v788 = vld [vmem:[%s3 + $0x488] sm:$0xff]
  %v789 = vld [vmem:[%s3 + $0x490] sm:$0xff]
  %v790 = vld [vmem:[%s3 + $0x498] sm:$0xff]
  %v791 = vld [vmem:[%s3 + $0x4a0] sm:$0xff]
  %v792 = vld [vmem:[%s3 + $0x4a8] sm:$0xff]
  %v793 = vld [vmem:[%s3 + $0x4b0] sm:$0xff]
  %v794 = vld [vmem:[%s3 + $0x4b8] sm:$0xff]
  %v795 = vld [vmem:[%s3 + $0x4c0] sm:$0xff]
  %v796 = vld [vmem:[%s3 + $0x4c8] sm:$0xff]
  %v797 = vld [vmem:[%s3 + $0x4d0] sm:$0xff]
  %v798 = vld [vmem:[%s3 + $0x4d8] sm:$0xff]
  %v799 = vld [vmem:[%s3 + $0x4e0] sm:$0xff]
  %v800 = vld [vmem:[%s3 + $0x4e8] sm:$0xff]
  %v801 = vld [vmem:[%s3 + $0x4f0] sm:$0xff]
  %v802 = vld [vmem:[%s3 + $0x4f8] sm:$0xff]
  %v803 = vld [vmem:[%s3 + $0x500] sm:$0xff]
  %v804 = vld [vmem:[%s3 + $0x508] sm:$0xff]
  %v805 = vld [vmem:[%s3 + $0x510] sm:$0xff]
  %v806 = vld [vmem:[%s3 + $0x518] sm:$0xff]
  %v807 = vld [vmem:[%s3 + $0x520] sm:$0xff]
  %v808 = vld [vmem:[%s3 + $0x528] sm:$0xff]
  %v809 = vld [vmem:[%s3 + $0x530] sm:$0xff]
  %v810 = vld [vmem:[%s3 + $0x538] sm:$0xff]
  %v811 = vld [vmem:[%s3 + $0x540] sm:$0xff]
  %v812 = vld [vmem:[%s3 + $0x548] sm:$0xff]
  %v813 = vld [vmem:[%s3 + $0x550] sm:$0xff]
  %v814 = vld [vmem:[%s3 + $0x558] sm:$0xff]
  %v815 = vld [vmem:[%s3 + $0x560] sm:$0xff]
  %v816 = vld [vmem:[%s3 + $0x568] sm:$0xff]
  %v817 = vld [vmem:[%s3 + $0x570] sm:$0xff]
  %v818 = vld [vmem:[%s3 + $0x578] sm:$0xff]
  %v819 = vld [vmem:[%s3 + $0x580] sm:$0xff]
  %v820 = vld [vmem:[%s3 + $0x588] sm:$0xff]
  %v821 = vld [vmem:[%s3 + $0x590] sm:$0xff]
  %v822 = vld [vmem:[%s3 + $0x598] sm:$0xff]
  %v823 = vld [vmem:[%s3 + $0x5a0] sm:$0xff]
  %v824 = vld [vmem:[%s3 + $0x5a8] sm:$0xff]
  %v825 = vld [vmem:[%s3 + $0x5b0] sm:$0xff]
  %v826 = vld [vmem:[%s3 + $0x5b8] sm:$0xff]
  %v827 = vld [vmem:[%s3 + $0x5c0] sm:$0xff]
  %v828 = vld [vmem:[%s3 + $0x5c8] sm:$0xff]
  %v829 = vld [vmem:[%s3 + $0x5d0] sm:$0xff]
  %v830 = vld [vmem:[%s3 + $0x5d8] sm:$0xff]
  %v831 = vld [vmem:[%s3 + $0x5e0] sm:$0xff]
  %v832 = vld [vmem:[%s3 + $0x5e8] sm:$0xff]
  %v833 = vld [vmem:[%s3 + $0x5f0] sm:$0xff]
  %v834 = vld [vmem:[%s3 + $0x5f8] sm:$0xff]
  %v835 = vld [vmem:[%s3 + $0x600] sm:$0xff]
  %v836 = vld [vmem:[%s3 + $0x608] sm:$0xff]
  %v837 = vld [vmem:[%s3 + $0x610] sm:$0xff]
  %v838 = vld [vmem:[%s3 + $0x618] sm:$0xff]
  %v839 = vld [vmem:[%s3 + $0x620] sm:$0xff]
  %v840 = vld [vmem:[%s3 + $0x628] sm:$0xff]
  %v841 = vld [vmem:[%s3 + $0x630] sm:$0xff]
  %v842 = vld [vmem:[%s3 + $0x638] sm:$0xff]
  %v843 = vld [vmem:[%s3 + $0x640] sm:$0xff]
  %v844 = vld [vmem:[%s3 + $0x648] sm:$0xff]
  %v845 = vld [vmem:[%s3 + $0x650] sm:$0xff]
  %v846 = vld [vmem:[%s3 + $0x658] sm:$0xff]
  %v847 = vld [vmem:[%s3 + $0x660] sm:$0xff]
  %v848 = vld [vmem:[%s3 + $0x668] sm:$0xff]
  %v849 = vld [vmem:[%s3 + $0x670] sm:$0xff]
  %v850 = vld [vmem:[%s3 + $0x678] sm:$0xff]
  %v851 = vld [vmem:[%s3 + $0x680] sm:$0xff]
  %v852 = vld [vmem:[%s3 + $0x688] sm:$0xff]
  %v853 = vld [vmem:[%s3 + $0x690] sm:$0xff]
  %v854 = vld [vmem:[%s3 + $0x698] sm:$0xff]
  %v855 = vld [vmem:[%s3 + $0x6a0] sm:$0xff]
  %v856 = vld [vmem:[%s3 + $0x6a8] sm:$0xff]
  %v857 = vld [vmem:[%s3 + $0x6b0] sm:$0xff]
  %v858 = vld [vmem:[%s3 + $0x6b8] sm:$0xff]
  %v859 = vld [vmem:[%s3 + $0x6c0] sm:$0xff]
  %v860 = vld [vmem:[%s3 + $0x6c8] sm:$0xff]
  %v861 = vld [vmem:[%s3 + $0x6d0] sm:$0xff]
  %v862 = vld [vmem:[%s3 + $0x6d8] sm:$0xff]
  %v863 = vld [vmem:[%s3 + $0x6e0] sm:$0xff]
  %v864 = vld [vmem:[%s3 + $0x6e8] sm:$0xff]
  %v865 = vld [vmem:[%s3 + $0x6f0] sm:$0xff]
  %v866 = vld [vmem:[%s3 + $0x6f8] sm:$0xff]
  %v867 = vld [vmem:[%s3 + $0x700] sm:$0xff]
  %v868 = vld [vmem:[%s3 + $0x708] sm:$0xff]
  %v869 = vld [vmem:[%s3 + $0x710] sm:$0xff]
  %v870 = vld [vmem:[%s3 + $0x718] sm:$0xff]
  %v871 = vld [vmem:[%s3 + $0x720] sm:$0xff]
  %v872 = vld [vmem:[%s3 + $0x728] sm:$0xff]
  %v873 = vld [vmem:[%s3 + $0x730] sm:$0xff]
  %v874 = vld [vmem:[%s3 + $0x738] sm:$0xff]
  %v875 = vld [vmem:[%s3 + $0x740] sm:$0xff]
  %v876 = vld [vmem:[%s3 + $0x748] sm:$0xff]
  %v877 = vld [vmem:[%s3 + $0x750] sm:$0xff]
  %v878 = vld [vmem:[%s3 + $0x758] sm:$0xff]
  %v879 = vld [vmem:[%s3 + $0x760] sm:$0xff]
  %v880 = vld [vmem:[%s3 + $0x768] sm:$0xff]
  %v881 = vld [vmem:[%s3 + $0x770] sm:$0xff]
  %v882 = vld [vmem:[%s3 + $0x778] sm:$0xff]
  %v883 = vld [vmem:[%s3 + $0x780] sm:$0xff]
  %v884 = vld [vmem:[%s3 + $0x788] sm:$0xff]
  %v885 = vld [vmem:[%s3 + $0x790] sm:$0xff]
  %v886 = vld [vmem:[%s3 + $0x798] sm:$0xff]
  %v887 = vld [vmem:[%s3 + $0x7a0] sm:$0xff]
  %v888 = vld [vmem:[%s3 + $0x7a8] sm:$0xff]
  %v889 = vld [vmem:[%s3 + $0x7b0] sm:$0xff]
  %v890 = vld [vmem:[%s3 + $0x7b8] sm:$0xff]
  %v891 = vld [vmem:[%s3 + $0x7c0] sm:$0xff]
  %v892 = vld [vmem:[%s3 + $0x7c8] sm:$0xff]
  %v893 = vld [vmem:[%s3 + $0x7d0] sm:$0xff]
  %v894 = vld [vmem:[%s3 + $0x7d8] sm:$0xff]
  %v895 = vld [vmem:[%s3 + $0x7e0] sm:$0xff]
  %v896 = vld [vmem:[%s3 + $0x7e8] sm:$0xff]
  %v897 = vld [vmem:[%s3 + $0x7f0] sm:$0xff]
  %v898 = vld [vmem:[%s3 + $0x7f8] sm:$0xff]
  %v899 = vld [vmem:[%s3 + $0x800] sm:$0xff]
  %v900 = vld [vmem:[%s3 + $0x808] sm:$0xff]
  %v901 = vld [vmem:[%s3 + $0x810] sm:$0xff]
  %v902 = vld [vmem:[%s3 + $0x818] sm:$0xff]
  %v903 = vld [vmem:[%s3 + $0x820] sm:$0xff]
  %v904 = vld [vmem:[%s3 + $0x828] sm:$0xff]
  %v905 = vld [vmem:[%s3 + $0x830] sm:$0xff]
  %v906 = vld [vmem:[%s3 + $0x838] sm:$0xff]
  %v907 = vld [vmem:[%s3 + $0x840] sm:$0xff]
  %v908 = vld [vmem:[%s3 + $0x848] sm:$0xff]
  %v909 = vld [vmem:[%s3 + $0x850] sm:$0xff]
  %v910 = vld [vmem:[%s3 + $0x858] sm:$0xff]
  %v911 = vld [vmem:[%s3 + $0x860] sm:$0xff]
  %v912 = vld [vmem:[%s3 + $0x868] sm:$0xff]
  %v913 = vld [vmem:[%s3 + $0x870] sm:$0xff]
  %v914 = vld [vmem:[%s3 + $0x878] sm:$0xff]
  %v915 = vld [vmem:[%s3 + $0x880] sm:$0xff]
  %v916 = vld [vmem:[%s3 + $0x888] sm:$0xff]
  %v917 = vld [vmem:[%s3 + $0x890] sm:$0xff]
  %v918 = vld [vmem:[%s3 + $0x898] sm:$0xff]
  %v919 = vld [vmem:[%s3 + $0x8a0] sm:$0xff]
  %v920 = vld [vmem:[%s3 + $0x8a8] sm:$0xff]
  %v921 = vld [vmem:[%s3 + $0x8b0] sm:$0xff]
  %v922 = vld [vmem:[%s3 + $0x8b8] sm:$0xff]
  %v923 = vld [vmem:[%s3 + $0x8c0] sm:$0xff]
  %v924 = vld [vmem:[%s3 + $0x8c8] sm:$0xff]
  %v925 = vld [vmem:[%s3 + $0x8d0] sm:$0xff]
  %v926 = vld [vmem:[%s3 + $0x8d8] sm:$0xff]
  %v927 = vld [vmem:[%s3 + $0x8e0] sm:$0xff]
  %v928 = vld [vmem:[%s3 + $0x8e8] sm:$0xff]
  %v929 = vld [vmem:[%s3 + $0x8f0] sm:$0xff]
  %v930 = vld [vmem:[%s3 + $0x8f8] sm:$0xff]
  %v931 = vld [vmem:[%s3 + $0x900] sm:$0xff]
  %v932 = vld [vmem:[%s3 + $0x908] sm:$0xff]
  %v933 = vld [vmem:[%s3 + $0x910] sm:$0xff]
  %v934 = vld [vmem:[%s3 + $0x918] sm:$0xff]
  %v935 = vld [vmem:[%s3 + $0x920] sm:$0xff]
  %v936 = vld [vmem:[%s3 + $0x928] sm:$0xff]
  %v937 = vld [vmem:[%s3 + $0x930] sm:$0xff]
  %v938 = vld [vmem:[%s3 + $0x938] sm:$0xff]
  %v939 = vld [vmem:[%s3 + $0x940] sm:$0xff]
  %v940 = vld [vmem:[%s3 + $0x948] sm:$0xff]
  %v941 = vld [vmem:[%s3 + $0x950] sm:$0xff]
  %v942 = vld [vmem:[%s3 + $0x958] sm:$0xff]
  %v943 = vld [vmem:[%s3 + $0x960] sm:$0xff]
  %v944 = vld [vmem:[%s3 + $0x968] sm:$0xff]
  %v945 = vld [vmem:[%s3 + $0x970] sm:$0xff]
  %v946 = vld [vmem:[%s3 + $0x978] sm:$0xff]
  %v947 = vld [vmem:[%s3 + $0x980] sm:$0xff]
  %v948 = vld [vmem:[%s3 + $0x988] sm:$0xff]
  %v949 = vld [vmem:[%s3 + $0x990] sm:$0xff]
  %v950 = vld [vmem:[%s3 + $0x998] sm:$0xff]
  %v951 = vld [vmem:[%s3 + $0x9a0] sm:$0xff]
  %v952 = vld [vmem:[%s3 + $0x9a8] sm:$0xff]
  %v953 = vld [vmem:[%s3 + $0x9b0] sm:$0xff]
  %v954 = vld [vmem:[%s3 + $0x9b8] sm:$0xff]
  %v955 = vld [vmem:[%s3 + $0x9c0] sm:$0xff]
  %v956 = vld [vmem:[%s3 + $0x9c8] sm:$0xff]
  %v957 = vld [vmem:[%s3 + $0x9d0] sm:$0xff]
  %v958 = vld [vmem:[%s3 + $0x9d8] sm:$0xff]
  %v959 = vld [vmem:[%s3 + $0x9e0] sm:$0xff]
  %v960 = vld [vmem:[%s3 + $0x9e8] sm:$0xff]
  %v961 = vld [vmem:[%s3 + $0x9f0] sm:$0xff]
  %v962 = vld [vmem:[%s3 + $0x9f8] sm:$0xff]
  %v963 = vld [vmem:[%s3 + $0xa00] sm:$0xff]
  %v964 = vld [vmem:[%s3 + $0xa08] sm:$0xff]
  %v965 = vld [vmem:[%s3 + $0xa10] sm:$0xff]
  %v966 = vld [vmem:[%s3 + $0xa18] sm:$0xff]
  %v967 = vld [vmem:[%s3 + $0xa20] sm:$0xff]
  %v968 = vld [vmem:[%s3 + $0xa28] sm:$0xff]
  %v969 = vld [vmem:[%s3 + $0xa30] sm:$0xff]
  %v970 = vld [vmem:[%s3 + $0xa38] sm:$0xff]
  %v971 = vld [vmem:[%s3 + $0xa40] sm:$0xff]
  %v972 = vld [vmem:[%s3 + $0xa48] sm:$0xff]
  %v973 = vld [vmem:[%s3 + $0xa50] sm:$0xff]
  %v974 = vld [vmem:[%s3 + $0xa58] sm:$0xff]
  %v975 = vld [vmem:[%s3 + $0xa60] sm:$0xff]
  %v976 = vld [vmem:[%s3 + $0xa68] sm:$0xff]
  %v977 = vld [vmem:[%s3 + $0xa70] sm:$0xff]
  %v978 = vld [vmem:[%s3 + $0xa78] sm:$0xff]
  %v979 = vld [vmem:[%s3 + $0xa80] sm:$0xff]
  %v980 = vld [vmem:[%s3 + $0xa88] sm:$0xff]
  %v981 = vld [vmem:[%s3 + $0xa90] sm:$0xff]
  %v982 = vld [vmem:[%s3 + $0xa98] sm:$0xff]
  %v983 = vld [vmem:[%s3 + $0xaa0] sm:$0xff]
  %v984 = vld [vmem:[%s3 + $0xaa8] sm:$0xff]
  %v985 = vld [vmem:[%s3 + $0xab0] sm:$0xff]
  %v986 = vld [vmem:[%s3 + $0xab8] sm:$0xff]
  %v987 = vld [vmem:[%s3 + $0xac0] sm:$0xff]
  %v988 = vld [vmem:[%s3 + $0xac8] sm:$0xff]
  %v989 = vld [vmem:[%s3 + $0xad0] sm:$0xff]
  %v990 = vld [vmem:[%s3 + $0xad8] sm:$0xff]
  %v991 = vld [vmem:[%s3 + $0xae0] sm:$0xff]
  %v992 = vld [vmem:[%s3 + $0xae8] sm:$0xff]
  %v993 = vld [vmem:[%s3 + $0xaf0] sm:$0xff]
  %v994 = vld [vmem:[%s3 + $0xaf8] sm:$0xff]
  %v995 = vld [vmem:[%s3 + $0xb00] sm:$0xff]
  %v996 = vld [vmem:[%s3 + $0xb08] sm:$0xff]
  %v997 = vld [vmem:[%s3 + $0xb10] sm:$0xff]
  %v998 = vld [vmem:[%s3 + $0xb18] sm:$0xff]
  %v999 = vld [vmem:[%s3 + $0xb20] sm:$0xff]
  %v1000 = vld [vmem:[%s3 + $0xb28] sm:$0xff]
  %v1001 = vld [vmem:[%s3 + $0xb30] sm:$0xff]
  %v1002 = vld [vmem:[%s3 + $0xb38] sm:$0xff]
  %v1003 = vld [vmem:[%s3 + $0xb40] sm:$0xff]
  %v1004 = vld [vmem:[%s3 + $0xb48] sm:$0xff]
  %v1005 = vld [vmem:[%s3 + $0xb50] sm:$0xff]
  %v1006 = vld [vmem:[%s3 + $0xb58] sm:$0xff]
  %v1007 = vld [vmem:[%s3 + $0xb60] sm:$0xff]
  %v1008 = vld [vmem:[%s3 + $0xb68] sm:$0xff]
  %v1009 = vld [vmem:[%s3 + $0xb70] sm:$0xff]
  %v1010 = vld [vmem:[%s3 + $0xb78] sm:$0xff]
  %v1011 = vld [vmem:[%s3 + $0xb80] sm:$0xff]
  %v1012 = vld [vmem:[%s3 + $0xb88] sm:$0xff]
  %v1013 = vld [vmem:[%s3 + $0xb90] sm:$0xff]
  %v1014 = vld [vmem:[%s3 + $0xb98] sm:$0xff]
  %v1015 = vld [vmem:[%s3 + $0xba0] sm:$0xff]
  %v1016 = vld [vmem:[%s3 + $0xba8] sm:$0xff]
  %v1017 = vld [vmem:[%s3 + $0xbb0] sm:$0xff]
  %v1018 = vld [vmem:[%s3 + $0xbb8] sm:$0xff]
  %v1019 = vld [vmem:[%s3 + $0xbc0] sm:$0xff]
  %v1020 = vld [vmem:[%s3 + $0xbc8] sm:$0xff]
  %v1021 = vld [vmem:[%s3 + $0xbd0] sm:$0xff]
  %v1022 = vld [vmem:[%s3 + $0xbd8] sm:$0xff]
  %v1023 = vld [vmem:[%s3 + $0xbe0] sm:$0xff]
  %v1024 = vld [vmem:[%s3 + $0xbe8] sm:$0xff]
  %v1025 = vld [vmem:[%s3 + $0xbf0] sm:$0xff]
  %v1026 = vld [vmem:[%s3 + $0xbf8] sm:$0xff]
  %v1027 = vld [vmem:[%s3 + $0xc00] sm:$0xff]
  %v1028 = vld [vmem:[%s3 + $0xc08] sm:$0xff]
  %v1029 = vld [vmem:[%s3 + $0xc10] sm:$0xff]
  %v1030 = vld [vmem:[%s3 + $0xc18] sm:$0xff]
  %v1031 = vld [vmem:[%s3 + $0xc20] sm:$0xff]
  %v1032 = vld [vmem:[%s3 + $0xc28] sm:$0xff]
  %v1033 = vld [vmem:[%s3 + $0xc30] sm:$0xff]
  %v1034 = vld [vmem:[%s3 + $0xc38] sm:$0xff]
  %v1035 = vld [vmem:[%s3 + $0xc40] sm:$0xff]
  %v1036 = vld [vmem:[%s3 + $0xc48] sm:$0xff]
  %v1037 = vld [vmem:[%s3 + $0xc50] sm:$0xff]
  %v1038 = vld [vmem:[%s3 + $0xc58] sm:$0xff]
  %v1039 = vld [vmem:[%s3 + $0xc60] sm:$0xff]
  %v1040 = vld [vmem:[%s3 + $0xc68] sm:$0xff]
  %v1041 = vld [vmem:[%s3 + $0xc70] sm:$0xff]
  %v1042 = vld [vmem:[%s3 + $0xc78] sm:$0xff]
  %v1043 = vld [vmem:[%s3 + $0xc80] sm:$0xff]
  %v1044 = vld [vmem:[%s3 + $0xc88] sm:$0xff]
  %v1045 = vld [vmem:[%s3 + $0xc90] sm:$0xff]
  %v1046 = vld [vmem:[%s3 + $0xc98] sm:$0xff]
  %v1047 = vld [vmem:[%s3 + $0xca0] sm:$0xff]
  %v1048 = vld [vmem:[%s3 + $0xca8] sm:$0xff]
  %v1049 = vld [vmem:[%s3 + $0xcb0] sm:$0xff]
  %v1050 = vld [vmem:[%s3 + $0xcb8] sm:$0xff]
  %v1051 = vld [vmem:[%s3 + $0xcc0] sm:$0xff]
  %v1052 = vld [vmem:[%s3 + $0xcc8] sm:$0xff]
  %v1053 = vld [vmem:[%s3 + $0xcd0] sm:$0xff]
  %v1054 = vld [vmem:[%s3 + $0xcd8] sm:$0xff]
  %v1055 = vld [vmem:[%s3 + $0xce0] sm:$0xff]
  %v1056 = vld [vmem:[%s3 + $0xce8] sm:$0xff]
  %v1057 = vld [vmem:[%s3 + $0xcf0] sm:$0xff]
  %v1058 = vld [vmem:[%s3 + $0xcf8] sm:$0xff]
  %v1059 = vld [vmem:[%s3 + $0xd00] sm:$0xff]
  %v1060 = vld [vmem:[%s3 + $0xd08] sm:$0xff]
  %v1061 = vld [vmem:[%s3 + $0xd10] sm:$0xff]
  %v1062 = vld [vmem:[%s3 + $0xd18] sm:$0xff]
  %v1063 = vld [vmem:[%s3 + $0xd20] sm:$0xff]
  %v1064 = vld [vmem:[%s3 + $0xd28] sm:$0xff]
  %v1065 = vld [vmem:[%s3 + $0xd30] sm:$0xff]
  %v1066 = vld [vmem:[%s3 + $0xd38] sm:$0xff]
  %v1067 = vld [vmem:[%s3 + $0xd40] sm:$0xff]
  %v1068 = vld [vmem:[%s3 + $0xd48] sm:$0xff]
  %v1069 = vld [vmem:[%s3 + $0xd50] sm:$0xff]
  %v1070 = vld [vmem:[%s3 + $0xd58] sm:$0xff]
  %v1071 = vld [vmem:[%s3 + $0xd60] sm:$0xff]
  %v1072 = vld [vmem:[%s3 + $0xd68] sm:$0xff]
  %v1073 = vld [vmem:[%s3 + $0xd70] sm:$0xff]
  %v1074 = vld [vmem:[%s3 + $0xd78] sm:$0xff]
  %v1075 = vld [vmem:[%s3 + $0xd80] sm:$0xff]
  %v1076 = vld [vmem:[%s3 + $0xd88] sm:$0xff]
  %v1077 = vld [vmem:[%s3 + $0xd90] sm:$0xff]
  %v1078 = vld [vmem:[%s3 + $0xd98] sm:$0xff]
  %v1079 = vld [vmem:[%s3 + $0xda0] sm:$0xff]
  %v1080 = vld [vmem:[%s3 + $0xda8] sm:$0xff]
  %v1081 = vld [vmem:[%s3 + $0xdb0] sm:$0xff]
  %v1082 = vld [vmem:[%s3 + $0xdb8] sm:$0xff]
  %v1083 = vld [vmem:[%s3 + $0xdc0] sm:$0xff]
  %v1084 = vld [vmem:[%s3 + $0xdc8] sm:$0xff]
  %v1085 = vld [vmem:[%s3 + $0xdd0] sm:$0xff]
  %v1086 = vld [vmem:[%s3 + $0xdd8] sm:$0xff]
  %v1087 = vld [vmem:[%s3 + $0xde0] sm:$0xff]
  %v1088 = vld [vmem:[%s3 + $0xde8] sm:$0xff]
  %v1089 = vld [vmem:[%s3 + $0xdf0] sm:$0xff]
  %v1090 = vld [vmem:[%s3 + $0xdf8] sm:$0xff]
  %v1091 = vld [vmem:[%s3 + $0xe00] sm:$0xff]
  %v1092 = vld [vmem:[%s3 + $0xe08] sm:$0xff]
  %v1093 = vld [vmem:[%s3 + $0xe10] sm:$0xff]
  %v1094 = vld [vmem:[%s3 + $0xe18] sm:$0xff]
  %v1095 = vld [vmem:[%s3 + $0xe20] sm:$0xff]
  %v1096 = vld [vmem:[%s3 + $0xe28] sm:$0xff]
  %v1097 = vld [vmem:[%s3 + $0xe30] sm:$0xff]
  %v1098 = vld [vmem:[%s3 + $0xe38] sm:$0xff]
  %v1099 = vld [vmem:[%s3 + $0xe40] sm:$0xff]
  %v1100 = vld [vmem:[%s3 + $0xe48] sm:$0xff]
  %v1101 = vld [vmem:[%s3 + $0xe50] sm:$0xff]
  %v1102 = vld [vmem:[%s3 + $0xe58] sm:$0xff]
  %v1103 = vld [vmem:[%s3 + $0xe60] sm:$0xff]
  %v1104 = vld [vmem:[%s3 + $0xe68] sm:$0xff]
  %v1105 = vld [vmem:[%s3 + $0xe70] sm:$0xff]
  %v1106 = vld [vmem:[%s3 + $0xe78] sm:$0xff]
  %v1107 = vld [vmem:[%s3 + $0xe80] sm:$0xff]
  %v1108 = vld [vmem:[%s3 + $0xe88] sm:$0xff]
  %v1109 = vld [vmem:[%s3 + $0xe90] sm:$0xff]
  %v1110 = vld [vmem:[%s3 + $0xe98] sm:$0xff]
  %v1111 = vld [vmem:[%s3 + $0xea0] sm:$0xff]
  %v1112 = vld [vmem:[%s3 + $0xea8] sm:$0xff]
  %v1113 = vld [vmem:[%s3 + $0xeb0] sm:$0xff]
  %v1114 = vld [vmem:[%s3 + $0xeb8] sm:$0xff]
  %v1115 = vld [vmem:[%s3 + $0xec0] sm:$0xff]
  %v1116 = vld [vmem:[%s3 + $0xec8] sm:$0xff]
  %v1117 = vld [vmem:[%s3 + $0xed0] sm:$0xff]
  %v1118 = vld [vmem:[%s3 + $0xed8] sm:$0xff]
  %v1119 = vld [vmem:[%s3 + $0xee0] sm:$0xff]
  %v1120 = vld [vmem:[%s3 + $0xee8] sm:$0xff]
  %v1121 = vld [vmem:[%s3 + $0xef0] sm:$0xff]
  %v1122 = vld [vmem:[%s3 + $0xef8] sm:$0xff]
  %v1123 = vld [vmem:[%s3 + $0xf00] sm:$0xff]
  %v1124 = vld [vmem:[%s3 + $0xf08] sm:$0xff]
  %v1125 = vld [vmem:[%s3 + $0xf10] sm:$0xff]
  %v1126 = vld [vmem:[%s3 + $0xf18] sm:$0xff]
  %v1127 = vld [vmem:[%s3 + $0xf20] sm:$0xff]
  %v1128 = vld [vmem:[%s3 + $0xf28] sm:$0xff]
  %v1129 = vld [vmem:[%s3 + $0xf30] sm:$0xff]
  %v1130 = vld [vmem:[%s3 + $0xf38] sm:$0xff]
  %v1131 = vld [vmem:[%s3 + $0xf40] sm:$0xff]
  %v1132 = vld [vmem:[%s3 + $0xf48] sm:$0xff]
  %v1133 = vld [vmem:[%s3 + $0xf50] sm:$0xff]
  %v1134 = vld [vmem:[%s3 + $0xf58] sm:$0xff]
  %v1135 = vld [vmem:[%s3 + $0xf60] sm:$0xff]
  %v1136 = vld [vmem:[%s3 + $0xf68] sm:$0xff]
  %v1137 = vld [vmem:[%s3 + $0xf70] sm:$0xff]
  %v1138 = vld [vmem:[%s3 + $0xf78] sm:$0xff]
  %v1139 = vld [vmem:[%s3 + $0xf80] sm:$0xff]
  %v1140 = vld [vmem:[%s3 + $0xf88] sm:$0xff]
  %v1141 = vld [vmem:[%s3 + $0xf90] sm:$0xff]
  %v1142 = vld [vmem:[%s3 + $0xf98] sm:$0xff]
  %v1143 = vld [vmem:[%s3 + $0xfa0] sm:$0xff]
  %v1144 = vld [vmem:[%s3 + $0xfa8] sm:$0xff]
  %v1145 = vld [vmem:[%s3 + $0xfb0] sm:$0xff]
  %v1146 = vld [vmem:[%s3 + $0xfb8] sm:$0xff]
  %v1147 = vld [vmem:[%s3 + $0xfc0] sm:$0xff]
  %v1148 = vld [vmem:[%s3 + $0xfc8] sm:$0xff]
  %v1149 = vld [vmem:[%s3 + $0xfd0] sm:$0xff]
  %v1150 = vld [vmem:[%s3 + $0xfd8] sm:$0xff]
  %v1151 = vld [vmem:[%s3 + $0xfe0] sm:$0xff]
  %v1152 = vld [vmem:[%s3 + $0xfe8] sm:$0xff]
  %v1153 = vld [vmem:[%s3 + $0xff0] sm:$0xff]
  %v1154 = vld [vmem:[%s3 + $0xff8] sm:$0xff]
  %v1155 = vld [vmem:[%s4] sm:$0xff]
  %v1157 = vlaneseq
  %v1158 = vshrl.u32 %v1157, 7
  %v1159 = vsub.s32 0, %v1158
  %v1160 = vrot.slane %v1155, %v1159
  %v1161 = vlaneseq
  %v1162 = vshrl.u32 %v1161, 7
  %v1163 = vsub.s32 1, %v1162
  %v1164 = vrot.slane %v1155, %v1163
  %v1165 = vlaneseq
  %v1166 = vshrl.u32 %v1165, 7
  %v1167 = vsub.s32 2, %v1166
  %v1168 = vrot.slane %v1155, %v1167
  %v1169 = vlaneseq
  %v1170 = vshrl.u32 %v1169, 7
  %v1171 = vsub.s32 3, %v1170
  %v1172 = vrot.slane %v1155, %v1171
  %v1173 = vlaneseq
  %v1174 = vshrl.u32 %v1173, 7
  %v1175 = vsub.s32 4, %v1174
  %v1176 = vrot.slane %v1155, %v1175
  %v1177 = vlaneseq
  %v1178 = vshrl.u32 %v1177, 7
  %v1179 = vsub.s32 5, %v1178
  %v1180 = vrot.slane %v1155, %v1179
  %v1181 = vlaneseq
  %v1182 = vshrl.u32 %v1181, 7
  %v1183 = vsub.s32 6, %v1182
  %v1184 = vrot.slane %v1155, %v1183
  %v1185 = vlaneseq
  %v1186 = vshrl.u32 %v1185, 7
  %v1187 = vsub.s32 7, %v1186
  %v1188 = vrot.slane %v1155, %v1187
  %v1709 = vunpack.c.l.b16 %v643
  %v1710 = vunpack.c.h.b16 %v643
  %v1711 = vunpack.c.l.b16 %v644
  %v1712 = vunpack.c.h.b16 %v644
  %v1713 = vunpack.c.l.b16 %v645
  %v1714 = vunpack.c.h.b16 %v645
  %v1715 = vunpack.c.l.b16 %v646
  %v1716 = vunpack.c.h.b16 %v646
  %v1717 = vunpack.c.l.b16 %v647
  %v1718 = vunpack.c.h.b16 %v647
  %v1719 = vunpack.c.l.b16 %v648
  %v1720 = vunpack.c.h.b16 %v648
  %v1721 = vunpack.c.l.b16 %v649
  %v1722 = vunpack.c.h.b16 %v649
  %v1723 = vunpack.c.l.b16 %v650
  %v1724 = vunpack.c.h.b16 %v650
  %v1725 = vunpack.c.l.b16 %v651
  %v1726 = vunpack.c.h.b16 %v651
  %v1727 = vunpack.c.l.b16 %v652
  %v1728 = vunpack.c.h.b16 %v652
  %v1729 = vunpack.c.l.b16 %v653
  %v1730 = vunpack.c.h.b16 %v653
  %v1731 = vunpack.c.l.b16 %v654
  %v1732 = vunpack.c.h.b16 %v654
  %v1733 = vunpack.c.l.b16 %v655
  %v1734 = vunpack.c.h.b16 %v655
  %v1735 = vunpack.c.l.b16 %v656
  %v1736 = vunpack.c.h.b16 %v656
  %v1737 = vunpack.c.l.b16 %v657
  %v1738 = vunpack.c.h.b16 %v657
  %v1739 = vunpack.c.l.b16 %v658
  %v1740 = vunpack.c.h.b16 %v658
  %v1741 = vunpack.c.l.b16 %v659
  %v1742 = vunpack.c.h.b16 %v659
  %v1743 = vunpack.c.l.b16 %v660
  %v1744 = vunpack.c.h.b16 %v660
  %v1745 = vunpack.c.l.b16 %v661
  %v1746 = vunpack.c.h.b16 %v661
  %v1747 = vunpack.c.l.b16 %v662
  %v1748 = vunpack.c.h.b16 %v662
  %v1749 = vunpack.c.l.b16 %v663
  %v1750 = vunpack.c.h.b16 %v663
  %v1751 = vunpack.c.l.b16 %v664
  %v1752 = vunpack.c.h.b16 %v664
  %v1753 = vunpack.c.l.b16 %v665
  %v1754 = vunpack.c.h.b16 %v665
  %v1755 = vunpack.c.l.b16 %v666
  %v1756 = vunpack.c.h.b16 %v666
  %v1757 = vunpack.c.l.b16 %v667
  %v1758 = vunpack.c.h.b16 %v667
  %v1759 = vunpack.c.l.b16 %v668
  %v1760 = vunpack.c.h.b16 %v668
  %v1761 = vunpack.c.l.b16 %v669
  %v1762 = vunpack.c.h.b16 %v669
  %v1763 = vunpack.c.l.b16 %v670
  %v1764 = vunpack.c.h.b16 %v670
  %v1765 = vunpack.c.l.b16 %v671
  %v1766 = vunpack.c.h.b16 %v671
  %v1767 = vunpack.c.l.b16 %v672
  %v1768 = vunpack.c.h.b16 %v672
  %v1769 = vunpack.c.l.b16 %v673
  %v1770 = vunpack.c.h.b16 %v673
  %v1771 = vunpack.c.l.b16 %v674
  %v1772 = vunpack.c.h.b16 %v674
  %v1773 = vunpack.c.l.b16 %v675
  %v1774 = vunpack.c.h.b16 %v675
  %v1775 = vunpack.c.l.b16 %v676
  %v1776 = vunpack.c.h.b16 %v676
  %v1777 = vunpack.c.l.b16 %v677
  %v1778 = vunpack.c.h.b16 %v677
  %v1779 = vunpack.c.l.b16 %v678
  %v1780 = vunpack.c.h.b16 %v678
  %v1781 = vunpack.c.l.b16 %v679
  %v1782 = vunpack.c.h.b16 %v679
  %v1783 = vunpack.c.l.b16 %v680
  %v1784 = vunpack.c.h.b16 %v680
  %v1785 = vunpack.c.l.b16 %v681
  %v1786 = vunpack.c.h.b16 %v681
  %v1787 = vunpack.c.l.b16 %v682
  %v1788 = vunpack.c.h.b16 %v682
  %v1789 = vunpack.c.l.b16 %v683
  %v1790 = vunpack.c.h.b16 %v683
  %v1791 = vunpack.c.l.b16 %v684
  %v1792 = vunpack.c.h.b16 %v684
  %v1793 = vunpack.c.l.b16 %v685
  %v1794 = vunpack.c.h.b16 %v685
  %v1795 = vunpack.c.l.b16 %v686
  %v1796 = vunpack.c.h.b16 %v686
  %v1797 = vunpack.c.l.b16 %v687
  %v1798 = vunpack.c.h.b16 %v687
  %v1799 = vunpack.c.l.b16 %v688
  %v1800 = vunpack.c.h.b16 %v688
  %v1801 = vunpack.c.l.b16 %v689
  %v1802 = vunpack.c.h.b16 %v689
  %v1803 = vunpack.c.l.b16 %v690
  %v1804 = vunpack.c.h.b16 %v690
  %v1805 = vunpack.c.l.b16 %v691
  %v1806 = vunpack.c.h.b16 %v691
  %v1807 = vunpack.c.l.b16 %v692
  %v1808 = vunpack.c.h.b16 %v692
  %v1809 = vunpack.c.l.b16 %v693
  %v1810 = vunpack.c.h.b16 %v693
  %v1811 = vunpack.c.l.b16 %v694
  %v1812 = vunpack.c.h.b16 %v694
  %v1813 = vunpack.c.l.b16 %v695
  %v1814 = vunpack.c.h.b16 %v695
  %v1815 = vunpack.c.l.b16 %v696
  %v1816 = vunpack.c.h.b16 %v696
  %v1817 = vunpack.c.l.b16 %v697
  %v1818 = vunpack.c.h.b16 %v697
  %v1819 = vunpack.c.l.b16 %v698
  %v1820 = vunpack.c.h.b16 %v698
  %v1821 = vunpack.c.l.b16 %v699
  %v1822 = vunpack.c.h.b16 %v699
  %v1823 = vunpack.c.l.b16 %v700
  %v1824 = vunpack.c.h.b16 %v700
  %v1825 = vunpack.c.l.b16 %v701
  %v1826 = vunpack.c.h.b16 %v701
  %v1827 = vunpack.c.l.b16 %v702
  %v1828 = vunpack.c.h.b16 %v702
  %v1829 = vunpack.c.l.b16 %v703
  %v1830 = vunpack.c.h.b16 %v703
  %v1831 = vunpack.c.l.b16 %v704
  %v1832 = vunpack.c.h.b16 %v704
  %v1833 = vunpack.c.l.b16 %v705
  %v1834 = vunpack.c.h.b16 %v705
  %v1835 = vunpack.c.l.b16 %v706
  %v1836 = vunpack.c.h.b16 %v706
  %v1837 = vunpack.c.l.b16 %v707
  %v1838 = vunpack.c.h.b16 %v707
  %v1839 = vunpack.c.l.b16 %v708
  %v1840 = vunpack.c.h.b16 %v708
  %v1841 = vunpack.c.l.b16 %v709
  %v1842 = vunpack.c.h.b16 %v709
  %v1843 = vunpack.c.l.b16 %v710
  %v1844 = vunpack.c.h.b16 %v710
  %v1845 = vunpack.c.l.b16 %v711
  %v1846 = vunpack.c.h.b16 %v711
  %v1847 = vunpack.c.l.b16 %v712
  %v1848 = vunpack.c.h.b16 %v712
  %v1849 = vunpack.c.l.b16 %v713
  %v1850 = vunpack.c.h.b16 %v713
  %v1851 = vunpack.c.l.b16 %v714
  %v1852 = vunpack.c.h.b16 %v714
  %v1853 = vunpack.c.l.b16 %v715
  %v1854 = vunpack.c.h.b16 %v715
  %v1855 = vunpack.c.l.b16 %v716
  %v1856 = vunpack.c.h.b16 %v716
  %v1857 = vunpack.c.l.b16 %v717
  %v1858 = vunpack.c.h.b16 %v717
  %v1859 = vunpack.c.l.b16 %v718
  %v1860 = vunpack.c.h.b16 %v718
  %v1861 = vunpack.c.l.b16 %v719
  %v1862 = vunpack.c.h.b16 %v719
  %v1863 = vunpack.c.l.b16 %v720
  %v1864 = vunpack.c.h.b16 %v720
  %v1865 = vunpack.c.l.b16 %v721
  %v1866 = vunpack.c.h.b16 %v721
  %v1867 = vunpack.c.l.b16 %v722
  %v1868 = vunpack.c.h.b16 %v722
  %v1869 = vunpack.c.l.b16 %v723
  %v1870 = vunpack.c.h.b16 %v723
  %v1871 = vunpack.c.l.b16 %v724
  %v1872 = vunpack.c.h.b16 %v724
  %v1873 = vunpack.c.l.b16 %v725
  %v1874 = vunpack.c.h.b16 %v725
  %v1875 = vunpack.c.l.b16 %v726
  %v1876 = vunpack.c.h.b16 %v726
  %v1877 = vunpack.c.l.b16 %v727
  %v1878 = vunpack.c.h.b16 %v727
  %v1879 = vunpack.c.l.b16 %v728
  %v1880 = vunpack.c.h.b16 %v728
  %v1881 = vunpack.c.l.b16 %v729
  %v1882 = vunpack.c.h.b16 %v729
  %v1883 = vunpack.c.l.b16 %v730
  %v1884 = vunpack.c.h.b16 %v730
  %v1885 = vunpack.c.l.b16 %v731
  %v1886 = vunpack.c.h.b16 %v731
  %v1887 = vunpack.c.l.b16 %v732
  %v1888 = vunpack.c.h.b16 %v732
  %v1889 = vunpack.c.l.b16 %v733
  %v1890 = vunpack.c.h.b16 %v733
  %v1891 = vunpack.c.l.b16 %v734
  %v1892 = vunpack.c.h.b16 %v734
  %v1893 = vunpack.c.l.b16 %v735
  %v1894 = vunpack.c.h.b16 %v735
  %v1895 = vunpack.c.l.b16 %v736
  %v1896 = vunpack.c.h.b16 %v736
  %v1897 = vunpack.c.l.b16 %v737
  %v1898 = vunpack.c.h.b16 %v737
  %v1899 = vunpack.c.l.b16 %v738
  %v1900 = vunpack.c.h.b16 %v738
  %v1901 = vunpack.c.l.b16 %v739
  %v1902 = vunpack.c.h.b16 %v739
  %v1903 = vunpack.c.l.b16 %v740
  %v1904 = vunpack.c.h.b16 %v740
  %v1905 = vunpack.c.l.b16 %v741
  %v1906 = vunpack.c.h.b16 %v741
  %v1907 = vunpack.c.l.b16 %v742
  %v1908 = vunpack.c.h.b16 %v742
  %v1909 = vunpack.c.l.b16 %v743
  %v1910 = vunpack.c.h.b16 %v743
  %v1911 = vunpack.c.l.b16 %v744
  %v1912 = vunpack.c.h.b16 %v744
  %v1913 = vunpack.c.l.b16 %v745
  %v1914 = vunpack.c.h.b16 %v745
  %v1915 = vunpack.c.l.b16 %v746
  %v1916 = vunpack.c.h.b16 %v746
  %v1917 = vunpack.c.l.b16 %v747
  %v1918 = vunpack.c.h.b16 %v747
  %v1919 = vunpack.c.l.b16 %v748
  %v1920 = vunpack.c.h.b16 %v748
  %v1921 = vunpack.c.l.b16 %v749
  %v1922 = vunpack.c.h.b16 %v749
  %v1923 = vunpack.c.l.b16 %v750
  %v1924 = vunpack.c.h.b16 %v750
  %v1925 = vunpack.c.l.b16 %v751
  %v1926 = vunpack.c.h.b16 %v751
  %v1927 = vunpack.c.l.b16 %v752
  %v1928 = vunpack.c.h.b16 %v752
  %v1929 = vunpack.c.l.b16 %v753
  %v1930 = vunpack.c.h.b16 %v753
  %v1931 = vunpack.c.l.b16 %v754
  %v1932 = vunpack.c.h.b16 %v754
  %v1933 = vunpack.c.l.b16 %v755
  %v1934 = vunpack.c.h.b16 %v755
  %v1935 = vunpack.c.l.b16 %v756
  %v1936 = vunpack.c.h.b16 %v756
  %v1937 = vunpack.c.l.b16 %v757
  %v1938 = vunpack.c.h.b16 %v757
  %v1939 = vunpack.c.l.b16 %v758
  %v1940 = vunpack.c.h.b16 %v758
  %v1941 = vunpack.c.l.b16 %v759
  %v1942 = vunpack.c.h.b16 %v759
  %v1943 = vunpack.c.l.b16 %v760
  %v1944 = vunpack.c.h.b16 %v760
  %v1945 = vunpack.c.l.b16 %v761
  %v1946 = vunpack.c.h.b16 %v761
  %v1947 = vunpack.c.l.b16 %v762
  %v1948 = vunpack.c.h.b16 %v762
  %v1949 = vunpack.c.l.b16 %v763
  %v1950 = vunpack.c.h.b16 %v763
  %v1951 = vunpack.c.l.b16 %v764
  %v1952 = vunpack.c.h.b16 %v764
  %v1953 = vunpack.c.l.b16 %v765
  %v1954 = vunpack.c.h.b16 %v765
  %v1955 = vunpack.c.l.b16 %v766
  %v1956 = vunpack.c.h.b16 %v766
  %v1957 = vunpack.c.l.b16 %v767
  %v1958 = vunpack.c.h.b16 %v767
  %v1959 = vunpack.c.l.b16 %v768
  %v1960 = vunpack.c.h.b16 %v768
  %v1961 = vunpack.c.l.b16 %v769
  %v1962 = vunpack.c.h.b16 %v769
  %v1963 = vunpack.c.l.b16 %v770
  %v1964 = vunpack.c.h.b16 %v770
  %v1965 = vunpack.c.l.b16 %v771
  %v1966 = vunpack.c.h.b16 %v771
  %v1967 = vunpack.c.l.b16 %v772
  %v1968 = vunpack.c.h.b16 %v772
  %v1969 = vunpack.c.l.b16 %v773
  %v1970 = vunpack.c.h.b16 %v773
  %v1971 = vunpack.c.l.b16 %v774
  %v1972 = vunpack.c.h.b16 %v774
  %v1973 = vunpack.c.l.b16 %v775
  %v1974 = vunpack.c.h.b16 %v775
  %v1975 = vunpack.c.l.b16 %v776
  %v1976 = vunpack.c.h.b16 %v776
  %v1977 = vunpack.c.l.b16 %v777
  %v1978 = vunpack.c.h.b16 %v777
  %v1979 = vunpack.c.l.b16 %v778
  %v1980 = vunpack.c.h.b16 %v778
  %v1981 = vunpack.c.l.b16 %v779
  %v1982 = vunpack.c.h.b16 %v779
  %v1983 = vunpack.c.l.b16 %v780
  %v1984 = vunpack.c.h.b16 %v780
  %v1985 = vunpack.c.l.b16 %v781
  %v1986 = vunpack.c.h.b16 %v781
  %v1987 = vunpack.c.l.b16 %v782
  %v1988 = vunpack.c.h.b16 %v782
  %v1989 = vunpack.c.l.b16 %v783
  %v1990 = vunpack.c.h.b16 %v783
  %v1991 = vunpack.c.l.b16 %v784
  %v1992 = vunpack.c.h.b16 %v784
  %v1993 = vunpack.c.l.b16 %v785
  %v1994 = vunpack.c.h.b16 %v785
  %v1995 = vunpack.c.l.b16 %v786
  %v1996 = vunpack.c.h.b16 %v786
  %v1997 = vunpack.c.l.b16 %v787
  %v1998 = vunpack.c.h.b16 %v787
  %v1999 = vunpack.c.l.b16 %v788
  %v2000 = vunpack.c.h.b16 %v788
  %v2001 = vunpack.c.l.b16 %v789
  %v2002 = vunpack.c.h.b16 %v789
  %v2003 = vunpack.c.l.b16 %v790
  %v2004 = vunpack.c.h.b16 %v790
  %v2005 = vunpack.c.l.b16 %v791
  %v2006 = vunpack.c.h.b16 %v791
  %v2007 = vunpack.c.l.b16 %v792
  %v2008 = vunpack.c.h.b16 %v792
  %v2009 = vunpack.c.l.b16 %v793
  %v2010 = vunpack.c.h.b16 %v793
  %v2011 = vunpack.c.l.b16 %v794
  %v2012 = vunpack.c.h.b16 %v794
  %v2013 = vunpack.c.l.b16 %v795
  %v2014 = vunpack.c.h.b16 %v795
  %v2015 = vunpack.c.l.b16 %v796
  %v2016 = vunpack.c.h.b16 %v796
  %v2017 = vunpack.c.l.b16 %v797
  %v2018 = vunpack.c.h.b16 %v797
  %v2019 = vunpack.c.l.b16 %v798
  %v2020 = vunpack.c.h.b16 %v798
  %v2021 = vunpack.c.l.b16 %v799
  %v2022 = vunpack.c.h.b16 %v799
  %v2023 = vunpack.c.l.b16 %v800
  %v2024 = vunpack.c.h.b16 %v800
  %v2025 = vunpack.c.l.b16 %v801
  %v2026 = vunpack.c.h.b16 %v801
  %v2027 = vunpack.c.l.b16 %v802
  %v2028 = vunpack.c.h.b16 %v802
  %v2029 = vunpack.c.l.b16 %v803
  %v2030 = vunpack.c.h.b16 %v803
  %v2031 = vunpack.c.l.b16 %v804
  %v2032 = vunpack.c.h.b16 %v804
  %v2033 = vunpack.c.l.b16 %v805
  %v2034 = vunpack.c.h.b16 %v805
  %v2035 = vunpack.c.l.b16 %v806
  %v2036 = vunpack.c.h.b16 %v806
  %v2037 = vunpack.c.l.b16 %v807
  %v2038 = vunpack.c.h.b16 %v807
  %v2039 = vunpack.c.l.b16 %v808
  %v2040 = vunpack.c.h.b16 %v808
  %v2041 = vunpack.c.l.b16 %v809
  %v2042 = vunpack.c.h.b16 %v809
  %v2043 = vunpack.c.l.b16 %v810
  %v2044 = vunpack.c.h.b16 %v810
  %v2045 = vunpack.c.l.b16 %v811
  %v2046 = vunpack.c.h.b16 %v811
  %v2047 = vunpack.c.l.b16 %v812
  %v2048 = vunpack.c.h.b16 %v812
  %v2049 = vunpack.c.l.b16 %v813
  %v2050 = vunpack.c.h.b16 %v813
  %v2051 = vunpack.c.l.b16 %v814
  %v2052 = vunpack.c.h.b16 %v814
  %v2053 = vunpack.c.l.b16 %v815
  %v2054 = vunpack.c.h.b16 %v815
  %v2055 = vunpack.c.l.b16 %v816
  %v2056 = vunpack.c.h.b16 %v816
  %v2057 = vunpack.c.l.b16 %v817
  %v2058 = vunpack.c.h.b16 %v817
  %v2059 = vunpack.c.l.b16 %v818
  %v2060 = vunpack.c.h.b16 %v818
  %v2061 = vunpack.c.l.b16 %v819
  %v2062 = vunpack.c.h.b16 %v819
  %v2063 = vunpack.c.l.b16 %v820
  %v2064 = vunpack.c.h.b16 %v820
  %v2065 = vunpack.c.l.b16 %v821
  %v2066 = vunpack.c.h.b16 %v821
  %v2067 = vunpack.c.l.b16 %v822
  %v2068 = vunpack.c.h.b16 %v822
  %v2069 = vunpack.c.l.b16 %v823
  %v2070 = vunpack.c.h.b16 %v823
  %v2071 = vunpack.c.l.b16 %v824
  %v2072 = vunpack.c.h.b16 %v824
  %v2073 = vunpack.c.l.b16 %v825
  %v2074 = vunpack.c.h.b16 %v825
  %v2075 = vunpack.c.l.b16 %v826
  %v2076 = vunpack.c.h.b16 %v826
  %v2077 = vunpack.c.l.b16 %v827
  %v2078 = vunpack.c.h.b16 %v827
  %v2079 = vunpack.c.l.b16 %v828
  %v2080 = vunpack.c.h.b16 %v828
  %v2081 = vunpack.c.l.b16 %v829
  %v2082 = vunpack.c.h.b16 %v829
  %v2083 = vunpack.c.l.b16 %v830
  %v2084 = vunpack.c.h.b16 %v830
  %v2085 = vunpack.c.l.b16 %v831
  %v2086 = vunpack.c.h.b16 %v831
  %v2087 = vunpack.c.l.b16 %v832
  %v2088 = vunpack.c.h.b16 %v832
  %v2089 = vunpack.c.l.b16 %v833
  %v2090 = vunpack.c.h.b16 %v833
  %v2091 = vunpack.c.l.b16 %v834
  %v2092 = vunpack.c.h.b16 %v834
  %v2093 = vunpack.c.l.b16 %v835
  %v2094 = vunpack.c.h.b16 %v835
  %v2095 = vunpack.c.l.b16 %v836
  %v2096 = vunpack.c.h.b16 %v836
  %v2097 = vunpack.c.l.b16 %v837
  %v2098 = vunpack.c.h.b16 %v837
  %v2099 = vunpack.c.l.b16 %v838
  %v2100 = vunpack.c.h.b16 %v838
  %v2101 = vunpack.c.l.b16 %v839
  %v2102 = vunpack.c.h.b16 %v839
  %v2103 = vunpack.c.l.b16 %v840
  %v2104 = vunpack.c.h.b16 %v840
  %v2105 = vunpack.c.l.b16 %v841
  %v2106 = vunpack.c.h.b16 %v841
  %v2107 = vunpack.c.l.b16 %v842
  %v2108 = vunpack.c.h.b16 %v842
  %v2109 = vunpack.c.l.b16 %v843
  %v2110 = vunpack.c.h.b16 %v843
  %v2111 = vunpack.c.l.b16 %v844
  %v2112 = vunpack.c.h.b16 %v844
  %v2113 = vunpack.c.l.b16 %v845
  %v2114 = vunpack.c.h.b16 %v845
  %v2115 = vunpack.c.l.b16 %v846
  %v2116 = vunpack.c.h.b16 %v846
  %v2117 = vunpack.c.l.b16 %v847
  %v2118 = vunpack.c.h.b16 %v847
  %v2119 = vunpack.c.l.b16 %v848
  %v2120 = vunpack.c.h.b16 %v848
  %v2121 = vunpack.c.l.b16 %v849
  %v2122 = vunpack.c.h.b16 %v849
  %v2123 = vunpack.c.l.b16 %v850
  %v2124 = vunpack.c.h.b16 %v850
  %v2125 = vunpack.c.l.b16 %v851
  %v2126 = vunpack.c.h.b16 %v851
  %v2127 = vunpack.c.l.b16 %v852
  %v2128 = vunpack.c.h.b16 %v852
  %v2129 = vunpack.c.l.b16 %v853
  %v2130 = vunpack.c.h.b16 %v853
  %v2131 = vunpack.c.l.b16 %v854
  %v2132 = vunpack.c.h.b16 %v854
  %v2133 = vunpack.c.l.b16 %v855
  %v2134 = vunpack.c.h.b16 %v855
  %v2135 = vunpack.c.l.b16 %v856
  %v2136 = vunpack.c.h.b16 %v856
  %v2137 = vunpack.c.l.b16 %v857
  %v2138 = vunpack.c.h.b16 %v857
  %v2139 = vunpack.c.l.b16 %v858
  %v2140 = vunpack.c.h.b16 %v858
  %v2141 = vunpack.c.l.b16 %v859
  %v2142 = vunpack.c.h.b16 %v859
  %v2143 = vunpack.c.l.b16 %v860
  %v2144 = vunpack.c.h.b16 %v860
  %v2145 = vunpack.c.l.b16 %v861
  %v2146 = vunpack.c.h.b16 %v861
  %v2147 = vunpack.c.l.b16 %v862
  %v2148 = vunpack.c.h.b16 %v862
  %v2149 = vunpack.c.l.b16 %v863
  %v2150 = vunpack.c.h.b16 %v863
  %v2151 = vunpack.c.l.b16 %v864
  %v2152 = vunpack.c.h.b16 %v864
  %v2153 = vunpack.c.l.b16 %v865
  %v2154 = vunpack.c.h.b16 %v865
  %v2155 = vunpack.c.l.b16 %v866
  %v2156 = vunpack.c.h.b16 %v866
  %v2157 = vunpack.c.l.b16 %v867
  %v2158 = vunpack.c.h.b16 %v867
  %v2159 = vunpack.c.l.b16 %v868
  %v2160 = vunpack.c.h.b16 %v868
  %v2161 = vunpack.c.l.b16 %v869
  %v2162 = vunpack.c.h.b16 %v869
  %v2163 = vunpack.c.l.b16 %v870
  %v2164 = vunpack.c.h.b16 %v870
  %v2165 = vunpack.c.l.b16 %v871
  %v2166 = vunpack.c.h.b16 %v871
  %v2167 = vunpack.c.l.b16 %v872
  %v2168 = vunpack.c.h.b16 %v872
  %v2169 = vunpack.c.l.b16 %v873
  %v2170 = vunpack.c.h.b16 %v873
  %v2171 = vunpack.c.l.b16 %v874
  %v2172 = vunpack.c.h.b16 %v874
  %v2173 = vunpack.c.l.b16 %v875
  %v2174 = vunpack.c.h.b16 %v875
  %v2175 = vunpack.c.l.b16 %v876
  %v2176 = vunpack.c.h.b16 %v876
  %v2177 = vunpack.c.l.b16 %v877
  %v2178 = vunpack.c.h.b16 %v877
  %v2179 = vunpack.c.l.b16 %v878
  %v2180 = vunpack.c.h.b16 %v878
  %v2181 = vunpack.c.l.b16 %v879
  %v2182 = vunpack.c.h.b16 %v879
  %v2183 = vunpack.c.l.b16 %v880
  %v2184 = vunpack.c.h.b16 %v880
  %v2185 = vunpack.c.l.b16 %v881
  %v2186 = vunpack.c.h.b16 %v881
  %v2187 = vunpack.c.l.b16 %v882
  %v2188 = vunpack.c.h.b16 %v882
  %v2189 = vunpack.c.l.b16 %v883
  %v2190 = vunpack.c.h.b16 %v883
  %v2191 = vunpack.c.l.b16 %v884
  %v2192 = vunpack.c.h.b16 %v884
  %v2193 = vunpack.c.l.b16 %v885
  %v2194 = vunpack.c.h.b16 %v885
  %v2195 = vunpack.c.l.b16 %v886
  %v2196 = vunpack.c.h.b16 %v886
  %v2197 = vunpack.c.l.b16 %v887
  %v2198 = vunpack.c.h.b16 %v887
  %v2199 = vunpack.c.l.b16 %v888
  %v2200 = vunpack.c.h.b16 %v888
  %v2201 = vunpack.c.l.b16 %v889
  %v2202 = vunpack.c.h.b16 %v889
  %v2203 = vunpack.c.l.b16 %v890
  %v2204 = vunpack.c.h.b16 %v890
  %v2205 = vunpack.c.l.b16 %v891
  %v2206 = vunpack.c.h.b16 %v891
  %v2207 = vunpack.c.l.b16 %v892
  %v2208 = vunpack.c.h.b16 %v892
  %v2209 = vunpack.c.l.b16 %v893
  %v2210 = vunpack.c.h.b16 %v893
  %v2211 = vunpack.c.l.b16 %v894
  %v2212 = vunpack.c.h.b16 %v894
  %v2213 = vunpack.c.l.b16 %v895
  %v2214 = vunpack.c.h.b16 %v895
  %v2215 = vunpack.c.l.b16 %v896
  %v2216 = vunpack.c.h.b16 %v896
  %v2217 = vunpack.c.l.b16 %v897
  %v2218 = vunpack.c.h.b16 %v897
  %v2219 = vunpack.c.l.b16 %v898
  %v2220 = vunpack.c.h.b16 %v898
  %v2221 = vunpack.c.l.b16 %v899
  %v2222 = vunpack.c.h.b16 %v899
  %v2223 = vunpack.c.l.b16 %v900
  %v2224 = vunpack.c.h.b16 %v900
  %v2225 = vunpack.c.l.b16 %v901
  %v2226 = vunpack.c.h.b16 %v901
  %v2227 = vunpack.c.l.b16 %v902
  %v2228 = vunpack.c.h.b16 %v902
  %v2229 = vunpack.c.l.b16 %v903
  %v2230 = vunpack.c.h.b16 %v903
  %v2231 = vunpack.c.l.b16 %v904
  %v2232 = vunpack.c.h.b16 %v904
  %v2233 = vunpack.c.l.b16 %v905
  %v2234 = vunpack.c.h.b16 %v905
  %v2235 = vunpack.c.l.b16 %v906
  %v2236 = vunpack.c.h.b16 %v906
  %v2237 = vunpack.c.l.b16 %v907
  %v2238 = vunpack.c.h.b16 %v907
  %v2239 = vunpack.c.l.b16 %v908
  %v2240 = vunpack.c.h.b16 %v908
  %v2241 = vunpack.c.l.b16 %v909
  %v2242 = vunpack.c.h.b16 %v909
  %v2243 = vunpack.c.l.b16 %v910
  %v2244 = vunpack.c.h.b16 %v910
  %v2245 = vunpack.c.l.b16 %v911
  %v2246 = vunpack.c.h.b16 %v911
  %v2247 = vunpack.c.l.b16 %v912
  %v2248 = vunpack.c.h.b16 %v912
  %v2249 = vunpack.c.l.b16 %v913
  %v2250 = vunpack.c.h.b16 %v913
  %v2251 = vunpack.c.l.b16 %v914
  %v2252 = vunpack.c.h.b16 %v914
  %v2253 = vunpack.c.l.b16 %v915
  %v2254 = vunpack.c.h.b16 %v915
  %v2255 = vunpack.c.l.b16 %v916
  %v2256 = vunpack.c.h.b16 %v916
  %v2257 = vunpack.c.l.b16 %v917
  %v2258 = vunpack.c.h.b16 %v917
  %v2259 = vunpack.c.l.b16 %v918
  %v2260 = vunpack.c.h.b16 %v918
  %v2261 = vunpack.c.l.b16 %v919
  %v2262 = vunpack.c.h.b16 %v919
  %v2263 = vunpack.c.l.b16 %v920
  %v2264 = vunpack.c.h.b16 %v920
  %v2265 = vunpack.c.l.b16 %v921
  %v2266 = vunpack.c.h.b16 %v921
  %v2267 = vunpack.c.l.b16 %v922
  %v2268 = vunpack.c.h.b16 %v922
  %v2269 = vunpack.c.l.b16 %v923
  %v2270 = vunpack.c.h.b16 %v923
  %v2271 = vunpack.c.l.b16 %v924
  %v2272 = vunpack.c.h.b16 %v924
  %v2273 = vunpack.c.l.b16 %v925
  %v2274 = vunpack.c.h.b16 %v925
  %v2275 = vunpack.c.l.b16 %v926
  %v2276 = vunpack.c.h.b16 %v926
  %v2277 = vunpack.c.l.b16 %v927
  %v2278 = vunpack.c.h.b16 %v927
  %v2279 = vunpack.c.l.b16 %v928
  %v2280 = vunpack.c.h.b16 %v928
  %v2281 = vunpack.c.l.b16 %v929
  %v2282 = vunpack.c.h.b16 %v929
  %v2283 = vunpack.c.l.b16 %v930
  %v2284 = vunpack.c.h.b16 %v930
  %v2285 = vunpack.c.l.b16 %v931
  %v2286 = vunpack.c.h.b16 %v931
  %v2287 = vunpack.c.l.b16 %v932
  %v2288 = vunpack.c.h.b16 %v932
  %v2289 = vunpack.c.l.b16 %v933
  %v2290 = vunpack.c.h.b16 %v933
  %v2291 = vunpack.c.l.b16 %v934
  %v2292 = vunpack.c.h.b16 %v934
  %v2293 = vunpack.c.l.b16 %v935
  %v2294 = vunpack.c.h.b16 %v935
  %v2295 = vunpack.c.l.b16 %v936
  %v2296 = vunpack.c.h.b16 %v936
  %v2297 = vunpack.c.l.b16 %v937
  %v2298 = vunpack.c.h.b16 %v937
  %v2299 = vunpack.c.l.b16 %v938
  %v2300 = vunpack.c.h.b16 %v938
  %v2301 = vunpack.c.l.b16 %v939
  %v2302 = vunpack.c.h.b16 %v939
  %v2303 = vunpack.c.l.b16 %v940
  %v2304 = vunpack.c.h.b16 %v940
  %v2305 = vunpack.c.l.b16 %v941
  %v2306 = vunpack.c.h.b16 %v941
  %v2307 = vunpack.c.l.b16 %v942
  %v2308 = vunpack.c.h.b16 %v942
  %v2309 = vunpack.c.l.b16 %v943
  %v2310 = vunpack.c.h.b16 %v943
  %v2311 = vunpack.c.l.b16 %v944
  %v2312 = vunpack.c.h.b16 %v944
  %v2313 = vunpack.c.l.b16 %v945
  %v2314 = vunpack.c.h.b16 %v945
  %v2315 = vunpack.c.l.b16 %v946
  %v2316 = vunpack.c.h.b16 %v946
  %v2317 = vunpack.c.l.b16 %v947
  %v2318 = vunpack.c.h.b16 %v947
  %v2319 = vunpack.c.l.b16 %v948
  %v2320 = vunpack.c.h.b16 %v948
  %v2321 = vunpack.c.l.b16 %v949
  %v2322 = vunpack.c.h.b16 %v949
  %v2323 = vunpack.c.l.b16 %v950
  %v2324 = vunpack.c.h.b16 %v950
  %v2325 = vunpack.c.l.b16 %v951
  %v2326 = vunpack.c.h.b16 %v951
  %v2327 = vunpack.c.l.b16 %v952
  %v2328 = vunpack.c.h.b16 %v952
  %v2329 = vunpack.c.l.b16 %v953
  %v2330 = vunpack.c.h.b16 %v953
  %v2331 = vunpack.c.l.b16 %v954
  %v2332 = vunpack.c.h.b16 %v954
  %v2333 = vunpack.c.l.b16 %v955
  %v2334 = vunpack.c.h.b16 %v955
  %v2335 = vunpack.c.l.b16 %v956
  %v2336 = vunpack.c.h.b16 %v956
  %v2337 = vunpack.c.l.b16 %v957
  %v2338 = vunpack.c.h.b16 %v957
  %v2339 = vunpack.c.l.b16 %v958
  %v2340 = vunpack.c.h.b16 %v958
  %v2341 = vunpack.c.l.b16 %v959
  %v2342 = vunpack.c.h.b16 %v959
  %v2343 = vunpack.c.l.b16 %v960
  %v2344 = vunpack.c.h.b16 %v960
  %v2345 = vunpack.c.l.b16 %v961
  %v2346 = vunpack.c.h.b16 %v961
  %v2347 = vunpack.c.l.b16 %v962
  %v2348 = vunpack.c.h.b16 %v962
  %v2349 = vunpack.c.l.b16 %v963
  %v2350 = vunpack.c.h.b16 %v963
  %v2351 = vunpack.c.l.b16 %v964
  %v2352 = vunpack.c.h.b16 %v964
  %v2353 = vunpack.c.l.b16 %v965
  %v2354 = vunpack.c.h.b16 %v965
  %v2355 = vunpack.c.l.b16 %v966
  %v2356 = vunpack.c.h.b16 %v966
  %v2357 = vunpack.c.l.b16 %v967
  %v2358 = vunpack.c.h.b16 %v967
  %v2359 = vunpack.c.l.b16 %v968
  %v2360 = vunpack.c.h.b16 %v968
  %v2361 = vunpack.c.l.b16 %v969
  %v2362 = vunpack.c.h.b16 %v969
  %v2363 = vunpack.c.l.b16 %v970
  %v2364 = vunpack.c.h.b16 %v970
  %v2365 = vunpack.c.l.b16 %v971
  %v2366 = vunpack.c.h.b16 %v971
  %v2367 = vunpack.c.l.b16 %v972
  %v2368 = vunpack.c.h.b16 %v972
  %v2369 = vunpack.c.l.b16 %v973
  %v2370 = vunpack.c.h.b16 %v973
  %v2371 = vunpack.c.l.b16 %v974
  %v2372 = vunpack.c.h.b16 %v974
  %v2373 = vunpack.c.l.b16 %v975
  %v2374 = vunpack.c.h.b16 %v975
  %v2375 = vunpack.c.l.b16 %v976
  %v2376 = vunpack.c.h.b16 %v976
  %v2377 = vunpack.c.l.b16 %v977
  %v2378 = vunpack.c.h.b16 %v977
  %v2379 = vunpack.c.l.b16 %v978
  %v2380 = vunpack.c.h.b16 %v978
  %v2381 = vunpack.c.l.b16 %v979
  %v2382 = vunpack.c.h.b16 %v979
  %v2383 = vunpack.c.l.b16 %v980
  %v2384 = vunpack.c.h.b16 %v980
  %v2385 = vunpack.c.l.b16 %v981
  %v2386 = vunpack.c.h.b16 %v981
  %v2387 = vunpack.c.l.b16 %v982
  %v2388 = vunpack.c.h.b16 %v982
  %v2389 = vunpack.c.l.b16 %v983
  %v2390 = vunpack.c.h.b16 %v983
  %v2391 = vunpack.c.l.b16 %v984
  %v2392 = vunpack.c.h.b16 %v984
  %v2393 = vunpack.c.l.b16 %v985
  %v2394 = vunpack.c.h.b16 %v985
  %v2395 = vunpack.c.l.b16 %v986
  %v2396 = vunpack.c.h.b16 %v986
  %v2397 = vunpack.c.l.b16 %v987
  %v2398 = vunpack.c.h.b16 %v987
  %v2399 = vunpack.c.l.b16 %v988
  %v2400 = vunpack.c.h.b16 %v988
  %v2401 = vunpack.c.l.b16 %v989
  %v2402 = vunpack.c.h.b16 %v989
  %v2403 = vunpack.c.l.b16 %v990
  %v2404 = vunpack.c.h.b16 %v990
  %v2405 = vunpack.c.l.b16 %v991
  %v2406 = vunpack.c.h.b16 %v991
  %v2407 = vunpack.c.l.b16 %v992
  %v2408 = vunpack.c.h.b16 %v992
  %v2409 = vunpack.c.l.b16 %v993
  %v2410 = vunpack.c.h.b16 %v993
  %v2411 = vunpack.c.l.b16 %v994
  %v2412 = vunpack.c.h.b16 %v994
  %v2413 = vunpack.c.l.b16 %v995
  %v2414 = vunpack.c.h.b16 %v995
  %v2415 = vunpack.c.l.b16 %v996
  %v2416 = vunpack.c.h.b16 %v996
  %v2417 = vunpack.c.l.b16 %v997
  %v2418 = vunpack.c.h.b16 %v997
  %v2419 = vunpack.c.l.b16 %v998
  %v2420 = vunpack.c.h.b16 %v998
  %v2421 = vunpack.c.l.b16 %v999
  %v2422 = vunpack.c.h.b16 %v999
  %v2423 = vunpack.c.l.b16 %v1000
  %v2424 = vunpack.c.h.b16 %v1000
  %v2425 = vunpack.c.l.b16 %v1001
  %v2426 = vunpack.c.h.b16 %v1001
  %v2427 = vunpack.c.l.b16 %v1002
  %v2428 = vunpack.c.h.b16 %v1002
  %v2429 = vunpack.c.l.b16 %v1003
  %v2430 = vunpack.c.h.b16 %v1003
  %v2431 = vunpack.c.l.b16 %v1004
  %v2432 = vunpack.c.h.b16 %v1004
  %v2433 = vunpack.c.l.b16 %v1005
  %v2434 = vunpack.c.h.b16 %v1005
  %v2435 = vunpack.c.l.b16 %v1006
  %v2436 = vunpack.c.h.b16 %v1006
  %v2437 = vunpack.c.l.b16 %v1007
  %v2438 = vunpack.c.h.b16 %v1007
  %v2439 = vunpack.c.l.b16 %v1008
  %v2440 = vunpack.c.h.b16 %v1008
  %v2441 = vunpack.c.l.b16 %v1009
  %v2442 = vunpack.c.h.b16 %v1009
  %v2443 = vunpack.c.l.b16 %v1010
  %v2444 = vunpack.c.h.b16 %v1010
  %v2445 = vunpack.c.l.b16 %v1011
  %v2446 = vunpack.c.h.b16 %v1011
  %v2447 = vunpack.c.l.b16 %v1012
  %v2448 = vunpack.c.h.b16 %v1012
  %v2449 = vunpack.c.l.b16 %v1013
  %v2450 = vunpack.c.h.b16 %v1013
  %v2451 = vunpack.c.l.b16 %v1014
  %v2452 = vunpack.c.h.b16 %v1014
  %v2453 = vunpack.c.l.b16 %v1015
  %v2454 = vunpack.c.h.b16 %v1015
  %v2455 = vunpack.c.l.b16 %v1016
  %v2456 = vunpack.c.h.b16 %v1016
  %v2457 = vunpack.c.l.b16 %v1017
  %v2458 = vunpack.c.h.b16 %v1017
  %v2459 = vunpack.c.l.b16 %v1018
  %v2460 = vunpack.c.h.b16 %v1018
  %v2461 = vunpack.c.l.b16 %v1019
  %v2462 = vunpack.c.h.b16 %v1019
  %v2463 = vunpack.c.l.b16 %v1020
  %v2464 = vunpack.c.h.b16 %v1020
  %v2465 = vunpack.c.l.b16 %v1021
  %v2466 = vunpack.c.h.b16 %v1021
  %v2467 = vunpack.c.l.b16 %v1022
  %v2468 = vunpack.c.h.b16 %v1022
  %v2469 = vunpack.c.l.b16 %v1023
  %v2470 = vunpack.c.h.b16 %v1023
  %v2471 = vunpack.c.l.b16 %v1024
  %v2472 = vunpack.c.h.b16 %v1024
  %v2473 = vunpack.c.l.b16 %v1025
  %v2474 = vunpack.c.h.b16 %v1025
  %v2475 = vunpack.c.l.b16 %v1026
  %v2476 = vunpack.c.h.b16 %v1026
  %v2477 = vunpack.c.l.b16 %v1027
  %v2478 = vunpack.c.h.b16 %v1027
  %v2479 = vunpack.c.l.b16 %v1028
  %v2480 = vunpack.c.h.b16 %v1028
  %v2481 = vunpack.c.l.b16 %v1029
  %v2482 = vunpack.c.h.b16 %v1029
  %v2483 = vunpack.c.l.b16 %v1030
  %v2484 = vunpack.c.h.b16 %v1030
  %v2485 = vunpack.c.l.b16 %v1031
  %v2486 = vunpack.c.h.b16 %v1031
  %v2487 = vunpack.c.l.b16 %v1032
  %v2488 = vunpack.c.h.b16 %v1032
  %v2489 = vunpack.c.l.b16 %v1033
  %v2490 = vunpack.c.h.b16 %v1033
  %v2491 = vunpack.c.l.b16 %v1034
  %v2492 = vunpack.c.h.b16 %v1034
  %v2493 = vunpack.c.l.b16 %v1035
  %v2494 = vunpack.c.h.b16 %v1035
  %v2495 = vunpack.c.l.b16 %v1036
  %v2496 = vunpack.c.h.b16 %v1036
  %v2497 = vunpack.c.l.b16 %v1037
  %v2498 = vunpack.c.h.b16 %v1037
  %v2499 = vunpack.c.l.b16 %v1038
  %v2500 = vunpack.c.h.b16 %v1038
  %v2501 = vunpack.c.l.b16 %v1039
  %v2502 = vunpack.c.h.b16 %v1039
  %v2503 = vunpack.c.l.b16 %v1040
  %v2504 = vunpack.c.h.b16 %v1040
  %v2505 = vunpack.c.l.b16 %v1041
  %v2506 = vunpack.c.h.b16 %v1041
  %v2507 = vunpack.c.l.b16 %v1042
  %v2508 = vunpack.c.h.b16 %v1042
  %v2509 = vunpack.c.l.b16 %v1043
  %v2510 = vunpack.c.h.b16 %v1043
  %v2511 = vunpack.c.l.b16 %v1044
  %v2512 = vunpack.c.h.b16 %v1044
  %v2513 = vunpack.c.l.b16 %v1045
  %v2514 = vunpack.c.h.b16 %v1045
  %v2515 = vunpack.c.l.b16 %v1046
  %v2516 = vunpack.c.h.b16 %v1046
  %v2517 = vunpack.c.l.b16 %v1047
  %v2518 = vunpack.c.h.b16 %v1047
  %v2519 = vunpack.c.l.b16 %v1048
  %v2520 = vunpack.c.h.b16 %v1048
  %v2521 = vunpack.c.l.b16 %v1049
  %v2522 = vunpack.c.h.b16 %v1049
  %v2523 = vunpack.c.l.b16 %v1050
  %v2524 = vunpack.c.h.b16 %v1050
  %v2525 = vunpack.c.l.b16 %v1051
  %v2526 = vunpack.c.h.b16 %v1051
  %v2527 = vunpack.c.l.b16 %v1052
  %v2528 = vunpack.c.h.b16 %v1052
  %v2529 = vunpack.c.l.b16 %v1053
  %v2530 = vunpack.c.h.b16 %v1053
  %v2531 = vunpack.c.l.b16 %v1054
  %v2532 = vunpack.c.h.b16 %v1054
  %v2533 = vunpack.c.l.b16 %v1055
  %v2534 = vunpack.c.h.b16 %v1055
  %v2535 = vunpack.c.l.b16 %v1056
  %v2536 = vunpack.c.h.b16 %v1056
  %v2537 = vunpack.c.l.b16 %v1057
  %v2538 = vunpack.c.h.b16 %v1057
  %v2539 = vunpack.c.l.b16 %v1058
  %v2540 = vunpack.c.h.b16 %v1058
  %v2541 = vunpack.c.l.b16 %v1059
  %v2542 = vunpack.c.h.b16 %v1059
  %v2543 = vunpack.c.l.b16 %v1060
  %v2544 = vunpack.c.h.b16 %v1060
  %v2545 = vunpack.c.l.b16 %v1061
  %v2546 = vunpack.c.h.b16 %v1061
  %v2547 = vunpack.c.l.b16 %v1062
  %v2548 = vunpack.c.h.b16 %v1062
  %v2549 = vunpack.c.l.b16 %v1063
  %v2550 = vunpack.c.h.b16 %v1063
  %v2551 = vunpack.c.l.b16 %v1064
  %v2552 = vunpack.c.h.b16 %v1064
  %v2553 = vunpack.c.l.b16 %v1065
  %v2554 = vunpack.c.h.b16 %v1065
  %v2555 = vunpack.c.l.b16 %v1066
  %v2556 = vunpack.c.h.b16 %v1066
  %v2557 = vunpack.c.l.b16 %v1067
  %v2558 = vunpack.c.h.b16 %v1067
  %v2559 = vunpack.c.l.b16 %v1068
  %v2560 = vunpack.c.h.b16 %v1068
  %v2561 = vunpack.c.l.b16 %v1069
  %v2562 = vunpack.c.h.b16 %v1069
  %v2563 = vunpack.c.l.b16 %v1070
  %v2564 = vunpack.c.h.b16 %v1070
  %v2565 = vunpack.c.l.b16 %v1071
  %v2566 = vunpack.c.h.b16 %v1071
  %v2567 = vunpack.c.l.b16 %v1072
  %v2568 = vunpack.c.h.b16 %v1072
  %v2569 = vunpack.c.l.b16 %v1073
  %v2570 = vunpack.c.h.b16 %v1073
  %v2571 = vunpack.c.l.b16 %v1074
  %v2572 = vunpack.c.h.b16 %v1074
  %v2573 = vunpack.c.l.b16 %v1075
  %v2574 = vunpack.c.h.b16 %v1075
  %v2575 = vunpack.c.l.b16 %v1076
  %v2576 = vunpack.c.h.b16 %v1076
  %v2577 = vunpack.c.l.b16 %v1077
  %v2578 = vunpack.c.h.b16 %v1077
  %v2579 = vunpack.c.l.b16 %v1078
  %v2580 = vunpack.c.h.b16 %v1078
  %v2581 = vunpack.c.l.b16 %v1079
  %v2582 = vunpack.c.h.b16 %v1079
  %v2583 = vunpack.c.l.b16 %v1080
  %v2584 = vunpack.c.h.b16 %v1080
  %v2585 = vunpack.c.l.b16 %v1081
  %v2586 = vunpack.c.h.b16 %v1081
  %v2587 = vunpack.c.l.b16 %v1082
  %v2588 = vunpack.c.h.b16 %v1082
  %v2589 = vunpack.c.l.b16 %v1083
  %v2590 = vunpack.c.h.b16 %v1083
  %v2591 = vunpack.c.l.b16 %v1084
  %v2592 = vunpack.c.h.b16 %v1084
  %v2593 = vunpack.c.l.b16 %v1085
  %v2594 = vunpack.c.h.b16 %v1085
  %v2595 = vunpack.c.l.b16 %v1086
  %v2596 = vunpack.c.h.b16 %v1086
  %v2597 = vunpack.c.l.b16 %v1087
  %v2598 = vunpack.c.h.b16 %v1087
  %v2599 = vunpack.c.l.b16 %v1088
  %v2600 = vunpack.c.h.b16 %v1088
  %v2601 = vunpack.c.l.b16 %v1089
  %v2602 = vunpack.c.h.b16 %v1089
  %v2603 = vunpack.c.l.b16 %v1090
  %v2604 = vunpack.c.h.b16 %v1090
  %v2605 = vunpack.c.l.b16 %v1091
  %v2606 = vunpack.c.h.b16 %v1091
  %v2607 = vunpack.c.l.b16 %v1092
  %v2608 = vunpack.c.h.b16 %v1092
  %v2609 = vunpack.c.l.b16 %v1093
  %v2610 = vunpack.c.h.b16 %v1093
  %v2611 = vunpack.c.l.b16 %v1094
  %v2612 = vunpack.c.h.b16 %v1094
  %v2613 = vunpack.c.l.b16 %v1095
  %v2614 = vunpack.c.h.b16 %v1095
  %v2615 = vunpack.c.l.b16 %v1096
  %v2616 = vunpack.c.h.b16 %v1096
  %v2617 = vunpack.c.l.b16 %v1097
  %v2618 = vunpack.c.h.b16 %v1097
  %v2619 = vunpack.c.l.b16 %v1098
  %v2620 = vunpack.c.h.b16 %v1098
  %v2621 = vunpack.c.l.b16 %v1099
  %v2622 = vunpack.c.h.b16 %v1099
  %v2623 = vunpack.c.l.b16 %v1100
  %v2624 = vunpack.c.h.b16 %v1100
  %v2625 = vunpack.c.l.b16 %v1101
  %v2626 = vunpack.c.h.b16 %v1101
  %v2627 = vunpack.c.l.b16 %v1102
  %v2628 = vunpack.c.h.b16 %v1102
  %v2629 = vunpack.c.l.b16 %v1103
  %v2630 = vunpack.c.h.b16 %v1103
  %v2631 = vunpack.c.l.b16 %v1104
  %v2632 = vunpack.c.h.b16 %v1104
  %v2633 = vunpack.c.l.b16 %v1105
  %v2634 = vunpack.c.h.b16 %v1105
  %v2635 = vunpack.c.l.b16 %v1106
  %v2636 = vunpack.c.h.b16 %v1106
  %v2637 = vunpack.c.l.b16 %v1107
  %v2638 = vunpack.c.h.b16 %v1107
  %v2639 = vunpack.c.l.b16 %v1108
  %v2640 = vunpack.c.h.b16 %v1108
  %v2641 = vunpack.c.l.b16 %v1109
  %v2642 = vunpack.c.h.b16 %v1109
  %v2643 = vunpack.c.l.b16 %v1110
  %v2644 = vunpack.c.h.b16 %v1110
  %v2645 = vunpack.c.l.b16 %v1111
  %v2646 = vunpack.c.h.b16 %v1111
  %v2647 = vunpack.c.l.b16 %v1112
  %v2648 = vunpack.c.h.b16 %v1112
  %v2649 = vunpack.c.l.b16 %v1113
  %v2650 = vunpack.c.h.b16 %v1113
  %v2651 = vunpack.c.l.b16 %v1114
  %v2652 = vunpack.c.h.b16 %v1114
  %v2653 = vunpack.c.l.b16 %v1115
  %v2654 = vunpack.c.h.b16 %v1115
  %v2655 = vunpack.c.l.b16 %v1116
  %v2656 = vunpack.c.h.b16 %v1116
  %v2657 = vunpack.c.l.b16 %v1117
  %v2658 = vunpack.c.h.b16 %v1117
  %v2659 = vunpack.c.l.b16 %v1118
  %v2660 = vunpack.c.h.b16 %v1118
  %v2661 = vunpack.c.l.b16 %v1119
  %v2662 = vunpack.c.h.b16 %v1119
  %v2663 = vunpack.c.l.b16 %v1120
  %v2664 = vunpack.c.h.b16 %v1120
  %v2665 = vunpack.c.l.b16 %v1121
  %v2666 = vunpack.c.h.b16 %v1121
  %v2667 = vunpack.c.l.b16 %v1122
  %v2668 = vunpack.c.h.b16 %v1122
  %v2669 = vunpack.c.l.b16 %v1123
  %v2670 = vunpack.c.h.b16 %v1123
  %v2671 = vunpack.c.l.b16 %v1124
  %v2672 = vunpack.c.h.b16 %v1124
  %v2673 = vunpack.c.l.b16 %v1125
  %v2674 = vunpack.c.h.b16 %v1125
  %v2675 = vunpack.c.l.b16 %v1126
  %v2676 = vunpack.c.h.b16 %v1126
  %v2677 = vunpack.c.l.b16 %v1127
  %v2678 = vunpack.c.h.b16 %v1127
  %v2679 = vunpack.c.l.b16 %v1128
  %v2680 = vunpack.c.h.b16 %v1128
  %v2681 = vunpack.c.l.b16 %v1129
  %v2682 = vunpack.c.h.b16 %v1129
  %v2683 = vunpack.c.l.b16 %v1130
  %v2684 = vunpack.c.h.b16 %v1130
  %v2685 = vunpack.c.l.b16 %v1131
  %v2686 = vunpack.c.h.b16 %v1131
  %v2687 = vunpack.c.l.b16 %v1132
  %v2688 = vunpack.c.h.b16 %v1132
  %v2689 = vunpack.c.l.b16 %v1133
  %v2690 = vunpack.c.h.b16 %v1133
  %v2691 = vunpack.c.l.b16 %v1134
  %v2692 = vunpack.c.h.b16 %v1134
  %v2693 = vunpack.c.l.b16 %v1135
  %v2694 = vunpack.c.h.b16 %v1135
  %v2695 = vunpack.c.l.b16 %v1136
  %v2696 = vunpack.c.h.b16 %v1136
  %v2697 = vunpack.c.l.b16 %v1137
  %v2698 = vunpack.c.h.b16 %v1137
  %v2699 = vunpack.c.l.b16 %v1138
  %v2700 = vunpack.c.h.b16 %v1138
  %v2701 = vunpack.c.l.b16 %v1139
  %v2702 = vunpack.c.h.b16 %v1139
  %v2703 = vunpack.c.l.b16 %v1140
  %v2704 = vunpack.c.h.b16 %v1140
  %v2705 = vunpack.c.l.b16 %v1141
  %v2706 = vunpack.c.h.b16 %v1141
  %v2707 = vunpack.c.l.b16 %v1142
  %v2708 = vunpack.c.h.b16 %v1142
  %v2709 = vunpack.c.l.b16 %v1143
  %v2710 = vunpack.c.h.b16 %v1143
  %v2711 = vunpack.c.l.b16 %v1144
  %v2712 = vunpack.c.h.b16 %v1144
  %v2713 = vunpack.c.l.b16 %v1145
  %v2714 = vunpack.c.h.b16 %v1145
  %v2715 = vunpack.c.l.b16 %v1146
  %v2716 = vunpack.c.h.b16 %v1146
  %v2717 = vunpack.c.l.b16 %v1147
  %v2718 = vunpack.c.h.b16 %v1147
  %v2719 = vunpack.c.l.b16 %v1148
  %v2720 = vunpack.c.h.b16 %v1148
  %v2721 = vunpack.c.l.b16 %v1149
  %v2722 = vunpack.c.h.b16 %v1149
  %v2723 = vunpack.c.l.b16 %v1150
  %v2724 = vunpack.c.h.b16 %v1150
  %v2725 = vunpack.c.l.b16 %v1151
  %v2726 = vunpack.c.h.b16 %v1151
  %v2727 = vunpack.c.l.b16 %v1152
  %v2728 = vunpack.c.h.b16 %v1152
  %v2729 = vunpack.c.l.b16 %v1153
  %v2730 = vunpack.c.h.b16 %v1153
  %v2731 = vunpack.c.l.b16 %v1154
  %v2732 = vunpack.c.h.b16 %v1154
  %v2733 = vpack.c.b16 %v1717, %v1709
  %v2734 = vpack.c.b16 %v1718, %v1710
  %v2735 = vpack.c.b16 %v1719, %v1711
  %v2736 = vpack.c.b16 %v1720, %v1712
  %v2737 = vpack.c.b16 %v1721, %v1713
  %v2738 = vpack.c.b16 %v1722, %v1714
  %v2739 = vpack.c.b16 %v1723, %v1715
  %v2740 = vpack.c.b16 %v1724, %v1716
  %v2741 = vpack.c.b16 %v1733, %v1725
  %v2742 = vpack.c.b16 %v1734, %v1726
  %v2743 = vpack.c.b16 %v1735, %v1727
  %v2744 = vpack.c.b16 %v1736, %v1728
  %v2745 = vpack.c.b16 %v1737, %v1729
  %v2746 = vpack.c.b16 %v1738, %v1730
  %v2747 = vpack.c.b16 %v1739, %v1731
  %v2748 = vpack.c.b16 %v1740, %v1732
  %v2749 = vpack.c.b16 %v1749, %v1741
  %v2750 = vpack.c.b16 %v1750, %v1742
  %v2751 = vpack.c.b16 %v1751, %v1743
  %v2752 = vpack.c.b16 %v1752, %v1744
  %v2753 = vpack.c.b16 %v1753, %v1745
  %v2754 = vpack.c.b16 %v1754, %v1746
  %v2755 = vpack.c.b16 %v1755, %v1747
  %v2756 = vpack.c.b16 %v1756, %v1748
  %v2757 = vpack.c.b16 %v1765, %v1757
  %v2758 = vpack.c.b16 %v1766, %v1758
  %v2759 = vpack.c.b16 %v1767, %v1759
  %v2760 = vpack.c.b16 %v1768, %v1760
  %v2761 = vpack.c.b16 %v1769, %v1761
  %v2762 = vpack.c.b16 %v1770, %v1762
  %v2763 = vpack.c.b16 %v1771, %v1763
  %v2764 = vpack.c.b16 %v1772, %v1764
  %v2765 = vpack.c.b16 %v1781, %v1773
  %v2766 = vpack.c.b16 %v1782, %v1774
  %v2767 = vpack.c.b16 %v1783, %v1775
  %v2768 = vpack.c.b16 %v1784, %v1776
  %v2769 = vpack.c.b16 %v1785, %v1777
  %v2770 = vpack.c.b16 %v1786, %v1778
  %v2771 = vpack.c.b16 %v1787, %v1779
  %v2772 = vpack.c.b16 %v1788, %v1780
  %v2773 = vpack.c.b16 %v1797, %v1789
  %v2774 = vpack.c.b16 %v1798, %v1790
  %v2775 = vpack.c.b16 %v1799, %v1791
  %v2776 = vpack.c.b16 %v1800, %v1792
  %v2777 = vpack.c.b16 %v1801, %v1793
  %v2778 = vpack.c.b16 %v1802, %v1794
  %v2779 = vpack.c.b16 %v1803, %v1795
  %v2780 = vpack.c.b16 %v1804, %v1796
  %v2781 = vpack.c.b16 %v1813, %v1805
  %v2782 = vpack.c.b16 %v1814, %v1806
  %v2783 = vpack.c.b16 %v1815, %v1807
  %v2784 = vpack.c.b16 %v1816, %v1808
  %v2785 = vpack.c.b16 %v1817, %v1809
  %v2786 = vpack.c.b16 %v1818, %v1810
  %v2787 = vpack.c.b16 %v1819, %v1811
  %v2788 = vpack.c.b16 %v1820, %v1812
  %v2789 = vpack.c.b16 %v1829, %v1821
  %v2790 = vpack.c.b16 %v1830, %v1822
  %v2791 = vpack.c.b16 %v1831, %v1823
  %v2792 = vpack.c.b16 %v1832, %v1824
  %v2793 = vpack.c.b16 %v1833, %v1825
  %v2794 = vpack.c.b16 %v1834, %v1826
  %v2795 = vpack.c.b16 %v1835, %v1827
  %v2796 = vpack.c.b16 %v1836, %v1828
  %v2797 = vpack.c.b16 %v1845, %v1837
  %v2798 = vpack.c.b16 %v1846, %v1838
  %v2799 = vpack.c.b16 %v1847, %v1839
  %v2800 = vpack.c.b16 %v1848, %v1840
  %v2801 = vpack.c.b16 %v1849, %v1841
  %v2802 = vpack.c.b16 %v1850, %v1842
  %v2803 = vpack.c.b16 %v1851, %v1843
  %v2804 = vpack.c.b16 %v1852, %v1844
  %v2805 = vpack.c.b16 %v1861, %v1853
  %v2806 = vpack.c.b16 %v1862, %v1854
  %v2807 = vpack.c.b16 %v1863, %v1855
  %v2808 = vpack.c.b16 %v1864, %v1856
  %v2809 = vpack.c.b16 %v1865, %v1857
  %v2810 = vpack.c.b16 %v1866, %v1858
  %v2811 = vpack.c.b16 %v1867, %v1859
  %v2812 = vpack.c.b16 %v1868, %v1860
  %v2813 = vpack.c.b16 %v1877, %v1869
  %v2814 = vpack.c.b16 %v1878, %v1870
  %v2815 = vpack.c.b16 %v1879, %v1871
  %v2816 = vpack.c.b16 %v1880, %v1872
  %v2817 = vpack.c.b16 %v1881, %v1873
  %v2818 = vpack.c.b16 %v1882, %v1874
  %v2819 = vpack.c.b16 %v1883, %v1875
  %v2820 = vpack.c.b16 %v1884, %v1876
  %v2821 = vpack.c.b16 %v1893, %v1885
  %v2822 = vpack.c.b16 %v1894, %v1886
  %v2823 = vpack.c.b16 %v1895, %v1887
  %v2824 = vpack.c.b16 %v1896, %v1888
  %v2825 = vpack.c.b16 %v1897, %v1889
  %v2826 = vpack.c.b16 %v1898, %v1890
  %v2827 = vpack.c.b16 %v1899, %v1891
  %v2828 = vpack.c.b16 %v1900, %v1892
  %v2829 = vpack.c.b16 %v1909, %v1901
  %v2830 = vpack.c.b16 %v1910, %v1902
  %v2831 = vpack.c.b16 %v1911, %v1903
  %v2832 = vpack.c.b16 %v1912, %v1904
  %v2833 = vpack.c.b16 %v1913, %v1905
  %v2834 = vpack.c.b16 %v1914, %v1906
  %v2835 = vpack.c.b16 %v1915, %v1907
  %v2836 = vpack.c.b16 %v1916, %v1908
  %v2837 = vpack.c.b16 %v1925, %v1917
  %v2838 = vpack.c.b16 %v1926, %v1918
  %v2839 = vpack.c.b16 %v1927, %v1919
  %v2840 = vpack.c.b16 %v1928, %v1920
  %v2841 = vpack.c.b16 %v1929, %v1921
  %v2842 = vpack.c.b16 %v1930, %v1922
  %v2843 = vpack.c.b16 %v1931, %v1923
  %v2844 = vpack.c.b16 %v1932, %v1924
  %v2845 = vpack.c.b16 %v1941, %v1933
  %v2846 = vpack.c.b16 %v1942, %v1934
  %v2847 = vpack.c.b16 %v1943, %v1935
  %v2848 = vpack.c.b16 %v1944, %v1936
  %v2849 = vpack.c.b16 %v1945, %v1937
  %v2850 = vpack.c.b16 %v1946, %v1938
  %v2851 = vpack.c.b16 %v1947, %v1939
  %v2852 = vpack.c.b16 %v1948, %v1940
  %v2853 = vpack.c.b16 %v1957, %v1949
  %v2854 = vpack.c.b16 %v1958, %v1950
  %v2855 = vpack.c.b16 %v1959, %v1951
  %v2856 = vpack.c.b16 %v1960, %v1952
  %v2857 = vpack.c.b16 %v1961, %v1953
  %v2858 = vpack.c.b16 %v1962, %v1954
  %v2859 = vpack.c.b16 %v1963, %v1955
  %v2860 = vpack.c.b16 %v1964, %v1956
  %v2861 = vpack.c.b16 %v1973, %v1965
  %v2862 = vpack.c.b16 %v1974, %v1966
  %v2863 = vpack.c.b16 %v1975, %v1967
  %v2864 = vpack.c.b16 %v1976, %v1968
  %v2865 = vpack.c.b16 %v1977, %v1969
  %v2866 = vpack.c.b16 %v1978, %v1970
  %v2867 = vpack.c.b16 %v1979, %v1971
  %v2868 = vpack.c.b16 %v1980, %v1972
  %v2869 = vpack.c.b16 %v1989, %v1981
  %v2870 = vpack.c.b16 %v1990, %v1982
  %v2871 = vpack.c.b16 %v1991, %v1983
  %v2872 = vpack.c.b16 %v1992, %v1984
  %v2873 = vpack.c.b16 %v1993, %v1985
  %v2874 = vpack.c.b16 %v1994, %v1986
  %v2875 = vpack.c.b16 %v1995, %v1987
  %v2876 = vpack.c.b16 %v1996, %v1988
  %v2877 = vpack.c.b16 %v2005, %v1997
  %v2878 = vpack.c.b16 %v2006, %v1998
  %v2879 = vpack.c.b16 %v2007, %v1999
  %v2880 = vpack.c.b16 %v2008, %v2000
  %v2881 = vpack.c.b16 %v2009, %v2001
  %v2882 = vpack.c.b16 %v2010, %v2002
  %v2883 = vpack.c.b16 %v2011, %v2003
  %v2884 = vpack.c.b16 %v2012, %v2004
  %v2885 = vpack.c.b16 %v2021, %v2013
  %v2886 = vpack.c.b16 %v2022, %v2014
  %v2887 = vpack.c.b16 %v2023, %v2015
  %v2888 = vpack.c.b16 %v2024, %v2016
  %v2889 = vpack.c.b16 %v2025, %v2017
  %v2890 = vpack.c.b16 %v2026, %v2018
  %v2891 = vpack.c.b16 %v2027, %v2019
  %v2892 = vpack.c.b16 %v2028, %v2020
  %v2893 = vpack.c.b16 %v2037, %v2029
  %v2894 = vpack.c.b16 %v2038, %v2030
  %v2895 = vpack.c.b16 %v2039, %v2031
  %v2896 = vpack.c.b16 %v2040, %v2032
  %v2897 = vpack.c.b16 %v2041, %v2033
  %v2898 = vpack.c.b16 %v2042, %v2034
  %v2899 = vpack.c.b16 %v2043, %v2035
  %v2900 = vpack.c.b16 %v2044, %v2036
  %v2901 = vpack.c.b16 %v2053, %v2045
  %v2902 = vpack.c.b16 %v2054, %v2046
  %v2903 = vpack.c.b16 %v2055, %v2047
  %v2904 = vpack.c.b16 %v2056, %v2048
  %v2905 = vpack.c.b16 %v2057, %v2049
  %v2906 = vpack.c.b16 %v2058, %v2050
  %v2907 = vpack.c.b16 %v2059, %v2051
  %v2908 = vpack.c.b16 %v2060, %v2052
  %v2909 = vpack.c.b16 %v2069, %v2061
  %v2910 = vpack.c.b16 %v2070, %v2062
  %v2911 = vpack.c.b16 %v2071, %v2063
  %v2912 = vpack.c.b16 %v2072, %v2064
  %v2913 = vpack.c.b16 %v2073, %v2065
  %v2914 = vpack.c.b16 %v2074, %v2066
  %v2915 = vpack.c.b16 %v2075, %v2067
  %v2916 = vpack.c.b16 %v2076, %v2068
  %v2917 = vpack.c.b16 %v2085, %v2077
  %v2918 = vpack.c.b16 %v2086, %v2078
  %v2919 = vpack.c.b16 %v2087, %v2079
  %v2920 = vpack.c.b16 %v2088, %v2080
  %v2921 = vpack.c.b16 %v2089, %v2081
  %v2922 = vpack.c.b16 %v2090, %v2082
  %v2923 = vpack.c.b16 %v2091, %v2083
  %v2924 = vpack.c.b16 %v2092, %v2084
  %v2925 = vpack.c.b16 %v2101, %v2093
  %v2926 = vpack.c.b16 %v2102, %v2094
  %v2927 = vpack.c.b16 %v2103, %v2095
  %v2928 = vpack.c.b16 %v2104, %v2096
  %v2929 = vpack.c.b16 %v2105, %v2097
  %v2930 = vpack.c.b16 %v2106, %v2098
  %v2931 = vpack.c.b16 %v2107, %v2099
  %v2932 = vpack.c.b16 %v2108, %v2100
  %v2933 = vpack.c.b16 %v2117, %v2109
  %v2934 = vpack.c.b16 %v2118, %v2110
  %v2935 = vpack.c.b16 %v2119, %v2111
  %v2936 = vpack.c.b16 %v2120, %v2112
  %v2937 = vpack.c.b16 %v2121, %v2113
  %v2938 = vpack.c.b16 %v2122, %v2114
  %v2939 = vpack.c.b16 %v2123, %v2115
  %v2940 = vpack.c.b16 %v2124, %v2116
  %v2941 = vpack.c.b16 %v2133, %v2125
  %v2942 = vpack.c.b16 %v2134, %v2126
  %v2943 = vpack.c.b16 %v2135, %v2127
  %v2944 = vpack.c.b16 %v2136, %v2128
  %v2945 = vpack.c.b16 %v2137, %v2129
  %v2946 = vpack.c.b16 %v2138, %v2130
  %v2947 = vpack.c.b16 %v2139, %v2131
  %v2948 = vpack.c.b16 %v2140, %v2132
  %v2949 = vpack.c.b16 %v2149, %v2141
  %v2950 = vpack.c.b16 %v2150, %v2142
  %v2951 = vpack.c.b16 %v2151, %v2143
  %v2952 = vpack.c.b16 %v2152, %v2144
  %v2953 = vpack.c.b16 %v2153, %v2145
  %v2954 = vpack.c.b16 %v2154, %v2146
  %v2955 = vpack.c.b16 %v2155, %v2147
  %v2956 = vpack.c.b16 %v2156, %v2148
  %v2957 = vpack.c.b16 %v2165, %v2157
  %v2958 = vpack.c.b16 %v2166, %v2158
  %v2959 = vpack.c.b16 %v2167, %v2159
  %v2960 = vpack.c.b16 %v2168, %v2160
  %v2961 = vpack.c.b16 %v2169, %v2161
  %v2962 = vpack.c.b16 %v2170, %v2162
  %v2963 = vpack.c.b16 %v2171, %v2163
  %v2964 = vpack.c.b16 %v2172, %v2164
  %v2965 = vpack.c.b16 %v2181, %v2173
  %v2966 = vpack.c.b16 %v2182, %v2174
  %v2967 = vpack.c.b16 %v2183, %v2175
  %v2968 = vpack.c.b16 %v2184, %v2176
  %v2969 = vpack.c.b16 %v2185, %v2177
  %v2970 = vpack.c.b16 %v2186, %v2178
  %v2971 = vpack.c.b16 %v2187, %v2179
  %v2972 = vpack.c.b16 %v2188, %v2180
  %v2973 = vpack.c.b16 %v2197, %v2189
  %v2974 = vpack.c.b16 %v2198, %v2190
  %v2975 = vpack.c.b16 %v2199, %v2191
  %v2976 = vpack.c.b16 %v2200, %v2192
  %v2977 = vpack.c.b16 %v2201, %v2193
  %v2978 = vpack.c.b16 %v2202, %v2194
  %v2979 = vpack.c.b16 %v2203, %v2195
  %v2980 = vpack.c.b16 %v2204, %v2196
  %v2981 = vpack.c.b16 %v2213, %v2205
  %v2982 = vpack.c.b16 %v2214, %v2206
  %v2983 = vpack.c.b16 %v2215, %v2207
  %v2984 = vpack.c.b16 %v2216, %v2208
  %v2985 = vpack.c.b16 %v2217, %v2209
  %v2986 = vpack.c.b16 %v2218, %v2210
  %v2987 = vpack.c.b16 %v2219, %v2211
  %v2988 = vpack.c.b16 %v2220, %v2212
  %v2989 = vpack.c.b16 %v2229, %v2221
  %v2990 = vpack.c.b16 %v2230, %v2222
  %v2991 = vpack.c.b16 %v2231, %v2223
  %v2992 = vpack.c.b16 %v2232, %v2224
  %v2993 = vpack.c.b16 %v2233, %v2225
  %v2994 = vpack.c.b16 %v2234, %v2226
  %v2995 = vpack.c.b16 %v2235, %v2227
  %v2996 = vpack.c.b16 %v2236, %v2228
  %v2997 = vpack.c.b16 %v2245, %v2237
  %v2998 = vpack.c.b16 %v2246, %v2238
  %v2999 = vpack.c.b16 %v2247, %v2239
  %v3000 = vpack.c.b16 %v2248, %v2240
  %v3001 = vpack.c.b16 %v2249, %v2241
  %v3002 = vpack.c.b16 %v2250, %v2242
  %v3003 = vpack.c.b16 %v2251, %v2243
  %v3004 = vpack.c.b16 %v2252, %v2244
  %v3005 = vpack.c.b16 %v2261, %v2253
  %v3006 = vpack.c.b16 %v2262, %v2254
  %v3007 = vpack.c.b16 %v2263, %v2255
  %v3008 = vpack.c.b16 %v2264, %v2256
  %v3009 = vpack.c.b16 %v2265, %v2257
  %v3010 = vpack.c.b16 %v2266, %v2258
  %v3011 = vpack.c.b16 %v2267, %v2259
  %v3012 = vpack.c.b16 %v2268, %v2260
  %v3013 = vpack.c.b16 %v2277, %v2269
  %v3014 = vpack.c.b16 %v2278, %v2270
  %v3015 = vpack.c.b16 %v2279, %v2271
  %v3016 = vpack.c.b16 %v2280, %v2272
  %v3017 = vpack.c.b16 %v2281, %v2273
  %v3018 = vpack.c.b16 %v2282, %v2274
  %v3019 = vpack.c.b16 %v2283, %v2275
  %v3020 = vpack.c.b16 %v2284, %v2276
  %v3021 = vpack.c.b16 %v2293, %v2285
  %v3022 = vpack.c.b16 %v2294, %v2286
  %v3023 = vpack.c.b16 %v2295, %v2287
  %v3024 = vpack.c.b16 %v2296, %v2288
  %v3025 = vpack.c.b16 %v2297, %v2289
  %v3026 = vpack.c.b16 %v2298, %v2290
  %v3027 = vpack.c.b16 %v2299, %v2291
  %v3028 = vpack.c.b16 %v2300, %v2292
  %v3029 = vpack.c.b16 %v2309, %v2301
  %v3030 = vpack.c.b16 %v2310, %v2302
  %v3031 = vpack.c.b16 %v2311, %v2303
  %v3032 = vpack.c.b16 %v2312, %v2304
  %v3033 = vpack.c.b16 %v2313, %v2305
  %v3034 = vpack.c.b16 %v2314, %v2306
  %v3035 = vpack.c.b16 %v2315, %v2307
  %v3036 = vpack.c.b16 %v2316, %v2308
  %v3037 = vpack.c.b16 %v2325, %v2317
  %v3038 = vpack.c.b16 %v2326, %v2318
  %v3039 = vpack.c.b16 %v2327, %v2319
  %v3040 = vpack.c.b16 %v2328, %v2320
  %v3041 = vpack.c.b16 %v2329, %v2321
  %v3042 = vpack.c.b16 %v2330, %v2322
  %v3043 = vpack.c.b16 %v2331, %v2323
  %v3044 = vpack.c.b16 %v2332, %v2324
  %v3045 = vpack.c.b16 %v2341, %v2333
  %v3046 = vpack.c.b16 %v2342, %v2334
  %v3047 = vpack.c.b16 %v2343, %v2335
  %v3048 = vpack.c.b16 %v2344, %v2336
  %v3049 = vpack.c.b16 %v2345, %v2337
  %v3050 = vpack.c.b16 %v2346, %v2338
  %v3051 = vpack.c.b16 %v2347, %v2339
  %v3052 = vpack.c.b16 %v2348, %v2340
  %v3053 = vpack.c.b16 %v2357, %v2349
  %v3054 = vpack.c.b16 %v2358, %v2350
  %v3055 = vpack.c.b16 %v2359, %v2351
  %v3056 = vpack.c.b16 %v2360, %v2352
  %v3057 = vpack.c.b16 %v2361, %v2353
  %v3058 = vpack.c.b16 %v2362, %v2354
  %v3059 = vpack.c.b16 %v2363, %v2355
  %v3060 = vpack.c.b16 %v2364, %v2356
  %v3061 = vpack.c.b16 %v2373, %v2365
  %v3062 = vpack.c.b16 %v2374, %v2366
  %v3063 = vpack.c.b16 %v2375, %v2367
  %v3064 = vpack.c.b16 %v2376, %v2368
  %v3065 = vpack.c.b16 %v2377, %v2369
  %v3066 = vpack.c.b16 %v2378, %v2370
  %v3067 = vpack.c.b16 %v2379, %v2371
  %v3068 = vpack.c.b16 %v2380, %v2372
  %v3069 = vpack.c.b16 %v2389, %v2381
  %v3070 = vpack.c.b16 %v2390, %v2382
  %v3071 = vpack.c.b16 %v2391, %v2383
  %v3072 = vpack.c.b16 %v2392, %v2384
  %v3073 = vpack.c.b16 %v2393, %v2385
  %v3074 = vpack.c.b16 %v2394, %v2386
  %v3075 = vpack.c.b16 %v2395, %v2387
  %v3076 = vpack.c.b16 %v2396, %v2388
  %v3077 = vpack.c.b16 %v2405, %v2397
  %v3078 = vpack.c.b16 %v2406, %v2398
  %v3079 = vpack.c.b16 %v2407, %v2399
  %v3080 = vpack.c.b16 %v2408, %v2400
  %v3081 = vpack.c.b16 %v2409, %v2401
  %v3082 = vpack.c.b16 %v2410, %v2402
  %v3083 = vpack.c.b16 %v2411, %v2403
  %v3084 = vpack.c.b16 %v2412, %v2404
  %v3085 = vpack.c.b16 %v2421, %v2413
  %v3086 = vpack.c.b16 %v2422, %v2414
  %v3087 = vpack.c.b16 %v2423, %v2415
  %v3088 = vpack.c.b16 %v2424, %v2416
  %v3089 = vpack.c.b16 %v2425, %v2417
  %v3090 = vpack.c.b16 %v2426, %v2418
  %v3091 = vpack.c.b16 %v2427, %v2419
  %v3092 = vpack.c.b16 %v2428, %v2420
  %v3093 = vpack.c.b16 %v2437, %v2429
  %v3094 = vpack.c.b16 %v2438, %v2430
  %v3095 = vpack.c.b16 %v2439, %v2431
  %v3096 = vpack.c.b16 %v2440, %v2432
  %v3097 = vpack.c.b16 %v2441, %v2433
  %v3098 = vpack.c.b16 %v2442, %v2434
  %v3099 = vpack.c.b16 %v2443, %v2435
  %v3100 = vpack.c.b16 %v2444, %v2436
  %v3101 = vpack.c.b16 %v2453, %v2445
  %v3102 = vpack.c.b16 %v2454, %v2446
  %v3103 = vpack.c.b16 %v2455, %v2447
  %v3104 = vpack.c.b16 %v2456, %v2448
  %v3105 = vpack.c.b16 %v2457, %v2449
  %v3106 = vpack.c.b16 %v2458, %v2450
  %v3107 = vpack.c.b16 %v2459, %v2451
  %v3108 = vpack.c.b16 %v2460, %v2452
  %v3109 = vpack.c.b16 %v2469, %v2461
  %v3110 = vpack.c.b16 %v2470, %v2462
  %v3111 = vpack.c.b16 %v2471, %v2463
  %v3112 = vpack.c.b16 %v2472, %v2464
  %v3113 = vpack.c.b16 %v2473, %v2465
  %v3114 = vpack.c.b16 %v2474, %v2466
  %v3115 = vpack.c.b16 %v2475, %v2467
  %v3116 = vpack.c.b16 %v2476, %v2468
  %v3117 = vpack.c.b16 %v2485, %v2477
  %v3118 = vpack.c.b16 %v2486, %v2478
  %v3119 = vpack.c.b16 %v2487, %v2479
  %v3120 = vpack.c.b16 %v2488, %v2480
  %v3121 = vpack.c.b16 %v2489, %v2481
  %v3122 = vpack.c.b16 %v2490, %v2482
  %v3123 = vpack.c.b16 %v2491, %v2483
  %v3124 = vpack.c.b16 %v2492, %v2484
  %v3125 = vpack.c.b16 %v2501, %v2493
  %v3126 = vpack.c.b16 %v2502, %v2494
  %v3127 = vpack.c.b16 %v2503, %v2495
  %v3128 = vpack.c.b16 %v2504, %v2496
  %v3129 = vpack.c.b16 %v2505, %v2497
  %v3130 = vpack.c.b16 %v2506, %v2498
  %v3131 = vpack.c.b16 %v2507, %v2499
  %v3132 = vpack.c.b16 %v2508, %v2500
  %v3133 = vpack.c.b16 %v2517, %v2509
  %v3134 = vpack.c.b16 %v2518, %v2510
  %v3135 = vpack.c.b16 %v2519, %v2511
  %v3136 = vpack.c.b16 %v2520, %v2512
  %v3137 = vpack.c.b16 %v2521, %v2513
  %v3138 = vpack.c.b16 %v2522, %v2514
  %v3139 = vpack.c.b16 %v2523, %v2515
  %v3140 = vpack.c.b16 %v2524, %v2516
  %v3141 = vpack.c.b16 %v2533, %v2525
  %v3142 = vpack.c.b16 %v2534, %v2526
  %v3143 = vpack.c.b16 %v2535, %v2527
  %v3144 = vpack.c.b16 %v2536, %v2528
  %v3145 = vpack.c.b16 %v2537, %v2529
  %v3146 = vpack.c.b16 %v2538, %v2530
  %v3147 = vpack.c.b16 %v2539, %v2531
  %v3148 = vpack.c.b16 %v2540, %v2532
  %v3149 = vpack.c.b16 %v2549, %v2541
  %v3150 = vpack.c.b16 %v2550, %v2542
  %v3151 = vpack.c.b16 %v2551, %v2543
  %v3152 = vpack.c.b16 %v2552, %v2544
  %v3153 = vpack.c.b16 %v2553, %v2545
  %v3154 = vpack.c.b16 %v2554, %v2546
  %v3155 = vpack.c.b16 %v2555, %v2547
  %v3156 = vpack.c.b16 %v2556, %v2548
  %v3157 = vpack.c.b16 %v2565, %v2557
  %v3158 = vpack.c.b16 %v2566, %v2558
  %v3159 = vpack.c.b16 %v2567, %v2559
  %v3160 = vpack.c.b16 %v2568, %v2560
  %v3161 = vpack.c.b16 %v2569, %v2561
  %v3162 = vpack.c.b16 %v2570, %v2562
  %v3163 = vpack.c.b16 %v2571, %v2563
  %v3164 = vpack.c.b16 %v2572, %v2564
  %v3165 = vpack.c.b16 %v2581, %v2573
  %v3166 = vpack.c.b16 %v2582, %v2574
  %v3167 = vpack.c.b16 %v2583, %v2575
  %v3168 = vpack.c.b16 %v2584, %v2576
  %v3169 = vpack.c.b16 %v2585, %v2577
  %v3170 = vpack.c.b16 %v2586, %v2578
  %v3171 = vpack.c.b16 %v2587, %v2579
  %v3172 = vpack.c.b16 %v2588, %v2580
  %v3173 = vpack.c.b16 %v2597, %v2589
  %v3174 = vpack.c.b16 %v2598, %v2590
  %v3175 = vpack.c.b16 %v2599, %v2591
  %v3176 = vpack.c.b16 %v2600, %v2592
  %v3177 = vpack.c.b16 %v2601, %v2593
  %v3178 = vpack.c.b16 %v2602, %v2594
  %v3179 = vpack.c.b16 %v2603, %v2595
  %v3180 = vpack.c.b16 %v2604, %v2596
  %v3181 = vpack.c.b16 %v2613, %v2605
  %v3182 = vpack.c.b16 %v2614, %v2606
  %v3183 = vpack.c.b16 %v2615, %v2607
  %v3184 = vpack.c.b16 %v2616, %v2608
  %v3185 = vpack.c.b16 %v2617, %v2609
  %v3186 = vpack.c.b16 %v2618, %v2610
  %v3187 = vpack.c.b16 %v2619, %v2611
  %v3188 = vpack.c.b16 %v2620, %v2612
  %v3189 = vpack.c.b16 %v2629, %v2621
  %v3190 = vpack.c.b16 %v2630, %v2622
  %v3191 = vpack.c.b16 %v2631, %v2623
  %v3192 = vpack.c.b16 %v2632, %v2624
  %v3193 = vpack.c.b16 %v2633, %v2625
  %v3194 = vpack.c.b16 %v2634, %v2626
  %v3195 = vpack.c.b16 %v2635, %v2627
  %v3196 = vpack.c.b16 %v2636, %v2628
  %v3197 = vpack.c.b16 %v2645, %v2637
  %v3198 = vpack.c.b16 %v2646, %v2638
  %v3199 = vpack.c.b16 %v2647, %v2639
  %v3200 = vpack.c.b16 %v2648, %v2640
  %v3201 = vpack.c.b16 %v2649, %v2641
  %v3202 = vpack.c.b16 %v2650, %v2642
  %v3203 = vpack.c.b16 %v2651, %v2643
  %v3204 = vpack.c.b16 %v2652, %v2644
  %v3205 = vpack.c.b16 %v2661, %v2653
  %v3206 = vpack.c.b16 %v2662, %v2654
  %v3207 = vpack.c.b16 %v2663, %v2655
  %v3208 = vpack.c.b16 %v2664, %v2656
  %v3209 = vpack.c.b16 %v2665, %v2657
  %v3210 = vpack.c.b16 %v2666, %v2658
  %v3211 = vpack.c.b16 %v2667, %v2659
  %v3212 = vpack.c.b16 %v2668, %v2660
  %v3213 = vpack.c.b16 %v2677, %v2669
  %v3214 = vpack.c.b16 %v2678, %v2670
  %v3215 = vpack.c.b16 %v2679, %v2671
  %v3216 = vpack.c.b16 %v2680, %v2672
  %v3217 = vpack.c.b16 %v2681, %v2673
  %v3218 = vpack.c.b16 %v2682, %v2674
  %v3219 = vpack.c.b16 %v2683, %v2675
  %v3220 = vpack.c.b16 %v2684, %v2676
  %v3221 = vpack.c.b16 %v2693, %v2685
  %v3222 = vpack.c.b16 %v2694, %v2686
  %v3223 = vpack.c.b16 %v2695, %v2687
  %v3224 = vpack.c.b16 %v2696, %v2688
  %v3225 = vpack.c.b16 %v2697, %v2689
  %v3226 = vpack.c.b16 %v2698, %v2690
  %v3227 = vpack.c.b16 %v2699, %v2691
  %v3228 = vpack.c.b16 %v2700, %v2692
  %v3229 = vpack.c.b16 %v2709, %v2701
  %v3230 = vpack.c.b16 %v2710, %v2702
  %v3231 = vpack.c.b16 %v2711, %v2703
  %v3232 = vpack.c.b16 %v2712, %v2704
  %v3233 = vpack.c.b16 %v2713, %v2705
  %v3234 = vpack.c.b16 %v2714, %v2706
  %v3235 = vpack.c.b16 %v2715, %v2707
  %v3236 = vpack.c.b16 %v2716, %v2708
  %v3237 = vpack.c.b16 %v2725, %v2717
  %v3238 = vpack.c.b16 %v2726, %v2718
  %v3239 = vpack.c.b16 %v2727, %v2719
  %v3240 = vpack.c.b16 %v2728, %v2720
  %v3241 = vpack.c.b16 %v2729, %v2721
  %v3242 = vpack.c.b16 %v2730, %v2722
  %v3243 = vpack.c.b16 %v2731, %v2723
  %v3244 = vpack.c.b16 %v2732, %v2724
  %3757 = vmatprep.subr.bf16.mxu0 %v2790
  %3758 = vmatpush1.bf16.msra.mxu0 %v2789
  %3759 = vmatprep.subr.bf16.mxu0 %v2782
  %3760 = vmatpush1.bf16.msra.mxu0 %v2781
  %3761 = vmatprep.subr.bf16.mxu0 %v2774
  %3762 = vmatpush1.bf16.msra.mxu0 %v2773
  %3763 = vmatprep.subr.bf16.mxu0 %v2766
  %3764 = vmatpush1.bf16.msra.mxu0 %v2765
  %3765 = vmatprep.subr.bf16.mxu0 %v2758
  %3766 = vmatpush1.bf16.msra.mxu0 %v2757
  %3767 = vmatprep.subr.bf16.mxu0 %v2750
  %3768 = vmatpush1.bf16.msra.mxu0 %v2749
  %3769 = vmatprep.subr.bf16.mxu0 %v2742
  %3770 = vmatpush1.bf16.msra.mxu0 %v2741
  %3771 = vmatprep.subr.bf16.mxu0 %v2734
  %3772 = vmatpush1.bf16.msra.mxu0 %v2733
  %3773 = vmatprep.subr.bf16.mxu0 %v2854
  %3774 = vmatpush2.bf16.msra.mxu0 %v2853
  %3775 = vmatprep.subr.bf16.mxu0 %v2846
  %3776 = vmatpush2.bf16.msra.mxu0 %v2845
  %3777 = vmatprep.subr.bf16.mxu0 %v2838
  %3778 = vmatpush2.bf16.msra.mxu0 %v2837
  %3779 = vmatprep.subr.bf16.mxu0 %v2830
  %3780 = vmatpush2.bf16.msra.mxu0 %v2829
  %3781 = vmatprep.subr.bf16.mxu0 %v2822
  %3782 = vmatpush2.bf16.msra.mxu0 %v2821
  %3783 = vmatprep.subr.bf16.mxu0 %v2814
  %3784 = vmatpush2.bf16.msra.mxu0 %v2813
  %3785 = vmatprep.subr.bf16.mxu0 %v2806
  %3786 = vmatpush2.bf16.msra.mxu0 %v2805
  %3787 = vmatprep.subr.bf16.mxu0 %v2798
  %3788 = vmatpush2.bf16.msra.mxu0 %v2797
  %3789 = vmatprep.mubr.bf16.mxu0 %v636
  %3790 = vmatmul.mubr.bf16.gmra.mxu0 %v635
  %v3791 = vpop.f32.mrf.mxu0
  %v3792 = vadd.f32 %v1160, %v3791
  %v3793 = vpop.f32.mrf.mxu0
  %v3794 = vadd.f32 %v1164, %v3793
  %v3795 = vpop.f32.mrf.mxu0
  %v3796 = vpop.f32.mrf.mxu0
  %3797 = vdwg.mxu0
  %3798 = vmatprep.subr.bf16.mxu0 %v2918
  %3799 = vmatpush1.bf16.msra.mxu0 %v2917
  %3800 = vmatprep.subr.bf16.mxu0 %v2910
  %3801 = vmatpush1.bf16.msra.mxu0 %v2909
  %3802 = vmatprep.subr.bf16.mxu0 %v2902
  %3803 = vmatpush1.bf16.msra.mxu0 %v2901
  %3804 = vmatprep.subr.bf16.mxu0 %v2894
  %3805 = vmatpush1.bf16.msra.mxu0 %v2893
  %3806 = vmatprep.subr.bf16.mxu0 %v2886
  %3807 = vmatpush1.bf16.msra.mxu0 %v2885
  %3808 = vmatprep.subr.bf16.mxu0 %v2878
  %3809 = vmatpush1.bf16.msra.mxu0 %v2877
  %3810 = vmatprep.subr.bf16.mxu0 %v2870
  %3811 = vmatpush1.bf16.msra.mxu0 %v2869
  %3812 = vmatprep.subr.bf16.mxu0 %v2862
  %3813 = vmatpush1.bf16.msra.mxu0 %v2861
  %3814 = vmatprep.subr.bf16.mxu0 %v2982
  %3815 = vmatpush2.bf16.msra.mxu0 %v2981
  %3816 = vmatprep.subr.bf16.mxu0 %v2974
  %3817 = vmatpush2.bf16.msra.mxu0 %v2973
  %3818 = vmatprep.subr.bf16.mxu0 %v2966
  %3819 = vmatpush2.bf16.msra.mxu0 %v2965
  %3820 = vmatprep.subr.bf16.mxu0 %v2958
  %3821 = vmatpush2.bf16.msra.mxu0 %v2957
  %3822 = vmatprep.subr.bf16.mxu0 %v2950
  %3823 = vmatpush2.bf16.msra.mxu0 %v2949
  %3824 = vmatprep.subr.bf16.mxu0 %v2942
  %3825 = vmatpush2.bf16.msra.mxu0 %v2941
  %3826 = vmatprep.subr.bf16.mxu0 %v2934
  %3827 = vmatpush2.bf16.msra.mxu0 %v2933
  %3828 = vmatprep.subr.bf16.mxu0 %v2926
  %3829 = vmatpush2.bf16.msra.mxu0 %v2925
  %3830 = vmatprep.mubr.bf16.mxu0 %v638
  %3831 = vmatmul.mubr.bf16.gmra.mxu0 %v637
  %v3832 = vpop.f32.mrf.mxu0
  %v3833 = vadd.f32 %v3792, %v3832
  %v3834 = vpop.f32.mrf.mxu0
  %v3835 = vadd.f32 %v3794, %v3834
  %v3836 = vpop.f32.mrf.mxu0
  %v3837 = vpop.f32.mrf.mxu0
  %3838 = vdwg.mxu0
  %3839 = vmatprep.subr.bf16.mxu0 %v3046
  %3840 = vmatpush1.bf16.msra.mxu0 %v3045
  %3841 = vmatprep.subr.bf16.mxu0 %v3038
  %3842 = vmatpush1.bf16.msra.mxu0 %v3037
  %3843 = vmatprep.subr.bf16.mxu0 %v3030
  %3844 = vmatpush1.bf16.msra.mxu0 %v3029
  %3845 = vmatprep.subr.bf16.mxu0 %v3022
  %3846 = vmatpush1.bf16.msra.mxu0 %v3021
  %3847 = vmatprep.subr.bf16.mxu0 %v3014
  %3848 = vmatpush1.bf16.msra.mxu0 %v3013
  %3849 = vmatprep.subr.bf16.mxu0 %v3006
  %3850 = vmatpush1.bf16.msra.mxu0 %v3005
  %3851 = vmatprep.subr.bf16.mxu0 %v2998
  %3852 = vmatpush1.bf16.msra.mxu0 %v2997
  %3853 = vmatprep.subr.bf16.mxu0 %v2990
  %3854 = vmatpush1.bf16.msra.mxu0 %v2989
  %3855 = vmatprep.subr.bf16.mxu0 %v3110
  %3856 = vmatpush2.bf16.msra.mxu0 %v3109
  %3857 = vmatprep.subr.bf16.mxu0 %v3102
  %3858 = vmatpush2.bf16.msra.mxu0 %v3101
  %3859 = vmatprep.subr.bf16.mxu0 %v3094
  %3860 = vmatpush2.bf16.msra.mxu0 %v3093
  %3861 = vmatprep.subr.bf16.mxu0 %v3086
  %3862 = vmatpush2.bf16.msra.mxu0 %v3085
  %3863 = vmatprep.subr.bf16.mxu0 %v3078
  %3864 = vmatpush2.bf16.msra.mxu0 %v3077
  %3865 = vmatprep.subr.bf16.mxu0 %v3070
  %3866 = vmatpush2.bf16.msra.mxu0 %v3069
  %3867 = vmatprep.subr.bf16.mxu0 %v3062
  %3868 = vmatpush2.bf16.msra.mxu0 %v3061
  %3869 = vmatprep.subr.bf16.mxu0 %v3054
  %3870 = vmatpush2.bf16.msra.mxu0 %v3053
  %3871 = vmatprep.mubr.bf16.mxu0 %v640
  %3872 = vmatmul.mubr.bf16.gmra.mxu0 %v639
  %v3873 = vpop.f32.mrf.mxu0
  %v3874 = vadd.f32 %v3833, %v3873
  %v3875 = vpop.f32.mrf.mxu0
  %v3876 = vadd.f32 %v3835, %v3875
  %v3877 = vpop.f32.mrf.mxu0
  %v3878 = vpop.f32.mrf.mxu0
  %3879 = vdwg.mxu0
  %3880 = vmatprep.subr.bf16.mxu0 %v3174
  %3881 = vmatpush1.bf16.msra.mxu0 %v3173
  %3882 = vmatprep.subr.bf16.mxu0 %v3166
  %3883 = vmatpush1.bf16.msra.mxu0 %v3165
  %3884 = vmatprep.subr.bf16.mxu0 %v3158
  %3885 = vmatpush1.bf16.msra.mxu0 %v3157
  %3886 = vmatprep.subr.bf16.mxu0 %v3150
  %3887 = vmatpush1.bf16.msra.mxu0 %v3149
  %3888 = vmatprep.subr.bf16.mxu0 %v3142
  %3889 = vmatpush1.bf16.msra.mxu0 %v3141
  %3890 = vmatprep.subr.bf16.mxu0 %v3134
  %3891 = vmatpush1.bf16.msra.mxu0 %v3133
  %3892 = vmatprep.subr.bf16.mxu0 %v3126
  %3893 = vmatpush1.bf16.msra.mxu0 %v3125
  %3894 = vmatprep.subr.bf16.mxu0 %v3118
  %3895 = vmatpush1.bf16.msra.mxu0 %v3117
  %3896 = vmatprep.subr.bf16.mxu0 %v3238
  %3897 = vmatpush2.bf16.msra.mxu0 %v3237
  %3898 = vmatprep.subr.bf16.mxu0 %v3230
  %3899 = vmatpush2.bf16.msra.mxu0 %v3229
  %3900 = vmatprep.subr.bf16.mxu0 %v3222
  %3901 = vmatpush2.bf16.msra.mxu0 %v3221
  %3902 = vmatprep.subr.bf16.mxu0 %v3214
  %3903 = vmatpush2.bf16.msra.mxu0 %v3213
  %3904 = vmatprep.subr.bf16.mxu0 %v3206
  %3905 = vmatpush2.bf16.msra.mxu0 %v3205
  %3906 = vmatprep.subr.bf16.mxu0 %v3198
  %3907 = vmatpush2.bf16.msra.mxu0 %v3197
  %3908 = vmatprep.subr.bf16.mxu0 %v3190
  %3909 = vmatpush2.bf16.msra.mxu0 %v3189
  %3910 = vmatprep.subr.bf16.mxu0 %v3182
  %3911 = vmatpush2.bf16.msra.mxu0 %v3181
  %3912 = vmatprep.mubr.bf16.mxu0 %v642
  %3913 = vmatmul.mubr.bf16.gmra.mxu0 %v641
  %v3914 = vpop.f32.mrf.mxu0
  %v3915 = vadd.f32 %v3874, %v3914
  %v3916 = vpop.f32.mrf.mxu0
  %v3917 = vadd.f32 %v3876, %v3916
  %v3918 = vpop.f32.mrf.mxu0
  %v3919 = vpop.f32.mrf.mxu0
  %3920 = vdwg.mxu0
  %3921 = vmatprep.subr.bf16.mxu0 %v2792
  %3922 = vmatpush1.bf16.msra.mxu0 %v2791
  %3923 = vmatprep.subr.bf16.mxu0 %v2784
  %3924 = vmatpush1.bf16.msra.mxu0 %v2783
  %3925 = vmatprep.subr.bf16.mxu0 %v2776
  %3926 = vmatpush1.bf16.msra.mxu0 %v2775
  %3927 = vmatprep.subr.bf16.mxu0 %v2768
  %3928 = vmatpush1.bf16.msra.mxu0 %v2767
  %3929 = vmatprep.subr.bf16.mxu0 %v2760
  %3930 = vmatpush1.bf16.msra.mxu0 %v2759
  %3931 = vmatprep.subr.bf16.mxu0 %v2752
  %3932 = vmatpush1.bf16.msra.mxu0 %v2751
  %3933 = vmatprep.subr.bf16.mxu0 %v2744
  %3934 = vmatpush1.bf16.msra.mxu0 %v2743
  %3935 = vmatprep.subr.bf16.mxu0 %v2736
  %3936 = vmatpush1.bf16.msra.mxu0 %v2735
  %3937 = vmatprep.subr.bf16.mxu0 %v2856
  %3938 = vmatpush2.bf16.msra.mxu0 %v2855
  %3939 = vmatprep.subr.bf16.mxu0 %v2848
  %3940 = vmatpush2.bf16.msra.mxu0 %v2847
  %3941 = vmatprep.subr.bf16.mxu0 %v2840
  %3942 = vmatpush2.bf16.msra.mxu0 %v2839
  %3943 = vmatprep.subr.bf16.mxu0 %v2832
  %3944 = vmatpush2.bf16.msra.mxu0 %v2831
  %3945 = vmatprep.subr.bf16.mxu0 %v2824
  %3946 = vmatpush2.bf16.msra.mxu0 %v2823
  %3947 = vmatprep.subr.bf16.mxu0 %v2816
  %3948 = vmatpush2.bf16.msra.mxu0 %v2815
  %3949 = vmatprep.subr.bf16.mxu0 %v2808
  %3950 = vmatpush2.bf16.msra.mxu0 %v2807
  %3951 = vmatprep.subr.bf16.mxu0 %v2800
  %3952 = vmatpush2.bf16.msra.mxu0 %v2799
  %3953 = vmatprep.mubr.bf16.mxu0 %v636
  %3954 = vmatmul.mubr.bf16.gmra.mxu0 %v635
  %v3955 = vpop.f32.mrf.mxu0
  %v3956 = vadd.f32 %v1168, %v3955
  %v3957 = vpop.f32.mrf.mxu0
  %v3958 = vadd.f32 %v1172, %v3957
  %v3959 = vpop.f32.mrf.mxu0
  %v3960 = vpop.f32.mrf.mxu0
  %3961 = vdwg.mxu0
  %3962 = vmatprep.subr.bf16.mxu0 %v2920
  %3963 = vmatpush1.bf16.msra.mxu0 %v2919
  %3964 = vmatprep.subr.bf16.mxu0 %v2912
  %3965 = vmatpush1.bf16.msra.mxu0 %v2911
  %3966 = vmatprep.subr.bf16.mxu0 %v2904
  %3967 = vmatpush1.bf16.msra.mxu0 %v2903
  %3968 = vmatprep.subr.bf16.mxu0 %v2896
  %3969 = vmatpush1.bf16.msra.mxu0 %v2895
  %3970 = vmatprep.subr.bf16.mxu0 %v2888
  %3971 = vmatpush1.bf16.msra.mxu0 %v2887
  %3972 = vmatprep.subr.bf16.mxu0 %v2880
  %3973 = vmatpush1.bf16.msra.mxu0 %v2879
  %3974 = vmatprep.subr.bf16.mxu0 %v2872
  %3975 = vmatpush1.bf16.msra.mxu0 %v2871
  %3976 = vmatprep.subr.bf16.mxu0 %v2864
  %3977 = vmatpush1.bf16.msra.mxu0 %v2863
  %3978 = vmatprep.subr.bf16.mxu0 %v2984
  %3979 = vmatpush2.bf16.msra.mxu0 %v2983
  %3980 = vmatprep.subr.bf16.mxu0 %v2976
  %3981 = vmatpush2.bf16.msra.mxu0 %v2975
  %3982 = vmatprep.subr.bf16.mxu0 %v2968
  %3983 = vmatpush2.bf16.msra.mxu0 %v2967
  %3984 = vmatprep.subr.bf16.mxu0 %v2960
  %3985 = vmatpush2.bf16.msra.mxu0 %v2959
  %3986 = vmatprep.subr.bf16.mxu0 %v2952
  %3987 = vmatpush2.bf16.msra.mxu0 %v2951
  %3988 = vmatprep.subr.bf16.mxu0 %v2944
  %3989 = vmatpush2.bf16.msra.mxu0 %v2943
  %3990 = vmatprep.subr.bf16.mxu0 %v2936
  %3991 = vmatpush2.bf16.msra.mxu0 %v2935
  %3992 = vmatprep.subr.bf16.mxu0 %v2928
  %3993 = vmatpush2.bf16.msra.mxu0 %v2927
  %3994 = vmatprep.mubr.bf16.mxu0 %v638
  %3995 = vmatmul.mubr.bf16.gmra.mxu0 %v637
  %v3996 = vpop.f32.mrf.mxu0
  %v3997 = vadd.f32 %v3956, %v3996
  %v3998 = vpop.f32.mrf.mxu0
  %v3999 = vadd.f32 %v3958, %v3998
  %v4000 = vpop.f32.mrf.mxu0
  %v4001 = vpop.f32.mrf.mxu0
  %4002 = vdwg.mxu0
  %4003 = vmatprep.subr.bf16.mxu0 %v3048
  %4004 = vmatpush1.bf16.msra.mxu0 %v3047
  %4005 = vmatprep.subr.bf16.mxu0 %v3040
  %4006 = vmatpush1.bf16.msra.mxu0 %v3039
  %4007 = vmatprep.subr.bf16.mxu0 %v3032
  %4008 = vmatpush1.bf16.msra.mxu0 %v3031
  %4009 = vmatprep.subr.bf16.mxu0 %v3024
  %4010 = vmatpush1.bf16.msra.mxu0 %v3023
  %4011 = vmatprep.subr.bf16.mxu0 %v3016
  %4012 = vmatpush1.bf16.msra.mxu0 %v3015
  %4013 = vmatprep.subr.bf16.mxu0 %v3008
  %4014 = vmatpush1.bf16.msra.mxu0 %v3007
  %4015 = vmatprep.subr.bf16.mxu0 %v3000
  %4016 = vmatpush1.bf16.msra.mxu0 %v2999
  %4017 = vmatprep.subr.bf16.mxu0 %v2992
  %4018 = vmatpush1.bf16.msra.mxu0 %v2991
  %4019 = vmatprep.subr.bf16.mxu0 %v3112
  %4020 = vmatpush2.bf16.msra.mxu0 %v3111
  %4021 = vmatprep.subr.bf16.mxu0 %v3104
  %4022 = vmatpush2.bf16.msra.mxu0 %v3103
  %4023 = vmatprep.subr.bf16.mxu0 %v3096
  %4024 = vmatpush2.bf16.msra.mxu0 %v3095
  %4025 = vmatprep.subr.bf16.mxu0 %v3088
  %4026 = vmatpush2.bf16.msra.mxu0 %v3087
  %4027 = vmatprep.subr.bf16.mxu0 %v3080
  %4028 = vmatpush2.bf16.msra.mxu0 %v3079
  %4029 = vmatprep.subr.bf16.mxu0 %v3072
  %4030 = vmatpush2.bf16.msra.mxu0 %v3071
  %4031 = vmatprep.subr.bf16.mxu0 %v3064
  %4032 = vmatpush2.bf16.msra.mxu0 %v3063
  %4033 = vmatprep.subr.bf16.mxu0 %v3056
  %4034 = vmatpush2.bf16.msra.mxu0 %v3055
  %4035 = vmatprep.mubr.bf16.mxu0 %v640
  %4036 = vmatmul.mubr.bf16.gmra.mxu0 %v639
  %v4037 = vpop.f32.mrf.mxu0
  %v4038 = vadd.f32 %v3997, %v4037
  %v4039 = vpop.f32.mrf.mxu0
  %v4040 = vadd.f32 %v3999, %v4039
  %v4041 = vpop.f32.mrf.mxu0
  %v4042 = vpop.f32.mrf.mxu0
  %4043 = vdwg.mxu0
  %4044 = vmatprep.subr.bf16.mxu0 %v3176
  %4045 = vmatpush1.bf16.msra.mxu0 %v3175
  %4046 = vmatprep.subr.bf16.mxu0 %v3168
  %4047 = vmatpush1.bf16.msra.mxu0 %v3167
  %4048 = vmatprep.subr.bf16.mxu0 %v3160
  %4049 = vmatpush1.bf16.msra.mxu0 %v3159
  %4050 = vmatprep.subr.bf16.mxu0 %v3152
  %4051 = vmatpush1.bf16.msra.mxu0 %v3151
  %4052 = vmatprep.subr.bf16.mxu0 %v3144
  %4053 = vmatpush1.bf16.msra.mxu0 %v3143
  %4054 = vmatprep.subr.bf16.mxu0 %v3136
  %4055 = vmatpush1.bf16.msra.mxu0 %v3135
  %4056 = vmatprep.subr.bf16.mxu0 %v3128
  %4057 = vmatpush1.bf16.msra.mxu0 %v3127
  %4058 = vmatprep.subr.bf16.mxu0 %v3120
  %4059 = vmatpush1.bf16.msra.mxu0 %v3119
  %4060 = vmatprep.subr.bf16.mxu0 %v3240
  %4061 = vmatpush2.bf16.msra.mxu0 %v3239
  %4062 = vmatprep.subr.bf16.mxu0 %v3232
  %4063 = vmatpush2.bf16.msra.mxu0 %v3231
  %4064 = vmatprep.subr.bf16.mxu0 %v3224
  %4065 = vmatpush2.bf16.msra.mxu0 %v3223
  %4066 = vmatprep.subr.bf16.mxu0 %v3216
  %4067 = vmatpush2.bf16.msra.mxu0 %v3215
  %4068 = vmatprep.subr.bf16.mxu0 %v3208
  %4069 = vmatpush2.bf16.msra.mxu0 %v3207
  %4070 = vmatprep.subr.bf16.mxu0 %v3200
  %4071 = vmatpush2.bf16.msra.mxu0 %v3199
  %4072 = vmatprep.subr.bf16.mxu0 %v3192
  %4073 = vmatpush2.bf16.msra.mxu0 %v3191
  %4074 = vmatprep.subr.bf16.mxu0 %v3184
  %4075 = vmatpush2.bf16.msra.mxu0 %v3183
  %4076 = vmatprep.mubr.bf16.mxu0 %v642
  %4077 = vmatmul.mubr.bf16.gmra.mxu0 %v641
  %v4078 = vpop.f32.mrf.mxu0
  %v4079 = vadd.f32 %v4038, %v4078
  %v4080 = vpop.f32.mrf.mxu0
  %v4081 = vadd.f32 %v4040, %v4080
  %v4082 = vpop.f32.mrf.mxu0
  %v4083 = vpop.f32.mrf.mxu0
  %4084 = vdwg.mxu0
  %4085 = vmatprep.subr.bf16.mxu0 %v2794
  %4086 = vmatpush1.bf16.msra.mxu0 %v2793
  %4087 = vmatprep.subr.bf16.mxu0 %v2786
  %4088 = vmatpush1.bf16.msra.mxu0 %v2785
  %4089 = vmatprep.subr.bf16.mxu0 %v2778
  %4090 = vmatpush1.bf16.msra.mxu0 %v2777
  %4091 = vmatprep.subr.bf16.mxu0 %v2770
  %4092 = vmatpush1.bf16.msra.mxu0 %v2769
  %4093 = vmatprep.subr.bf16.mxu0 %v2762
  %4094 = vmatpush1.bf16.msra.mxu0 %v2761
  %4095 = vmatprep.subr.bf16.mxu0 %v2754
  %4096 = vmatpush1.bf16.msra.mxu0 %v2753
  %4097 = vmatprep.subr.bf16.mxu0 %v2746
  %4098 = vmatpush1.bf16.msra.mxu0 %v2745
  %4099 = vmatprep.subr.bf16.mxu0 %v2738
  %4100 = vmatpush1.bf16.msra.mxu0 %v2737
  %4101 = vmatprep.subr.bf16.mxu0 %v2858
  %4102 = vmatpush2.bf16.msra.mxu0 %v2857
  %4103 = vmatprep.subr.bf16.mxu0 %v2850
  %4104 = vmatpush2.bf16.msra.mxu0 %v2849
  %4105 = vmatprep.subr.bf16.mxu0 %v2842
  %4106 = vmatpush2.bf16.msra.mxu0 %v2841
  %4107 = vmatprep.subr.bf16.mxu0 %v2834
  %4108 = vmatpush2.bf16.msra.mxu0 %v2833
  %4109 = vmatprep.subr.bf16.mxu0 %v2826
  %4110 = vmatpush2.bf16.msra.mxu0 %v2825
  %4111 = vmatprep.subr.bf16.mxu0 %v2818
  %4112 = vmatpush2.bf16.msra.mxu0 %v2817
  %4113 = vmatprep.subr.bf16.mxu0 %v2810
  %4114 = vmatpush2.bf16.msra.mxu0 %v2809
  %4115 = vmatprep.subr.bf16.mxu0 %v2802
  %4116 = vmatpush2.bf16.msra.mxu0 %v2801
  %4117 = vmatprep.mubr.bf16.mxu0 %v636
  %4118 = vmatmul.mubr.bf16.gmra.mxu0 %v635
  %v4119 = vpop.f32.mrf.mxu0
  %v4120 = vadd.f32 %v1176, %v4119
  %v4121 = vpop.f32.mrf.mxu0
  %v4122 = vadd.f32 %v1180, %v4121
  %v4123 = vpop.f32.mrf.mxu0
  %v4124 = vpop.f32.mrf.mxu0
  %4125 = vdwg.mxu0
  %4126 = vmatprep.subr.bf16.mxu0 %v2922
  %4127 = vmatpush1.bf16.msra.mxu0 %v2921
  %4128 = vmatprep.subr.bf16.mxu0 %v2914
  %4129 = vmatpush1.bf16.msra.mxu0 %v2913
  %4130 = vmatprep.subr.bf16.mxu0 %v2906
  %4131 = vmatpush1.bf16.msra.mxu0 %v2905
  %4132 = vmatprep.subr.bf16.mxu0 %v2898
  %4133 = vmatpush1.bf16.msra.mxu0 %v2897
  %4134 = vmatprep.subr.bf16.mxu0 %v2890
  %4135 = vmatpush1.bf16.msra.mxu0 %v2889
  %4136 = vmatprep.subr.bf16.mxu0 %v2882
  %4137 = vmatpush1.bf16.msra.mxu0 %v2881
  %4138 = vmatprep.subr.bf16.mxu0 %v2874
  %4139 = vmatpush1.bf16.msra.mxu0 %v2873
  %4140 = vmatprep.subr.bf16.mxu0 %v2866
  %4141 = vmatpush1.bf16.msra.mxu0 %v2865
  %4142 = vmatprep.subr.bf16.mxu0 %v2986
  %4143 = vmatpush2.bf16.msra.mxu0 %v2985
  %4144 = vmatprep.subr.bf16.mxu0 %v2978
  %4145 = vmatpush2.bf16.msra.mxu0 %v2977
  %4146 = vmatprep.subr.bf16.mxu0 %v2970
  %4147 = vmatpush2.bf16.msra.mxu0 %v2969
  %4148 = vmatprep.subr.bf16.mxu0 %v2962
  %4149 = vmatpush2.bf16.msra.mxu0 %v2961
  %4150 = vmatprep.subr.bf16.mxu0 %v2954
  %4151 = vmatpush2.bf16.msra.mxu0 %v2953
  %4152 = vmatprep.subr.bf16.mxu0 %v2946
  %4153 = vmatpush2.bf16.msra.mxu0 %v2945
  %4154 = vmatprep.subr.bf16.mxu0 %v2938
  %4155 = vmatpush2.bf16.msra.mxu0 %v2937
  %4156 = vmatprep.subr.bf16.mxu0 %v2930
  %4157 = vmatpush2.bf16.msra.mxu0 %v2929
  %4158 = vmatprep.mubr.bf16.mxu0 %v638
  %4159 = vmatmul.mubr.bf16.gmra.mxu0 %v637
  %v4160 = vpop.f32.mrf.mxu0
  %v4161 = vadd.f32 %v4120, %v4160
  %v4162 = vpop.f32.mrf.mxu0
  %v4163 = vadd.f32 %v4122, %v4162
  %v4164 = vpop.f32.mrf.mxu0
  %v4165 = vpop.f32.mrf.mxu0
  %4166 = vdwg.mxu0
  %4167 = vmatprep.subr.bf16.mxu0 %v3050
  %4168 = vmatpush1.bf16.msra.mxu0 %v3049
  %4169 = vmatprep.subr.bf16.mxu0 %v3042
  %4170 = vmatpush1.bf16.msra.mxu0 %v3041
  %4171 = vmatprep.subr.bf16.mxu0 %v3034
  %4172 = vmatpush1.bf16.msra.mxu0 %v3033
  %4173 = vmatprep.subr.bf16.mxu0 %v3026
  %4174 = vmatpush1.bf16.msra.mxu0 %v3025
  %4175 = vmatprep.subr.bf16.mxu0 %v3018
  %4176 = vmatpush1.bf16.msra.mxu0 %v3017
  %4177 = vmatprep.subr.bf16.mxu0 %v3010
  %4178 = vmatpush1.bf16.msra.mxu0 %v3009
  %4179 = vmatprep.subr.bf16.mxu0 %v3002
  %4180 = vmatpush1.bf16.msra.mxu0 %v3001
  %4181 = vmatprep.subr.bf16.mxu0 %v2994
  %4182 = vmatpush1.bf16.msra.mxu0 %v2993
  %4183 = vmatprep.subr.bf16.mxu0 %v3114
  %4184 = vmatpush2.bf16.msra.mxu0 %v3113
  %4185 = vmatprep.subr.bf16.mxu0 %v3106
  %4186 = vmatpush2.bf16.msra.mxu0 %v3105
  %4187 = vmatprep.subr.bf16.mxu0 %v3098
  %4188 = vmatpush2.bf16.msra.mxu0 %v3097
  %4189 = vmatprep.subr.bf16.mxu0 %v3090
  %4190 = vmatpush2.bf16.msra.mxu0 %v3089
  %4191 = vmatprep.subr.bf16.mxu0 %v3082
  %4192 = vmatpush2.bf16.msra.mxu0 %v3081
  %4193 = vmatprep.subr.bf16.mxu0 %v3074
  %4194 = vmatpush2.bf16.msra.mxu0 %v3073
  %4195 = vmatprep.subr.bf16.mxu0 %v3066
  %4196 = vmatpush2.bf16.msra.mxu0 %v3065
  %4197 = vmatprep.subr.bf16.mxu0 %v3058
  %4198 = vmatpush2.bf16.msra.mxu0 %v3057
  %4199 = vmatprep.mubr.bf16.mxu0 %v640
  %4200 = vmatmul.mubr.bf16.gmra.mxu0 %v639
  %v4201 = vpop.f32.mrf.mxu0
  %v4202 = vadd.f32 %v4161, %v4201
  %v4203 = vpop.f32.mrf.mxu0
  %v4204 = vadd.f32 %v4163, %v4203
  %v4205 = vpop.f32.mrf.mxu0
  %v4206 = vpop.f32.mrf.mxu0
  %4207 = vdwg.mxu0
  %4208 = vmatprep.subr.bf16.mxu0 %v3178
  %4209 = vmatpush1.bf16.msra.mxu0 %v3177
  %4210 = vmatprep.subr.bf16.mxu0 %v3170
  %4211 = vmatpush1.bf16.msra.mxu0 %v3169
  %4212 = vmatprep.subr.bf16.mxu0 %v3162
  %4213 = vmatpush1.bf16.msra.mxu0 %v3161
  %4214 = vmatprep.subr.bf16.mxu0 %v3154
  %4215 = vmatpush1.bf16.msra.mxu0 %v3153
  %4216 = vmatprep.subr.bf16.mxu0 %v3146
  %4217 = vmatpush1.bf16.msra.mxu0 %v3145
  %4218 = vmatprep.subr.bf16.mxu0 %v3138
  %4219 = vmatpush1.bf16.msra.mxu0 %v3137
  %4220 = vmatprep.subr.bf16.mxu0 %v3130
  %4221 = vmatpush1.bf16.msra.mxu0 %v3129
  %4222 = vmatprep.subr.bf16.mxu0 %v3122
  %4223 = vmatpush1.bf16.msra.mxu0 %v3121
  %4224 = vmatprep.subr.bf16.mxu0 %v3242
  %4225 = vmatpush2.bf16.msra.mxu0 %v3241
  %4226 = vmatprep.subr.bf16.mxu0 %v3234
  %4227 = vmatpush2.bf16.msra.mxu0 %v3233
  %4228 = vmatprep.subr.bf16.mxu0 %v3226
  %4229 = vmatpush2.bf16.msra.mxu0 %v3225
  %4230 = vmatprep.subr.bf16.mxu0 %v3218
  %4231 = vmatpush2.bf16.msra.mxu0 %v3217
  %4232 = vmatprep.subr.bf16.mxu0 %v3210
  %4233 = vmatpush2.bf16.msra.mxu0 %v3209
  %4234 = vmatprep.subr.bf16.mxu0 %v3202
  %4235 = vmatpush2.bf16.msra.mxu0 %v3201
  %4236 = vmatprep.subr.bf16.mxu0 %v3194
  %4237 = vmatpush2.bf16.msra.mxu0 %v3193
  %4238 = vmatprep.subr.bf16.mxu0 %v3186
  %4239 = vmatpush2.bf16.msra.mxu0 %v3185
  %4240 = vmatprep.mubr.bf16.mxu0 %v642
  %4241 = vmatmul.mubr.bf16.gmra.mxu0 %v641
  %v4242 = vpop.f32.mrf.mxu0
  %v4243 = vadd.f32 %v4202, %v4242
  %v4244 = vpop.f32.mrf.mxu0
  %v4245 = vadd.f32 %v4204, %v4244
  %v4246 = vpop.f32.mrf.mxu0
  %v4247 = vpop.f32.mrf.mxu0
  %4248 = vdwg.mxu0
  %4249 = vmatprep.subr.bf16.mxu0 %v2796
  %4250 = vmatpush1.bf16.msra.mxu0 %v2795
  %4251 = vmatprep.subr.bf16.mxu0 %v2788
  %4252 = vmatpush1.bf16.msra.mxu0 %v2787
  %4253 = vmatprep.subr.bf16.mxu0 %v2780
  %4254 = vmatpush1.bf16.msra.mxu0 %v2779
  %4255 = vmatprep.subr.bf16.mxu0 %v2772
  %4256 = vmatpush1.bf16.msra.mxu0 %v2771
  %4257 = vmatprep.subr.bf16.mxu0 %v2764
  %4258 = vmatpush1.bf16.msra.mxu0 %v2763
  %4259 = vmatprep.subr.bf16.mxu0 %v2756
  %4260 = vmatpush1.bf16.msra.mxu0 %v2755
  %4261 = vmatprep.subr.bf16.mxu0 %v2748
  %4262 = vmatpush1.bf16.msra.mxu0 %v2747
  %4263 = vmatprep.subr.bf16.mxu0 %v2740
  %4264 = vmatpush1.bf16.msra.mxu0 %v2739
  %4265 = vmatprep.subr.bf16.mxu0 %v2860
  %4266 = vmatpush2.bf16.msra.mxu0 %v2859
  %4267 = vmatprep.subr.bf16.mxu0 %v2852
  %4268 = vmatpush2.bf16.msra.mxu0 %v2851
  %4269 = vmatprep.subr.bf16.mxu0 %v2844
  %4270 = vmatpush2.bf16.msra.mxu0 %v2843
  %4271 = vmatprep.subr.bf16.mxu0 %v2836
  %4272 = vmatpush2.bf16.msra.mxu0 %v2835
  %4273 = vmatprep.subr.bf16.mxu0 %v2828
  %4274 = vmatpush2.bf16.msra.mxu0 %v2827
  %4275 = vmatprep.subr.bf16.mxu0 %v2820
  %4276 = vmatpush2.bf16.msra.mxu0 %v2819
  %4277 = vmatprep.subr.bf16.mxu0 %v2812
  %4278 = vmatpush2.bf16.msra.mxu0 %v2811
  %4279 = vmatprep.subr.bf16.mxu0 %v2804
  %4280 = vmatpush2.bf16.msra.mxu0 %v2803
  %4281 = vmatprep.mubr.bf16.mxu0 %v636
  %4282 = vmatmul.mubr.bf16.gmra.mxu0 %v635
  %v4283 = vpop.f32.mrf.mxu0
  %v4284 = vadd.f32 %v1184, %v4283
  %v4285 = vpop.f32.mrf.mxu0
  %v4286 = vadd.f32 %v1188, %v4285
  %v4287 = vpop.f32.mrf.mxu0
  %v4288 = vpop.f32.mrf.mxu0
  %4289 = vdwg.mxu0
  %4290 = vmatprep.subr.bf16.mxu0 %v2924
  %4291 = vmatpush1.bf16.msra.mxu0 %v2923
  %4292 = vmatprep.subr.bf16.mxu0 %v2916
  %4293 = vmatpush1.bf16.msra.mxu0 %v2915
  %4294 = vmatprep.subr.bf16.mxu0 %v2908
  %4295 = vmatpush1.bf16.msra.mxu0 %v2907
  %4296 = vmatprep.subr.bf16.mxu0 %v2900
  %4297 = vmatpush1.bf16.msra.mxu0 %v2899
  %4298 = vmatprep.subr.bf16.mxu0 %v2892
  %4299 = vmatpush1.bf16.msra.mxu0 %v2891
  %4300 = vmatprep.subr.bf16.mxu0 %v2884
  %4301 = vmatpush1.bf16.msra.mxu0 %v2883
  %4302 = vmatprep.subr.bf16.mxu0 %v2876
  %4303 = vmatpush1.bf16.msra.mxu0 %v2875
  %4304 = vmatprep.subr.bf16.mxu0 %v2868
  %4305 = vmatpush1.bf16.msra.mxu0 %v2867
  %4306 = vmatprep.subr.bf16.mxu0 %v2988
  %4307 = vmatpush2.bf16.msra.mxu0 %v2987
  %4308 = vmatprep.subr.bf16.mxu0 %v2980
  %4309 = vmatpush2.bf16.msra.mxu0 %v2979
  %4310 = vmatprep.subr.bf16.mxu0 %v2972
  %4311 = vmatpush2.bf16.msra.mxu0 %v2971
  %4312 = vmatprep.subr.bf16.mxu0 %v2964
  %4313 = vmatpush2.bf16.msra.mxu0 %v2963
  %4314 = vmatprep.subr.bf16.mxu0 %v2956
  %4315 = vmatpush2.bf16.msra.mxu0 %v2955
  %4316 = vmatprep.subr.bf16.mxu0 %v2948
  %4317 = vmatpush2.bf16.msra.mxu0 %v2947
  %4318 = vmatprep.subr.bf16.mxu0 %v2940
  %4319 = vmatpush2.bf16.msra.mxu0 %v2939
  %4320 = vmatprep.subr.bf16.mxu0 %v2932
  %4321 = vmatpush2.bf16.msra.mxu0 %v2931
  %4322 = vmatprep.mubr.bf16.mxu0 %v638
  %4323 = vmatmul.mubr.bf16.gmra.mxu0 %v637
  %v4324 = vpop.f32.mrf.mxu0
  %v4325 = vadd.f32 %v4284, %v4324
  %v4326 = vpop.f32.mrf.mxu0
  %v4327 = vadd.f32 %v4286, %v4326
  %v4328 = vpop.f32.mrf.mxu0
  %v4329 = vpop.f32.mrf.mxu0
  %4330 = vdwg.mxu0
  %4331 = vmatprep.subr.bf16.mxu0 %v3052
  %4332 = vmatpush1.bf16.msra.mxu0 %v3051
  %4333 = vmatprep.subr.bf16.mxu0 %v3044
  %4334 = vmatpush1.bf16.msra.mxu0 %v3043
  %4335 = vmatprep.subr.bf16.mxu0 %v3036
  %4336 = vmatpush1.bf16.msra.mxu0 %v3035
  %4337 = vmatprep.subr.bf16.mxu0 %v3028
  %4338 = vmatpush1.bf16.msra.mxu0 %v3027
  %4339 = vmatprep.subr.bf16.mxu0 %v3020
  %4340 = vmatpush1.bf16.msra.mxu0 %v3019
  %4341 = vmatprep.subr.bf16.mxu0 %v3012
  %4342 = vmatpush1.bf16.msra.mxu0 %v3011
  %4343 = vmatprep.subr.bf16.mxu0 %v3004
  %4344 = vmatpush1.bf16.msra.mxu0 %v3003
  %4345 = vmatprep.subr.bf16.mxu0 %v2996
  %4346 = vmatpush1.bf16.msra.mxu0 %v2995
  %4347 = vmatprep.subr.bf16.mxu0 %v3116
  %4348 = vmatpush2.bf16.msra.mxu0 %v3115
  %4349 = vmatprep.subr.bf16.mxu0 %v3108
  %4350 = vmatpush2.bf16.msra.mxu0 %v3107
  %4351 = vmatprep.subr.bf16.mxu0 %v3100
  %4352 = vmatpush2.bf16.msra.mxu0 %v3099
  %4353 = vmatprep.subr.bf16.mxu0 %v3092
  %4354 = vmatpush2.bf16.msra.mxu0 %v3091
  %4355 = vmatprep.subr.bf16.mxu0 %v3084
  %4356 = vmatpush2.bf16.msra.mxu0 %v3083
  %4357 = vmatprep.subr.bf16.mxu0 %v3076
  %4358 = vmatpush2.bf16.msra.mxu0 %v3075
  %4359 = vmatprep.subr.bf16.mxu0 %v3068
  %4360 = vmatpush2.bf16.msra.mxu0 %v3067
  %4361 = vmatprep.subr.bf16.mxu0 %v3060
  %4362 = vmatpush2.bf16.msra.mxu0 %v3059
  %4363 = vmatprep.mubr.bf16.mxu0 %v640
  %4364 = vmatmul.mubr.bf16.gmra.mxu0 %v639
  %v4365 = vpop.f32.mrf.mxu0
  %v4366 = vadd.f32 %v4325, %v4365
  %v4367 = vpop.f32.mrf.mxu0
  %v4368 = vadd.f32 %v4327, %v4367
  %v4369 = vpop.f32.mrf.mxu0
  %v4370 = vpop.f32.mrf.mxu0
  %4371 = vdwg.mxu0
  %4372 = vmatprep.subr.bf16.mxu0 %v3180
  %4373 = vmatpush1.bf16.msra.mxu0 %v3179
  %4374 = vmatprep.subr.bf16.mxu0 %v3172
  %4375 = vmatpush1.bf16.msra.mxu0 %v3171
  %4376 = vmatprep.subr.bf16.mxu0 %v3164
  %4377 = vmatpush1.bf16.msra.mxu0 %v3163
  %4378 = vmatprep.subr.bf16.mxu0 %v3156
  %4379 = vmatpush1.bf16.msra.mxu0 %v3155
  %4380 = vmatprep.subr.bf16.mxu0 %v3148
  %4381 = vmatpush1.bf16.msra.mxu0 %v3147
  %4382 = vmatprep.subr.bf16.mxu0 %v3140
  %4383 = vmatpush1.bf16.msra.mxu0 %v3139
  %4384 = vmatprep.subr.bf16.mxu0 %v3132
  %4385 = vmatpush1.bf16.msra.mxu0 %v3131
  %4386 = vmatprep.subr.bf16.mxu0 %v3124
  %4387 = vmatpush1.bf16.msra.mxu0 %v3123
  %4388 = vmatprep.subr.bf16.mxu0 %v3244
  %4389 = vmatpush2.bf16.msra.mxu0 %v3243
  %4390 = vmatprep.subr.bf16.mxu0 %v3236
  %4391 = vmatpush2.bf16.msra.mxu0 %v3235
  %4392 = vmatprep.subr.bf16.mxu0 %v3228
  %4393 = vmatpush2.bf16.msra.mxu0 %v3227
  %4394 = vmatprep.subr.bf16.mxu0 %v3220
  %4395 = vmatpush2.bf16.msra.mxu0 %v3219
  %4396 = vmatprep.subr.bf16.mxu0 %v3212
  %4397 = vmatpush2.bf16.msra.mxu0 %v3211
  %4398 = vmatprep.subr.bf16.mxu0 %v3204
  %4399 = vmatpush2.bf16.msra.mxu0 %v3203
  %4400 = vmatprep.subr.bf16.mxu0 %v3196
  %4401 = vmatpush2.bf16.msra.mxu0 %v3195
  %4402 = vmatprep.subr.bf16.mxu0 %v3188
  %4403 = vmatpush2.bf16.msra.mxu0 %v3187
  %4404 = vmatprep.mubr.bf16.mxu0 %v642
  %4405 = vmatmul.mubr.bf16.gmra.mxu0 %v641
  %v4406 = vpop.f32.mrf.mxu0
  %v4407 = vadd.f32 %v4366, %v4406
  %v4408 = vpop.f32.mrf.mxu0
  %v4409 = vadd.f32 %v4368, %v4408
  %v4410 = vpop.f32.mrf.mxu0
  %v4411 = vpop.f32.mrf.mxu0
  %4412 = vdwg.mxu0
  %v4413 = vmax.f32 %v3915, 0.0
  %v4414 = vmax.f32 %v3917, 0.0
  %v4415 = vmax.f32 %v4079, 0.0
  %v4416 = vmax.f32 %v4081, 0.0
  %v4417 = vmax.f32 %v4243, 0.0
  %v4418 = vmax.f32 %v4245, 0.0
  %v4419 = vmax.f32 %v4407, 0.0
  %v4420 = vmax.f32 %v4409, 0.0
  %v4421 = vpack.c.bf16 %v4413, %v4413
  %v4422 = vpack.c.bf16 %v4414, %v4414
  %v4423 = vpack.c.bf16 %v4415, %v4415
  %v4424 = vpack.c.bf16 %v4416, %v4416
  %v4425 = vpack.c.bf16 %v4417, %v4417
  %v4426 = vpack.c.bf16 %v4418, %v4418
  %v4427 = vpack.c.bf16 %v4419, %v4419
  %v4428 = vpack.c.bf16 %v4420, %v4420
  %v4429 = vld [vmem:[%s5] sm:$0xff]
  %v4430 = vld [vmem:[%s5 + $0x8] sm:$0xff]
  %v4431 = vld [vmem:[%s5 + $0x10] sm:$0xff]
  %v4432 = vld [vmem:[%s5 + $0x18] sm:$0xff]
  %v4433 = vld [vmem:[%s5 + $0x20] sm:$0xff]
  %v4434 = vld [vmem:[%s5 + $0x28] sm:$0xff]
  %v4435 = vld [vmem:[%s5 + $0x30] sm:$0xff]
  %v4436 = vld [vmem:[%s5 + $0x38] sm:$0xff]
  %v4437 = vld [vmem:[%s5 + $0x40] sm:$0xff]
  %v4438 = vld [vmem:[%s5 + $0x48] sm:$0xff]
  %v4439 = vld [vmem:[%s5 + $0x50] sm:$0xff]
  %v4440 = vld [vmem:[%s5 + $0x58] sm:$0xff]
  %v4441 = vld [vmem:[%s5 + $0x60] sm:$0xff]
  %v4442 = vld [vmem:[%s5 + $0x68] sm:$0xff]
  %v4443 = vld [vmem:[%s5 + $0x70] sm:$0xff]
  %v4444 = vld [vmem:[%s5 + $0x78] sm:$0xff]
  %v4445 = vld [vmem:[%s5 + $0x80] sm:$0xff]
  %v4446 = vld [vmem:[%s5 + $0x88] sm:$0xff]
  %v4447 = vld [vmem:[%s5 + $0x90] sm:$0xff]
  %v4448 = vld [vmem:[%s5 + $0x98] sm:$0xff]
  %v4449 = vld [vmem:[%s5 + $0xa0] sm:$0xff]
  %v4450 = vld [vmem:[%s5 + $0xa8] sm:$0xff]
  %v4451 = vld [vmem:[%s5 + $0xb0] sm:$0xff]
  %v4452 = vld [vmem:[%s5 + $0xb8] sm:$0xff]
  %v4453 = vld [vmem:[%s5 + $0xc0] sm:$0xff]
  %v4454 = vld [vmem:[%s5 + $0xc8] sm:$0xff]
  %v4455 = vld [vmem:[%s5 + $0xd0] sm:$0xff]
  %v4456 = vld [vmem:[%s5 + $0xd8] sm:$0xff]
  %v4457 = vld [vmem:[%s5 + $0xe0] sm:$0xff]
  %v4458 = vld [vmem:[%s5 + $0xe8] sm:$0xff]
  %v4459 = vld [vmem:[%s5 + $0xf0] sm:$0xff]
  %v4460 = vld [vmem:[%s5 + $0xf8] sm:$0xff]
  %v4461 = vld [vmem:[%s5 + $0x100] sm:$0xff]
  %v4462 = vld [vmem:[%s5 + $0x108] sm:$0xff]
  %v4463 = vld [vmem:[%s5 + $0x110] sm:$0xff]
  %v4464 = vld [vmem:[%s5 + $0x118] sm:$0xff]
  %v4465 = vld [vmem:[%s5 + $0x120] sm:$0xff]
  %v4466 = vld [vmem:[%s5 + $0x128] sm:$0xff]
  %v4467 = vld [vmem:[%s5 + $0x130] sm:$0xff]
  %v4468 = vld [vmem:[%s5 + $0x138] sm:$0xff]
  %v4469 = vld [vmem:[%s5 + $0x140] sm:$0xff]
  %v4470 = vld [vmem:[%s5 + $0x148] sm:$0xff]
  %v4471 = vld [vmem:[%s5 + $0x150] sm:$0xff]
  %v4472 = vld [vmem:[%s5 + $0x158] sm:$0xff]
  %v4473 = vld [vmem:[%s5 + $0x160] sm:$0xff]
  %v4474 = vld [vmem:[%s5 + $0x168] sm:$0xff]
  %v4475 = vld [vmem:[%s5 + $0x170] sm:$0xff]
  %v4476 = vld [vmem:[%s5 + $0x178] sm:$0xff]
  %v4477 = vld [vmem:[%s5 + $0x180] sm:$0xff]
  %v4478 = vld [vmem:[%s5 + $0x188] sm:$0xff]
  %v4479 = vld [vmem:[%s5 + $0x190] sm:$0xff]
  %v4480 = vld [vmem:[%s5 + $0x198] sm:$0xff]
  %v4481 = vld [vmem:[%s5 + $0x1a0] sm:$0xff]
  %v4482 = vld [vmem:[%s5 + $0x1a8] sm:$0xff]
  %v4483 = vld [vmem:[%s5 + $0x1b0] sm:$0xff]
  %v4484 = vld [vmem:[%s5 + $0x1b8] sm:$0xff]
  %v4485 = vld [vmem:[%s5 + $0x1c0] sm:$0xff]
  %v4486 = vld [vmem:[%s5 + $0x1c8] sm:$0xff]
  %v4487 = vld [vmem:[%s5 + $0x1d0] sm:$0xff]
  %v4488 = vld [vmem:[%s5 + $0x1d8] sm:$0xff]
  %v4489 = vld [vmem:[%s5 + $0x1e0] sm:$0xff]
  %v4490 = vld [vmem:[%s5 + $0x1e8] sm:$0xff]
  %v4491 = vld [vmem:[%s5 + $0x1f0] sm:$0xff]
  %v4492 = vld [vmem:[%s5 + $0x1f8] sm:$0xff]
  %v4493 = vld [vmem:[%s5 + $0x200] sm:$0xff]
  %v4494 = vld [vmem:[%s5 + $0x208] sm:$0xff]
  %v4495 = vld [vmem:[%s5 + $0x210] sm:$0xff]
  %v4496 = vld [vmem:[%s5 + $0x218] sm:$0xff]
  %v4497 = vld [vmem:[%s5 + $0x220] sm:$0xff]
  %v4498 = vld [vmem:[%s5 + $0x228] sm:$0xff]
  %v4499 = vld [vmem:[%s5 + $0x230] sm:$0xff]
  %v4500 = vld [vmem:[%s5 + $0x238] sm:$0xff]
  %v4501 = vld [vmem:[%s5 + $0x240] sm:$0xff]
  %v4502 = vld [vmem:[%s5 + $0x248] sm:$0xff]
  %v4503 = vld [vmem:[%s5 + $0x250] sm:$0xff]
  %v4504 = vld [vmem:[%s5 + $0x258] sm:$0xff]
  %v4505 = vld [vmem:[%s5 + $0x260] sm:$0xff]
  %v4506 = vld [vmem:[%s5 + $0x268] sm:$0xff]
  %v4507 = vld [vmem:[%s5 + $0x270] sm:$0xff]
  %v4508 = vld [vmem:[%s5 + $0x278] sm:$0xff]
  %v4509 = vld [vmem:[%s5 + $0x280] sm:$0xff]
  %v4510 = vld [vmem:[%s5 + $0x288] sm:$0xff]
  %v4511 = vld [vmem:[%s5 + $0x290] sm:$0xff]
  %v4512 = vld [vmem:[%s5 + $0x298] sm:$0xff]
  %v4513 = vld [vmem:[%s5 + $0x2a0] sm:$0xff]
  %v4514 = vld [vmem:[%s5 + $0x2a8] sm:$0xff]
  %v4515 = vld [vmem:[%s5 + $0x2b0] sm:$0xff]
  %v4516 = vld [vmem:[%s5 + $0x2b8] sm:$0xff]
  %v4517 = vld [vmem:[%s5 + $0x2c0] sm:$0xff]
  %v4518 = vld [vmem:[%s5 + $0x2c8] sm:$0xff]
  %v4519 = vld [vmem:[%s5 + $0x2d0] sm:$0xff]
  %v4520 = vld [vmem:[%s5 + $0x2d8] sm:$0xff]
  %v4521 = vld [vmem:[%s5 + $0x2e0] sm:$0xff]
  %v4522 = vld [vmem:[%s5 + $0x2e8] sm:$0xff]
  %v4523 = vld [vmem:[%s5 + $0x2f0] sm:$0xff]
  %v4524 = vld [vmem:[%s5 + $0x2f8] sm:$0xff]
  %v4525 = vld [vmem:[%s5 + $0x300] sm:$0xff]
  %v4526 = vld [vmem:[%s5 + $0x308] sm:$0xff]
  %v4527 = vld [vmem:[%s5 + $0x310] sm:$0xff]
  %v4528 = vld [vmem:[%s5 + $0x318] sm:$0xff]
  %v4529 = vld [vmem:[%s5 + $0x320] sm:$0xff]
  %v4530 = vld [vmem:[%s5 + $0x328] sm:$0xff]
  %v4531 = vld [vmem:[%s5 + $0x330] sm:$0xff]
  %v4532 = vld [vmem:[%s5 + $0x338] sm:$0xff]
  %v4533 = vld [vmem:[%s5 + $0x340] sm:$0xff]
  %v4534 = vld [vmem:[%s5 + $0x348] sm:$0xff]
  %v4535 = vld [vmem:[%s5 + $0x350] sm:$0xff]
  %v4536 = vld [vmem:[%s5 + $0x358] sm:$0xff]
  %v4537 = vld [vmem:[%s5 + $0x360] sm:$0xff]
  %v4538 = vld [vmem:[%s5 + $0x368] sm:$0xff]
  %v4539 = vld [vmem:[%s5 + $0x370] sm:$0xff]
  %v4540 = vld [vmem:[%s5 + $0x378] sm:$0xff]
  %v4541 = vld [vmem:[%s5 + $0x380] sm:$0xff]
  %v4542 = vld [vmem:[%s5 + $0x388] sm:$0xff]
  %v4543 = vld [vmem:[%s5 + $0x390] sm:$0xff]
  %v4544 = vld [vmem:[%s5 + $0x398] sm:$0xff]
  %v4545 = vld [vmem:[%s5 + $0x3a0] sm:$0xff]
  %v4546 = vld [vmem:[%s5 + $0x3a8] sm:$0xff]
  %v4547 = vld [vmem:[%s5 + $0x3b0] sm:$0xff]
  %v4548 = vld [vmem:[%s5 + $0x3b8] sm:$0xff]
  %v4549 = vld [vmem:[%s5 + $0x3c0] sm:$0xff]
  %v4550 = vld [vmem:[%s5 + $0x3c8] sm:$0xff]
  %v4551 = vld [vmem:[%s5 + $0x3d0] sm:$0xff]
  %v4552 = vld [vmem:[%s5 + $0x3d8] sm:$0xff]
  %v4553 = vld [vmem:[%s5 + $0x3e0] sm:$0xff]
  %v4554 = vld [vmem:[%s5 + $0x3e8] sm:$0xff]
  %v4555 = vld [vmem:[%s5 + $0x3f0] sm:$0xff]
  %v4556 = vld [vmem:[%s5 + $0x3f8] sm:$0xff]
  %v4557 = vld [vmem:[%s6] sm:$0x3]
  %v4559 = vlaneseq
  %v4560 = vshrl.u32 %v4559, 7
  %v4561 = vsub.s32 0, %v4560
  %v4562 = vrot.slane %v4557, %v4561
  %v4563 = vlaneseq
  %v4564 = vshrl.u32 %v4563, 7
  %v4565 = vsub.s32 1, %v4564
  %v4566 = vrot.slane %v4557, %v4565
  %v4697 = vunpack.c.l.b16 %v4429
  %v4698 = vunpack.c.h.b16 %v4429
  %v4699 = vunpack.c.l.b16 %v4430
  %v4700 = vunpack.c.h.b16 %v4430
  %v4701 = vunpack.c.l.b16 %v4431
  %v4702 = vunpack.c.h.b16 %v4431
  %v4703 = vunpack.c.l.b16 %v4432
  %v4704 = vunpack.c.h.b16 %v4432
  %v4705 = vunpack.c.l.b16 %v4433
  %v4706 = vunpack.c.h.b16 %v4433
  %v4707 = vunpack.c.l.b16 %v4434
  %v4708 = vunpack.c.h.b16 %v4434
  %v4709 = vunpack.c.l.b16 %v4435
  %v4710 = vunpack.c.h.b16 %v4435
  %v4711 = vunpack.c.l.b16 %v4436
  %v4712 = vunpack.c.h.b16 %v4436
  %v4713 = vunpack.c.l.b16 %v4437
  %v4714 = vunpack.c.h.b16 %v4437
  %v4715 = vunpack.c.l.b16 %v4438
  %v4716 = vunpack.c.h.b16 %v4438
  %v4717 = vunpack.c.l.b16 %v4439
  %v4718 = vunpack.c.h.b16 %v4439
  %v4719 = vunpack.c.l.b16 %v4440
  %v4720 = vunpack.c.h.b16 %v4440
  %v4721 = vunpack.c.l.b16 %v4441
  %v4722 = vunpack.c.h.b16 %v4441
  %v4723 = vunpack.c.l.b16 %v4442
  %v4724 = vunpack.c.h.b16 %v4442
  %v4725 = vunpack.c.l.b16 %v4443
  %v4726 = vunpack.c.h.b16 %v4443
  %v4727 = vunpack.c.l.b16 %v4444
  %v4728 = vunpack.c.h.b16 %v4444
  %v4729 = vunpack.c.l.b16 %v4445
  %v4730 = vunpack.c.h.b16 %v4445
  %v4731 = vunpack.c.l.b16 %v4446
  %v4732 = vunpack.c.h.b16 %v4446
  %v4733 = vunpack.c.l.b16 %v4447
  %v4734 = vunpack.c.h.b16 %v4447
  %v4735 = vunpack.c.l.b16 %v4448
  %v4736 = vunpack.c.h.b16 %v4448
  %v4737 = vunpack.c.l.b16 %v4449
  %v4738 = vunpack.c.h.b16 %v4449
  %v4739 = vunpack.c.l.b16 %v4450
  %v4740 = vunpack.c.h.b16 %v4450
  %v4741 = vunpack.c.l.b16 %v4451
  %v4742 = vunpack.c.h.b16 %v4451
  %v4743 = vunpack.c.l.b16 %v4452
  %v4744 = vunpack.c.h.b16 %v4452
  %v4745 = vunpack.c.l.b16 %v4453
  %v4746 = vunpack.c.h.b16 %v4453
  %v4747 = vunpack.c.l.b16 %v4454
  %v4748 = vunpack.c.h.b16 %v4454
  %v4749 = vunpack.c.l.b16 %v4455
  %v4750 = vunpack.c.h.b16 %v4455
  %v4751 = vunpack.c.l.b16 %v4456
  %v4752 = vunpack.c.h.b16 %v4456
  %v4753 = vunpack.c.l.b16 %v4457
  %v4754 = vunpack.c.h.b16 %v4457
  %v4755 = vunpack.c.l.b16 %v4458
  %v4756 = vunpack.c.h.b16 %v4458
  %v4757 = vunpack.c.l.b16 %v4459
  %v4758 = vunpack.c.h.b16 %v4459
  %v4759 = vunpack.c.l.b16 %v4460
  %v4760 = vunpack.c.h.b16 %v4460
  %v4761 = vunpack.c.l.b16 %v4461
  %v4762 = vunpack.c.h.b16 %v4461
  %v4763 = vunpack.c.l.b16 %v4462
  %v4764 = vunpack.c.h.b16 %v4462
  %v4765 = vunpack.c.l.b16 %v4463
  %v4766 = vunpack.c.h.b16 %v4463
  %v4767 = vunpack.c.l.b16 %v4464
  %v4768 = vunpack.c.h.b16 %v4464
  %v4769 = vunpack.c.l.b16 %v4465
  %v4770 = vunpack.c.h.b16 %v4465
  %v4771 = vunpack.c.l.b16 %v4466
  %v4772 = vunpack.c.h.b16 %v4466
  %v4773 = vunpack.c.l.b16 %v4467
  %v4774 = vunpack.c.h.b16 %v4467
  %v4775 = vunpack.c.l.b16 %v4468
  %v4776 = vunpack.c.h.b16 %v4468
  %v4777 = vunpack.c.l.b16 %v4469
  %v4778 = vunpack.c.h.b16 %v4469
  %v4779 = vunpack.c.l.b16 %v4470
  %v4780 = vunpack.c.h.b16 %v4470
  %v4781 = vunpack.c.l.b16 %v4471
  %v4782 = vunpack.c.h.b16 %v4471
  %v4783 = vunpack.c.l.b16 %v4472
  %v4784 = vunpack.c.h.b16 %v4472
  %v4785 = vunpack.c.l.b16 %v4473
  %v4786 = vunpack.c.h.b16 %v4473
  %v4787 = vunpack.c.l.b16 %v4474
  %v4788 = vunpack.c.h.b16 %v4474
  %v4789 = vunpack.c.l.b16 %v4475
  %v4790 = vunpack.c.h.b16 %v4475
  %v4791 = vunpack.c.l.b16 %v4476
  %v4792 = vunpack.c.h.b16 %v4476
  %v4793 = vunpack.c.l.b16 %v4477
  %v4794 = vunpack.c.h.b16 %v4477
  %v4795 = vunpack.c.l.b16 %v4478
  %v4796 = vunpack.c.h.b16 %v4478
  %v4797 = vunpack.c.l.b16 %v4479
  %v4798 = vunpack.c.h.b16 %v4479
  %v4799 = vunpack.c.l.b16 %v4480
  %v4800 = vunpack.c.h.b16 %v4480
  %v4801 = vunpack.c.l.b16 %v4481
  %v4802 = vunpack.c.h.b16 %v4481
  %v4803 = vunpack.c.l.b16 %v4482
  %v4804 = vunpack.c.h.b16 %v4482
  %v4805 = vunpack.c.l.b16 %v4483
  %v4806 = vunpack.c.h.b16 %v4483
  %v4807 = vunpack.c.l.b16 %v4484
  %v4808 = vunpack.c.h.b16 %v4484
  %v4809 = vunpack.c.l.b16 %v4485
  %v4810 = vunpack.c.h.b16 %v4485
  %v4811 = vunpack.c.l.b16 %v4486
  %v4812 = vunpack.c.h.b16 %v4486
  %v4813 = vunpack.c.l.b16 %v4487
  %v4814 = vunpack.c.h.b16 %v4487
  %v4815 = vunpack.c.l.b16 %v4488
  %v4816 = vunpack.c.h.b16 %v4488
  %v4817 = vunpack.c.l.b16 %v4489
  %v4818 = vunpack.c.h.b16 %v4489
  %v4819 = vunpack.c.l.b16 %v4490
  %v4820 = vunpack.c.h.b16 %v4490
  %v4821 = vunpack.c.l.b16 %v4491
  %v4822 = vunpack.c.h.b16 %v4491
  %v4823 = vunpack.c.l.b16 %v4492
  %v4824 = vunpack.c.h.b16 %v4492
  %v4825 = vunpack.c.l.b16 %v4493
  %v4826 = vunpack.c.h.b16 %v4493
  %v4827 = vunpack.c.l.b16 %v4494
  %v4828 = vunpack.c.h.b16 %v4494
  %v4829 = vunpack.c.l.b16 %v4495
  %v4830 = vunpack.c.h.b16 %v4495
  %v4831 = vunpack.c.l.b16 %v4496
  %v4832 = vunpack.c.h.b16 %v4496
  %v4833 = vunpack.c.l.b16 %v4497
  %v4834 = vunpack.c.h.b16 %v4497
  %v4835 = vunpack.c.l.b16 %v4498
  %v4836 = vunpack.c.h.b16 %v4498
  %v4837 = vunpack.c.l.b16 %v4499
  %v4838 = vunpack.c.h.b16 %v4499
  %v4839 = vunpack.c.l.b16 %v4500
  %v4840 = vunpack.c.h.b16 %v4500
  %v4841 = vunpack.c.l.b16 %v4501
  %v4842 = vunpack.c.h.b16 %v4501
  %v4843 = vunpack.c.l.b16 %v4502
  %v4844 = vunpack.c.h.b16 %v4502
  %v4845 = vunpack.c.l.b16 %v4503
  %v4846 = vunpack.c.h.b16 %v4503
  %v4847 = vunpack.c.l.b16 %v4504
  %v4848 = vunpack.c.h.b16 %v4504
  %v4849 = vunpack.c.l.b16 %v4505
  %v4850 = vunpack.c.h.b16 %v4505
  %v4851 = vunpack.c.l.b16 %v4506
  %v4852 = vunpack.c.h.b16 %v4506
  %v4853 = vunpack.c.l.b16 %v4507
  %v4854 = vunpack.c.h.b16 %v4507
  %v4855 = vunpack.c.l.b16 %v4508
  %v4856 = vunpack.c.h.b16 %v4508
  %v4857 = vunpack.c.l.b16 %v4509
  %v4858 = vunpack.c.h.b16 %v4509
  %v4859 = vunpack.c.l.b16 %v4510
  %v4860 = vunpack.c.h.b16 %v4510
  %v4861 = vunpack.c.l.b16 %v4511
  %v4862 = vunpack.c.h.b16 %v4511
  %v4863 = vunpack.c.l.b16 %v4512
  %v4864 = vunpack.c.h.b16 %v4512
  %v4865 = vunpack.c.l.b16 %v4513
  %v4866 = vunpack.c.h.b16 %v4513
  %v4867 = vunpack.c.l.b16 %v4514
  %v4868 = vunpack.c.h.b16 %v4514
  %v4869 = vunpack.c.l.b16 %v4515
  %v4870 = vunpack.c.h.b16 %v4515
  %v4871 = vunpack.c.l.b16 %v4516
  %v4872 = vunpack.c.h.b16 %v4516
  %v4873 = vunpack.c.l.b16 %v4517
  %v4874 = vunpack.c.h.b16 %v4517
  %v4875 = vunpack.c.l.b16 %v4518
  %v4876 = vunpack.c.h.b16 %v4518
  %v4877 = vunpack.c.l.b16 %v4519
  %v4878 = vunpack.c.h.b16 %v4519
  %v4879 = vunpack.c.l.b16 %v4520
  %v4880 = vunpack.c.h.b16 %v4520
  %v4881 = vunpack.c.l.b16 %v4521
  %v4882 = vunpack.c.h.b16 %v4521
  %v4883 = vunpack.c.l.b16 %v4522
  %v4884 = vunpack.c.h.b16 %v4522
  %v4885 = vunpack.c.l.b16 %v4523
  %v4886 = vunpack.c.h.b16 %v4523
  %v4887 = vunpack.c.l.b16 %v4524
  %v4888 = vunpack.c.h.b16 %v4524
  %v4889 = vunpack.c.l.b16 %v4525
  %v4890 = vunpack.c.h.b16 %v4525
  %v4891 = vunpack.c.l.b16 %v4526
  %v4892 = vunpack.c.h.b16 %v4526
  %v4893 = vunpack.c.l.b16 %v4527
  %v4894 = vunpack.c.h.b16 %v4527
  %v4895 = vunpack.c.l.b16 %v4528
  %v4896 = vunpack.c.h.b16 %v4528
  %v4897 = vunpack.c.l.b16 %v4529
  %v4898 = vunpack.c.h.b16 %v4529
  %v4899 = vunpack.c.l.b16 %v4530
  %v4900 = vunpack.c.h.b16 %v4530
  %v4901 = vunpack.c.l.b16 %v4531
  %v4902 = vunpack.c.h.b16 %v4531
  %v4903 = vunpack.c.l.b16 %v4532
  %v4904 = vunpack.c.h.b16 %v4532
  %v4905 = vunpack.c.l.b16 %v4533
  %v4906 = vunpack.c.h.b16 %v4533
  %v4907 = vunpack.c.l.b16 %v4534
  %v4908 = vunpack.c.h.b16 %v4534
  %v4909 = vunpack.c.l.b16 %v4535
  %v4910 = vunpack.c.h.b16 %v4535
  %v4911 = vunpack.c.l.b16 %v4536
  %v4912 = vunpack.c.h.b16 %v4536
  %v4913 = vunpack.c.l.b16 %v4537
  %v4914 = vunpack.c.h.b16 %v4537
  %v4915 = vunpack.c.l.b16 %v4538
  %v4916 = vunpack.c.h.b16 %v4538
  %v4917 = vunpack.c.l.b16 %v4539
  %v4918 = vunpack.c.h.b16 %v4539
  %v4919 = vunpack.c.l.b16 %v4540
  %v4920 = vunpack.c.h.b16 %v4540
  %v4921 = vunpack.c.l.b16 %v4541
  %v4922 = vunpack.c.h.b16 %v4541
  %v4923 = vunpack.c.l.b16 %v4542
  %v4924 = vunpack.c.h.b16 %v4542
  %v4925 = vunpack.c.l.b16 %v4543
  %v4926 = vunpack.c.h.b16 %v4543
  %v4927 = vunpack.c.l.b16 %v4544
  %v4928 = vunpack.c.h.b16 %v4544
  %v4929 = vunpack.c.l.b16 %v4545
  %v4930 = vunpack.c.h.b16 %v4545
  %v4931 = vunpack.c.l.b16 %v4546
  %v4932 = vunpack.c.h.b16 %v4546
  %v4933 = vunpack.c.l.b16 %v4547
  %v4934 = vunpack.c.h.b16 %v4547
  %v4935 = vunpack.c.l.b16 %v4548
  %v4936 = vunpack.c.h.b16 %v4548
  %v4937 = vunpack.c.l.b16 %v4549
  %v4938 = vunpack.c.h.b16 %v4549
  %v4939 = vunpack.c.l.b16 %v4550
  %v4940 = vunpack.c.h.b16 %v4550
  %v4941 = vunpack.c.l.b16 %v4551
  %v4942 = vunpack.c.h.b16 %v4551
  %v4943 = vunpack.c.l.b16 %v4552
  %v4944 = vunpack.c.h.b16 %v4552
  %v4945 = vunpack.c.l.b16 %v4553
  %v4946 = vunpack.c.h.b16 %v4553
  %v4947 = vunpack.c.l.b16 %v4554
  %v4948 = vunpack.c.h.b16 %v4554
  %v4949 = vunpack.c.l.b16 %v4555
  %v4950 = vunpack.c.h.b16 %v4555
  %v4951 = vunpack.c.l.b16 %v4556
  %v4952 = vunpack.c.h.b16 %v4556
  %v4953 = vpack.c.b16 %v4699, %v4697
  %v4954 = vpack.c.b16 %v4700, %v4698
  %v4955 = vpack.c.b16 %v4703, %v4701
  %v4956 = vpack.c.b16 %v4704, %v4702
  %v4957 = vpack.c.b16 %v4707, %v4705
  %v4958 = vpack.c.b16 %v4708, %v4706
  %v4959 = vpack.c.b16 %v4711, %v4709
  %v4960 = vpack.c.b16 %v4712, %v4710
  %v4961 = vpack.c.b16 %v4715, %v4713
  %v4962 = vpack.c.b16 %v4716, %v4714
  %v4963 = vpack.c.b16 %v4719, %v4717
  %v4964 = vpack.c.b16 %v4720, %v4718
  %v4965 = vpack.c.b16 %v4723, %v4721
  %v4966 = vpack.c.b16 %v4724, %v4722
  %v4967 = vpack.c.b16 %v4727, %v4725
  %v4968 = vpack.c.b16 %v4728, %v4726
  %v4969 = vpack.c.b16 %v4731, %v4729
  %v4970 = vpack.c.b16 %v4732, %v4730
  %v4971 = vpack.c.b16 %v4735, %v4733
  %v4972 = vpack.c.b16 %v4736, %v4734
  %v4973 = vpack.c.b16 %v4739, %v4737
  %v4974 = vpack.c.b16 %v4740, %v4738
  %v4975 = vpack.c.b16 %v4743, %v4741
  %v4976 = vpack.c.b16 %v4744, %v4742
  %v4977 = vpack.c.b16 %v4747, %v4745
  %v4978 = vpack.c.b16 %v4748, %v4746
  %v4979 = vpack.c.b16 %v4751, %v4749
  %v4980 = vpack.c.b16 %v4752, %v4750
  %v4981 = vpack.c.b16 %v4755, %v4753
  %v4982 = vpack.c.b16 %v4756, %v4754
  %v4983 = vpack.c.b16 %v4759, %v4757
  %v4984 = vpack.c.b16 %v4760, %v4758
  %v4985 = vpack.c.b16 %v4763, %v4761
  %v4986 = vpack.c.b16 %v4764, %v4762
  %v4987 = vpack.c.b16 %v4767, %v4765
  %v4988 = vpack.c.b16 %v4768, %v4766
  %v4989 = vpack.c.b16 %v4771, %v4769
  %v4990 = vpack.c.b16 %v4772, %v4770
  %v4991 = vpack.c.b16 %v4775, %v4773
  %v4992 = vpack.c.b16 %v4776, %v4774
  %v4993 = vpack.c.b16 %v4779, %v4777
  %v4994 = vpack.c.b16 %v4780, %v4778
  %v4995 = vpack.c.b16 %v4783, %v4781
  %v4996 = vpack.c.b16 %v4784, %v4782
  %v4997 = vpack.c.b16 %v4787, %v4785
  %v4998 = vpack.c.b16 %v4788, %v4786
  %v4999 = vpack.c.b16 %v4791, %v4789
  %v5000 = vpack.c.b16 %v4792, %v4790
  %v5001 = vpack.c.b16 %v4795, %v4793
  %v5002 = vpack.c.b16 %v4796, %v4794
  %v5003 = vpack.c.b16 %v4799, %v4797
  %v5004 = vpack.c.b16 %v4800, %v4798
  %v5005 = vpack.c.b16 %v4803, %v4801
  %v5006 = vpack.c.b16 %v4804, %v4802
  %v5007 = vpack.c.b16 %v4807, %v4805
  %v5008 = vpack.c.b16 %v4808, %v4806
  %v5009 = vpack.c.b16 %v4811, %v4809
  %v5010 = vpack.c.b16 %v4812, %v4810
  %v5011 = vpack.c.b16 %v4815, %v4813
  %v5012 = vpack.c.b16 %v4816, %v4814
  %v5013 = vpack.c.b16 %v4819, %v4817
  %v5014 = vpack.c.b16 %v4820, %v4818
  %v5015 = vpack.c.b16 %v4823, %v4821
  %v5016 = vpack.c.b16 %v4824, %v4822
  %v5017 = vpack.c.b16 %v4827, %v4825
  %v5018 = vpack.c.b16 %v4828, %v4826
  %v5019 = vpack.c.b16 %v4831, %v4829
  %v5020 = vpack.c.b16 %v4832, %v4830
  %v5021 = vpack.c.b16 %v4835, %v4833
  %v5022 = vpack.c.b16 %v4836, %v4834
  %v5023 = vpack.c.b16 %v4839, %v4837
  %v5024 = vpack.c.b16 %v4840, %v4838
  %v5025 = vpack.c.b16 %v4843, %v4841
  %v5026 = vpack.c.b16 %v4844, %v4842
  %v5027 = vpack.c.b16 %v4847, %v4845
  %v5028 = vpack.c.b16 %v4848, %v4846
  %v5029 = vpack.c.b16 %v4851, %v4849
  %v5030 = vpack.c.b16 %v4852, %v4850
  %v5031 = vpack.c.b16 %v4855, %v4853
  %v5032 = vpack.c.b16 %v4856, %v4854
  %v5033 = vpack.c.b16 %v4859, %v4857
  %v5034 = vpack.c.b16 %v4860, %v4858
  %v5035 = vpack.c.b16 %v4863, %v4861
  %v5036 = vpack.c.b16 %v4864, %v4862
  %v5037 = vpack.c.b16 %v4867, %v4865
  %v5038 = vpack.c.b16 %v4868, %v4866
  %v5039 = vpack.c.b16 %v4871, %v4869
  %v5040 = vpack.c.b16 %v4872, %v4870
  %v5041 = vpack.c.b16 %v4875, %v4873
  %v5042 = vpack.c.b16 %v4876, %v4874
  %v5043 = vpack.c.b16 %v4879, %v4877
  %v5044 = vpack.c.b16 %v4880, %v4878
  %v5045 = vpack.c.b16 %v4883, %v4881
  %v5046 = vpack.c.b16 %v4884, %v4882
  %v5047 = vpack.c.b16 %v4887, %v4885
  %v5048 = vpack.c.b16 %v4888, %v4886
  %v5049 = vpack.c.b16 %v4891, %v4889
  %v5050 = vpack.c.b16 %v4892, %v4890
  %v5051 = vpack.c.b16 %v4895, %v4893
  %v5052 = vpack.c.b16 %v4896, %v4894
  %v5053 = vpack.c.b16 %v4899, %v4897
  %v5054 = vpack.c.b16 %v4900, %v4898
  %v5055 = vpack.c.b16 %v4903, %v4901
  %v5056 = vpack.c.b16 %v4904, %v4902
  %v5057 = vpack.c.b16 %v4907, %v4905
  %v5058 = vpack.c.b16 %v4908, %v4906
  %v5059 = vpack.c.b16 %v4911, %v4909
  %v5060 = vpack.c.b16 %v4912, %v4910
  %v5061 = vpack.c.b16 %v4915, %v4913
  %v5062 = vpack.c.b16 %v4916, %v4914
  %v5063 = vpack.c.b16 %v4919, %v4917
  %v5064 = vpack.c.b16 %v4920, %v4918
  %v5065 = vpack.c.b16 %v4923, %v4921
  %v5066 = vpack.c.b16 %v4924, %v4922
  %v5067 = vpack.c.b16 %v4927, %v4925
  %v5068 = vpack.c.b16 %v4928, %v4926
  %v5069 = vpack.c.b16 %v4931, %v4929
  %v5070 = vpack.c.b16 %v4932, %v4930
  %v5071 = vpack.c.b16 %v4935, %v4933
  %v5072 = vpack.c.b16 %v4936, %v4934
  %v5073 = vpack.c.b16 %v4939, %v4937
  %v5074 = vpack.c.b16 %v4940, %v4938
  %v5075 = vpack.c.b16 %v4943, %v4941
  %v5076 = vpack.c.b16 %v4944, %v4942
  %v5077 = vpack.c.b16 %v4947, %v4945
  %v5078 = vpack.c.b16 %v4948, %v4946
  %v5079 = vpack.c.b16 %v4951, %v4949
  %v5080 = vpack.c.b16 %v4952, %v4950
  %5209 = vmatprep.subr.bf16.mxu0 %v4968
  %5210 = vmatpush1.bf16.msra.mxu0 %v4967
  %5211 = vmatprep.subr.bf16.mxu0 %v4966
  %5212 = vmatpush1.bf16.msra.mxu0 %v4965
  %5213 = vmatprep.subr.bf16.mxu0 %v4964
  %5214 = vmatpush1.bf16.msra.mxu0 %v4963
  %5215 = vmatprep.subr.bf16.mxu0 %v4962
  %5216 = vmatpush1.bf16.msra.mxu0 %v4961
  %5217 = vmatprep.subr.bf16.mxu0 %v4960
  %5218 = vmatpush1.bf16.msra.mxu0 %v4959
  %5219 = vmatprep.subr.bf16.mxu0 %v4958
  %5220 = vmatpush1.bf16.msra.mxu0 %v4957
  %5221 = vmatprep.subr.bf16.mxu0 %v4956
  %5222 = vmatpush1.bf16.msra.mxu0 %v4955
  %5223 = vmatprep.subr.bf16.mxu0 %v4954
  %5224 = vmatpush1.bf16.msra.mxu0 %v4953
  %5225 = vmatprep.subr.bf16.mxu0 %v4984
  %5226 = vmatpush2.bf16.msra.mxu0 %v4983
  %5227 = vmatprep.subr.bf16.mxu0 %v4982
  %5228 = vmatpush2.bf16.msra.mxu0 %v4981
  %5229 = vmatprep.subr.bf16.mxu0 %v4980
  %5230 = vmatpush2.bf16.msra.mxu0 %v4979
  %5231 = vmatprep.subr.bf16.mxu0 %v4978
  %5232 = vmatpush2.bf16.msra.mxu0 %v4977
  %5233 = vmatprep.subr.bf16.mxu0 %v4976
  %5234 = vmatpush2.bf16.msra.mxu0 %v4975
  %5235 = vmatprep.subr.bf16.mxu0 %v4974
  %5236 = vmatpush2.bf16.msra.mxu0 %v4973
  %5237 = vmatprep.subr.bf16.mxu0 %v4972
  %5238 = vmatpush2.bf16.msra.mxu0 %v4971
  %5239 = vmatprep.subr.bf16.mxu0 %v4970
  %5240 = vmatpush2.bf16.msra.mxu0 %v4969
  %5241 = vmatprep.mubr.bf16.mxu0 %v4422
  %5242 = vmatmul.mubr.bf16.gmra.mxu0 %v4421
  %v5243 = vpop.f32.mrf.mxu0
  %v5244 = vadd.f32 %v4562, %v5243
  %v5245 = vpop.f32.mrf.mxu0
  %v5246 = vadd.f32 %v4566, %v5245
  %v5247 = vpop.f32.mrf.mxu0
  %v5248 = vpop.f32.mrf.mxu0
  %5249 = vdwg.mxu0
  %5250 = vmatprep.subr.bf16.mxu0 %v5000
  %5251 = vmatpush1.bf16.msra.mxu0 %v4999
  %5252 = vmatprep.subr.bf16.mxu0 %v4998
  %5253 = vmatpush1.bf16.msra.mxu0 %v4997
  %5254 = vmatprep.subr.bf16.mxu0 %v4996
  %5255 = vmatpush1.bf16.msra.mxu0 %v4995
  %5256 = vmatprep.subr.bf16.mxu0 %v4994
  %5257 = vmatpush1.bf16.msra.mxu0 %v4993
  %5258 = vmatprep.subr.bf16.mxu0 %v4992
  %5259 = vmatpush1.bf16.msra.mxu0 %v4991
  %5260 = vmatprep.subr.bf16.mxu0 %v4990
  %5261 = vmatpush1.bf16.msra.mxu0 %v4989
  %5262 = vmatprep.subr.bf16.mxu0 %v4988
  %5263 = vmatpush1.bf16.msra.mxu0 %v4987
  %5264 = vmatprep.subr.bf16.mxu0 %v4986
  %5265 = vmatpush1.bf16.msra.mxu0 %v4985
  %5266 = vmatprep.subr.bf16.mxu0 %v5016
  %5267 = vmatpush2.bf16.msra.mxu0 %v5015
  %5268 = vmatprep.subr.bf16.mxu0 %v5014
  %5269 = vmatpush2.bf16.msra.mxu0 %v5013
  %5270 = vmatprep.subr.bf16.mxu0 %v5012
  %5271 = vmatpush2.bf16.msra.mxu0 %v5011
  %5272 = vmatprep.subr.bf16.mxu0 %v5010
  %5273 = vmatpush2.bf16.msra.mxu0 %v5009
  %5274 = vmatprep.subr.bf16.mxu0 %v5008
  %5275 = vmatpush2.bf16.msra.mxu0 %v5007
  %5276 = vmatprep.subr.bf16.mxu0 %v5006
  %5277 = vmatpush2.bf16.msra.mxu0 %v5005
  %5278 = vmatprep.subr.bf16.mxu0 %v5004
  %5279 = vmatpush2.bf16.msra.mxu0 %v5003
  %5280 = vmatprep.subr.bf16.mxu0 %v5002
  %5281 = vmatpush2.bf16.msra.mxu0 %v5001
  %5282 = vmatprep.mubr.bf16.mxu0 %v4424
  %5283 = vmatmul.mubr.bf16.gmra.mxu0 %v4423
  %v5284 = vpop.f32.mrf.mxu0
  %v5285 = vadd.f32 %v5244, %v5284
  %v5286 = vpop.f32.mrf.mxu0
  %v5287 = vadd.f32 %v5246, %v5286
  %v5288 = vpop.f32.mrf.mxu0
  %v5289 = vpop.f32.mrf.mxu0
  %5290 = vdwg.mxu0
  %5291 = vmatprep.subr.bf16.mxu0 %v5032
  %5292 = vmatpush1.bf16.msra.mxu0 %v5031
  %5293 = vmatprep.subr.bf16.mxu0 %v5030
  %5294 = vmatpush1.bf16.msra.mxu0 %v5029
  %5295 = vmatprep.subr.bf16.mxu0 %v5028
  %5296 = vmatpush1.bf16.msra.mxu0 %v5027
  %5297 = vmatprep.subr.bf16.mxu0 %v5026
  %5298 = vmatpush1.bf16.msra.mxu0 %v5025
  %5299 = vmatprep.subr.bf16.mxu0 %v5024
  %5300 = vmatpush1.bf16.msra.mxu0 %v5023
  %5301 = vmatprep.subr.bf16.mxu0 %v5022
  %5302 = vmatpush1.bf16.msra.mxu0 %v5021
  %5303 = vmatprep.subr.bf16.mxu0 %v5020
  %5304 = vmatpush1.bf16.msra.mxu0 %v5019
  %5305 = vmatprep.subr.bf16.mxu0 %v5018
  %5306 = vmatpush1.bf16.msra.mxu0 %v5017
  %5307 = vmatprep.subr.bf16.mxu0 %v5048
  %5308 = vmatpush2.bf16.msra.mxu0 %v5047
  %5309 = vmatprep.subr.bf16.mxu0 %v5046
  %5310 = vmatpush2.bf16.msra.mxu0 %v5045
  %5311 = vmatprep.subr.bf16.mxu0 %v5044
  %5312 = vmatpush2.bf16.msra.mxu0 %v5043
  %5313 = vmatprep.subr.bf16.mxu0 %v5042
  %5314 = vmatpush2.bf16.msra.mxu0 %v5041
  %5315 = vmatprep.subr.bf16.mxu0 %v5040
  %5316 = vmatpush2.bf16.msra.mxu0 %v5039
  %5317 = vmatprep.subr.bf16.mxu0 %v5038
  %5318 = vmatpush2.bf16.msra.mxu0 %v5037
  %5319 = vmatprep.subr.bf16.mxu0 %v5036
  %5320 = vmatpush2.bf16.msra.mxu0 %v5035
  %5321 = vmatprep.subr.bf16.mxu0 %v5034
  %5322 = vmatpush2.bf16.msra.mxu0 %v5033
  %5323 = vmatprep.mubr.bf16.mxu0 %v4426
  %5324 = vmatmul.mubr.bf16.gmra.mxu0 %v4425
  %v5325 = vpop.f32.mrf.mxu0
  %v5326 = vadd.f32 %v5285, %v5325
  %v5327 = vpop.f32.mrf.mxu0
  %v5328 = vadd.f32 %v5287, %v5327
  %v5329 = vpop.f32.mrf.mxu0
  %v5330 = vpop.f32.mrf.mxu0
  %5331 = vdwg.mxu0
  %5332 = vmatprep.subr.bf16.mxu0 %v5064
  %5333 = vmatpush1.bf16.msra.mxu0 %v5063
  %5334 = vmatprep.subr.bf16.mxu0 %v5062
  %5335 = vmatpush1.bf16.msra.mxu0 %v5061
  %5336 = vmatprep.subr.bf16.mxu0 %v5060
  %5337 = vmatpush1.bf16.msra.mxu0 %v5059
  %5338 = vmatprep.subr.bf16.mxu0 %v5058
  %5339 = vmatpush1.bf16.msra.mxu0 %v5057
  %5340 = vmatprep.subr.bf16.mxu0 %v5056
  %5341 = vmatpush1.bf16.msra.mxu0 %v5055
  %5342 = vmatprep.subr.bf16.mxu0 %v5054
  %5343 = vmatpush1.bf16.msra.mxu0 %v5053
  %5344 = vmatprep.subr.bf16.mxu0 %v5052
  %5345 = vmatpush1.bf16.msra.mxu0 %v5051
  %5346 = vmatprep.subr.bf16.mxu0 %v5050
  %5347 = vmatpush1.bf16.msra.mxu0 %v5049
  %5348 = vmatprep.subr.bf16.mxu0 %v5080
  %5349 = vmatpush2.bf16.msra.mxu0 %v5079
  %5350 = vmatprep.subr.bf16.mxu0 %v5078
  %5351 = vmatpush2.bf16.msra.mxu0 %v5077
  %5352 = vmatprep.subr.bf16.mxu0 %v5076
  %5353 = vmatpush2.bf16.msra.mxu0 %v5075
  %5354 = vmatprep.subr.bf16.mxu0 %v5074
  %5355 = vmatpush2.bf16.msra.mxu0 %v5073
  %5356 = vmatprep.subr.bf16.mxu0 %v5072
  %5357 = vmatpush2.bf16.msra.mxu0 %v5071
  %5358 = vmatprep.subr.bf16.mxu0 %v5070
  %5359 = vmatpush2.bf16.msra.mxu0 %v5069
  %5360 = vmatprep.subr.bf16.mxu0 %v5068
  %5361 = vmatpush2.bf16.msra.mxu0 %v5067
  %5362 = vmatprep.subr.bf16.mxu0 %v5066
  %5363 = vmatpush2.bf16.msra.mxu0 %v5065
  %5364 = vmatprep.mubr.bf16.mxu0 %v4428
  %5365 = vmatmul.mubr.bf16.gmra.mxu0 %v4427
  %v5366 = vpop.f32.mrf.mxu0
  %v5367 = vadd.f32 %v5326, %v5366
  %v5368 = vpop.f32.mrf.mxu0
  %v5369 = vadd.f32 %v5328, %v5368
  %v5370 = vpop.f32.mrf.mxu0
  %v5371 = vpop.f32.mrf.mxu0
  %5372 = vdwg.mxu0
  %v5373 = vmax.f32 %v5367, 0.0
  %v5374 = vmax.f32 %v5369, 0.0
  %v5375 = vld [vmem:[%s7] sm:$0x3]
  %v5377 = vlaneseq
  %v5378 = vshrl.u32 %v5377, 7
  %v5379 = vsub.s32 0, %v5378
  %v5380 = vrot.slane %v5375, %v5379
  %v5381 = vlaneseq
  %v5382 = vshrl.u32 %v5381, 7
  %v5383 = vsub.s32 1, %v5382
  %v5384 = vrot.slane %v5375, %v5383
  %v5387 = vmul.f32 %v5373, %v5380
  %v5388 = vmul.f32 %v5374, %v5384
  %v5389 = vadd.f32 %v5387, %v5388
  %5390 = vadd.xlane.f32.xlu0 %v5389
  %v5391 = vpop.xlane.xlu0 %5390
  %v5392 = vld [vmem:[#allocation2] sm:$0x1]
  %v5394 = vlaneseq
  %v5395 = vshrl.u32 %v5394, 7
  %v5396 = vsub.s32 0, %v5395
  %v5397 = vrot.slane %v5392, %v5396
  %v5399 = vadd.f32 %v5391, %v5397
  %vm5400 = vcmask 7168
  %5401 = vst.msk [vmem:[%s9] sm:$0xff] %vm5400, %v5399
  // Predicated region
  $region38: #{mdgt_forward.3} parent=0 // pred_check
    _
  $region39: #{mdgt_forward.3} parent=0 // pred_check_branch
    %5403 = sbr.rel (0) target = $region41
  $region40: #{mdgt_forward.3} parent=0 // pred_region
    _
  $region41: #{mdgt_forward.3} parent=0 // pred_fallthru
    _
  // Predicated region
  $region42: #{mdgt_forward.3} parent=0 // pred_check
    _
  $region43: #{mdgt_forward.3} parent=0 // pred_check_branch
    %5405 = sbr.rel (0) target = $region45
  $region44: #{mdgt_forward.3} parent=0 // pred_region
    _
  $region45: #{mdgt_forward.3} parent=0 // pred_fallthru
    _

</llo_original>
